<compile_context>
chip_gen: v7x
topology: tpu7x:2x2x1
jax: 0.10.0
libtpu: 0.0.40
codegen_flags: <defaults>
</compile_context>

<pallas_src>
import jax
import jax.numpy as jnp
from jax.experimental import pallas as pl
from jax.experimental.pallas import tpu as pltpu

EPS = 1e-5


# ----------------------------------------------------------------------------
# In-kernel helpers
# ----------------------------------------------------------------------------
def _conv3x3_taps(xp, w_ref, H, W):
    """3x3 'same' conv of one zero-bordered (H+2, W+2, Cin) bf16 image.

    xp    : ref (input block or scratch) of shape (H+2, W+2, Cin), bf16.
    w_ref : ref of shape (9, Cin, Cout), bf16, tap index k = dy*3 + dx.
    Returns the (H*W, Cout) f32 accumulator (9 direct MXU matmuls).
    """
    Cin = xp.shape[-1]
    Cout = w_ref.shape[-1]
    acc = jnp.zeros((H * W, Cout), jnp.float32)
    for k in range(9):
        dy, dx = divmod(k, 3)
        tap = xp[dy:dy + H, dx:dx + W, :].reshape(H * W, Cin)        # bf16
        acc = acc + jnp.dot(tap, w_ref[k], preferred_element_type=jnp.float32)
    return acc


def _write_stats(st_ref, acc):
    """Per-image sum and sum-of-squares of the f32 conv accumulator."""
    st_ref[0:1, :] = jnp.sum(acc, axis=0, keepdims=True)
    st_ref[1:2, :] = jnp.sum(acc * acc, axis=0, keepdims=True)


# ----------------------------------------------------------------------------
# Pass 1: y1 = conv1(x_padded), plus per-image BN1 statistics
# ----------------------------------------------------------------------------
def _conv1_kernel(xp_ref, w_ref, y_ref, st_ref):
    H = xp_ref.shape[0] - 2
    W = xp_ref.shape[1] - 2
    acc = _conv3x3_taps(xp_ref, w_ref, H, W)           # (H*W, Cout) f32
    y_ref[...] = acc.astype(y_ref.dtype)               # bf16, no reshape
    _write_stats(st_ref, acc)


# ----------------------------------------------------------------------------
# Pass 2: y2 = conv2(relu(bn1(y1))), plus per-image BN2 statistics
# ----------------------------------------------------------------------------
def _conv2_kernel(y1_ref, w_ref, sc_ref, sh_ref, y2_ref, st_ref, xpad):
    Hp, Wp, C = xpad.shape
    H, W = Hp - 2, Wp - 2

    # Zero the 1-pixel border every step (4 thin strips); see header comment
    # on why a program_id==0 guard is not safe under core-sharded "parallel".
    zrow = jnp.zeros((1, Wp, C), xpad.dtype)
    zcol = jnp.zeros((Hp, 1, C), xpad.dtype)
    xpad[0:1, :, :] = zrow
    xpad[Hp - 1:Hp, :, :] = zrow
    xpad[:, 0:1, :] = zcol
    xpad[:, Wp - 1:Wp, :] = zcol

    # BN1 + ReLU in f32, write the interior once as bf16.
    h1 = jnp.maximum(y1_ref[...].astype(jnp.float32) * sc_ref[...] + sh_ref[...], 0.0)
    xpad[1:H + 1, 1:W + 1, :] = h1.astype(xpad.dtype).reshape(H, W, C)

    acc = _conv3x3_taps(xpad, w_ref, H, W)              # (H*W, Cout) f32
    y2_ref[...] = acc.astype(y2_ref.dtype)
    _write_stats(st_ref, acc)


# ----------------------------------------------------------------------------
# Pass 3: out = relu(bn2(y2) + x), flattened lane-dense view
# ----------------------------------------------------------------------------
def _bn_add_relu_kernel(y2_ref, x_ref, sc_ref, sh_ref, o_ref):
    o_ref[...] = jnp.maximum(
        y2_ref[...].astype(jnp.float32) * sc_ref[...] + sh_ref[...]
        + x_ref[...].astype(jnp.float32), 0.0)


# ----------------------------------------------------------------------------
# Wrapper helpers
# ----------------------------------------------------------------------------
def _prep_weight(w_oihw):
    """OIHW (Cout, Cin, 3, 3) -> (9, Cin, Cout) bf16, tap index k = dy*3 + dx."""
    Cout, Cin, kh, kw = w_oihw.shape
    return jnp.transpose(w_oihw, (2, 3, 1, 0)).reshape(kh * kw, Cin, Cout).astype(jnp.bfloat16)


def _finalize_bn(stats, gamma, beta, count):
    """Fold global batch mean/var and gamma/beta into per-channel scale/shift."""
    s = jnp.sum(stats[:, 0, :], axis=0)
    ss = jnp.sum(stats[:, 1, :], axis=0)
    mean = s / count
    var = jnp.maximum(ss / count - mean * mean, 0.0)    # biased variance (PyTorch norm)
    scale = gamma.astype(jnp.float32) * jax.lax.rsqrt(var + EPS)
    shift = beta.astype(jnp.float32) - mean * scale
    return scale.reshape(1, -1), shift.reshape(1, -1)


def _padded_bytes(shape, dtype):
    """VMEM footprint of one buffer after (sublane, lane) tile padding."""
    it = jnp.dtype(dtype).itemsize
    dims = [int(d) for d in shape]
    while len(dims) < 2:
        dims.insert(0, 1)
    sub = 8 * max(1, 4 // it)                 # 8 for f32, 16 for bf16
    lead = 1
    for d in dims[:-2]:
        lead *= d
    rows = -(-dims[-2] // sub) * sub
    cols = -(-dims[-1] // 128) * 128
    return lead * rows * cols * it


def _cparams(block_bytes, scratch_bytes=0):
    # Pipeline double-buffers every block; add headroom and stay well under
    # v7x's 64 MiB physical VMEM.
    est = 2 * block_bytes + scratch_bytes
    limit = int(min(max(2 * est, 32 << 20), 64 << 20))
    return pltpu.CompilerParams(dimension_semantics=("parallel",),
                                vmem_limit_bytes=limit)


def _pass3_layout(total, C, max_lane=1024):
    """Pick a (rows, lane) reshape for the flattened elementwise pass.

    lane is a multiple of C (the per-channel scale/shift pattern then depends
    on the lane index only) and, when possible, a multiple of 128 (lane-dense
    stores).  Block rows are a multiple of 8 or span all rows.
    """
    nhw = total // C
    lane = C
    lane_dense = None
    m = 1
    while m * C <= max_lane:
        if nhw % m == 0:
            cand = m * C
            lane = cand
            if cand % 128 == 0:
                lane_dense = cand
        m += 1
    lane = lane_dense if lane_dense is not None else lane
    rows = total // lane
    tb = rows
    for cand in (512, 256, 128, 64, 32, 16, 8):
        if rows % cand == 0:
            tb = cand
            break
    return lane, rows, tb


# ----------------------------------------------------------------------------
# Forward pass
# ----------------------------------------------------------------------------
def basic_res_block_2d(x_nchw, w1_oihw, w2_oihw, g1, b1, g2, b2):
    """x_nchw: (N, C, H, W); conv weights in PyTorch OIHW layout."""
    N, C, H, W = x_nchw.shape
    Cout = w1_oihw.shape[0]
    assert Cout == C, "stride=1 / downsample=None path requires in==out channels"
    HW = H * W

    # bf16 activations on the HBM side (the MXU consumes bf16 anyway).
    x = jnp.transpose(x_nchw, (0, 2, 3, 1)).astype(jnp.bfloat16)        # NHWC
    xp = jnp.pad(x, ((0, 0), (1, 1), (1, 1), (0, 0)))                   # zero halo
    w1t = _prep_weight(w1_oihw)                                          # (9, C, C)
    w2t = _prep_weight(w2_oihw)

    xp_spec = pl.BlockSpec((None, H + 2, W + 2, C), lambda i: (i, 0, 0, 0))
    y_spec = pl.BlockSpec((None, HW, C), lambda i: (i, 0, 0))
    st_spec = pl.BlockSpec((None, 2, C), lambda i: (i, 0, 0))
    w_spec = pl.BlockSpec((9, C, C), lambda i: (0, 0, 0))
    vec_spec = pl.BlockSpec((1, C), lambda i: (0, 0))

    y_bytes = _padded_bytes((HW, C), jnp.bfloat16)
    w_bytes = _padded_bytes((9, C, C), jnp.bfloat16)
    st_bytes = _padded_bytes((2, C), jnp.float32)
    xpad_bytes = _padded_bytes((H + 2, W + 2, C), jnp.bfloat16)
    vec_bytes = _padded_bytes((1, C), jnp.float32)

    # ---- pass 1: conv1 (pre-padded input) + bn1 statistics ----
    y1, st1 = pl.pallas_call(
        _conv1_kernel,
        out_shape=(jax.ShapeDtypeStruct((N, HW, C), jnp.bfloat16),
                   jax.ShapeDtypeStruct((N, 2, C), jnp.float32)),
        grid=(N,),
        in_specs=[xp_spec, w_spec],
        out_specs=(y_spec, st_spec),
        compiler_params=_cparams(xpad_bytes + w_bytes + y_bytes + st_bytes),
    )(xp, w1t)
    sc1, sh1 = _finalize_bn(st1, g1, b1, N * HW)

    # ---- pass 2: bn1 -> relu -> conv2 + bn2 statistics ----
    y2, st2 = pl.pallas_call(
        _conv2_kernel,
        out_shape=(jax.ShapeDtypeStruct((N, HW, C), jnp.bfloat16),
                   jax.ShapeDtypeStruct((N, 2, C), jnp.float32)),
        grid=(N,),
        in_specs=[y_spec, w_spec, vec_spec, vec_spec],
        out_specs=(y_spec, st_spec),
        scratch_shapes=[pltpu.VMEM((H + 2, W + 2, C), jnp.bfloat16)],
        compiler_params=_cparams(2 * y_bytes + w_bytes + st_bytes + 2 * vec_bytes,
                                 scratch_bytes=xpad_bytes),
    )(y1, w2t, sc1, sh1)
    sc2, sh2 = _finalize_bn(st2, g2, b2, N * HW)

    # ---- pass 3: bn2 + residual add + relu on a lane-dense flattened view ----
    total = N * HW * C
    lane, rows, tb = _pass3_layout(total, C)
    y2f = y2.reshape(rows, lane)
    xf = x.reshape(rows, lane)
    sc2_row = jnp.tile(sc2.reshape(-1), lane // C).reshape(1, lane)
    sh2_row = jnp.tile(sh2.reshape(-1), lane // C).reshape(1, lane)

    row_spec = pl.BlockSpec((tb, lane), lambda i: (i, 0))
    brow_spec = pl.BlockSpec((1, lane), lambda i: (0, 0))
    tile_bytes = (2 * _padded_bytes((tb, lane), jnp.bfloat16)
                  + _padded_bytes((tb, lane), jnp.float32)
                  + 2 * _padded_bytes((1, lane), jnp.float32))

    out_flat = pl.pallas_call(
        _bn_add_relu_kernel,
        out_shape=jax.ShapeDtypeStruct((rows, lane), jnp.float32),
        grid=(rows // tb,),
        in_specs=[row_spec, row_spec, brow_spec, brow_spec],
        out_specs=row_spec,
        compiler_params=_cparams(tile_bytes),
    )(y2f, xf, sc2_row, sh2_row)

    out_nhwc = out_flat.reshape(N, H, W, C)
    return jnp.transpose(out_nhwc, (0, 3, 1, 2))        # back to NCHW


# ----------------------- pure-JAX reference for verification -----------------------
def ref_forward(x, w1, w2, g1, b1, g2, b2):
    """Mirrors the kernel's precision choreography: bf16 conv operands with f32
    accumulation, bf16 activations in HBM, BN statistics from the f32 accumulator."""
    f32, bf16 = jnp.float32, jnp.bfloat16

    def conv(xx, w):
        return jax.lax.conv_general_dilated(
            xx.astype(bf16), w.astype(bf16),
            window_strides=(1, 1), padding=((1, 1), (1, 1)),
            dimension_numbers=("NCHW", "OIHW", "NCHW"),
            preferred_element_type=f32)

    def bn_scale_shift(acc, g, b):
        mean = acc.mean(axis=(0, 2, 3), keepdims=True)
        var = ((acc - mean) ** 2).mean(axis=(0, 2, 3), keepdims=True)
        scale = g.reshape(1, -1, 1, 1).astype(f32) * jax.lax.rsqrt(var + EPS)
        shift = b.reshape(1, -1, 1, 1).astype(f32) - mean * scale
        return scale, shift

    xb = x.astype(bf16).astype(f32)                      # x held in HBM as bf16
    y1 = conv(xb, w1)                                    # f32 accumulator
    s1, t1 = bn_scale_shift(y1, g1, b1)
    h1 = jnp.maximum(y1.astype(bf16).astype(f32) * s1 + t1, 0.0)
    y2 = conv(h1, w2)
    s2, t2 = bn_scale_shift(y2, g2, b2)
    out = y2.astype(bf16).astype(f32) * s2 + t2 + xb
    return jnp.maximum(out, 0.0)


if __name__ == "__main__":
    key = jax.random.PRNGKey(0)
    k_x, k_w1, k_w2, k_g1, k_b1, k_g2, k_b2 = jax.random.split(key, 7)

    N, C, H, W = 2, 4, 16, 16   # in_channels == out_channels, stride=1, downsample=None
    x = jax.random.normal(k_x, (N, C, H, W), jnp.float32)
    w1 = 0.2 * jax.random.normal(k_w1, (C, C, 3, 3), jnp.float32)   # conv1 weight (OIHW)
    w2 = 0.2 * jax.random.normal(k_w2, (C, C, 3, 3), jnp.float32)   # conv2 weight (OIHW)
    g1 = 1.0 + 0.1 * jax.random.normal(k_g1, (C,), jnp.float32)     # bn1 gamma
    b1 = 0.1 * jax.random.normal(k_b1, (C,), jnp.float32)           # bn1 beta
    g2 = 1.0 + 0.1 * jax.random.normal(k_g2, (C,), jnp.float32)     # bn2 gamma
    b2 = 0.1 * jax.random.normal(k_b2, (C,), jnp.float32)           # bn2 beta

    fwd = jax.jit(basic_res_block_2d)
    out = jax.block_until_ready(fwd(x, w1, w2, g1, b1, g2, b2))
    assert out.shape == (N, C, H, W)

    ref = jax.block_until_ready(ref_forward(x, w1, w2, g1, b1, g2, b2))
    max_err = float(jnp.max(jnp.abs(out - ref)))
    assert jnp.allclose(out, ref, atol=3e-2, rtol=3e-2), f"max_err={max_err}"

    print("KERNEL_OK")
</pallas_src>

<mosaic_0001>
module attributes {stable_mosaic.version = 11 : i64} {
  func.func @_conv1_kernel(%arg0: i32, %arg1: memref<1x18x18x4xbf16, #tpu.memory_space<vmem>>, %arg2: memref<9x4x4xbf16, #tpu.memory_space<vmem>>, %arg3: memref<1x256x4xbf16, #tpu.memory_space<vmem>>, %arg4: memref<1x2x4xf32, #tpu.memory_space<vmem>>) attributes {dimension_semantics = [#tpu.dimension_semantics<parallel>], iteration_bounds = array<i64: 2>, scalar_prefetch = 0 : i64, scratch_operands = 0 : i64, tpu.core_type = #tpu.core_type<tc>, window_params = [{transform_indices = @transform_0, window_bounds = array<i64: 1, 18, 18, 4>}, {pipeline_mode = #tpu.pipeline_mode<synchronous>, transform_indices = @transform_1, window_bounds = array<i64: 9, 4, 4>}, {transform_indices = @transform_2, window_bounds = array<i64: 1, 256, 4>}, {transform_indices = @transform_3, window_bounds = array<i64: 1, 2, 4>}]} {
    %cst = arith.constant 0.000000e+00 : f32
    %0 = vector.broadcast %cst : f32 to vector<256x4xf32>
    %c0 = arith.constant 0 : index
    %c0_0 = arith.constant 0 : index
    %c0_1 = arith.constant 0 : index
    %c0_2 = arith.constant 0 : index
    %1 = vector.load %arg1[%c0, %c0_0, %c0_1, %c0_2] : memref<1x18x18x4xbf16, #tpu.memory_space<vmem>>, vector<1x16x16x4xbf16>
    %2 = vector.shape_cast %1 : vector<1x16x16x4xbf16> to vector<16x16x4xbf16>
    %3 = vector.shape_cast %2 : vector<16x16x4xbf16> to vector<256x4xbf16>
    %c0_3 = arith.constant 0 : index
    %c0_4 = arith.constant 0 : index
    %c0_5 = arith.constant 0 : index
    %4 = vector.load %arg2[%c0_3, %c0_4, %c0_5] : memref<9x4x4xbf16, #tpu.memory_space<vmem>>, vector<1x4x4xbf16>
    %5 = vector.shape_cast %4 : vector<1x4x4xbf16> to vector<4x4xbf16>
    %cst_6 = arith.constant dense<0.000000e+00> : vector<256x4xf32>
    %6 = tpu.matmul %3, %5, %cst_6 {dimension_numbers = #tpu.dot_dimension_numbers<[1], [0], [0], [1], [0, 0, 1, 1], [], []>} : vector<256x4xbf16>, vector<4x4xbf16>, vector<256x4xf32> -> vector<256x4xf32>
    %7 = arith.addf %0, %6 : vector<256x4xf32>
    %c0_7 = arith.constant 0 : index
    %c0_8 = arith.constant 0 : index
    %c1 = arith.constant 1 : index
    %c0_9 = arith.constant 0 : index
    %8 = vector.load %arg1[%c0_7, %c0_8, %c1, %c0_9] : memref<1x18x18x4xbf16, #tpu.memory_space<vmem>>, vector<1x16x16x4xbf16>
    %9 = vector.shape_cast %8 : vector<1x16x16x4xbf16> to vector<16x16x4xbf16>
    %10 = vector.shape_cast %9 : vector<16x16x4xbf16> to vector<256x4xbf16>
    %c1_10 = arith.constant 1 : index
    %c0_11 = arith.constant 0 : index
    %c0_12 = arith.constant 0 : index
    %11 = vector.load %arg2[%c1_10, %c0_11, %c0_12] : memref<9x4x4xbf16, #tpu.memory_space<vmem>>, vector<1x4x4xbf16>
    %12 = vector.shape_cast %11 : vector<1x4x4xbf16> to vector<4x4xbf16>
    %cst_13 = arith.constant dense<0.000000e+00> : vector<256x4xf32>
    %13 = tpu.matmul %10, %12, %cst_13 {dimension_numbers = #tpu.dot_dimension_numbers<[1], [0], [0], [1], [0, 0, 1, 1], [], []>} : vector<256x4xbf16>, vector<4x4xbf16>, vector<256x4xf32> -> vector<256x4xf32>
    %14 = arith.addf %7, %13 : vector<256x4xf32>
    %c0_14 = arith.constant 0 : index
    %c0_15 = arith.constant 0 : index
    %c2 = arith.constant 2 : index
    %c0_16 = arith.constant 0 : index
    %15 = vector.load %arg1[%c0_14, %c0_15, %c2, %c0_16] : memref<1x18x18x4xbf16, #tpu.memory_space<vmem>>, vector<1x16x16x4xbf16>
    %16 = vector.shape_cast %15 : vector<1x16x16x4xbf16> to vector<16x16x4xbf16>
    %17 = vector.shape_cast %16 : vector<16x16x4xbf16> to vector<256x4xbf16>
    %c2_17 = arith.constant 2 : index
    %c0_18 = arith.constant 0 : index
    %c0_19 = arith.constant 0 : index
    %18 = vector.load %arg2[%c2_17, %c0_18, %c0_19] : memref<9x4x4xbf16, #tpu.memory_space<vmem>>, vector<1x4x4xbf16>
    %19 = vector.shape_cast %18 : vector<1x4x4xbf16> to vector<4x4xbf16>
    %cst_20 = arith.constant dense<0.000000e+00> : vector<256x4xf32>
    %20 = tpu.matmul %17, %19, %cst_20 {dimension_numbers = #tpu.dot_dimension_numbers<[1], [0], [0], [1], [0, 0, 1, 1], [], []>} : vector<256x4xbf16>, vector<4x4xbf16>, vector<256x4xf32> -> vector<256x4xf32>
    %21 = arith.addf %14, %20 : vector<256x4xf32>
    %c0_21 = arith.constant 0 : index
    %c1_22 = arith.constant 1 : index
    %c0_23 = arith.constant 0 : index
    %c0_24 = arith.constant 0 : index
    %22 = vector.load %arg1[%c0_21, %c1_22, %c0_23, %c0_24] : memref<1x18x18x4xbf16, #tpu.memory_space<vmem>>, vector<1x16x16x4xbf16>
    %23 = vector.shape_cast %22 : vector<1x16x16x4xbf16> to vector<16x16x4xbf16>
    %24 = vector.shape_cast %23 : vector<16x16x4xbf16> to vector<256x4xbf16>
    %c3 = arith.constant 3 : index
    %c0_25 = arith.constant 0 : index
    %c0_26 = arith.constant 0 : index
    %25 = vector.load %arg2[%c3, %c0_25, %c0_26] : memref<9x4x4xbf16, #tpu.memory_space<vmem>>, vector<1x4x4xbf16>
    %26 = vector.shape_cast %25 : vector<1x4x4xbf16> to vector<4x4xbf16>
    %cst_27 = arith.constant dense<0.000000e+00> : vector<256x4xf32>
    %27 = tpu.matmul %24, %26, %cst_27 {dimension_numbers = #tpu.dot_dimension_numbers<[1], [0], [0], [1], [0, 0, 1, 1], [], []>} : vector<256x4xbf16>, vector<4x4xbf16>, vector<256x4xf32> -> vector<256x4xf32>
    %28 = arith.addf %21, %27 : vector<256x4xf32>
    %c0_28 = arith.constant 0 : index
    %c1_29 = arith.constant 1 : index
    %c1_30 = arith.constant 1 : index
    %c0_31 = arith.constant 0 : index
    %29 = vector.load %arg1[%c0_28, %c1_29, %c1_30, %c0_31] : memref<1x18x18x4xbf16, #tpu.memory_space<vmem>>, vector<1x16x16x4xbf16>
    %30 = vector.shape_cast %29 : vector<1x16x16x4xbf16> to vector<16x16x4xbf16>
    %31 = vector.shape_cast %30 : vector<16x16x4xbf16> to vector<256x4xbf16>
    %c4 = arith.constant 4 : index
    %c0_32 = arith.constant 0 : index
    %c0_33 = arith.constant 0 : index
    %32 = vector.load %arg2[%c4, %c0_32, %c0_33] : memref<9x4x4xbf16, #tpu.memory_space<vmem>>, vector<1x4x4xbf16>
    %33 = vector.shape_cast %32 : vector<1x4x4xbf16> to vector<4x4xbf16>
    %cst_34 = arith.constant dense<0.000000e+00> : vector<256x4xf32>
    %34 = tpu.matmul %31, %33, %cst_34 {dimension_numbers = #tpu.dot_dimension_numbers<[1], [0], [0], [1], [0, 0, 1, 1], [], []>} : vector<256x4xbf16>, vector<4x4xbf16>, vector<256x4xf32> -> vector<256x4xf32>
    %35 = arith.addf %28, %34 : vector<256x4xf32>
    %c0_35 = arith.constant 0 : index
    %c1_36 = arith.constant 1 : index
    %c2_37 = arith.constant 2 : index
    %c0_38 = arith.constant 0 : index
    %36 = vector.load %arg1[%c0_35, %c1_36, %c2_37, %c0_38] : memref<1x18x18x4xbf16, #tpu.memory_space<vmem>>, vector<1x16x16x4xbf16>
    %37 = vector.shape_cast %36 : vector<1x16x16x4xbf16> to vector<16x16x4xbf16>
    %38 = vector.shape_cast %37 : vector<16x16x4xbf16> to vector<256x4xbf16>
    %c5 = arith.constant 5 : index
    %c0_39 = arith.constant 0 : index
    %c0_40 = arith.constant 0 : index
    %39 = vector.load %arg2[%c5, %c0_39, %c0_40] : memref<9x4x4xbf16, #tpu.memory_space<vmem>>, vector<1x4x4xbf16>
    %40 = vector.shape_cast %39 : vector<1x4x4xbf16> to vector<4x4xbf16>
    %cst_41 = arith.constant dense<0.000000e+00> : vector<256x4xf32>
    %41 = tpu.matmul %38, %40, %cst_41 {dimension_numbers = #tpu.dot_dimension_numbers<[1], [0], [0], [1], [0, 0, 1, 1], [], []>} : vector<256x4xbf16>, vector<4x4xbf16>, vector<256x4xf32> -> vector<256x4xf32>
    %42 = arith.addf %35, %41 : vector<256x4xf32>
    %c0_42 = arith.constant 0 : index
    %c2_43 = arith.constant 2 : index
    %c0_44 = arith.constant 0 : index
    %c0_45 = arith.constant 0 : index
    %43 = vector.load %arg1[%c0_42, %c2_43, %c0_44, %c0_45] : memref<1x18x18x4xbf16, #tpu.memory_space<vmem>>, vector<1x16x16x4xbf16>
    %44 = vector.shape_cast %43 : vector<1x16x16x4xbf16> to vector<16x16x4xbf16>
    %45 = vector.shape_cast %44 : vector<16x16x4xbf16> to vector<256x4xbf16>
    %c6 = arith.constant 6 : index
    %c0_46 = arith.constant 0 : index
    %c0_47 = arith.constant 0 : index
    %46 = vector.load %arg2[%c6, %c0_46, %c0_47] : memref<9x4x4xbf16, #tpu.memory_space<vmem>>, vector<1x4x4xbf16>
    %47 = vector.shape_cast %46 : vector<1x4x4xbf16> to vector<4x4xbf16>
    %cst_48 = arith.constant dense<0.000000e+00> : vector<256x4xf32>
    %48 = tpu.matmul %45, %47, %cst_48 {dimension_numbers = #tpu.dot_dimension_numbers<[1], [0], [0], [1], [0, 0, 1, 1], [], []>} : vector<256x4xbf16>, vector<4x4xbf16>, vector<256x4xf32> -> vector<256x4xf32>
    %49 = arith.addf %42, %48 : vector<256x4xf32>
    %c0_49 = arith.constant 0 : index
    %c2_50 = arith.constant 2 : index
    %c1_51 = arith.constant 1 : index
    %c0_52 = arith.constant 0 : index
    %50 = vector.load %arg1[%c0_49, %c2_50, %c1_51, %c0_52] : memref<1x18x18x4xbf16, #tpu.memory_space<vmem>>, vector<1x16x16x4xbf16>
    %51 = vector.shape_cast %50 : vector<1x16x16x4xbf16> to vector<16x16x4xbf16>
    %52 = vector.shape_cast %51 : vector<16x16x4xbf16> to vector<256x4xbf16>
    %c7 = arith.constant 7 : index
    %c0_53 = arith.constant 0 : index
    %c0_54 = arith.constant 0 : index
    %53 = vector.load %arg2[%c7, %c0_53, %c0_54] : memref<9x4x4xbf16, #tpu.memory_space<vmem>>, vector<1x4x4xbf16>
    %54 = vector.shape_cast %53 : vector<1x4x4xbf16> to vector<4x4xbf16>
    %cst_55 = arith.constant dense<0.000000e+00> : vector<256x4xf32>
    %55 = tpu.matmul %52, %54, %cst_55 {dimension_numbers = #tpu.dot_dimension_numbers<[1], [0], [0], [1], [0, 0, 1, 1], [], []>} : vector<256x4xbf16>, vector<4x4xbf16>, vector<256x4xf32> -> vector<256x4xf32>
    %56 = arith.addf %49, %55 : vector<256x4xf32>
    %c0_56 = arith.constant 0 : index
    %c2_57 = arith.constant 2 : index
    %c2_58 = arith.constant 2 : index
    %c0_59 = arith.constant 0 : index
    %57 = vector.load %arg1[%c0_56, %c2_57, %c2_58, %c0_59] : memref<1x18x18x4xbf16, #tpu.memory_space<vmem>>, vector<1x16x16x4xbf16>
    %58 = vector.shape_cast %57 : vector<1x16x16x4xbf16> to vector<16x16x4xbf16>
    %59 = vector.shape_cast %58 : vector<16x16x4xbf16> to vector<256x4xbf16>
    %c8 = arith.constant 8 : index
    %c0_60 = arith.constant 0 : index
    %c0_61 = arith.constant 0 : index
    %60 = vector.load %arg2[%c8, %c0_60, %c0_61] : memref<9x4x4xbf16, #tpu.memory_space<vmem>>, vector<1x4x4xbf16>
    %61 = vector.shape_cast %60 : vector<1x4x4xbf16> to vector<4x4xbf16>
    %cst_62 = arith.constant dense<0.000000e+00> : vector<256x4xf32>
    %62 = tpu.matmul %59, %61, %cst_62 {dimension_numbers = #tpu.dot_dimension_numbers<[1], [0], [0], [1], [0, 0, 1, 1], [], []>} : vector<256x4xbf16>, vector<4x4xbf16>, vector<256x4xf32> -> vector<256x4xf32>
    %63 = arith.addf %56, %62 : vector<256x4xf32>
    %64 = arith.truncf %63 : vector<256x4xf32> to vector<256x4xbf16>
    %c0_63 = arith.constant 0 : index
    %c0_64 = arith.constant 0 : index
    %c0_65 = arith.constant 0 : index
    %65 = vector.load %arg3[%c0_63, %c0_64, %c0_65] : memref<1x256x4xbf16, #tpu.memory_space<vmem>>, vector<1x256x4xbf16>
    %66 = vector.shape_cast %65 : vector<1x256x4xbf16> to vector<256x4xbf16>
    %67 = vector.shape_cast %64 : vector<256x4xbf16> to vector<1x256x4xbf16>
    tpu.vector_store %arg3[%c0_63, %c0_64, %c0_65], %67 {strides = array<i32>} : memref<1x256x4xbf16, #tpu.memory_space<vmem>>, vector<1x256x4xbf16>,
    %cst_66 = arith.constant dense<0.000000e+00> : vector<4xf32>
    %68 = vector.multi_reduction <add>, %63, %cst_66 [0] : vector<256x4xf32> to vector<4xf32>
    %69 = vector.shape_cast %68 : vector<4xf32> to vector<1x4xf32>
    %c0_67 = arith.constant 0 : index
    %c0_68 = arith.constant 0 : index
    %c0_69 = arith.constant 0 : index
    %70 = vector.load %arg4[%c0_67, %c0_68, %c0_69] : memref<1x2x4xf32, #tpu.memory_space<vmem>>, vector<1x1x4xf32>
    %71 = vector.shape_cast %70 : vector<1x1x4xf32> to vector<1x4xf32>
    %72 = vector.shape_cast %69 : vector<1x4xf32> to vector<1x1x4xf32>
    tpu.vector_store %arg4[%c0_67, %c0_68, %c0_69], %72 {strides = array<i32>} : memref<1x2x4xf32, #tpu.memory_space<vmem>>, vector<1x1x4xf32>,
    %73 = arith.mulf %63, %63 : vector<256x4xf32>
    %cst_70 = arith.constant dense<0.000000e+00> : vector<4xf32>
    %74 = vector.multi_reduction <add>, %73, %cst_70 [0] : vector<256x4xf32> to vector<4xf32>
    %75 = vector.shape_cast %74 : vector<4xf32> to vector<1x4xf32>
    %c0_71 = arith.constant 0 : index
    %c1_72 = arith.constant 1 : index
    %c0_73 = arith.constant 0 : index
    %76 = vector.load %arg4[%c0_71, %c1_72, %c0_73] : memref<1x2x4xf32, #tpu.memory_space<vmem>>, vector<1x1x4xf32>
    %77 = vector.shape_cast %76 : vector<1x1x4xf32> to vector<1x4xf32>
    %78 = vector.shape_cast %75 : vector<1x4xf32> to vector<1x1x4xf32>
    tpu.vector_store %arg4[%c0_71, %c1_72, %c0_73], %78 {strides = array<i32>} : memref<1x2x4xf32, #tpu.memory_space<vmem>>, vector<1x1x4xf32>,
    return
  }
  func.func @transform_0(%arg0: i32) -> (i32, i32, i32, i32) {
    %c0_i32 = arith.constant 0 : i32
    %c0_i32_0 = arith.constant 0 : i32
    %c0_i32_1 = arith.constant 0 : i32
    %c0_i32_2 = arith.constant 0 : i32
    return %arg0, %c0_i32, %c0_i32_0, %c0_i32_1 : i32, i32, i32, i32
  }
  func.func @transform_1(%arg0: i32) -> (i32, i32, i32) {
    %c0_i32 = arith.constant 0 : i32
    %c0_i32_0 = arith.constant 0 : i32
    %c0_i32_1 = arith.constant 0 : i32
    %c0_i32_2 = arith.constant 0 : i32
    return %c0_i32, %c0_i32_0, %c0_i32_1 : i32, i32, i32
  }
  func.func @transform_2(%arg0: i32) -> (i32, i32, i32) {
    %c0_i32 = arith.constant 0 : i32
    %c0_i32_0 = arith.constant 0 : i32
    %c0_i32_1 = arith.constant 0 : i32
    return %arg0, %c0_i32, %c0_i32_0 : i32, i32, i32
  }
  func.func @transform_3(%arg0: i32) -> (i32, i32, i32) {
    %c0_i32 = arith.constant 0 : i32
    %c0_i32_0 = arith.constant 0 : i32
    %c0_i32_1 = arith.constant 0 : i32
    return %arg0, %c0_i32, %c0_i32_0 : i32, i32, i32
  }
}

module attributes {stable_mosaic.version = 11 : i64} {
  func.func @_conv2_kernel(%arg0: i32, %arg1: memref<1x256x4xbf16, #tpu.memory_space<vmem>>, %arg2: memref<9x4x4xbf16, #tpu.memory_space<vmem>>, %arg3: memref<1x4xf32, #tpu.memory_space<vmem>>, %arg4: memref<1x4xf32, #tpu.memory_space<vmem>>, %arg5: memref<1x256x4xbf16, #tpu.memory_space<vmem>>, %arg6: memref<1x2x4xf32, #tpu.memory_space<vmem>>, %arg7: memref<18x18x4xbf16, #tpu.memory_space<vmem>>) attributes {dimension_semantics = [#tpu.dimension_semantics<parallel>], iteration_bounds = array<i64: 2>, scalar_prefetch = 0 : i64, scratch_operands = 1 : i64, tpu.core_type = #tpu.core_type<tc>, window_params = [{transform_indices = @transform_0, window_bounds = array<i64: 1, 256, 4>}, {pipeline_mode = #tpu.pipeline_mode<synchronous>, transform_indices = @transform_1, window_bounds = array<i64: 9, 4, 4>}, {pipeline_mode = #tpu.pipeline_mode<synchronous>, transform_indices = @transform_2, window_bounds = array<i64: 1, 4>}, {pipeline_mode = #tpu.pipeline_mode<synchronous>, transform_indices = @transform_3, window_bounds = array<i64: 1, 4>}, {transform_indices = @transform_4, window_bounds = array<i64: 1, 256, 4>}, {transform_indices = @transform_5, window_bounds = array<i64: 1, 2, 4>}]} {
    %cst = arith.constant 0.000000e+00 : bf16
    %0 = vector.broadcast %cst : bf16 to vector<1x18x4xbf16>
    %cst_0 = arith.constant 0.000000e+00 : bf16
    %1 = vector.broadcast %cst_0 : bf16 to vector<18x1x4xbf16>
    %c0 = arith.constant 0 : index
    %c0_1 = arith.constant 0 : index
    %c0_2 = arith.constant 0 : index
    %2 = vector.load %arg7[%c0, %c0_1, %c0_2] : memref<18x18x4xbf16, #tpu.memory_space<vmem>>, vector<1x18x4xbf16>
    tpu.vector_store %arg7[%c0, %c0_1, %c0_2], %0 {strides = array<i32>} : memref<18x18x4xbf16, #tpu.memory_space<vmem>>, vector<1x18x4xbf16>,
    %c17 = arith.constant 17 : index
    %c0_3 = arith.constant 0 : index
    %c0_4 = arith.constant 0 : index
    %3 = vector.load %arg7[%c17, %c0_3, %c0_4] : memref<18x18x4xbf16, #tpu.memory_space<vmem>>, vector<1x18x4xbf16>
    tpu.vector_store %arg7[%c17, %c0_3, %c0_4], %0 {strides = array<i32>} : memref<18x18x4xbf16, #tpu.memory_space<vmem>>, vector<1x18x4xbf16>,
    %c0_5 = arith.constant 0 : index
    %c0_6 = arith.constant 0 : index
    %c0_7 = arith.constant 0 : index
    %4 = vector.load %arg7[%c0_5, %c0_6, %c0_7] : memref<18x18x4xbf16, #tpu.memory_space<vmem>>, vector<18x1x4xbf16>
    tpu.vector_store %arg7[%c0_5, %c0_6, %c0_7], %1 {strides = array<i32>} : memref<18x18x4xbf16, #tpu.memory_space<vmem>>, vector<18x1x4xbf16>,
    %c0_8 = arith.constant 0 : index
    %c17_9 = arith.constant 17 : index
    %c0_10 = arith.constant 0 : index
    %5 = vector.load %arg7[%c0_8, %c17_9, %c0_10] : memref<18x18x4xbf16, #tpu.memory_space<vmem>>, vector<18x1x4xbf16>
    tpu.vector_store %arg7[%c0_8, %c17_9, %c0_10], %1 {strides = array<i32>} : memref<18x18x4xbf16, #tpu.memory_space<vmem>>, vector<18x1x4xbf16>,
    %c0_11 = arith.constant 0 : index
    %c0_12 = arith.constant 0 : index
    %c0_13 = arith.constant 0 : index
    %6 = vector.load %arg1[%c0_11, %c0_12, %c0_13] : memref<1x256x4xbf16, #tpu.memory_space<vmem>>, vector<1x256x4xbf16>
    %7 = vector.shape_cast %6 : vector<1x256x4xbf16> to vector<256x4xbf16>
    %8 = arith.extf %7 : vector<256x4xbf16> to vector<256x4xf32>
    %c0_14 = arith.constant 0 : index
    %c0_15 = arith.constant 0 : index
    %9 = vector.load %arg3[%c0_14, %c0_15] : memref<1x4xf32, #tpu.memory_space<vmem>>, vector<1x4xf32>
    %10 = vector.broadcast %9 : vector<1x4xf32> to vector<256x4xf32>
    %11 = arith.mulf %8, %10 : vector<256x4xf32>
    %c0_16 = arith.constant 0 : index
    %c0_17 = arith.constant 0 : index
    %12 = vector.load %arg4[%c0_16, %c0_17] : memref<1x4xf32, #tpu.memory_space<vmem>>, vector<1x4xf32>
    %13 = vector.broadcast %12 : vector<1x4xf32> to vector<256x4xf32>
    %14 = arith.addf %11, %13 : vector<256x4xf32>
    %cst_18 = arith.constant 0.000000e+00 : f32
    %15 = vector.broadcast %cst_18 : f32 to vector<256x4xf32>
    %16 = arith.maximumf %14, %15 : vector<256x4xf32>
    %17 = arith.truncf %16 : vector<256x4xf32> to vector<256x4xbf16>
    %18 = vector.shape_cast %17 : vector<256x4xbf16> to vector<16x16x4xbf16>
    %c1 = arith.constant 1 : index
    %c1_19 = arith.constant 1 : index
    %c0_20 = arith.constant 0 : index
    %19 = vector.load %arg7[%c1, %c1_19, %c0_20] : memref<18x18x4xbf16, #tpu.memory_space<vmem>>, vector<16x16x4xbf16>
    tpu.vector_store %arg7[%c1, %c1_19, %c0_20], %18 {strides = array<i32>} : memref<18x18x4xbf16, #tpu.memory_space<vmem>>, vector<16x16x4xbf16>,
    %cst_21 = arith.constant 0.000000e+00 : f32
    %20 = vector.broadcast %cst_21 : f32 to vector<256x4xf32>
    %c0_22 = arith.constant 0 : index
    %c0_23 = arith.constant 0 : index
    %c0_24 = arith.constant 0 : index
    %21 = vector.load %arg7[%c0_22, %c0_23, %c0_24] : memref<18x18x4xbf16, #tpu.memory_space<vmem>>, vector<16x16x4xbf16>
    %22 = vector.shape_cast %21 : vector<16x16x4xbf16> to vector<256x4xbf16>
    %c0_25 = arith.constant 0 : index
    %c0_26 = arith.constant 0 : index
    %c0_27 = arith.constant 0 : index
    %23 = vector.load %arg2[%c0_25, %c0_26, %c0_27] : memref<9x4x4xbf16, #tpu.memory_space<vmem>>, vector<1x4x4xbf16>
    %24 = vector.shape_cast %23 : vector<1x4x4xbf16> to vector<4x4xbf16>
    %cst_28 = arith.constant dense<0.000000e+00> : vector<256x4xf32>
    %25 = tpu.matmul %22, %24, %cst_28 {dimension_numbers = #tpu.dot_dimension_numbers<[1], [0], [0], [1], [0, 0, 1, 1], [], []>} : vector<256x4xbf16>, vector<4x4xbf16>, vector<256x4xf32> -> vector<256x4xf32>
    %26 = arith.addf %20, %25 : vector<256x4xf32>
    %c0_29 = arith.constant 0 : index
    %c1_30 = arith.constant 1 : index
    %c0_31 = arith.constant 0 : index
    %27 = vector.load %arg7[%c0_29, %c1_30, %c0_31] : memref<18x18x4xbf16, #tpu.memory_space<vmem>>, vector<16x16x4xbf16>
    %28 = vector.shape_cast %27 : vector<16x16x4xbf16> to vector<256x4xbf16>
    %c1_32 = arith.constant 1 : index
    %c0_33 = arith.constant 0 : index
    %c0_34 = arith.constant 0 : index
    %29 = vector.load %arg2[%c1_32, %c0_33, %c0_34] : memref<9x4x4xbf16, #tpu.memory_space<vmem>>, vector<1x4x4xbf16>
    %30 = vector.shape_cast %29 : vector<1x4x4xbf16> to vector<4x4xbf16>
    %cst_35 = arith.constant dense<0.000000e+00> : vector<256x4xf32>
    %31 = tpu.matmul %28, %30, %cst_35 {dimension_numbers = #tpu.dot_dimension_numbers<[1], [0], [0], [1], [0, 0, 1, 1], [], []>} : vector<256x4xbf16>, vector<4x4xbf16>, vector<256x4xf32> -> vector<256x4xf32>
    %32 = arith.addf %26, %31 : vector<256x4xf32>
    %c0_36 = arith.constant 0 : index
    %c2 = arith.constant 2 : index
    %c0_37 = arith.constant 0 : index
    %33 = vector.load %arg7[%c0_36, %c2, %c0_37] : memref<18x18x4xbf16, #tpu.memory_space<vmem>>, vector<16x16x4xbf16>
    %34 = vector.shape_cast %33 : vector<16x16x4xbf16> to vector<256x4xbf16>
    %c2_38 = arith.constant 2 : index
    %c0_39 = arith.constant 0 : index
    %c0_40 = arith.constant 0 : index
    %35 = vector.load %arg2[%c2_38, %c0_39, %c0_40] : memref<9x4x4xbf16, #tpu.memory_space<vmem>>, vector<1x4x4xbf16>
    %36 = vector.shape_cast %35 : vector<1x4x4xbf16> to vector<4x4xbf16>
    %cst_41 = arith.constant dense<0.000000e+00> : vector<256x4xf32>
    %37 = tpu.matmul %34, %36, %cst_41 {dimension_numbers = #tpu.dot_dimension_numbers<[1], [0], [0], [1], [0, 0, 1, 1], [], []>} : vector<256x4xbf16>, vector<4x4xbf16>, vector<256x4xf32> -> vector<256x4xf32>
    %38 = arith.addf %32, %37 : vector<256x4xf32>
    %c1_42 = arith.constant 1 : index
    %c0_43 = arith.constant 0 : index
    %c0_44 = arith.constant 0 : index
    %39 = vector.load %arg7[%c1_42, %c0_43, %c0_44] : memref<18x18x4xbf16, #tpu.memory_space<vmem>>, vector<16x16x4xbf16>
    %40 = vector.shape_cast %39 : vector<16x16x4xbf16> to vector<256x4xbf16>
    %c3 = arith.constant 3 : index
    %c0_45 = arith.constant 0 : index
    %c0_46 = arith.constant 0 : index
    %41 = vector.load %arg2[%c3, %c0_45, %c0_46] : memref<9x4x4xbf16, #tpu.memory_space<vmem>>, vector<1x4x4xbf16>
    %42 = vector.shape_cast %41 : vector<1x4x4xbf16> to vector<4x4xbf16>
    %cst_47 = arith.constant dense<0.000000e+00> : vector<256x4xf32>
    %43 = tpu.matmul %40, %42, %cst_47 {dimension_numbers = #tpu.dot_dimension_numbers<[1], [0], [0], [1], [0, 0, 1, 1], [], []>} : vector<256x4xbf16>, vector<4x4xbf16>, vector<256x4xf32> -> vector<256x4xf32>
    %44 = arith.addf %38, %43 : vector<256x4xf32>
    %c1_48 = arith.constant 1 : index
    %c1_49 = arith.constant 1 : index
    %c0_50 = arith.constant 0 : index
    %45 = vector.load %arg7[%c1_48, %c1_49, %c0_50] : memref<18x18x4xbf16, #tpu.memory_space<vmem>>, vector<16x16x4xbf16>
    %46 = vector.shape_cast %45 : vector<16x16x4xbf16> to vector<256x4xbf16>
    %c4 = arith.constant 4 : index
    %c0_51 = arith.constant 0 : index
    %c0_52 = arith.constant 0 : index
    %47 = vector.load %arg2[%c4, %c0_51, %c0_52] : memref<9x4x4xbf16, #tpu.memory_space<vmem>>, vector<1x4x4xbf16>
    %48 = vector.shape_cast %47 : vector<1x4x4xbf16> to vector<4x4xbf16>
    %cst_53 = arith.constant dense<0.000000e+00> : vector<256x4xf32>
    %49 = tpu.matmul %46, %48, %cst_53 {dimension_numbers = #tpu.dot_dimension_numbers<[1], [0], [0], [1], [0, 0, 1, 1], [], []>} : vector<256x4xbf16>, vector<4x4xbf16>, vector<256x4xf32> -> vector<256x4xf32>
    %50 = arith.addf %44, %49 : vector<256x4xf32>
    %c1_54 = arith.constant 1 : index
    %c2_55 = arith.constant 2 : index
    %c0_56 = arith.constant 0 : index
    %51 = vector.load %arg7[%c1_54, %c2_55, %c0_56] : memref<18x18x4xbf16, #tpu.memory_space<vmem>>, vector<16x16x4xbf16>
    %52 = vector.shape_cast %51 : vector<16x16x4xbf16> to vector<256x4xbf16>
    %c5 = arith.constant 5 : index
    %c0_57 = arith.constant 0 : index
    %c0_58 = arith.constant 0 : index
    %53 = vector.load %arg2[%c5, %c0_57, %c0_58] : memref<9x4x4xbf16, #tpu.memory_space<vmem>>, vector<1x4x4xbf16>
    %54 = vector.shape_cast %53 : vector<1x4x4xbf16> to vector<4x4xbf16>
    %cst_59 = arith.constant dense<0.000000e+00> : vector<256x4xf32>
    %55 = tpu.matmul %52, %54, %cst_59 {dimension_numbers = #tpu.dot_dimension_numbers<[1], [0], [0], [1], [0, 0, 1, 1], [], []>} : vector<256x4xbf16>, vector<4x4xbf16>, vector<256x4xf32> -> vector<256x4xf32>
    %56 = arith.addf %50, %55 : vector<256x4xf32>
    %c2_60 = arith.constant 2 : index
    %c0_61 = arith.constant 0 : index
    %c0_62 = arith.constant 0 : index
    %57 = vector.load %arg7[%c2_60, %c0_61, %c0_62] : memref<18x18x4xbf16, #tpu.memory_space<vmem>>, vector<16x16x4xbf16>
    %58 = vector.shape_cast %57 : vector<16x16x4xbf16> to vector<256x4xbf16>
    %c6 = arith.constant 6 : index
    %c0_63 = arith.constant 0 : index
    %c0_64 = arith.constant 0 : index
    %59 = vector.load %arg2[%c6, %c0_63, %c0_64] : memref<9x4x4xbf16, #tpu.memory_space<vmem>>, vector<1x4x4xbf16>
    %60 = vector.shape_cast %59 : vector<1x4x4xbf16> to vector<4x4xbf16>
    %cst_65 = arith.constant dense<0.000000e+00> : vector<256x4xf32>
    %61 = tpu.matmul %58, %60, %cst_65 {dimension_numbers = #tpu.dot_dimension_numbers<[1], [0], [0], [1], [0, 0, 1, 1], [], []>} : vector<256x4xbf16>, vector<4x4xbf16>, vector<256x4xf32> -> vector<256x4xf32>
    %62 = arith.addf %56, %61 : vector<256x4xf32>
    %c2_66 = arith.constant 2 : index
    %c1_67 = arith.constant 1 : index
    %c0_68 = arith.constant 0 : index
    %63 = vector.load %arg7[%c2_66, %c1_67, %c0_68] : memref<18x18x4xbf16, #tpu.memory_space<vmem>>, vector<16x16x4xbf16>
    %64 = vector.shape_cast %63 : vector<16x16x4xbf16> to vector<256x4xbf16>
    %c7 = arith.constant 7 : index
    %c0_69 = arith.constant 0 : index
    %c0_70 = arith.constant 0 : index
    %65 = vector.load %arg2[%c7, %c0_69, %c0_70] : memref<9x4x4xbf16, #tpu.memory_space<vmem>>, vector<1x4x4xbf16>
    %66 = vector.shape_cast %65 : vector<1x4x4xbf16> to vector<4x4xbf16>
    %cst_71 = arith.constant dense<0.000000e+00> : vector<256x4xf32>
    %67 = tpu.matmul %64, %66, %cst_71 {dimension_numbers = #tpu.dot_dimension_numbers<[1], [0], [0], [1], [0, 0, 1, 1], [], []>} : vector<256x4xbf16>, vector<4x4xbf16>, vector<256x4xf32> -> vector<256x4xf32>
    %68 = arith.addf %62, %67 : vector<256x4xf32>
    %c2_72 = arith.constant 2 : index
    %c2_73 = arith.constant 2 : index
    %c0_74 = arith.constant 0 : index
    %69 = vector.load %arg7[%c2_72, %c2_73, %c0_74] : memref<18x18x4xbf16, #tpu.memory_space<vmem>>, vector<16x16x4xbf16>
    %70 = vector.shape_cast %69 : vector<16x16x4xbf16> to vector<256x4xbf16>
    %c8 = arith.constant 8 : index
    %c0_75 = arith.constant 0 : index
    %c0_76 = arith.constant 0 : index
    %71 = vector.load %arg2[%c8, %c0_75, %c0_76] : memref<9x4x4xbf16, #tpu.memory_space<vmem>>, vector<1x4x4xbf16>
    %72 = vector.shape_cast %71 : vector<1x4x4xbf16> to vector<4x4xbf16>
    %cst_77 = arith.constant dense<0.000000e+00> : vector<256x4xf32>
    %73 = tpu.matmul %70, %72, %cst_77 {dimension_numbers = #tpu.dot_dimension_numbers<[1], [0], [0], [1], [0, 0, 1, 1], [], []>} : vector<256x4xbf16>, vector<4x4xbf16>, vector<256x4xf32> -> vector<256x4xf32>
    %74 = arith.addf %68, %73 : vector<256x4xf32>
    %75 = arith.truncf %74 : vector<256x4xf32> to vector<256x4xbf16>
    %c0_78 = arith.constant 0 : index
    %c0_79 = arith.constant 0 : index
    %c0_80 = arith.constant 0 : index
    %76 = vector.load %arg5[%c0_78, %c0_79, %c0_80] : memref<1x256x4xbf16, #tpu.memory_space<vmem>>, vector<1x256x4xbf16>
    %77 = vector.shape_cast %76 : vector<1x256x4xbf16> to vector<256x4xbf16>
    %78 = vector.shape_cast %75 : vector<256x4xbf16> to vector<1x256x4xbf16>
    tpu.vector_store %arg5[%c0_78, %c0_79, %c0_80], %78 {strides = array<i32>} : memref<1x256x4xbf16, #tpu.memory_space<vmem>>, vector<1x256x4xbf16>,
    %cst_81 = arith.constant dense<0.000000e+00> : vector<4xf32>
    %79 = vector.multi_reduction <add>, %74, %cst_81 [0] : vector<256x4xf32> to vector<4xf32>
    %80 = vector.shape_cast %79 : vector<4xf32> to vector<1x4xf32>
    %c0_82 = arith.constant 0 : index
    %c0_83 = arith.constant 0 : index
    %c0_84 = arith.constant 0 : index
    %81 = vector.load %arg6[%c0_82, %c0_83, %c0_84] : memref<1x2x4xf32, #tpu.memory_space<vmem>>, vector<1x1x4xf32>
    %82 = vector.shape_cast %81 : vector<1x1x4xf32> to vector<1x4xf32>
    %83 = vector.shape_cast %80 : vector<1x4xf32> to vector<1x1x4xf32>
    tpu.vector_store %arg6[%c0_82, %c0_83, %c0_84], %83 {strides = array<i32>} : memref<1x2x4xf32, #tpu.memory_space<vmem>>, vector<1x1x4xf32>,
    %84 = arith.mulf %74, %74 : vector<256x4xf32>
    %cst_85 = arith.constant dense<0.000000e+00> : vector<4xf32>
    %85 = vector.multi_reduction <add>, %84, %cst_85 [0] : vector<256x4xf32> to vector<4xf32>
    %86 = vector.shape_cast %85 : vector<4xf32> to vector<1x4xf32>
    %c0_86 = arith.constant 0 : index
    %c1_87 = arith.constant 1 : index
    %c0_88 = arith.constant 0 : index
    %87 = vector.load %arg6[%c0_86, %c1_87, %c0_88] : memref<1x2x4xf32, #tpu.memory_space<vmem>>, vector<1x1x4xf32>
    %88 = vector.shape_cast %87 : vector<1x1x4xf32> to vector<1x4xf32>
    %89 = vector.shape_cast %86 : vector<1x4xf32> to vector<1x1x4xf32>
    tpu.vector_store %arg6[%c0_86, %c1_87, %c0_88], %89 {strides = array<i32>} : memref<1x2x4xf32, #tpu.memory_space<vmem>>, vector<1x1x4xf32>,
    return
  }
  func.func @transform_0(%arg0: i32) -> (i32, i32, i32) {
    %c0_i32 = arith.constant 0 : i32
    %c0_i32_0 = arith.constant 0 : i32
    %c0_i32_1 = arith.constant 0 : i32
    return %arg0, %c0_i32, %c0_i32_0 : i32, i32, i32
  }
  func.func @transform_1(%arg0: i32) -> (i32, i32, i32) {
    %c0_i32 = arith.constant 0 : i32
    %c0_i32_0 = arith.constant 0 : i32
    %c0_i32_1 = arith.constant 0 : i32
    %c0_i32_2 = arith.constant 0 : i32
    return %c0_i32, %c0_i32_0, %c0_i32_1 : i32, i32, i32
  }
  func.func @transform_2(%arg0: i32) -> (i32, i32) {
    %c0_i32 = arith.constant 0 : i32
    %c0_i32_0 = arith.constant 0 : i32
    %c0_i32_1 = arith.constant 0 : i32
    return %c0_i32, %c0_i32_0 : i32, i32
  }
  func.func @transform_3(%arg0: i32) -> (i32, i32) {
    %c0_i32 = arith.constant 0 : i32
    %c0_i32_0 = arith.constant 0 : i32
    %c0_i32_1 = arith.constant 0 : i32
    return %c0_i32, %c0_i32_0 : i32, i32
  }
  func.func @transform_4(%arg0: i32) -> (i32, i32, i32) {
    %c0_i32 = arith.constant 0 : i32
    %c0_i32_0 = arith.constant 0 : i32
    %c0_i32_1 = arith.constant 0 : i32
    return %arg0, %c0_i32, %c0_i32_0 : i32, i32, i32
  }
  func.func @transform_5(%arg0: i32) -> (i32, i32, i32) {
    %c0_i32 = arith.constant 0 : i32
    %c0_i32_0 = arith.constant 0 : i32
    %c0_i32_1 = arith.constant 0 : i32
    return %arg0, %c0_i32, %c0_i32_0 : i32, i32, i32
  }
}

module attributes {stable_mosaic.version = 11 : i64} {
  func.func @_bn_add_relu_kernel(%arg0: i32, %arg1: memref<2x1024xbf16, #tpu.memory_space<vmem>>, %arg2: memref<2x1024xbf16, #tpu.memory_space<vmem>>, %arg3: memref<1x1024xf32, #tpu.memory_space<vmem>>, %arg4: memref<1x1024xf32, #tpu.memory_space<vmem>>, %arg5: memref<2x1024xf32, #tpu.memory_space<vmem>>) attributes {dimension_semantics = [#tpu.dimension_semantics<parallel>], iteration_bounds = array<i64: 1>, scalar_prefetch = 0 : i64, scratch_operands = 0 : i64, tpu.core_type = #tpu.core_type<tc>, window_params = [{transform_indices = @transform_0, window_bounds = array<i64: 2, 1024>}, {transform_indices = @transform_1, window_bounds = array<i64: 2, 1024>}, {pipeline_mode = #tpu.pipeline_mode<synchronous>, transform_indices = @transform_2, window_bounds = array<i64: 1, 1024>}, {pipeline_mode = #tpu.pipeline_mode<synchronous>, transform_indices = @transform_3, window_bounds = array<i64: 1, 1024>}, {transform_indices = @transform_4, window_bounds = array<i64: 2, 1024>}]} {
    %c0 = arith.constant 0 : index
    %c0_0 = arith.constant 0 : index
    %0 = vector.load %arg1[%c0, %c0_0] : memref<2x1024xbf16, #tpu.memory_space<vmem>>, vector<2x1024xbf16>
    %1 = arith.extf %0 : vector<2x1024xbf16> to vector<2x1024xf32>
    %c0_1 = arith.constant 0 : index
    %c0_2 = arith.constant 0 : index
    %2 = vector.load %arg3[%c0_1, %c0_2] : memref<1x1024xf32, #tpu.memory_space<vmem>>, vector<1x1024xf32>
    %3 = vector.broadcast %2 : vector<1x1024xf32> to vector<2x1024xf32>
    %4 = arith.mulf %1, %3 : vector<2x1024xf32>
    %c0_3 = arith.constant 0 : index
    %c0_4 = arith.constant 0 : index
    %5 = vector.load %arg4[%c0_3, %c0_4] : memref<1x1024xf32, #tpu.memory_space<vmem>>, vector<1x1024xf32>
    %6 = vector.broadcast %5 : vector<1x1024xf32> to vector<2x1024xf32>
    %7 = arith.addf %4, %6 : vector<2x1024xf32>
    %c0_5 = arith.constant 0 : index
    %c0_6 = arith.constant 0 : index
    %8 = vector.load %arg2[%c0_5, %c0_6] : memref<2x1024xbf16, #tpu.memory_space<vmem>>, vector<2x1024xbf16>
    %9 = arith.extf %8 : vector<2x1024xbf16> to vector<2x1024xf32>
    %10 = arith.addf %7, %9 : vector<2x1024xf32>
    %cst = arith.constant 0.000000e+00 : f32
    %11 = vector.broadcast %cst : f32 to vector<2x1024xf32>
    %12 = arith.maximumf %10, %11 : vector<2x1024xf32>
    %c0_7 = arith.constant 0 : index
    %c0_8 = arith.constant 0 : index
    %13 = vector.load %arg5[%c0_7, %c0_8] : memref<2x1024xf32, #tpu.memory_space<vmem>>, vector<2x1024xf32>
    tpu.vector_store %arg5[%c0_7, %c0_8], %12 {strides = array<i32>} : memref<2x1024xf32, #tpu.memory_space<vmem>>, vector<2x1024xf32>,
    return
  }
  func.func @transform_0(%arg0: i32) -> (i32, i32) {
    %c0_i32 = arith.constant 0 : i32
    %c0_i32_0 = arith.constant 0 : i32
    return %arg0, %c0_i32 : i32, i32
  }
  func.func @transform_1(%arg0: i32) -> (i32, i32) {
    %c0_i32 = arith.constant 0 : i32
    %c0_i32_0 = arith.constant 0 : i32
    return %arg0, %c0_i32 : i32, i32
  }
  func.func @transform_2(%arg0: i32) -> (i32, i32) {
    %c0_i32 = arith.constant 0 : i32
    %c0_i32_0 = arith.constant 0 : i32
    %c0_i32_1 = arith.constant 0 : i32
    return %c0_i32, %c0_i32_0 : i32, i32
  }
  func.func @transform_3(%arg0: i32) -> (i32, i32) {
    %c0_i32 = arith.constant 0 : i32
    %c0_i32_0 = arith.constant 0 : i32
    %c0_i32_1 = arith.constant 0 : i32
    return %c0_i32, %c0_i32_0 : i32, i32
  }
  func.func @transform_4(%arg0: i32) -> (i32, i32) {
    %c0_i32 = arith.constant 0 : i32
    %c0_i32_0 = arith.constant 0 : i32
    return %arg0, %c0_i32 : i32, i32
  }
}

</mosaic_0001>

<llo_original>
// kernel: tile.14
$region0: #{tile.14}
  #allocation0 [shape = 's32[1]{0}', space=sflag, size = 0x4, scoped, tag = 'scoped memory for tile.14']
  %s0 = inlined_call_operand.vmem [shape: f32[4], index: 0, kind: input, shape index: {}]
  %s1 = inlined_call_operand.vmem [shape: f32[256,4], index: 1, kind: output, shape index: {}]
  // Predicated region
  $region2: #{tile.14} parent=0 // pred_check
    _
  $region3: #{tile.14} parent=0 // pred_check_branch
    %3 = sbr.rel (0) target = $region5
  $region4: #{tile.14} parent=0 // pred_region
    _
  $region5: #{tile.14} parent=0 // pred_fallthru
    _
  %v4 = vld [vmem:[%s0] ss:$0 sm:$0xff]
  %5 = vst [vmem:[%s1] sm:$0xff] %v4
  %s6 = scalar_lea.vmem %s1, 8
  %7 = vst [vmem:[%s6] sm:$0xff] %v4
  %s8 = scalar_lea.vmem %s1, 16
  %9 = vst [vmem:[%s8] sm:$0xff] %v4
  %s10 = scalar_lea.vmem %s1, 24
  %11 = vst [vmem:[%s10] sm:$0xff] %v4
  %s12 = scalar_lea.vmem %s1, 32
  %13 = vst [vmem:[%s12] sm:$0xff] %v4
  %s14 = scalar_lea.vmem %s1, 40
  %15 = vst [vmem:[%s14] sm:$0xff] %v4
  %s16 = scalar_lea.vmem %s1, 48
  %17 = vst [vmem:[%s16] sm:$0xff] %v4
  %s18 = scalar_lea.vmem %s1, 56
  %19 = vst [vmem:[%s18] sm:$0xff] %v4
  %s20 = scalar_lea.vmem %s1, 64
  %21 = vst [vmem:[%s20] sm:$0xff] %v4
  %s22 = scalar_lea.vmem %s1, 72
  %23 = vst [vmem:[%s22] sm:$0xff] %v4
  %s24 = scalar_lea.vmem %s1, 80
  %25 = vst [vmem:[%s24] sm:$0xff] %v4
  %s26 = scalar_lea.vmem %s1, 88
  %27 = vst [vmem:[%s26] sm:$0xff] %v4
  %s28 = scalar_lea.vmem %s1, 96
  %29 = vst [vmem:[%s28] sm:$0xff] %v4
  %s30 = scalar_lea.vmem %s1, 104
  %31 = vst [vmem:[%s30] sm:$0xff] %v4
  %s32 = scalar_lea.vmem %s1, 112
  %33 = vst [vmem:[%s32] sm:$0xff] %v4
  %s34 = scalar_lea.vmem %s1, 120
  %35 = vst [vmem:[%s34] sm:$0xff] %v4
  %s36 = scalar_lea.vmem %s1, 128
  %37 = vst [vmem:[%s36] sm:$0xff] %v4
  %s38 = scalar_lea.vmem %s1, 136
  %39 = vst [vmem:[%s38] sm:$0xff] %v4
  %s40 = scalar_lea.vmem %s1, 144
  %41 = vst [vmem:[%s40] sm:$0xff] %v4
  %s42 = scalar_lea.vmem %s1, 152
  %43 = vst [vmem:[%s42] sm:$0xff] %v4
  %s44 = scalar_lea.vmem %s1, 160
  %45 = vst [vmem:[%s44] sm:$0xff] %v4
  %s46 = scalar_lea.vmem %s1, 168
  %47 = vst [vmem:[%s46] sm:$0xff] %v4
  %s48 = scalar_lea.vmem %s1, 176
  %49 = vst [vmem:[%s48] sm:$0xff] %v4
  %s50 = scalar_lea.vmem %s1, 184
  %51 = vst [vmem:[%s50] sm:$0xff] %v4
  %s52 = scalar_lea.vmem %s1, 192
  %53 = vst [vmem:[%s52] sm:$0xff] %v4
  %s54 = scalar_lea.vmem %s1, 200
  %55 = vst [vmem:[%s54] sm:$0xff] %v4
  %s56 = scalar_lea.vmem %s1, 208
  %57 = vst [vmem:[%s56] sm:$0xff] %v4
  %s58 = scalar_lea.vmem %s1, 216
  %59 = vst [vmem:[%s58] sm:$0xff] %v4
  %s60 = scalar_lea.vmem %s1, 224
  %61 = vst [vmem:[%s60] sm:$0xff] %v4
  %s62 = scalar_lea.vmem %s1, 232
  %63 = vst [vmem:[%s62] sm:$0xff] %v4
  %s64 = scalar_lea.vmem %s1, 240
  %65 = vst [vmem:[%s64] sm:$0xff] %v4
  %s66 = scalar_lea.vmem %s1, 248
  %67 = vst [vmem:[%s66] sm:$0xff] %v4

// kernel: tile.15
$region0: #{tile.15}
  %s0 = inlined_call_operand.vmem [shape: f32[256,4], index: 0, kind: input, shape index: {}]
  %s1 = inlined_call_operand.vmem [shape: f32[1,1024], index: 1, kind: output, shape index: {}]
  $region1: #{tile.15} parent=0
    #allocation0 [shape = 'u8[32768]{0}', space=vmem, size = 0x8000, scoped, tag = 'scoped mem for output reshape']
    %v2 = vld [vmem:[%s0] sm:$0x1]
    %s3 = scalar_lea.vmem %s0, 31
    %v4 = vld [vmem:[%s3] sm:$0x2]
    %vm5 = vcmask 1041409
    %v6 = vsel %vm5, %v4, %v2
    %s7 = scalar_lea.vmem %s0, 62
    %v8 = vld [vmem:[%s7] sm:$0x4]
    %vm9 = vcmask 1042434
    %v10 = vsel %vm9, %v8, %v6
    %s11 = scalar_lea.vmem %s0, 93
    %v12 = vld [vmem:[%s11] sm:$0x8]
    %vm13 = vcmask 1043459
    %v14 = vsel %vm13, %v12, %v10
    %s15 = scalar_lea.vmem %s0, 124
    %v16 = vld [vmem:[%s15] sm:$0x10]
    %vm17 = vcmask 1044484
    %v18 = vsel %vm17, %v16, %v14
    %s19 = scalar_lea.vmem %s0, 155
    %v20 = vld [vmem:[%s19] sm:$0x20]
    %vm21 = vcmask 1045509
    %v22 = vsel %vm21, %v20, %v18
    %s23 = scalar_lea.vmem %s0, 186
    %v24 = vld [vmem:[%s23] sm:$0x40]
    %vm25 = vcmask 1046534
    %v26 = vsel %vm25, %v24, %v22
    %s27 = scalar_lea.vmem %s0, 217
    %v28 = vld [vmem:[%s27] sm:$0x80]
    %vm29 = vcmask 1047559
    %v30 = vsel %vm29, %v28, %v26
    %vm31 = vcmask 31744
    %32 = vst.msk [vmem:[#allocation0] ss:$8 sm:$0xf] %vm31, %v30
    %33 = vst.msk [vmem:[#allocation0] ss:$8 sm:$0xf0] %vm31, %v30
    %s34 = scalar_lea.vmem %s0, 31
    %v35 = vld [vmem:[%s34] sm:$0x1]
    %s36 = scalar_lea.vmem %s0, 62
    %v37 = vld [vmem:[%s36] sm:$0x2]
    %vm38 = vcmask 1041409
    %v39 = vsel %vm38, %v37, %v35
    %s40 = scalar_lea.vmem %s0, 93
    %v41 = vld [vmem:[%s40] sm:$0x4]
    %vm42 = vcmask 1042434
    %v43 = vsel %vm42, %v41, %v39
    %s44 = scalar_lea.vmem %s0, 124
    %v45 = vld [vmem:[%s44] sm:$0x8]
    %vm46 = vcmask 1043459
    %v47 = vsel %vm46, %v45, %v43
    %s48 = scalar_lea.vmem %s0, 155
    %v49 = vld [vmem:[%s48] sm:$0x10]
    %vm50 = vcmask 1044484
    %v51 = vsel %vm50, %v49, %v47
    %s52 = scalar_lea.vmem %s0, 186
    %v53 = vld [vmem:[%s52] sm:$0x20]
    %vm54 = vcmask 1045509
    %v55 = vsel %vm54, %v53, %v51
    %s56 = scalar_lea.vmem %s0, 217
    %v57 = vld [vmem:[%s56] sm:$0x40]
    %vm58 = vcmask 1046534
    %v59 = vsel %vm58, %v57, %v55
    %s60 = scalar_lea.vmem %s0, 248
    %v61 = vld [vmem:[%s60] sm:$0x80]
    %vm62 = vcmask 1047559
    %v63 = vsel %vm62, %v61, %v59
    %64 = vrot.lane.b32.xlu0 %v63, 124
    %v65 = vpop.permute.xlu0 %64
    %vm66 = vcmask 1048544
    %67 = vst.msk [vmem:[#allocation0] ss:$8 sm:$0xf] %vm66, %v65
    %68 = vst.msk [vmem:[#allocation0] ss:$8 sm:$0xf0] %vm66, %v65
    %s69 = scalar_lea.vmem %s0, 30
    %v70 = vld [vmem:[%s69] sm:$0x1]
    %s71 = scalar_lea.vmem %s0, 61
    %v72 = vld [vmem:[%s71] sm:$0x2]
    %vm73 = vcmask 1041409
    %v74 = vsel %vm73, %v72, %v70
    %s75 = scalar_lea.vmem %s0, 92
    %v76 = vld [vmem:[%s75] sm:$0x4]
    %vm77 = vcmask 1042434
    %v78 = vsel %vm77, %v76, %v74
    %s79 = scalar_lea.vmem %s0, 123
    %v80 = vld [vmem:[%s79] sm:$0x8]
    %vm81 = vcmask 1043459
    %v82 = vsel %vm81, %v80, %v78
    %s83 = scalar_lea.vmem %s0, 154
    %v84 = vld [vmem:[%s83] sm:$0x10]
    %vm85 = vcmask 1044484
    %v86 = vsel %vm85, %v84, %v82
    %s87 = scalar_lea.vmem %s0, 185
    %v88 = vld [vmem:[%s87] sm:$0x20]
    %vm89 = vcmask 1045509
    %v90 = vsel %vm89, %v88, %v86
    %s91 = scalar_lea.vmem %s0, 216
    %v92 = vld [vmem:[%s91] sm:$0x40]
    %vm93 = vcmask 1046534
    %v94 = vsel %vm93, %v92, %v90
    %s95 = scalar_lea.vmem %s0, 247
    %v96 = vld [vmem:[%s95] sm:$0x80]
    %vm97 = vcmask 1047559
    %v98 = vsel %vm97, %v96, %v94
    %99 = vrot.lane.b32.xlu0 %v98, 120
    %v100 = vpop.permute.xlu0 %99
    %vm101 = vcmask 1015744
    %102 = vst.msk [vmem:[#allocation0] ss:$8 sm:$0xf] %vm101, %v100
    %103 = vst.msk [vmem:[#allocation0] ss:$8 sm:$0xf0] %vm101, %v100
    %s104 = scalar_lea.vmem %s0, 29
    %v105 = vld [vmem:[%s104] sm:$0x1]
    %s106 = scalar_lea.vmem %s0, 60
    %v107 = vld [vmem:[%s106] sm:$0x2]
    %vm108 = vcmask 1041409
    %v109 = vsel %vm108, %v107, %v105
    %s110 = scalar_lea.vmem %s0, 91
    %v111 = vld [vmem:[%s110] sm:$0x4]
    %vm112 = vcmask 1042434
    %v113 = vsel %vm112, %v111, %v109
    %s114 = scalar_lea.vmem %s0, 122
    %v115 = vld [vmem:[%s114] sm:$0x8]
    %vm116 = vcmask 1043459
    %v117 = vsel %vm116, %v115, %v113
    %s118 = scalar_lea.vmem %s0, 153
    %v119 = vld [vmem:[%s118] sm:$0x10]
    %vm120 = vcmask 1044484
    %v121 = vsel %vm120, %v119, %v117
    %s122 = scalar_lea.vmem %s0, 184
    %v123 = vld [vmem:[%s122] sm:$0x20]
    %vm124 = vcmask 1045509
    %v125 = vsel %vm124, %v123, %v121
    %s126 = scalar_lea.vmem %s0, 215
    %v127 = vld [vmem:[%s126] sm:$0x40]
    %vm128 = vcmask 1046534
    %v129 = vsel %vm128, %v127, %v125
    %s130 = scalar_lea.vmem %s0, 246
    %v131 = vld [vmem:[%s130] sm:$0x80]
    %vm132 = vcmask 1047559
    %v133 = vsel %vm132, %v131, %v129
    %134 = vrot.lane.b32.xlu0 %v133, 116
    %v135 = vpop.permute.xlu0 %134
    %vm136 = vcmask 982944
    %137 = vst.msk [vmem:[#allocation0] ss:$8 sm:$0xf] %vm136, %v135
    %138 = vst.msk [vmem:[#allocation0] ss:$8 sm:$0xf0] %vm136, %v135
    %s139 = scalar_lea.vmem %s0, 28
    %v140 = vld [vmem:[%s139] sm:$0x1]
    %s141 = scalar_lea.vmem %s0, 59
    %v142 = vld [vmem:[%s141] sm:$0x2]
    %vm143 = vcmask 1041409
    %v144 = vsel %vm143, %v142, %v140
    %s145 = scalar_lea.vmem %s0, 90
    %v146 = vld [vmem:[%s145] sm:$0x4]
    %vm147 = vcmask 1042434
    %v148 = vsel %vm147, %v146, %v144
    %s149 = scalar_lea.vmem %s0, 121
    %v150 = vld [vmem:[%s149] sm:$0x8]
    %vm151 = vcmask 1043459
    %v152 = vsel %vm151, %v150, %v148
    %s153 = scalar_lea.vmem %s0, 152
    %v154 = vld [vmem:[%s153] sm:$0x10]
    %vm155 = vcmask 1044484
    %v156 = vsel %vm155, %v154, %v152
    %s157 = scalar_lea.vmem %s0, 183
    %v158 = vld [vmem:[%s157] sm:$0x20]
    %vm159 = vcmask 1045509
    %v160 = vsel %vm159, %v158, %v156
    %s161 = scalar_lea.vmem %s0, 214
    %v162 = vld [vmem:[%s161] sm:$0x40]
    %vm163 = vcmask 1046534
    %v164 = vsel %vm163, %v162, %v160
    %s165 = scalar_lea.vmem %s0, 245
    %v166 = vld [vmem:[%s165] sm:$0x80]
    %vm167 = vcmask 1047559
    %v168 = vsel %vm167, %v166, %v164
    %169 = vrot.lane.b32.xlu0 %v168, 112
    %v170 = vpop.permute.xlu0 %169
    %vm171 = vcmask 950144
    %172 = vst.msk [vmem:[#allocation0] ss:$8 sm:$0xf] %vm171, %v170
    %173 = vst.msk [vmem:[#allocation0] ss:$8 sm:$0xf0] %vm171, %v170
    %s174 = scalar_lea.vmem %s0, 27
    %v175 = vld [vmem:[%s174] sm:$0x1]
    %s176 = scalar_lea.vmem %s0, 58
    %v177 = vld [vmem:[%s176] sm:$0x2]
    %vm178 = vcmask 1041409
    %v179 = vsel %vm178, %v177, %v175
    %s180 = scalar_lea.vmem %s0, 89
    %v181 = vld [vmem:[%s180] sm:$0x4]
    %vm182 = vcmask 1042434
    %v183 = vsel %vm182, %v181, %v179
    %s184 = scalar_lea.vmem %s0, 120
    %v185 = vld [vmem:[%s184] sm:$0x8]
    %vm186 = vcmask 1043459
    %v187 = vsel %vm186, %v185, %v183
    %s188 = scalar_lea.vmem %s0, 151
    %v189 = vld [vmem:[%s188] sm:$0x10]
    %vm190 = vcmask 1044484
    %v191 = vsel %vm190, %v189, %v187
    %s192 = scalar_lea.vmem %s0, 182
    %v193 = vld [vmem:[%s192] sm:$0x20]
    %vm194 = vcmask 1045509
    %v195 = vsel %vm194, %v193, %v191
    %s196 = scalar_lea.vmem %s0, 213
    %v197 = vld [vmem:[%s196] sm:$0x40]
    %vm198 = vcmask 1046534
    %v199 = vsel %vm198, %v197, %v195
    %s200 = scalar_lea.vmem %s0, 244
    %v201 = vld [vmem:[%s200] sm:$0x80]
    %vm202 = vcmask 1047559
    %v203 = vsel %vm202, %v201, %v199
    %204 = vrot.lane.b32.xlu0 %v203, 108
    %v205 = vpop.permute.xlu0 %204
    %vm206 = vcmask 917344
    %207 = vst.msk [vmem:[#allocation0] ss:$8 sm:$0xf] %vm206, %v205
    %208 = vst.msk [vmem:[#allocation0] ss:$8 sm:$0xf0] %vm206, %v205
    %s209 = scalar_lea.vmem %s0, 26
    %v210 = vld [vmem:[%s209] sm:$0x1]
    %s211 = scalar_lea.vmem %s0, 57
    %v212 = vld [vmem:[%s211] sm:$0x2]
    %vm213 = vcmask 1041409
    %v214 = vsel %vm213, %v212, %v210
    %s215 = scalar_lea.vmem %s0, 88
    %v216 = vld [vmem:[%s215] sm:$0x4]
    %vm217 = vcmask 1042434
    %v218 = vsel %vm217, %v216, %v214
    %s219 = scalar_lea.vmem %s0, 119
    %v220 = vld [vmem:[%s219] sm:$0x8]
    %vm221 = vcmask 1043459
    %v222 = vsel %vm221, %v220, %v218
    %s223 = scalar_lea.vmem %s0, 150
    %v224 = vld [vmem:[%s223] sm:$0x10]
    %vm225 = vcmask 1044484
    %v226 = vsel %vm225, %v224, %v222
    %s227 = scalar_lea.vmem %s0, 181
    %v228 = vld [vmem:[%s227] sm:$0x20]
    %vm229 = vcmask 1045509
    %v230 = vsel %vm229, %v228, %v226
    %s231 = scalar_lea.vmem %s0, 212
    %v232 = vld [vmem:[%s231] sm:$0x40]
    %vm233 = vcmask 1046534
    %v234 = vsel %vm233, %v232, %v230
    %s235 = scalar_lea.vmem %s0, 243
    %v236 = vld [vmem:[%s235] sm:$0x80]
    %vm237 = vcmask 1047559
    %v238 = vsel %vm237, %v236, %v234
    %239 = vrot.lane.b32.xlu0 %v238, 104
    %v240 = vpop.permute.xlu0 %239
    %vm241 = vcmask 884544
    %242 = vst.msk [vmem:[#allocation0] ss:$8 sm:$0xf] %vm241, %v240
    %243 = vst.msk [vmem:[#allocation0] ss:$8 sm:$0xf0] %vm241, %v240
    %s244 = scalar_lea.vmem %s0, 25
    %v245 = vld [vmem:[%s244] sm:$0x1]
    %s246 = scalar_lea.vmem %s0, 56
    %v247 = vld [vmem:[%s246] sm:$0x2]
    %vm248 = vcmask 1041409
    %v249 = vsel %vm248, %v247, %v245
    %s250 = scalar_lea.vmem %s0, 87
    %v251 = vld [vmem:[%s250] sm:$0x4]
    %vm252 = vcmask 1042434
    %v253 = vsel %vm252, %v251, %v249
    %s254 = scalar_lea.vmem %s0, 118
    %v255 = vld [vmem:[%s254] sm:$0x8]
    %vm256 = vcmask 1043459
    %v257 = vsel %vm256, %v255, %v253
    %s258 = scalar_lea.vmem %s0, 149
    %v259 = vld [vmem:[%s258] sm:$0x10]
    %vm260 = vcmask 1044484
    %v261 = vsel %vm260, %v259, %v257
    %s262 = scalar_lea.vmem %s0, 180
    %v263 = vld [vmem:[%s262] sm:$0x20]
    %vm264 = vcmask 1045509
    %v265 = vsel %vm264, %v263, %v261
    %s266 = scalar_lea.vmem %s0, 211
    %v267 = vld [vmem:[%s266] sm:$0x40]
    %vm268 = vcmask 1046534
    %v269 = vsel %vm268, %v267, %v265
    %s270 = scalar_lea.vmem %s0, 242
    %v271 = vld [vmem:[%s270] sm:$0x80]
    %vm272 = vcmask 1047559
    %v273 = vsel %vm272, %v271, %v269
    %274 = vrot.lane.b32.xlu0 %v273, 100
    %v275 = vpop.permute.xlu0 %274
    %vm276 = vcmask 851744
    %277 = vst.msk [vmem:[#allocation0] ss:$8 sm:$0xf] %vm276, %v275
    %278 = vst.msk [vmem:[#allocation0] ss:$8 sm:$0xf0] %vm276, %v275
    %s279 = scalar_lea.vmem %s0, 24
    %v280 = vld [vmem:[%s279] sm:$0x1]
    %s281 = scalar_lea.vmem %s0, 55
    %v282 = vld [vmem:[%s281] sm:$0x2]
    %vm283 = vcmask 1041409
    %v284 = vsel %vm283, %v282, %v280
    %s285 = scalar_lea.vmem %s0, 86
    %v286 = vld [vmem:[%s285] sm:$0x4]
    %vm287 = vcmask 1042434
    %v288 = vsel %vm287, %v286, %v284
    %s289 = scalar_lea.vmem %s0, 117
    %v290 = vld [vmem:[%s289] sm:$0x8]
    %vm291 = vcmask 1043459
    %v292 = vsel %vm291, %v290, %v288
    %s293 = scalar_lea.vmem %s0, 148
    %v294 = vld [vmem:[%s293] sm:$0x10]
    %vm295 = vcmask 1044484
    %v296 = vsel %vm295, %v294, %v292
    %s297 = scalar_lea.vmem %s0, 179
    %v298 = vld [vmem:[%s297] sm:$0x20]
    %vm299 = vcmask 1045509
    %v300 = vsel %vm299, %v298, %v296
    %s301 = scalar_lea.vmem %s0, 210
    %v302 = vld [vmem:[%s301] sm:$0x40]
    %vm303 = vcmask 1046534
    %v304 = vsel %vm303, %v302, %v300
    %s305 = scalar_lea.vmem %s0, 241
    %v306 = vld [vmem:[%s305] sm:$0x80]
    %vm307 = vcmask 1047559
    %v308 = vsel %vm307, %v306, %v304
    %309 = vrot.lane.b32.xlu0 %v308, 96
    %v310 = vpop.permute.xlu0 %309
    %vm311 = vcmask 818944
    %312 = vst.msk [vmem:[#allocation0] ss:$8 sm:$0xf] %vm311, %v310
    %313 = vst.msk [vmem:[#allocation0] ss:$8 sm:$0xf0] %vm311, %v310
    %s314 = scalar_lea.vmem %s0, 23
    %v315 = vld [vmem:[%s314] sm:$0x1]
    %s316 = scalar_lea.vmem %s0, 54
    %v317 = vld [vmem:[%s316] sm:$0x2]
    %vm318 = vcmask 1041409
    %v319 = vsel %vm318, %v317, %v315
    %s320 = scalar_lea.vmem %s0, 85
    %v321 = vld [vmem:[%s320] sm:$0x4]
    %vm322 = vcmask 1042434
    %v323 = vsel %vm322, %v321, %v319
    %s324 = scalar_lea.vmem %s0, 116
    %v325 = vld [vmem:[%s324] sm:$0x8]
    %vm326 = vcmask 1043459
    %v327 = vsel %vm326, %v325, %v323
    %s328 = scalar_lea.vmem %s0, 147
    %v329 = vld [vmem:[%s328] sm:$0x10]
    %vm330 = vcmask 1044484
    %v331 = vsel %vm330, %v329, %v327
    %s332 = scalar_lea.vmem %s0, 178
    %v333 = vld [vmem:[%s332] sm:$0x20]
    %vm334 = vcmask 1045509
    %v335 = vsel %vm334, %v333, %v331
    %s336 = scalar_lea.vmem %s0, 209
    %v337 = vld [vmem:[%s336] sm:$0x40]
    %vm338 = vcmask 1046534
    %v339 = vsel %vm338, %v337, %v335
    %s340 = scalar_lea.vmem %s0, 240
    %v341 = vld [vmem:[%s340] sm:$0x80]
    %vm342 = vcmask 1047559
    %v343 = vsel %vm342, %v341, %v339
    %344 = vrot.lane.b32.xlu0 %v343, 92
    %v345 = vpop.permute.xlu0 %344
    %vm346 = vcmask 786144
    %347 = vst.msk [vmem:[#allocation0] ss:$8 sm:$0xf] %vm346, %v345
    %348 = vst.msk [vmem:[#allocation0] ss:$8 sm:$0xf0] %vm346, %v345
    %s349 = scalar_lea.vmem %s0, 22
    %v350 = vld [vmem:[%s349] sm:$0x1]
    %s351 = scalar_lea.vmem %s0, 53
    %v352 = vld [vmem:[%s351] sm:$0x2]
    %vm353 = vcmask 1041409
    %v354 = vsel %vm353, %v352, %v350
    %s355 = scalar_lea.vmem %s0, 84
    %v356 = vld [vmem:[%s355] sm:$0x4]
    %vm357 = vcmask 1042434
    %v358 = vsel %vm357, %v356, %v354
    %s359 = scalar_lea.vmem %s0, 115
    %v360 = vld [vmem:[%s359] sm:$0x8]
    %vm361 = vcmask 1043459
    %v362 = vsel %vm361, %v360, %v358
    %s363 = scalar_lea.vmem %s0, 146
    %v364 = vld [vmem:[%s363] sm:$0x10]
    %vm365 = vcmask 1044484
    %v366 = vsel %vm365, %v364, %v362
    %s367 = scalar_lea.vmem %s0, 177
    %v368 = vld [vmem:[%s367] sm:$0x20]
    %vm369 = vcmask 1045509
    %v370 = vsel %vm369, %v368, %v366
    %s371 = scalar_lea.vmem %s0, 208
    %v372 = vld [vmem:[%s371] sm:$0x40]
    %vm373 = vcmask 1046534
    %v374 = vsel %vm373, %v372, %v370
    %s375 = scalar_lea.vmem %s0, 239
    %v376 = vld [vmem:[%s375] sm:$0x80]
    %vm377 = vcmask 1047559
    %v378 = vsel %vm377, %v376, %v374
    %379 = vrot.lane.b32.xlu0 %v378, 88
    %v380 = vpop.permute.xlu0 %379
    %vm381 = vcmask 753344
    %382 = vst.msk [vmem:[#allocation0] ss:$8 sm:$0xf] %vm381, %v380
    %383 = vst.msk [vmem:[#allocation0] ss:$8 sm:$0xf0] %vm381, %v380
    %s384 = scalar_lea.vmem %s0, 21
    %v385 = vld [vmem:[%s384] sm:$0x1]
    %s386 = scalar_lea.vmem %s0, 52
    %v387 = vld [vmem:[%s386] sm:$0x2]
    %vm388 = vcmask 1041409
    %v389 = vsel %vm388, %v387, %v385
    %s390 = scalar_lea.vmem %s0, 83
    %v391 = vld [vmem:[%s390] sm:$0x4]
    %vm392 = vcmask 1042434
    %v393 = vsel %vm392, %v391, %v389
    %s394 = scalar_lea.vmem %s0, 114
    %v395 = vld [vmem:[%s394] sm:$0x8]
    %vm396 = vcmask 1043459
    %v397 = vsel %vm396, %v395, %v393
    %s398 = scalar_lea.vmem %s0, 145
    %v399 = vld [vmem:[%s398] sm:$0x10]
    %vm400 = vcmask 1044484
    %v401 = vsel %vm400, %v399, %v397
    %s402 = scalar_lea.vmem %s0, 176
    %v403 = vld [vmem:[%s402] sm:$0x20]
    %vm404 = vcmask 1045509
    %v405 = vsel %vm404, %v403, %v401
    %s406 = scalar_lea.vmem %s0, 207
    %v407 = vld [vmem:[%s406] sm:$0x40]
    %vm408 = vcmask 1046534
    %v409 = vsel %vm408, %v407, %v405
    %s410 = scalar_lea.vmem %s0, 238
    %v411 = vld [vmem:[%s410] sm:$0x80]
    %vm412 = vcmask 1047559
    %v413 = vsel %vm412, %v411, %v409
    %414 = vrot.lane.b32.xlu0 %v413, 84
    %v415 = vpop.permute.xlu0 %414
    %vm416 = vcmask 720544
    %417 = vst.msk [vmem:[#allocation0] ss:$8 sm:$0xf] %vm416, %v415
    %418 = vst.msk [vmem:[#allocation0] ss:$8 sm:$0xf0] %vm416, %v415
    %s419 = scalar_lea.vmem %s0, 20
    %v420 = vld [vmem:[%s419] sm:$0x1]
    %s421 = scalar_lea.vmem %s0, 51
    %v422 = vld [vmem:[%s421] sm:$0x2]
    %vm423 = vcmask 1041409
    %v424 = vsel %vm423, %v422, %v420
    %s425 = scalar_lea.vmem %s0, 82
    %v426 = vld [vmem:[%s425] sm:$0x4]
    %vm427 = vcmask 1042434
    %v428 = vsel %vm427, %v426, %v424
    %s429 = scalar_lea.vmem %s0, 113
    %v430 = vld [vmem:[%s429] sm:$0x8]
    %vm431 = vcmask 1043459
    %v432 = vsel %vm431, %v430, %v428
    %s433 = scalar_lea.vmem %s0, 144
    %v434 = vld [vmem:[%s433] sm:$0x10]
    %vm435 = vcmask 1044484
    %v436 = vsel %vm435, %v434, %v432
    %s437 = scalar_lea.vmem %s0, 175
    %v438 = vld [vmem:[%s437] sm:$0x20]
    %vm439 = vcmask 1045509
    %v440 = vsel %vm439, %v438, %v436
    %s441 = scalar_lea.vmem %s0, 206
    %v442 = vld [vmem:[%s441] sm:$0x40]
    %vm443 = vcmask 1046534
    %v444 = vsel %vm443, %v442, %v440
    %s445 = scalar_lea.vmem %s0, 237
    %v446 = vld [vmem:[%s445] sm:$0x80]
    %vm447 = vcmask 1047559
    %v448 = vsel %vm447, %v446, %v444
    %449 = vrot.lane.b32.xlu0 %v448, 80
    %v450 = vpop.permute.xlu0 %449
    %vm451 = vcmask 687744
    %452 = vst.msk [vmem:[#allocation0] ss:$8 sm:$0xf] %vm451, %v450
    %453 = vst.msk [vmem:[#allocation0] ss:$8 sm:$0xf0] %vm451, %v450
    %s454 = scalar_lea.vmem %s0, 19
    %v455 = vld [vmem:[%s454] sm:$0x1]
    %s456 = scalar_lea.vmem %s0, 50
    %v457 = vld [vmem:[%s456] sm:$0x2]
    %vm458 = vcmask 1041409
    %v459 = vsel %vm458, %v457, %v455
    %s460 = scalar_lea.vmem %s0, 81
    %v461 = vld [vmem:[%s460] sm:$0x4]
    %vm462 = vcmask 1042434
    %v463 = vsel %vm462, %v461, %v459
    %s464 = scalar_lea.vmem %s0, 112
    %v465 = vld [vmem:[%s464] sm:$0x8]
    %vm466 = vcmask 1043459
    %v467 = vsel %vm466, %v465, %v463
    %s468 = scalar_lea.vmem %s0, 143
    %v469 = vld [vmem:[%s468] sm:$0x10]
    %vm470 = vcmask 1044484
    %v471 = vsel %vm470, %v469, %v467
    %s472 = scalar_lea.vmem %s0, 174
    %v473 = vld [vmem:[%s472] sm:$0x20]
    %vm474 = vcmask 1045509
    %v475 = vsel %vm474, %v473, %v471
    %s476 = scalar_lea.vmem %s0, 205
    %v477 = vld [vmem:[%s476] sm:$0x40]
    %vm478 = vcmask 1046534
    %v479 = vsel %vm478, %v477, %v475
    %s480 = scalar_lea.vmem %s0, 236
    %v481 = vld [vmem:[%s480] sm:$0x80]
    %vm482 = vcmask 1047559
    %v483 = vsel %vm482, %v481, %v479
    %484 = vrot.lane.b32.xlu0 %v483, 76
    %v485 = vpop.permute.xlu0 %484
    %vm486 = vcmask 654944
    %487 = vst.msk [vmem:[#allocation0] ss:$8 sm:$0xf] %vm486, %v485
    %488 = vst.msk [vmem:[#allocation0] ss:$8 sm:$0xf0] %vm486, %v485
    %s489 = scalar_lea.vmem %s0, 18
    %v490 = vld [vmem:[%s489] sm:$0x1]
    %s491 = scalar_lea.vmem %s0, 49
    %v492 = vld [vmem:[%s491] sm:$0x2]
    %vm493 = vcmask 1041409
    %v494 = vsel %vm493, %v492, %v490
    %s495 = scalar_lea.vmem %s0, 80
    %v496 = vld [vmem:[%s495] sm:$0x4]
    %vm497 = vcmask 1042434
    %v498 = vsel %vm497, %v496, %v494
    %s499 = scalar_lea.vmem %s0, 111
    %v500 = vld [vmem:[%s499] sm:$0x8]
    %vm501 = vcmask 1043459
    %v502 = vsel %vm501, %v500, %v498
    %s503 = scalar_lea.vmem %s0, 142
    %v504 = vld [vmem:[%s503] sm:$0x10]
    %vm505 = vcmask 1044484
    %v506 = vsel %vm505, %v504, %v502
    %s507 = scalar_lea.vmem %s0, 173
    %v508 = vld [vmem:[%s507] sm:$0x20]
    %vm509 = vcmask 1045509
    %v510 = vsel %vm509, %v508, %v506
    %s511 = scalar_lea.vmem %s0, 204
    %v512 = vld [vmem:[%s511] sm:$0x40]
    %vm513 = vcmask 1046534
    %v514 = vsel %vm513, %v512, %v510
    %s515 = scalar_lea.vmem %s0, 235
    %v516 = vld [vmem:[%s515] sm:$0x80]
    %vm517 = vcmask 1047559
    %v518 = vsel %vm517, %v516, %v514
    %519 = vrot.lane.b32.xlu0 %v518, 72
    %v520 = vpop.permute.xlu0 %519
    %vm521 = vcmask 622144
    %522 = vst.msk [vmem:[#allocation0] ss:$8 sm:$0xf] %vm521, %v520
    %523 = vst.msk [vmem:[#allocation0] ss:$8 sm:$0xf0] %vm521, %v520
    %s524 = scalar_lea.vmem %s0, 17
    %v525 = vld [vmem:[%s524] sm:$0x1]
    %s526 = scalar_lea.vmem %s0, 48
    %v527 = vld [vmem:[%s526] sm:$0x2]
    %vm528 = vcmask 1041409
    %v529 = vsel %vm528, %v527, %v525
    %s530 = scalar_lea.vmem %s0, 79
    %v531 = vld [vmem:[%s530] sm:$0x4]
    %vm532 = vcmask 1042434
    %v533 = vsel %vm532, %v531, %v529
    %s534 = scalar_lea.vmem %s0, 110
    %v535 = vld [vmem:[%s534] sm:$0x8]
    %vm536 = vcmask 1043459
    %v537 = vsel %vm536, %v535, %v533
    %s538 = scalar_lea.vmem %s0, 141
    %v539 = vld [vmem:[%s538] sm:$0x10]
    %vm540 = vcmask 1044484
    %v541 = vsel %vm540, %v539, %v537
    %s542 = scalar_lea.vmem %s0, 172
    %v543 = vld [vmem:[%s542] sm:$0x20]
    %vm544 = vcmask 1045509
    %v545 = vsel %vm544, %v543, %v541
    %s546 = scalar_lea.vmem %s0, 203
    %v547 = vld [vmem:[%s546] sm:$0x40]
    %vm548 = vcmask 1046534
    %v549 = vsel %vm548, %v547, %v545
    %s550 = scalar_lea.vmem %s0, 234
    %v551 = vld [vmem:[%s550] sm:$0x80]
    %vm552 = vcmask 1047559
    %v553 = vsel %vm552, %v551, %v549
    %554 = vrot.lane.b32.xlu0 %v553, 68
    %v555 = vpop.permute.xlu0 %554
    %vm556 = vcmask 589344
    %557 = vst.msk [vmem:[#allocation0] ss:$8 sm:$0xf] %vm556, %v555
    %558 = vst.msk [vmem:[#allocation0] ss:$8 sm:$0xf0] %vm556, %v555
    %s559 = scalar_lea.vmem %s0, 16
    %v560 = vld [vmem:[%s559] sm:$0x1]
    %s561 = scalar_lea.vmem %s0, 47
    %v562 = vld [vmem:[%s561] sm:$0x2]
    %vm563 = vcmask 1041409
    %v564 = vsel %vm563, %v562, %v560
    %s565 = scalar_lea.vmem %s0, 78
    %v566 = vld [vmem:[%s565] sm:$0x4]
    %vm567 = vcmask 1042434
    %v568 = vsel %vm567, %v566, %v564
    %s569 = scalar_lea.vmem %s0, 109
    %v570 = vld [vmem:[%s569] sm:$0x8]
    %vm571 = vcmask 1043459
    %v572 = vsel %vm571, %v570, %v568
    %s573 = scalar_lea.vmem %s0, 140
    %v574 = vld [vmem:[%s573] sm:$0x10]
    %vm575 = vcmask 1044484
    %v576 = vsel %vm575, %v574, %v572
    %s577 = scalar_lea.vmem %s0, 171
    %v578 = vld [vmem:[%s577] sm:$0x20]
    %vm579 = vcmask 1045509
    %v580 = vsel %vm579, %v578, %v576
    %s581 = scalar_lea.vmem %s0, 202
    %v582 = vld [vmem:[%s581] sm:$0x40]
    %vm583 = vcmask 1046534
    %v584 = vsel %vm583, %v582, %v580
    %s585 = scalar_lea.vmem %s0, 233
    %v586 = vld [vmem:[%s585] sm:$0x80]
    %vm587 = vcmask 1047559
    %v588 = vsel %vm587, %v586, %v584
    %589 = vrot.lane.b32.xlu0 %v588, 64
    %v590 = vpop.permute.xlu0 %589
    %vm591 = vcmask 556544
    %592 = vst.msk [vmem:[#allocation0] ss:$8 sm:$0xf] %vm591, %v590
    %593 = vst.msk [vmem:[#allocation0] ss:$8 sm:$0xf0] %vm591, %v590
    %s594 = scalar_lea.vmem %s0, 15
    %v595 = vld [vmem:[%s594] sm:$0x1]
    %s596 = scalar_lea.vmem %s0, 46
    %v597 = vld [vmem:[%s596] sm:$0x2]
    %vm598 = vcmask 1041409
    %v599 = vsel %vm598, %v597, %v595
    %s600 = scalar_lea.vmem %s0, 77
    %v601 = vld [vmem:[%s600] sm:$0x4]
    %vm602 = vcmask 1042434
    %v603 = vsel %vm602, %v601, %v599
    %s604 = scalar_lea.vmem %s0, 108
    %v605 = vld [vmem:[%s604] sm:$0x8]
    %vm606 = vcmask 1043459
    %v607 = vsel %vm606, %v605, %v603
    %s608 = scalar_lea.vmem %s0, 139
    %v609 = vld [vmem:[%s608] sm:$0x10]
    %vm610 = vcmask 1044484
    %v611 = vsel %vm610, %v609, %v607
    %s612 = scalar_lea.vmem %s0, 170
    %v613 = vld [vmem:[%s612] sm:$0x20]
    %vm614 = vcmask 1045509
    %v615 = vsel %vm614, %v613, %v611
    %s616 = scalar_lea.vmem %s0, 201
    %v617 = vld [vmem:[%s616] sm:$0x40]
    %vm618 = vcmask 1046534
    %v619 = vsel %vm618, %v617, %v615
    %s620 = scalar_lea.vmem %s0, 232
    %v621 = vld [vmem:[%s620] sm:$0x80]
    %vm622 = vcmask 1047559
    %v623 = vsel %vm622, %v621, %v619
    %624 = vrot.lane.b32.xlu0 %v623, 60
    %v625 = vpop.permute.xlu0 %624
    %vm626 = vcmask 523744
    %627 = vst.msk [vmem:[#allocation0] ss:$8 sm:$0xf] %vm626, %v625
    %628 = vst.msk [vmem:[#allocation0] ss:$8 sm:$0xf0] %vm626, %v625
    %s629 = scalar_lea.vmem %s0, 14
    %v630 = vld [vmem:[%s629] sm:$0x1]
    %s631 = scalar_lea.vmem %s0, 45
    %v632 = vld [vmem:[%s631] sm:$0x2]
    %vm633 = vcmask 1041409
    %v634 = vsel %vm633, %v632, %v630
    %s635 = scalar_lea.vmem %s0, 76
    %v636 = vld [vmem:[%s635] sm:$0x4]
    %vm637 = vcmask 1042434
    %v638 = vsel %vm637, %v636, %v634
    %s639 = scalar_lea.vmem %s0, 107
    %v640 = vld [vmem:[%s639] sm:$0x8]
    %vm641 = vcmask 1043459
    %v642 = vsel %vm641, %v640, %v638
    %s643 = scalar_lea.vmem %s0, 138
    %v644 = vld [vmem:[%s643] sm:$0x10]
    %vm645 = vcmask 1044484
    %v646 = vsel %vm645, %v644, %v642
    %s647 = scalar_lea.vmem %s0, 169
    %v648 = vld [vmem:[%s647] sm:$0x20]
    %vm649 = vcmask 1045509
    %v650 = vsel %vm649, %v648, %v646
    %s651 = scalar_lea.vmem %s0, 200
    %v652 = vld [vmem:[%s651] sm:$0x40]
    %vm653 = vcmask 1046534
    %v654 = vsel %vm653, %v652, %v650
    %s655 = scalar_lea.vmem %s0, 231
    %v656 = vld [vmem:[%s655] sm:$0x80]
    %vm657 = vcmask 1047559
    %v658 = vsel %vm657, %v656, %v654
    %659 = vrot.lane.b32.xlu0 %v658, 56
    %v660 = vpop.permute.xlu0 %659
    %vm661 = vcmask 490944
    %662 = vst.msk [vmem:[#allocation0] ss:$8 sm:$0xf] %vm661, %v660
    %663 = vst.msk [vmem:[#allocation0] ss:$8 sm:$0xf0] %vm661, %v660
    %s664 = scalar_lea.vmem %s0, 13
    %v665 = vld [vmem:[%s664] sm:$0x1]
    %s666 = scalar_lea.vmem %s0, 44
    %v667 = vld [vmem:[%s666] sm:$0x2]
    %vm668 = vcmask 1041409
    %v669 = vsel %vm668, %v667, %v665
    %s670 = scalar_lea.vmem %s0, 75
    %v671 = vld [vmem:[%s670] sm:$0x4]
    %vm672 = vcmask 1042434
    %v673 = vsel %vm672, %v671, %v669
    %s674 = scalar_lea.vmem %s0, 106
    %v675 = vld [vmem:[%s674] sm:$0x8]
    %vm676 = vcmask 1043459
    %v677 = vsel %vm676, %v675, %v673
    %s678 = scalar_lea.vmem %s0, 137
    %v679 = vld [vmem:[%s678] sm:$0x10]
    %vm680 = vcmask 1044484
    %v681 = vsel %vm680, %v679, %v677
    %s682 = scalar_lea.vmem %s0, 168
    %v683 = vld [vmem:[%s682] sm:$0x20]
    %vm684 = vcmask 1045509
    %v685 = vsel %vm684, %v683, %v681
    %s686 = scalar_lea.vmem %s0, 199
    %v687 = vld [vmem:[%s686] sm:$0x40]
    %vm688 = vcmask 1046534
    %v689 = vsel %vm688, %v687, %v685
    %s690 = scalar_lea.vmem %s0, 230
    %v691 = vld [vmem:[%s690] sm:$0x80]
    %vm692 = vcmask 1047559
    %v693 = vsel %vm692, %v691, %v689
    %694 = vrot.lane.b32.xlu0 %v693, 52
    %v695 = vpop.permute.xlu0 %694
    %vm696 = vcmask 458144
    %697 = vst.msk [vmem:[#allocation0] ss:$8 sm:$0xf] %vm696, %v695
    %698 = vst.msk [vmem:[#allocation0] ss:$8 sm:$0xf0] %vm696, %v695
    %s699 = scalar_lea.vmem %s0, 12
    %v700 = vld [vmem:[%s699] sm:$0x1]
    %s701 = scalar_lea.vmem %s0, 43
    %v702 = vld [vmem:[%s701] sm:$0x2]
    %vm703 = vcmask 1041409
    %v704 = vsel %vm703, %v702, %v700
    %s705 = scalar_lea.vmem %s0, 74
    %v706 = vld [vmem:[%s705] sm:$0x4]
    %vm707 = vcmask 1042434
    %v708 = vsel %vm707, %v706, %v704
    %s709 = scalar_lea.vmem %s0, 105
    %v710 = vld [vmem:[%s709] sm:$0x8]
    %vm711 = vcmask 1043459
    %v712 = vsel %vm711, %v710, %v708
    %s713 = scalar_lea.vmem %s0, 136
    %v714 = vld [vmem:[%s713] sm:$0x10]
    %vm715 = vcmask 1044484
    %v716 = vsel %vm715, %v714, %v712
    %s717 = scalar_lea.vmem %s0, 167
    %v718 = vld [vmem:[%s717] sm:$0x20]
    %vm719 = vcmask 1045509
    %v720 = vsel %vm719, %v718, %v716
    %s721 = scalar_lea.vmem %s0, 198
    %v722 = vld [vmem:[%s721] sm:$0x40]
    %vm723 = vcmask 1046534
    %v724 = vsel %vm723, %v722, %v720
    %s725 = scalar_lea.vmem %s0, 229
    %v726 = vld [vmem:[%s725] sm:$0x80]
    %vm727 = vcmask 1047559
    %v728 = vsel %vm727, %v726, %v724
    %729 = vrot.lane.b32.xlu0 %v728, 48
    %v730 = vpop.permute.xlu0 %729
    %vm731 = vcmask 425344
    %732 = vst.msk [vmem:[#allocation0] ss:$8 sm:$0xf] %vm731, %v730
    %733 = vst.msk [vmem:[#allocation0] ss:$8 sm:$0xf0] %vm731, %v730
    %s734 = scalar_lea.vmem %s0, 11
    %v735 = vld [vmem:[%s734] sm:$0x1]
    %s736 = scalar_lea.vmem %s0, 42
    %v737 = vld [vmem:[%s736] sm:$0x2]
    %vm738 = vcmask 1041409
    %v739 = vsel %vm738, %v737, %v735
    %s740 = scalar_lea.vmem %s0, 73
    %v741 = vld [vmem:[%s740] sm:$0x4]
    %vm742 = vcmask 1042434
    %v743 = vsel %vm742, %v741, %v739
    %s744 = scalar_lea.vmem %s0, 104
    %v745 = vld [vmem:[%s744] sm:$0x8]
    %vm746 = vcmask 1043459
    %v747 = vsel %vm746, %v745, %v743
    %s748 = scalar_lea.vmem %s0, 135
    %v749 = vld [vmem:[%s748] sm:$0x10]
    %vm750 = vcmask 1044484
    %v751 = vsel %vm750, %v749, %v747
    %s752 = scalar_lea.vmem %s0, 166
    %v753 = vld [vmem:[%s752] sm:$0x20]
    %vm754 = vcmask 1045509
    %v755 = vsel %vm754, %v753, %v751
    %s756 = scalar_lea.vmem %s0, 197
    %v757 = vld [vmem:[%s756] sm:$0x40]
    %vm758 = vcmask 1046534
    %v759 = vsel %vm758, %v757, %v755
    %s760 = scalar_lea.vmem %s0, 228
    %v761 = vld [vmem:[%s760] sm:$0x80]
    %vm762 = vcmask 1047559
    %v763 = vsel %vm762, %v761, %v759
    %764 = vrot.lane.b32.xlu0 %v763, 44
    %v765 = vpop.permute.xlu0 %764
    %vm766 = vcmask 392544
    %767 = vst.msk [vmem:[#allocation0] ss:$8 sm:$0xf] %vm766, %v765
    %768 = vst.msk [vmem:[#allocation0] ss:$8 sm:$0xf0] %vm766, %v765
    %s769 = scalar_lea.vmem %s0, 10
    %v770 = vld [vmem:[%s769] sm:$0x1]
    %s771 = scalar_lea.vmem %s0, 41
    %v772 = vld [vmem:[%s771] sm:$0x2]
    %vm773 = vcmask 1041409
    %v774 = vsel %vm773, %v772, %v770
    %s775 = scalar_lea.vmem %s0, 72
    %v776 = vld [vmem:[%s775] sm:$0x4]
    %vm777 = vcmask 1042434
    %v778 = vsel %vm777, %v776, %v774
    %s779 = scalar_lea.vmem %s0, 103
    %v780 = vld [vmem:[%s779] sm:$0x8]
    %vm781 = vcmask 1043459
    %v782 = vsel %vm781, %v780, %v778
    %s783 = scalar_lea.vmem %s0, 134
    %v784 = vld [vmem:[%s783] sm:$0x10]
    %vm785 = vcmask 1044484
    %v786 = vsel %vm785, %v784, %v782
    %s787 = scalar_lea.vmem %s0, 165
    %v788 = vld [vmem:[%s787] sm:$0x20]
    %vm789 = vcmask 1045509
    %v790 = vsel %vm789, %v788, %v786
    %s791 = scalar_lea.vmem %s0, 196
    %v792 = vld [vmem:[%s791] sm:$0x40]
    %vm793 = vcmask 1046534
    %v794 = vsel %vm793, %v792, %v790
    %s795 = scalar_lea.vmem %s0, 227
    %v796 = vld [vmem:[%s795] sm:$0x80]
    %vm797 = vcmask 1047559
    %v798 = vsel %vm797, %v796, %v794
    %799 = vrot.lane.b32.xlu0 %v798, 40
    %v800 = vpop.permute.xlu0 %799
    %vm801 = vcmask 359744
    %802 = vst.msk [vmem:[#allocation0] ss:$8 sm:$0xf] %vm801, %v800
    %803 = vst.msk [vmem:[#allocation0] ss:$8 sm:$0xf0] %vm801, %v800
    %s804 = scalar_lea.vmem %s0, 9
    %v805 = vld [vmem:[%s804] sm:$0x1]
    %s806 = scalar_lea.vmem %s0, 40
    %v807 = vld [vmem:[%s806] sm:$0x2]
    %vm808 = vcmask 1041409
    %v809 = vsel %vm808, %v807, %v805
    %s810 = scalar_lea.vmem %s0, 71
    %v811 = vld [vmem:[%s810] sm:$0x4]
    %vm812 = vcmask 1042434
    %v813 = vsel %vm812, %v811, %v809
    %s814 = scalar_lea.vmem %s0, 102
    %v815 = vld [vmem:[%s814] sm:$0x8]
    %vm816 = vcmask 1043459
    %v817 = vsel %vm816, %v815, %v813
    %s818 = scalar_lea.vmem %s0, 133
    %v819 = vld [vmem:[%s818] sm:$0x10]
    %vm820 = vcmask 1044484
    %v821 = vsel %vm820, %v819, %v817
    %s822 = scalar_lea.vmem %s0, 164
    %v823 = vld [vmem:[%s822] sm:$0x20]
    %vm824 = vcmask 1045509
    %v825 = vsel %vm824, %v823, %v821
    %s826 = scalar_lea.vmem %s0, 195
    %v827 = vld [vmem:[%s826] sm:$0x40]
    %vm828 = vcmask 1046534
    %v829 = vsel %vm828, %v827, %v825
    %s830 = scalar_lea.vmem %s0, 226
    %v831 = vld [vmem:[%s830] sm:$0x80]
    %vm832 = vcmask 1047559
    %v833 = vsel %vm832, %v831, %v829
    %834 = vrot.lane.b32.xlu0 %v833, 36
    %v835 = vpop.permute.xlu0 %834
    %vm836 = vcmask 326944
    %837 = vst.msk [vmem:[#allocation0] ss:$8 sm:$0xf] %vm836, %v835
    %838 = vst.msk [vmem:[#allocation0] ss:$8 sm:$0xf0] %vm836, %v835
    %s839 = scalar_lea.vmem %s0, 8
    %v840 = vld [vmem:[%s839] sm:$0x1]
    %s841 = scalar_lea.vmem %s0, 39
    %v842 = vld [vmem:[%s841] sm:$0x2]
    %vm843 = vcmask 1041409
    %v844 = vsel %vm843, %v842, %v840
    %s845 = scalar_lea.vmem %s0, 70
    %v846 = vld [vmem:[%s845] sm:$0x4]
    %vm847 = vcmask 1042434
    %v848 = vsel %vm847, %v846, %v844
    %s849 = scalar_lea.vmem %s0, 101
    %v850 = vld [vmem:[%s849] sm:$0x8]
    %vm851 = vcmask 1043459
    %v852 = vsel %vm851, %v850, %v848
    %s853 = scalar_lea.vmem %s0, 132
    %v854 = vld [vmem:[%s853] sm:$0x10]
    %vm855 = vcmask 1044484
    %v856 = vsel %vm855, %v854, %v852
    %s857 = scalar_lea.vmem %s0, 163
    %v858 = vld [vmem:[%s857] sm:$0x20]
    %vm859 = vcmask 1045509
    %v860 = vsel %vm859, %v858, %v856
    %s861 = scalar_lea.vmem %s0, 194
    %v862 = vld [vmem:[%s861] sm:$0x40]
    %vm863 = vcmask 1046534
    %v864 = vsel %vm863, %v862, %v860
    %s865 = scalar_lea.vmem %s0, 225
    %v866 = vld [vmem:[%s865] sm:$0x80]
    %vm867 = vcmask 1047559
    %v868 = vsel %vm867, %v866, %v864
    %869 = vrot.lane.b32.xlu0 %v868, 32
    %v870 = vpop.permute.xlu0 %869
    %vm871 = vcmask 294144
    %872 = vst.msk [vmem:[#allocation0] ss:$8 sm:$0xf] %vm871, %v870
    %873 = vst.msk [vmem:[#allocation0] ss:$8 sm:$0xf0] %vm871, %v870
    %s874 = scalar_lea.vmem %s0, 7
    %v875 = vld [vmem:[%s874] sm:$0x1]
    %s876 = scalar_lea.vmem %s0, 38
    %v877 = vld [vmem:[%s876] sm:$0x2]
    %vm878 = vcmask 1041409
    %v879 = vsel %vm878, %v877, %v875
    %s880 = scalar_lea.vmem %s0, 69
    %v881 = vld [vmem:[%s880] sm:$0x4]
    %vm882 = vcmask 1042434
    %v883 = vsel %vm882, %v881, %v879
    %s884 = scalar_lea.vmem %s0, 100
    %v885 = vld [vmem:[%s884] sm:$0x8]
    %vm886 = vcmask 1043459
    %v887 = vsel %vm886, %v885, %v883
    %s888 = scalar_lea.vmem %s0, 131
    %v889 = vld [vmem:[%s888] sm:$0x10]
    %vm890 = vcmask 1044484
    %v891 = vsel %vm890, %v889, %v887
    %s892 = scalar_lea.vmem %s0, 162
    %v893 = vld [vmem:[%s892] sm:$0x20]
    %vm894 = vcmask 1045509
    %v895 = vsel %vm894, %v893, %v891
    %s896 = scalar_lea.vmem %s0, 193
    %v897 = vld [vmem:[%s896] sm:$0x40]
    %vm898 = vcmask 1046534
    %v899 = vsel %vm898, %v897, %v895
    %s900 = scalar_lea.vmem %s0, 224
    %v901 = vld [vmem:[%s900] sm:$0x80]
    %vm902 = vcmask 1047559
    %v903 = vsel %vm902, %v901, %v899
    %904 = vrot.lane.b32.xlu0 %v903, 28
    %v905 = vpop.permute.xlu0 %904
    %vm906 = vcmask 261344
    %907 = vst.msk [vmem:[#allocation0] ss:$8 sm:$0xf] %vm906, %v905
    %908 = vst.msk [vmem:[#allocation0] ss:$8 sm:$0xf0] %vm906, %v905
    %s909 = scalar_lea.vmem %s0, 6
    %v910 = vld [vmem:[%s909] sm:$0x1]
    %s911 = scalar_lea.vmem %s0, 37
    %v912 = vld [vmem:[%s911] sm:$0x2]
    %vm913 = vcmask 1041409
    %v914 = vsel %vm913, %v912, %v910
    %s915 = scalar_lea.vmem %s0, 68
    %v916 = vld [vmem:[%s915] sm:$0x4]
    %vm917 = vcmask 1042434
    %v918 = vsel %vm917, %v916, %v914
    %s919 = scalar_lea.vmem %s0, 99
    %v920 = vld [vmem:[%s919] sm:$0x8]
    %vm921 = vcmask 1043459
    %v922 = vsel %vm921, %v920, %v918
    %s923 = scalar_lea.vmem %s0, 130
    %v924 = vld [vmem:[%s923] sm:$0x10]
    %vm925 = vcmask 1044484
    %v926 = vsel %vm925, %v924, %v922
    %s927 = scalar_lea.vmem %s0, 161
    %v928 = vld [vmem:[%s927] sm:$0x20]
    %vm929 = vcmask 1045509
    %v930 = vsel %vm929, %v928, %v926
    %s931 = scalar_lea.vmem %s0, 192
    %v932 = vld [vmem:[%s931] sm:$0x40]
    %vm933 = vcmask 1046534
    %v934 = vsel %vm933, %v932, %v930
    %s935 = scalar_lea.vmem %s0, 223
    %v936 = vld [vmem:[%s935] sm:$0x80]
    %vm937 = vcmask 1047559
    %v938 = vsel %vm937, %v936, %v934
    %939 = vrot.lane.b32.xlu0 %v938, 24
    %v940 = vpop.permute.xlu0 %939
    %vm941 = vcmask 228544
    %942 = vst.msk [vmem:[#allocation0] ss:$8 sm:$0xf] %vm941, %v940
    %943 = vst.msk [vmem:[#allocation0] ss:$8 sm:$0xf0] %vm941, %v940
    %s944 = scalar_lea.vmem %s0, 5
    %v945 = vld [vmem:[%s944] sm:$0x1]
    %s946 = scalar_lea.vmem %s0, 36
    %v947 = vld [vmem:[%s946] sm:$0x2]
    %vm948 = vcmask 1041409
    %v949 = vsel %vm948, %v947, %v945
    %s950 = scalar_lea.vmem %s0, 67
    %v951 = vld [vmem:[%s950] sm:$0x4]
    %vm952 = vcmask 1042434
    %v953 = vsel %vm952, %v951, %v949
    %s954 = scalar_lea.vmem %s0, 98
    %v955 = vld [vmem:[%s954] sm:$0x8]
    %vm956 = vcmask 1043459
    %v957 = vsel %vm956, %v955, %v953
    %s958 = scalar_lea.vmem %s0, 129
    %v959 = vld [vmem:[%s958] sm:$0x10]
    %vm960 = vcmask 1044484
    %v961 = vsel %vm960, %v959, %v957
    %s962 = scalar_lea.vmem %s0, 160
    %v963 = vld [vmem:[%s962] sm:$0x20]
    %vm964 = vcmask 1045509
    %v965 = vsel %vm964, %v963, %v961
    %s966 = scalar_lea.vmem %s0, 191
    %v967 = vld [vmem:[%s966] sm:$0x40]
    %vm968 = vcmask 1046534
    %v969 = vsel %vm968, %v967, %v965
    %s970 = scalar_lea.vmem %s0, 222
    %v971 = vld [vmem:[%s970] sm:$0x80]
    %vm972 = vcmask 1047559
    %v973 = vsel %vm972, %v971, %v969
    %974 = vrot.lane.b32.xlu0 %v973, 20
    %v975 = vpop.permute.xlu0 %974
    %vm976 = vcmask 195744
    %977 = vst.msk [vmem:[#allocation0] ss:$8 sm:$0xf] %vm976, %v975
    %978 = vst.msk [vmem:[#allocation0] ss:$8 sm:$0xf0] %vm976, %v975
    %s979 = scalar_lea.vmem %s0, 4
    %v980 = vld [vmem:[%s979] sm:$0x1]
    %s981 = scalar_lea.vmem %s0, 35
    %v982 = vld [vmem:[%s981] sm:$0x2]
    %vm983 = vcmask 1041409
    %v984 = vsel %vm983, %v982, %v980
    %s985 = scalar_lea.vmem %s0, 66
    %v986 = vld [vmem:[%s985] sm:$0x4]
    %vm987 = vcmask 1042434
    %v988 = vsel %vm987, %v986, %v984
    %s989 = scalar_lea.vmem %s0, 97
    %v990 = vld [vmem:[%s989] sm:$0x8]
    %vm991 = vcmask 1043459
    %v992 = vsel %vm991, %v990, %v988
    %s993 = scalar_lea.vmem %s0, 128
    %v994 = vld [vmem:[%s993] sm:$0x10]
    %vm995 = vcmask 1044484
    %v996 = vsel %vm995, %v994, %v992
    %s997 = scalar_lea.vmem %s0, 159
    %v998 = vld [vmem:[%s997] sm:$0x20]
    %vm999 = vcmask 1045509
    %v1000 = vsel %vm999, %v998, %v996
    %s1001 = scalar_lea.vmem %s0, 190
    %v1002 = vld [vmem:[%s1001] sm:$0x40]
    %vm1003 = vcmask 1046534
    %v1004 = vsel %vm1003, %v1002, %v1000
    %s1005 = scalar_lea.vmem %s0, 221
    %v1006 = vld [vmem:[%s1005] sm:$0x80]
    %vm1007 = vcmask 1047559
    %v1008 = vsel %vm1007, %v1006, %v1004
    %1009 = vrot.lane.b32.xlu0 %v1008, 16
    %v1010 = vpop.permute.xlu0 %1009
    %vm1011 = vcmask 162944
    %1012 = vst.msk [vmem:[#allocation0] ss:$8 sm:$0xf] %vm1011, %v1010
    %1013 = vst.msk [vmem:[#allocation0] ss:$8 sm:$0xf0] %vm1011, %v1010
    %s1014 = scalar_lea.vmem %s0, 3
    %v1015 = vld [vmem:[%s1014] sm:$0x1]
    %s1016 = scalar_lea.vmem %s0, 34
    %v1017 = vld [vmem:[%s1016] sm:$0x2]
    %vm1018 = vcmask 1041409
    %v1019 = vsel %vm1018, %v1017, %v1015
    %s1020 = scalar_lea.vmem %s0, 65
    %v1021 = vld [vmem:[%s1020] sm:$0x4]
    %vm1022 = vcmask 1042434
    %v1023 = vsel %vm1022, %v1021, %v1019
    %s1024 = scalar_lea.vmem %s0, 96
    %v1025 = vld [vmem:[%s1024] sm:$0x8]
    %vm1026 = vcmask 1043459
    %v1027 = vsel %vm1026, %v1025, %v1023
    %s1028 = scalar_lea.vmem %s0, 127
    %v1029 = vld [vmem:[%s1028] sm:$0x10]
    %vm1030 = vcmask 1044484
    %v1031 = vsel %vm1030, %v1029, %v1027
    %s1032 = scalar_lea.vmem %s0, 158
    %v1033 = vld [vmem:[%s1032] sm:$0x20]
    %vm1034 = vcmask 1045509
    %v1035 = vsel %vm1034, %v1033, %v1031
    %s1036 = scalar_lea.vmem %s0, 189
    %v1037 = vld [vmem:[%s1036] sm:$0x40]
    %vm1038 = vcmask 1046534
    %v1039 = vsel %vm1038, %v1037, %v1035
    %s1040 = scalar_lea.vmem %s0, 220
    %v1041 = vld [vmem:[%s1040] sm:$0x80]
    %vm1042 = vcmask 1047559
    %v1043 = vsel %vm1042, %v1041, %v1039
    %1044 = vrot.lane.b32.xlu0 %v1043, 12
    %v1045 = vpop.permute.xlu0 %1044
    %vm1046 = vcmask 130144
    %1047 = vst.msk [vmem:[#allocation0] ss:$8 sm:$0xf] %vm1046, %v1045
    %1048 = vst.msk [vmem:[#allocation0] ss:$8 sm:$0xf0] %vm1046, %v1045
    %s1049 = scalar_lea.vmem %s0, 2
    %v1050 = vld [vmem:[%s1049] sm:$0x1]
    %s1051 = scalar_lea.vmem %s0, 33
    %v1052 = vld [vmem:[%s1051] sm:$0x2]
    %vm1053 = vcmask 1041409
    %v1054 = vsel %vm1053, %v1052, %v1050
    %s1055 = scalar_lea.vmem %s0, 64
    %v1056 = vld [vmem:[%s1055] sm:$0x4]
    %vm1057 = vcmask 1042434
    %v1058 = vsel %vm1057, %v1056, %v1054
    %s1059 = scalar_lea.vmem %s0, 95
    %v1060 = vld [vmem:[%s1059] sm:$0x8]
    %vm1061 = vcmask 1043459
    %v1062 = vsel %vm1061, %v1060, %v1058
    %s1063 = scalar_lea.vmem %s0, 126
    %v1064 = vld [vmem:[%s1063] sm:$0x10]
    %vm1065 = vcmask 1044484
    %v1066 = vsel %vm1065, %v1064, %v1062
    %s1067 = scalar_lea.vmem %s0, 157
    %v1068 = vld [vmem:[%s1067] sm:$0x20]
    %vm1069 = vcmask 1045509
    %v1070 = vsel %vm1069, %v1068, %v1066
    %s1071 = scalar_lea.vmem %s0, 188
    %v1072 = vld [vmem:[%s1071] sm:$0x40]
    %vm1073 = vcmask 1046534
    %v1074 = vsel %vm1073, %v1072, %v1070
    %s1075 = scalar_lea.vmem %s0, 219
    %v1076 = vld [vmem:[%s1075] sm:$0x80]
    %vm1077 = vcmask 1047559
    %v1078 = vsel %vm1077, %v1076, %v1074
    %1079 = vrot.lane.b32.xlu0 %v1078, 8
    %v1080 = vpop.permute.xlu0 %1079
    %vm1081 = vcmask 97344
    %1082 = vst.msk [vmem:[#allocation0] ss:$8 sm:$0xf] %vm1081, %v1080
    %1083 = vst.msk [vmem:[#allocation0] ss:$8 sm:$0xf0] %vm1081, %v1080
    %s1084 = scalar_lea.vmem %s0, 1
    %v1085 = vld [vmem:[%s1084] sm:$0x1]
    %s1086 = scalar_lea.vmem %s0, 32
    %v1087 = vld [vmem:[%s1086] sm:$0x2]
    %vm1088 = vcmask 1041409
    %v1089 = vsel %vm1088, %v1087, %v1085
    %s1090 = scalar_lea.vmem %s0, 63
    %v1091 = vld [vmem:[%s1090] sm:$0x4]
    %vm1092 = vcmask 1042434
    %v1093 = vsel %vm1092, %v1091, %v1089
    %s1094 = scalar_lea.vmem %s0, 94
    %v1095 = vld [vmem:[%s1094] sm:$0x8]
    %vm1096 = vcmask 1043459
    %v1097 = vsel %vm1096, %v1095, %v1093
    %s1098 = scalar_lea.vmem %s0, 125
    %v1099 = vld [vmem:[%s1098] sm:$0x10]
    %vm1100 = vcmask 1044484
    %v1101 = vsel %vm1100, %v1099, %v1097
    %s1102 = scalar_lea.vmem %s0, 156
    %v1103 = vld [vmem:[%s1102] sm:$0x20]
    %vm1104 = vcmask 1045509
    %v1105 = vsel %vm1104, %v1103, %v1101
    %s1106 = scalar_lea.vmem %s0, 187
    %v1107 = vld [vmem:[%s1106] sm:$0x40]
    %vm1108 = vcmask 1046534
    %v1109 = vsel %vm1108, %v1107, %v1105
    %s1110 = scalar_lea.vmem %s0, 218
    %v1111 = vld [vmem:[%s1110] sm:$0x80]
    %vm1112 = vcmask 1047559
    %v1113 = vsel %vm1112, %v1111, %v1109
    %1114 = vrot.lane.b32.xlu0 %v1113, 4
    %v1115 = vpop.permute.xlu0 %1114
    %vm1116 = vcmask 64544
    %1117 = vst.msk [vmem:[#allocation0] ss:$8 sm:$0xf] %vm1116, %v1115
    %1118 = vst.msk [vmem:[#allocation0] ss:$8 sm:$0xf0] %vm1116, %v1115
    %s1120 = sshllo.u32 0, 1
    %v1122 = vld [vmem:[#allocation0] sm:%s1120]
    %s1123 = sshllo.u32 0, 1
    %1124 = vst [vmem:[%s1] sm:%s1123] %v1122
    %s1125 = scalar_lea.vmem [#allocation0], 8
    %v1126 = vld [vmem:[%s1125] sm:%s1120]
    %s1127 = sshllo.u32 0, 1
    %s1128 = scalar_lea.vmem %s1, 1
    %1129 = vst [vmem:[%s1128] sm:%s1127] %v1126
    %s1130 = scalar_lea.vmem [#allocation0], 16
    %v1131 = vld [vmem:[%s1130] sm:%s1120]
    %s1132 = sshllo.u32 0, 1
    %s1133 = smul.addr 1, 2
    %s1134 = scalar_lea.vmem %s1, %s1133
    %1135 = vst [vmem:[%s1134] sm:%s1132] %v1131
    %s1136 = scalar_lea.vmem [#allocation0], 24
    %v1137 = vld [vmem:[%s1136] sm:%s1120]
    %s1138 = sshllo.u32 0, 1
    %s1139 = smul.addr 1, 3
    %s1140 = scalar_lea.vmem %s1, %s1139
    %1141 = vst [vmem:[%s1140] sm:%s1138] %v1137
    %s1142 = scalar_lea.vmem [#allocation0], 32
    %v1143 = vld [vmem:[%s1142] sm:%s1120]
    %s1144 = sshllo.u32 0, 1
    %s1145 = smul.addr 1, 4
    %s1146 = scalar_lea.vmem %s1, %s1145
    %1147 = vst [vmem:[%s1146] sm:%s1144] %v1143
    %s1148 = scalar_lea.vmem [#allocation0], 40
    %v1149 = vld [vmem:[%s1148] sm:%s1120]
    %s1150 = sshllo.u32 0, 1
    %s1151 = smul.addr 1, 5
    %s1152 = scalar_lea.vmem %s1, %s1151
    %1153 = vst [vmem:[%s1152] sm:%s1150] %v1149
    %s1154 = scalar_lea.vmem [#allocation0], 48
    %v1155 = vld [vmem:[%s1154] sm:%s1120]
    %s1156 = sshllo.u32 0, 1
    %s1157 = smul.addr 1, 6
    %s1158 = scalar_lea.vmem %s1, %s1157
    %1159 = vst [vmem:[%s1158] sm:%s1156] %v1155
    %s1160 = scalar_lea.vmem [#allocation0], 56
    %v1161 = vld [vmem:[%s1160] sm:%s1120]
    %s1162 = sshllo.u32 0, 1
    %s1163 = smul.addr 1, 7
    %s1164 = scalar_lea.vmem %s1, %s1163
    %1165 = vst [vmem:[%s1164] sm:%s1162] %v1161

// kernel: basic_res_block_2d.5
$region0: #{basic_res_block_2d.5}
  #allocation0 [shape = 'u32[]', space=smem, size = 0x4, offset = 0x4, fixed_abs, tag = 'smem constant byte address 0x4 - core index']
  #allocation1 [shape = 'u32[144,128]{1,0:T(1,128)}', space=vmem, size = 0x12000, scoped, tag = 'internal scratch']
  %s0 = inlined_call_operand.vmem [shape: bf16[2,1024], index: 0, kind: input, shape index: {}]
  %s1 = inlined_call_operand.vmem [shape: bf16[2,1024], index: 1, kind: input, shape index: {}]
  %s2 = inlined_call_operand.vmem [shape: f32[1,1024], index: 2, kind: input, shape index: {}]
  %s3 = inlined_call_operand.vmem [shape: f32[1,1024], index: 3, kind: input, shape index: {}]
  %s4 = inlined_call_operand.vmem [shape: f32[2,1024], index: 4, kind: output, shape index: {}]
  %s5 = sld [smem:[#allocation0]]
  $region26: #{basic_res_block_2d.5} parent=0
    _
  %s7 = ssub.s32 1, %s5
  %s8 = scalar_select 0, %s7, %s5
  // Predicated region
  $region2: #{basic_res_block_2d.5} parent=0 // pred_check
    _
  $region3: #{basic_res_block_2d.5} parent=0 // pred_check_branch
    %10 = sbr.rel (0) target = $region5
  $region4: #{basic_res_block_2d.5} parent=0 // pred_region
    _
  $region5: #{basic_res_block_2d.5} parent=0 // pred_fallthru
    _
  // Predicated region
  $region6: #{basic_res_block_2d.5} parent=0 // pred_check
    _
  $region7: #{basic_res_block_2d.5} parent=0 // pred_check_branch
    %12 = sbr.rel (0) target = $region9
  $region8: #{basic_res_block_2d.5} parent=0 // pred_region
    _
  $region9: #{basic_res_block_2d.5} parent=0 // pred_fallthru
    _
  // Predicated region
  $region10: #{basic_res_block_2d.5} parent=0 // pred_check
    _
  $region11: #{basic_res_block_2d.5} parent=0 // pred_check_branch
    %14 = sbr.rel (0) target = $region13
  $region12: #{basic_res_block_2d.5} parent=0 // pred_region
    _
  $region13: #{basic_res_block_2d.5} parent=0 // pred_fallthru
    _
  // Predicated region
  $region14: #{basic_res_block_2d.5} parent=0 // pred_check
    _
  $region15: #{basic_res_block_2d.5} parent=0 // pred_check_branch
    %16 = sbr.rel (0) target = $region17
  $region16: #{basic_res_block_2d.5} parent=0 // pred_region
    _
  $region17: #{basic_res_block_2d.5} parent=0 // pred_fallthru
    _
  %v17 = vld [vmem:[%s0] sm:$0xff]
  %v18 = vunpack.c.l.bf16 %v17
  %v19 = vunpack.c.h.bf16 %v17
  %v20 = vld [vmem:[%s2] sm:$0xff]
  %v22 = vlaneseq
  %v23 = vshrl.u32 %v22, 7
  %v24 = vsub.s32 0, %v23
  %v25 = vrot.slane %v20, %v24
  %v26 = vlaneseq
  %v27 = vshrl.u32 %v26, 7
  %v28 = vsub.s32 1, %v27
  %v29 = vrot.slane %v20, %v28
  %v30 = vlaneseq
  %v31 = vshrl.u32 %v30, 7
  %v32 = vsub.s32 2, %v31
  %v33 = vrot.slane %v20, %v32
  %v34 = vlaneseq
  %v35 = vshrl.u32 %v34, 7
  %v36 = vsub.s32 3, %v35
  %v37 = vrot.slane %v20, %v36
  %v38 = vlaneseq
  %v39 = vshrl.u32 %v38, 7
  %v40 = vsub.s32 4, %v39
  %v41 = vrot.slane %v20, %v40
  %v42 = vlaneseq
  %v43 = vshrl.u32 %v42, 7
  %v44 = vsub.s32 5, %v43
  %v45 = vrot.slane %v20, %v44
  %v46 = vlaneseq
  %v47 = vshrl.u32 %v46, 7
  %v48 = vsub.s32 6, %v47
  %v49 = vrot.slane %v20, %v48
  %v50 = vlaneseq
  %v51 = vshrl.u32 %v50, 7
  %v52 = vsub.s32 7, %v51
  %v53 = vrot.slane %v20, %v52
  %v54 = vcombine.low %v25, %v29
  %v55 = vcombine.low %v33, %v37
  %v57 = vunpack.c.l.s4 1983009808
  %v58 = vunpack.c.0.s8 %v57
  %v59 = vlaneseq
  %v60 = vshrl.u32 %v59, 7
  %v61 = vsub.s32 %v58, %v60
  %v62 = vrot.slane %v54, %v61
  %v64 = vunpack.c.l.s4 1983009808
  %v65 = vunpack.c.0.s8 %v64
  %v66 = vlaneseq
  %v67 = vshrl.u32 %v66, 7
  %v68 = vsub.s32 %v65, %v67
  %v69 = vrot.slane %v55, %v68
  %v70 = vcombine.low %v62, %v69
  %v71 = vcombine.low %v41, %v45
  %v72 = vcombine.low %v49, %v53
  %v74 = vunpack.c.l.s4 1983009808
  %v75 = vunpack.c.0.s8 %v74
  %v76 = vlaneseq
  %v77 = vshrl.u32 %v76, 7
  %v78 = vsub.s32 %v75, %v77
  %v79 = vrot.slane %v71, %v78
  %v81 = vunpack.c.l.s4 1983009808
  %v82 = vunpack.c.0.s8 %v81
  %v83 = vlaneseq
  %v84 = vshrl.u32 %v83, 7
  %v85 = vsub.s32 %v82, %v84
  %v86 = vrot.slane %v72, %v85
  %v87 = vcombine.low %v79, %v86
  %v90 = vmul.f32 %v18, %v70
  %v91 = vmul.f32 %v19, %v87
  %v92 = vld [vmem:[%s3] sm:$0xff]
  %v94 = vlaneseq
  %v95 = vshrl.u32 %v94, 7
  %v96 = vsub.s32 0, %v95
  %v97 = vrot.slane %v92, %v96
  %v98 = vlaneseq
  %v99 = vshrl.u32 %v98, 7
  %v100 = vsub.s32 1, %v99
  %v101 = vrot.slane %v92, %v100
  %v102 = vlaneseq
  %v103 = vshrl.u32 %v102, 7
  %v104 = vsub.s32 2, %v103
  %v105 = vrot.slane %v92, %v104
  %v106 = vlaneseq
  %v107 = vshrl.u32 %v106, 7
  %v108 = vsub.s32 3, %v107
  %v109 = vrot.slane %v92, %v108
  %v110 = vlaneseq
  %v111 = vshrl.u32 %v110, 7
  %v112 = vsub.s32 4, %v111
  %v113 = vrot.slane %v92, %v112
  %v114 = vlaneseq
  %v115 = vshrl.u32 %v114, 7
  %v116 = vsub.s32 5, %v115
  %v117 = vrot.slane %v92, %v116
  %v118 = vlaneseq
  %v119 = vshrl.u32 %v118, 7
  %v120 = vsub.s32 6, %v119
  %v121 = vrot.slane %v92, %v120
  %v122 = vlaneseq
  %v123 = vshrl.u32 %v122, 7
  %v124 = vsub.s32 7, %v123
  %v125 = vrot.slane %v92, %v124
  %v126 = vcombine.low %v97, %v101
  %v127 = vcombine.low %v105, %v109
  %v129 = vunpack.c.l.s4 1983009808
  %v130 = vunpack.c.0.s8 %v129
  %v131 = vlaneseq
  %v132 = vshrl.u32 %v131, 7
  %v133 = vsub.s32 %v130, %v132
  %v134 = vrot.slane %v126, %v133
  %v136 = vunpack.c.l.s4 1983009808
  %v137 = vunpack.c.0.s8 %v136
  %v138 = vlaneseq
  %v139 = vshrl.u32 %v138, 7
  %v140 = vsub.s32 %v137, %v139
  %v141 = vrot.slane %v127, %v140
  %v142 = vcombine.low %v134, %v141
  %v143 = vcombine.low %v113, %v117
  %v144 = vcombine.low %v121, %v125
  %v146 = vunpack.c.l.s4 1983009808
  %v147 = vunpack.c.0.s8 %v146
  %v148 = vlaneseq
  %v149 = vshrl.u32 %v148, 7
  %v150 = vsub.s32 %v147, %v149
  %v151 = vrot.slane %v143, %v150
  %v153 = vunpack.c.l.s4 1983009808
  %v154 = vunpack.c.0.s8 %v153
  %v155 = vlaneseq
  %v156 = vshrl.u32 %v155, 7
  %v157 = vsub.s32 %v154, %v156
  %v158 = vrot.slane %v144, %v157
  %v159 = vcombine.low %v151, %v158
  %v162 = vadd.f32 %v90, %v142
  %v163 = vadd.f32 %v91, %v159
  %v164 = vld [vmem:[%s1] sm:$0xff]
  %v165 = vunpack.c.l.bf16 %v164
  %v166 = vunpack.c.h.bf16 %v164
  %v167 = vadd.f32 %v162, %v165
  %v168 = vadd.f32 %v163, %v166
  %v169 = vmax.f32 %v167, 0.0
  %v170 = vmax.f32 %v168, 0.0
  %171 = vst [vmem:[%s4] sm:$0xff] %v169
  %172 = vst [vmem:[%s4 + $0x8] sm:$0xff] %v170
  // Predicated region
  $region18: #{basic_res_block_2d.5} parent=0 // pred_check
    _
  $region19: #{basic_res_block_2d.5} parent=0 // pred_check_branch
    %174 = sbr.rel (0) target = $region21
  $region20: #{basic_res_block_2d.5} parent=0 // pred_region
    _
  $region21: #{basic_res_block_2d.5} parent=0 // pred_fallthru
    _
  // Predicated region
  $region22: #{basic_res_block_2d.5} parent=0 // pred_check
    _
  $region23: #{basic_res_block_2d.5} parent=0 // pred_check_branch
    %176 = sbr.rel (0) target = $region25
  $region24: #{basic_res_block_2d.5} parent=0 // pred_region
    _
  $region25: #{basic_res_block_2d.5} parent=0 // pred_fallthru
    _

// kernel: basic_res_block_2d.3
$region0: #{basic_res_block_2d.3}
  #allocation0 [shape = 'u32[]', space=smem, size = 0x4, offset = 0x4, fixed_abs, tag = 'smem constant byte address 0x4 - core index']
  #allocation1 [shape = 'u32[144,128]{1,0:T(1,128)}', space=vmem, size = 0x12000, scoped, tag = 'internal scratch']
  %s0 = inlined_call_operand.vmem [shape: bf16[2,18,18,4], index: 0, kind: input, shape index: {}]
  %s1 = inlined_call_operand.vmem [shape: bf16[9,4,4], index: 1, kind: input, shape index: {}]
  %s2 = inlined_call_operand.vmem [shape: bf16[2,256,4], index: 2, kind: output, shape index: {0}]
  %s3 = inlined_call_operand.vmem [shape: f32[2,2,4], index: 3, kind: output, shape index: {1}]
  %4 = xla_tuple %s2, %s3
  %s5 = sld [smem:[#allocation0]]
  $region49: #{basic_res_block_2d.3} parent=0
    _
  %s7 = ssub.s32 1, %s5
  %s8 = scalar_select 0, %s7, %s5
  loop: start=0, step=1, limit=4
  $region2: #{basic_res_block_2d.3} parent=0 // loop_pre_header
    _
  $region3: #{basic_res_block_2d.3} parent=0 // loop_header
    %s10 = sphi 0, %s14
    %p11 = scmp.ge.s32.totalorder %s10, 4
    %s20 = sphi 0, %s22
    %s23 = sphi 0, %s20
    %s24 = sphi 0, %s23
    %s40 = sphi 0, %s24
    %s44 = sphi 0, %s44
    %s46 = sphi 0, %s44
    %s47 = sphi 0, %s46
    %s61 = sphi 0, %s47
    %s67 = sphi 0, %s69
    %s70 = sphi 0, %s67
    %s71 = sphi 0, %s70
    %s87 = sphi 0, %s71
    %s93 = sphi 0, %s95
    %s96 = sphi 0, %s93
    %s97 = sphi 0, %s96
    %s113 = sphi 0, %s97
  $region4: #{basic_res_block_2d.3} parent=0 // loop_header_branch
    %13 = sbr.rel (%p11) target = $region8
  $region5: #{basic_res_block_2d.3} parent=0 // loop_body
    %s15 = ssub.s32 %s10, 1
    %s16 = ssub.s32 %s10, 2
    %s17 = sadd.s32 %s10, 1
    %s18 = ssub.s32 %s10, %s17
    %p19 = scmp.eq.s32.totalorder %s18, 0
    %s21 = sadd.s32 %s20, 1
    %s22 = scalar_select %p19, %s20, %s21
    %p25 = pneg %p19
    %p26 = scmp.eq.s32.totalorder %s10, 1
    %p27 = por %p25, %p26
    %p28 = scmp.ne.s32.totalorder %s20, %s23
    %p29 = scmp.eq.s32.totalorder %s10, 0
    %p30 = por %p28, %p29
    %p31 = scmp.ne.s32.totalorder %s20, %s23
    %p32 = scmp.eq.s32.totalorder %s15, 1
    %p33 = por %p31, %p32
    %p34 = scmp.ne.s32.totalorder %s23, %s24
    %p35 = scmp.eq.s32.totalorder %s15, 0
    %p36 = por %p34, %p35
    %p37 = scmp.ne.s32.totalorder %s23, %s24
    %p38 = scmp.eq.s32.totalorder %s16, 1
    %p39 = por %p37, %p38
    %p41 = scmp.ne.s32.totalorder %s24, %s40
    %p42 = scmp.eq.s32.totalorder %s16, 0
    %p43 = por %p41, %p42
    %s45 = sadd.s32 %s44, 1
    %p48 = scmp.eq.s32.totalorder %s10, 1
    %p49 = scmp.ne.s32.totalorder %s44, %s46
    %p50 = scmp.eq.s32.totalorder %s10, 0
    %p51 = por %p49, %p50
    %p52 = scmp.ne.s32.totalorder %s44, %s46
    %p53 = scmp.eq.s32.totalorder %s15, 1
    %p54 = por %p52, %p53
    %p55 = scmp.ne.s32.totalorder %s46, %s47
    %p56 = scmp.eq.s32.totalorder %s15, 0
    %p57 = por %p55, %p56
    %p58 = scmp.ne.s32.totalorder %s46, %s47
    %p59 = scmp.eq.s32.totalorder %s16, 1
    %p60 = por %p58, %p59
    %p62 = scmp.ne.s32.totalorder %s47, %s61
    %p63 = scmp.eq.s32.totalorder %s16, 0
    %p64 = por %p62, %p63
    %s65 = ssub.s32 %s10, %s17
    %p66 = scmp.eq.s32.totalorder %s65, 0
    %s68 = sadd.s32 %s67, 1
    %s69 = scalar_select %p66, %s67, %s68
    %p72 = pneg %p66
    %p73 = scmp.eq.s32.totalorder %s10, 1
    %p74 = por %p72, %p73
    %p75 = scmp.ne.s32.totalorder %s67, %s70
    %p76 = scmp.eq.s32.totalorder %s10, 0
    %p77 = por %p75, %p76
    %p78 = scmp.ne.s32.totalorder %s67, %s70
    %p79 = scmp.eq.s32.totalorder %s15, 1
    %p80 = por %p78, %p79
    %p81 = scmp.ne.s32.totalorder %s70, %s71
    %p82 = scmp.eq.s32.totalorder %s15, 0
    %p83 = por %p81, %p82
    %p84 = scmp.ne.s32.totalorder %s70, %s71
    %p85 = scmp.eq.s32.totalorder %s16, 1
    %p86 = por %p84, %p85
    %p88 = scmp.ne.s32.totalorder %s71, %s87
    %p89 = scmp.eq.s32.totalorder %s16, 0
    %p90 = por %p88, %p89
    %s91 = ssub.s32 %s10, %s17
    %p92 = scmp.eq.s32.totalorder %s91, 0
    %s94 = sadd.s32 %s93, 1
    %s95 = scalar_select %p92, %s93, %s94
    %p98 = pneg %p92
    %p99 = scmp.eq.s32.totalorder %s10, 1
    %p100 = por %p98, %p99
    %p101 = scmp.ne.s32.totalorder %s93, %s96
    %p102 = scmp.eq.s32.totalorder %s10, 0
    %p103 = por %p101, %p102
    %p104 = scmp.ne.s32.totalorder %s93, %s96
    %p105 = scmp.eq.s32.totalorder %s15, 1
    %p106 = por %p104, %p105
    %p107 = scmp.ne.s32.totalorder %s96, %s97
    %p108 = scmp.eq.s32.totalorder %s15, 0
    %p109 = por %p107, %p108
    %p110 = scmp.ne.s32.totalorder %s96, %s97
    %p111 = scmp.eq.s32.totalorder %s16, 1
    %p112 = por %p110, %p111
    %p114 = scmp.ne.s32.totalorder %s97, %s113
    %p115 = scmp.eq.s32.totalorder %s16, 0
    %p116 = por %p114, %p115
    %p117 = scmp.le.s32.totalorder 1, %s10
    %p118 = scmp.lt.s32.totalorder %s10, 3
    %p119 = pnand %p117, %p118
    %p120 = pneg %p119
    // Predicated region
    $region9: #{basic_res_block_2d.3} parent=5 // pred_check
      _
    $region10: #{basic_res_block_2d.3} parent=5 // pred_check_branch
      %122 = sbr.rel (%p119) target = $region12
    $region11: #{basic_res_block_2d.3} parent=5 // pred_region
      %s123 = ssub.s32 %s10, 1
      // Predicated region
      $region13: #{basic_res_block_2d.3} parent=11 // pred_check
        %p124 = pneg %p57
      $region14: #{basic_res_block_2d.3} parent=11 // pred_check_branch
        %126 = sbr.rel (%p124) target = $region16
      $region15: #{basic_res_block_2d.3} parent=11 // pred_region
        _
      $region16: #{basic_res_block_2d.3} parent=11 // pred_fallthru
        _
    $region12: #{basic_res_block_2d.3} parent=5 // pred_fallthru
      _
    %p127 = scmp.lt.s32.totalorder %s10, 2
    // Predicated region
    $region17: #{basic_res_block_2d.3} parent=5 // pred_check
      %p128 = pneg %p127
    $region18: #{basic_res_block_2d.3} parent=5 // pred_check_branch
      %130 = sbr.rel (%p128) target = $region20
    $region19: #{basic_res_block_2d.3} parent=5 // pred_region
      // Predicated region
      $region21: #{basic_res_block_2d.3} parent=19 // pred_check
        %p131 = pneg %p30
      $region22: #{basic_res_block_2d.3} parent=19 // pred_check_branch
        %133 = sbr.rel (%p131) target = $region24
      $region23: #{basic_res_block_2d.3} parent=19 // pred_region
        %p134 = scmp.lt.s32.totalorder %s10, 1
        %s135 = scalar_select %p134, %s10, 1
        %s136 = smul.addr %s135, 54
        %s137 = smul.addr %s136, 4
        %s138 = scalar_lea.vmem %s0, %s137
      $region24: #{basic_res_block_2d.3} parent=19 // pred_fallthru
        _
    $region20: #{basic_res_block_2d.3} parent=5 // pred_fallthru
      _
    %p139 = scmp.le.s32.totalorder 1, %s10
    %p140 = scmp.lt.s32.totalorder %s10, 3
    %p141 = pnand %p139, %p140
    %p142 = pneg %p141
    // Predicated region
    $region25: #{basic_res_block_2d.3} parent=5 // pred_check
      _
    $region26: #{basic_res_block_2d.3} parent=5 // pred_check_branch
      %144 = sbr.rel (%p141) target = $region28
    $region27: #{basic_res_block_2d.3} parent=5 // pred_region
      %s145 = ssub.s32 %s10, 1
      %p146 = scmp.lt.s32.totalorder %s15, 1
      %s147 = scalar_select %p146, %s15, 1
      %s148 = smul.addr %s147, 54
      %s149 = smul.addr %s148, 4
      %s150 = scalar_lea.vmem %s0, %s149
      %p151 = pneg %p36
      %p152 = pneg %p33
      %p153 = pneg %p57
      %p154 = pneg %p54
      %p155 = pneg %p83
      %p156 = pneg %p80
      %p157 = scmp.lt.s32.totalorder %s15, 1
      %s158 = scalar_select %p157, %s15, 1
      %s159 = smul.addr %s158, 32
      %s160 = smul.addr %s159, 4
      %s161 = scalar_lea.vmem %s2, %s160
      %p162 = pneg %p109
      %p163 = pneg %p106
      %p164 = scmp.lt.s32.totalorder %s15, 1
      %s165 = scalar_select %p164, %s15, 1
      %s166 = smul.addr %s165, 2
      %s167 = scalar_lea.vmem %s3, %s166
      %p168 = scmp.lt.s32.totalorder %s15, 1
      %s169 = scalar_select %p168, %s15, 1
      %s170 = smul.addr %s169, 54
      %s171 = smul.addr %s170, 4
      %s172 = scalar_lea.vmem %s0, %s171
      %p173 = scmp.lt.s32.totalorder %s15, 1
      %s174 = scalar_select %p173, %s15, 1
      %s175 = smul.addr %s174, 32
      %s176 = smul.addr %s175, 4
      %s177 = scalar_lea.vmem %s2, %s176
      %p178 = scmp.lt.s32.totalorder %s15, 1
      %s179 = scalar_select %p178, %s15, 1
      %s180 = smul.addr %s179, 2
      %s181 = scalar_lea.vmem %s3, %s180
      %v183 = vld [vmem:[%s172] sm:$0xf]
      %v184 = vld [vmem:[%s172 + $0x4] sm:$0xf]
      %v185 = vld [vmem:[%s172 + $0xc] sm:$0xf]
      %v186 = vld [vmem:[%s172 + $0x10] sm:$0xf]
      %v187 = vld [vmem:[%s172 + $0x18] sm:$0xf]
      %v188 = vld [vmem:[%s172 + $0x1c] sm:$0xf]
      %v189 = vld [vmem:[%s172 + $0x24] sm:$0xf]
      %v190 = vld [vmem:[%s172 + $0x28] sm:$0xf]
      %v191 = vld [vmem:[%s172 + $0x30] sm:$0xf]
      %v192 = vld [vmem:[%s172 + $0x34] sm:$0xf]
      %v193 = vld [vmem:[%s172 + $0x3c] sm:$0xf]
      %v194 = vld [vmem:[%s172 + $0x40] sm:$0xf]
      %v195 = vld [vmem:[%s172 + $0x48] sm:$0xf]
      %v196 = vld [vmem:[%s172 + $0x4c] sm:$0xf]
      %v197 = vld [vmem:[%s172 + $0x54] sm:$0xf]
      %v198 = vld [vmem:[%s172 + $0x58] sm:$0xf]
      %v199 = vld [vmem:[%s172 + $0x60] sm:$0xf]
      %v200 = vld [vmem:[%s172 + $0x64] sm:$0xf]
      %v201 = vld [vmem:[%s172 + $0x6c] sm:$0xf]
      %v202 = vld [vmem:[%s172 + $0x70] sm:$0xf]
      %v203 = vld [vmem:[%s172 + $0x78] sm:$0xf]
      %v204 = vld [vmem:[%s172 + $0x7c] sm:$0xf]
      %v205 = vld [vmem:[%s172 + $0x84] sm:$0xf]
      %v206 = vld [vmem:[%s172 + $0x88] sm:$0xf]
      %v207 = vld [vmem:[%s172 + $0x90] sm:$0xf]
      %v208 = vld [vmem:[%s172 + $0x94] sm:$0xf]
      %v209 = vld [vmem:[%s172 + $0x9c] sm:$0xf]
      %v210 = vld [vmem:[%s172 + $0xa0] sm:$0xf]
      %v211 = vld [vmem:[%s172 + $0xa8] sm:$0xf]
      %v212 = vld [vmem:[%s172 + $0xac] sm:$0xf]
      %v213 = vld [vmem:[%s172 + $0xb4] sm:$0xf]
      %v214 = vld [vmem:[%s172 + $0xb8] sm:$0xf]
      %v215 = vld [vmem:[%s1] sm:$0x3]
      %v216 = vld [vmem:[%s172 + $0x8] sm:$0x1]
      %v217 = vld [vmem:[%s172 + $0x14] sm:$0x1]
      %v218 = vld [vmem:[%s172 + $0x20] sm:$0x1]
      %v219 = vld [vmem:[%s172 + $0x2c] sm:$0x1]
      %v220 = vld [vmem:[%s172 + $0x38] sm:$0x1]
      %v221 = vld [vmem:[%s172 + $0x44] sm:$0x1]
      %v222 = vld [vmem:[%s172 + $0x50] sm:$0x1]
      %v223 = vld [vmem:[%s172 + $0x5c] sm:$0x1]
      %v224 = vld [vmem:[%s172 + $0x68] sm:$0x1]
      %v225 = vld [vmem:[%s172 + $0x74] sm:$0x1]
      %v226 = vld [vmem:[%s172 + $0x80] sm:$0x1]
      %v227 = vld [vmem:[%s172 + $0x8c] sm:$0x1]
      %v228 = vld [vmem:[%s172 + $0x98] sm:$0x1]
      %v229 = vld [vmem:[%s172 + $0xa4] sm:$0x1]
      %v230 = vld [vmem:[%s172 + $0xb0] sm:$0x1]
      %v231 = vld [vmem:[%s172 + $0xbc] sm:$0x1]
      %vm232 = vsmask.f32 3328
      %vm233 = vsmask.f32 7440
      %vm234 = vmor %vm232, %vm233
      %v236 = vshrl.u32 %v183, 16
      %v238 = vrot.slane %v236, 4
      %v239 = vshll.u32 %v183, 16
      %v241 = vrot.slane %v239, 5
      %v242 = vor.u32 %v238, %v241
      %v243 = vrot.slane %v242, 4
      %v245 = vshll.u32 %v184, 16
      %v247 = vrot.slane %v245, 5
      %v248 = vsel %vm234, %v243, %v247
      %v249 = vshrl.u32 %v184, 16
      %v251 = vrot.slane %v249, 4
      %v252 = vor.u32 %v251, %v247
      %v253 = vrot.slane %v252, 4
      %v255 = vshll.u32 %v216, 16
      %v257 = vrot.slane %v255, 5
      %v258 = vsel %vm234, %v253, %v257
      %v260 = vshrl.u32 %v185, 16
      %v262 = vrot.slane %v260, 4
      %v263 = vshll.u32 %v185, 16
      %v265 = vrot.slane %v263, 5
      %v266 = vor.u32 %v262, %v265
      %v267 = vrot.slane %v266, 4
      %v269 = vshll.u32 %v186, 16
      %v271 = vrot.slane %v269, 5
      %v272 = vsel %vm234, %v267, %v271
      %v273 = vshrl.u32 %v186, 16
      %v275 = vrot.slane %v273, 4
      %v276 = vor.u32 %v275, %v271
      %v277 = vrot.slane %v276, 4
      %v279 = vshll.u32 %v217, 16
      %v281 = vrot.slane %v279, 5
      %v282 = vsel %vm234, %v277, %v281
      %v284 = vshrl.u32 %v187, 16
      %v286 = vrot.slane %v284, 4
      %v287 = vshll.u32 %v187, 16
      %v289 = vrot.slane %v287, 5
      %v290 = vor.u32 %v286, %v289
      %v291 = vrot.slane %v290, 4
      %v293 = vshll.u32 %v188, 16
      %v295 = vrot.slane %v293, 5
      %v296 = vsel %vm234, %v291, %v295
      %v297 = vshrl.u32 %v188, 16
      %v299 = vrot.slane %v297, 4
      %v300 = vor.u32 %v299, %v295
      %v301 = vrot.slane %v300, 4
      %v303 = vshll.u32 %v218, 16
      %v305 = vrot.slane %v303, 5
      %v306 = vsel %vm234, %v301, %v305
      %v308 = vshrl.u32 %v189, 16
      %v310 = vrot.slane %v308, 4
      %v311 = vshll.u32 %v189, 16
      %v313 = vrot.slane %v311, 5
      %v314 = vor.u32 %v310, %v313
      %v315 = vrot.slane %v314, 4
      %v317 = vshll.u32 %v190, 16
      %v319 = vrot.slane %v317, 5
      %v320 = vsel %vm234, %v315, %v319
      %v321 = vshrl.u32 %v190, 16
      %v323 = vrot.slane %v321, 4
      %v324 = vor.u32 %v323, %v319
      %v325 = vrot.slane %v324, 4
      %v327 = vshll.u32 %v219, 16
      %v329 = vrot.slane %v327, 5
      %v330 = vsel %vm234, %v325, %v329
      %v332 = vshrl.u32 %v191, 16
      %v334 = vrot.slane %v332, 4
      %v335 = vshll.u32 %v191, 16
      %v337 = vrot.slane %v335, 5
      %v338 = vor.u32 %v334, %v337
      %v339 = vrot.slane %v338, 4
      %v341 = vshll.u32 %v192, 16
      %v343 = vrot.slane %v341, 5
      %v344 = vsel %vm234, %v339, %v343
      %v345 = vshrl.u32 %v192, 16
      %v347 = vrot.slane %v345, 4
      %v348 = vor.u32 %v347, %v343
      %v349 = vrot.slane %v348, 4
      %v351 = vshll.u32 %v220, 16
      %v353 = vrot.slane %v351, 5
      %v354 = vsel %vm234, %v349, %v353
      %v356 = vshrl.u32 %v193, 16
      %v358 = vrot.slane %v356, 4
      %v359 = vshll.u32 %v193, 16
      %v361 = vrot.slane %v359, 5
      %v362 = vor.u32 %v358, %v361
      %v363 = vrot.slane %v362, 4
      %v365 = vshll.u32 %v194, 16
      %v367 = vrot.slane %v365, 5
      %v368 = vsel %vm234, %v363, %v367
      %v369 = vshrl.u32 %v194, 16
      %v371 = vrot.slane %v369, 4
      %v372 = vor.u32 %v371, %v367
      %v373 = vrot.slane %v372, 4
      %v375 = vshll.u32 %v221, 16
      %v377 = vrot.slane %v375, 5
      %v378 = vsel %vm234, %v373, %v377
      %v380 = vshrl.u32 %v195, 16
      %v382 = vrot.slane %v380, 4
      %v383 = vshll.u32 %v195, 16
      %v385 = vrot.slane %v383, 5
      %v386 = vor.u32 %v382, %v385
      %v387 = vrot.slane %v386, 4
      %v389 = vshll.u32 %v196, 16
      %v391 = vrot.slane %v389, 5
      %v392 = vsel %vm234, %v387, %v391
      %v393 = vshrl.u32 %v196, 16
      %v395 = vrot.slane %v393, 4
      %v396 = vor.u32 %v395, %v391
      %v397 = vrot.slane %v396, 4
      %v399 = vshll.u32 %v222, 16
      %v401 = vrot.slane %v399, 5
      %v402 = vsel %vm234, %v397, %v401
      %v404 = vshrl.u32 %v197, 16
      %v406 = vrot.slane %v404, 4
      %v407 = vshll.u32 %v197, 16
      %v409 = vrot.slane %v407, 5
      %v410 = vor.u32 %v406, %v409
      %v411 = vrot.slane %v410, 4
      %v413 = vshll.u32 %v198, 16
      %v415 = vrot.slane %v413, 5
      %v416 = vsel %vm234, %v411, %v415
      %v417 = vshrl.u32 %v198, 16
      %v419 = vrot.slane %v417, 4
      %v420 = vor.u32 %v419, %v415
      %v421 = vrot.slane %v420, 4
      %v423 = vshll.u32 %v223, 16
      %v425 = vrot.slane %v423, 5
      %v426 = vsel %vm234, %v421, %v425
      %v428 = vshrl.u32 %v199, 16
      %v430 = vrot.slane %v428, 4
      %v431 = vshll.u32 %v199, 16
      %v433 = vrot.slane %v431, 5
      %v434 = vor.u32 %v430, %v433
      %v435 = vrot.slane %v434, 4
      %v437 = vshll.u32 %v200, 16
      %v439 = vrot.slane %v437, 5
      %v440 = vsel %vm234, %v435, %v439
      %v441 = vshrl.u32 %v200, 16
      %v443 = vrot.slane %v441, 4
      %v444 = vor.u32 %v443, %v439
      %v445 = vrot.slane %v444, 4
      %v447 = vshll.u32 %v224, 16
      %v449 = vrot.slane %v447, 5
      %v450 = vsel %vm234, %v445, %v449
      %v452 = vshrl.u32 %v201, 16
      %v454 = vrot.slane %v452, 4
      %v455 = vshll.u32 %v201, 16
      %v457 = vrot.slane %v455, 5
      %v458 = vor.u32 %v454, %v457
      %v459 = vrot.slane %v458, 4
      %v461 = vshll.u32 %v202, 16
      %v463 = vrot.slane %v461, 5
      %v464 = vsel %vm234, %v459, %v463
      %v465 = vshrl.u32 %v202, 16
      %v467 = vrot.slane %v465, 4
      %v468 = vor.u32 %v467, %v463
      %v469 = vrot.slane %v468, 4
      %v471 = vshll.u32 %v225, 16
      %v473 = vrot.slane %v471, 5
      %v474 = vsel %vm234, %v469, %v473
      %v476 = vshrl.u32 %v203, 16
      %v478 = vrot.slane %v476, 4
      %v479 = vshll.u32 %v203, 16
      %v481 = vrot.slane %v479, 5
      %v482 = vor.u32 %v478, %v481
      %v483 = vrot.slane %v482, 4
      %v485 = vshll.u32 %v204, 16
      %v487 = vrot.slane %v485, 5
      %v488 = vsel %vm234, %v483, %v487
      %v489 = vshrl.u32 %v204, 16
      %v491 = vrot.slane %v489, 4
      %v492 = vor.u32 %v491, %v487
      %v493 = vrot.slane %v492, 4
      %v495 = vshll.u32 %v226, 16
      %v497 = vrot.slane %v495, 5
      %v498 = vsel %vm234, %v493, %v497
      %v500 = vshrl.u32 %v205, 16
      %v502 = vrot.slane %v500, 4
      %v503 = vshll.u32 %v205, 16
      %v505 = vrot.slane %v503, 5
      %v506 = vor.u32 %v502, %v505
      %v507 = vrot.slane %v506, 4
      %v509 = vshll.u32 %v206, 16
      %v511 = vrot.slane %v509, 5
      %v512 = vsel %vm234, %v507, %v511
      %v513 = vshrl.u32 %v206, 16
      %v515 = vrot.slane %v513, 4
      %v516 = vor.u32 %v515, %v511
      %v517 = vrot.slane %v516, 4
      %v519 = vshll.u32 %v227, 16
      %v521 = vrot.slane %v519, 5
      %v522 = vsel %vm234, %v517, %v521
      %v524 = vshrl.u32 %v207, 16
      %v526 = vrot.slane %v524, 4
      %v527 = vshll.u32 %v207, 16
      %v529 = vrot.slane %v527, 5
      %v530 = vor.u32 %v526, %v529
      %v531 = vrot.slane %v530, 4
      %v533 = vshll.u32 %v208, 16
      %v535 = vrot.slane %v533, 5
      %v536 = vsel %vm234, %v531, %v535
      %v537 = vshrl.u32 %v208, 16
      %v539 = vrot.slane %v537, 4
      %v540 = vor.u32 %v539, %v535
      %v541 = vrot.slane %v540, 4
      %v543 = vshll.u32 %v228, 16
      %v545 = vrot.slane %v543, 5
      %v546 = vsel %vm234, %v541, %v545
      %v548 = vshrl.u32 %v209, 16
      %v550 = vrot.slane %v548, 4
      %v551 = vshll.u32 %v209, 16
      %v553 = vrot.slane %v551, 5
      %v554 = vor.u32 %v550, %v553
      %v555 = vrot.slane %v554, 4
      %v557 = vshll.u32 %v210, 16
      %v559 = vrot.slane %v557, 5
      %v560 = vsel %vm234, %v555, %v559
      %v561 = vshrl.u32 %v210, 16
      %v563 = vrot.slane %v561, 4
      %v564 = vor.u32 %v563, %v559
      %v565 = vrot.slane %v564, 4
      %v567 = vshll.u32 %v229, 16
      %v569 = vrot.slane %v567, 5
      %v570 = vsel %vm234, %v565, %v569
      %v572 = vshrl.u32 %v211, 16
      %v574 = vrot.slane %v572, 4
      %v575 = vshll.u32 %v211, 16
      %v577 = vrot.slane %v575, 5
      %v578 = vor.u32 %v574, %v577
      %v579 = vrot.slane %v578, 4
      %v581 = vshll.u32 %v212, 16
      %v583 = vrot.slane %v581, 5
      %v584 = vsel %vm234, %v579, %v583
      %v585 = vshrl.u32 %v212, 16
      %v587 = vrot.slane %v585, 4
      %v588 = vor.u32 %v587, %v583
      %v589 = vrot.slane %v588, 4
      %v591 = vshll.u32 %v230, 16
      %v593 = vrot.slane %v591, 5
      %v594 = vsel %vm234, %v589, %v593
      %v596 = vshrl.u32 %v213, 16
      %v598 = vrot.slane %v596, 4
      %v599 = vshll.u32 %v213, 16
      %v601 = vrot.slane %v599, 5
      %v602 = vor.u32 %v598, %v601
      %v603 = vrot.slane %v602, 4
      %v605 = vshll.u32 %v214, 16
      %v607 = vrot.slane %v605, 5
      %v608 = vsel %vm234, %v603, %v607
      %v609 = vshrl.u32 %v214, 16
      %v611 = vrot.slane %v609, 4
      %v612 = vor.u32 %v611, %v607
      %v613 = vrot.slane %v612, 4
      %v615 = vshll.u32 %v231, 16
      %v617 = vrot.slane %v615, 5
      %v618 = vsel %vm234, %v613, %v617
      %s619 = scalar_lea.vmem %s1, 2
      %v620 = vld [vmem:[%s619] sm:$0x3]
      %v621 = vunpack.c.l.b16 %v248
      %v622 = vunpack.c.l.b16 %v258
      %v623 = vunpack.c.l.b16 %v272
      %v624 = vunpack.c.l.b16 %v282
      %v625 = vunpack.c.l.b16 %v296
      %v626 = vunpack.c.l.b16 %v306
      %v627 = vunpack.c.l.b16 %v320
      %v628 = vunpack.c.l.b16 %v330
      %v629 = vunpack.c.l.b16 %v344
      %v630 = vunpack.c.l.b16 %v354
      %v631 = vunpack.c.l.b16 %v368
      %v632 = vunpack.c.l.b16 %v378
      %v633 = vunpack.c.l.b16 %v392
      %v634 = vunpack.c.l.b16 %v402
      %v635 = vunpack.c.l.b16 %v416
      %v636 = vunpack.c.l.b16 %v426
      %v637 = vunpack.c.l.b16 %v440
      %v638 = vunpack.c.l.b16 %v450
      %v639 = vunpack.c.l.b16 %v464
      %v640 = vunpack.c.l.b16 %v474
      %v641 = vunpack.c.l.b16 %v488
      %v642 = vunpack.c.l.b16 %v498
      %v643 = vunpack.c.l.b16 %v512
      %v644 = vunpack.c.l.b16 %v522
      %v645 = vunpack.c.l.b16 %v536
      %v646 = vunpack.c.l.b16 %v546
      %v647 = vunpack.c.l.b16 %v560
      %v648 = vunpack.c.l.b16 %v570
      %v649 = vunpack.c.l.b16 %v584
      %v650 = vunpack.c.l.b16 %v594
      %v651 = vunpack.c.l.b16 %v608
      %v652 = vunpack.c.l.b16 %v618
      %v653 = vpack.c.b16 %v622, %v621
      %v654 = vpack.c.b16 %v624, %v623
      %v655 = vpack.c.b16 %v626, %v625
      %v656 = vpack.c.b16 %v628, %v627
      %v657 = vpack.c.b16 %v630, %v629
      %v658 = vpack.c.b16 %v632, %v631
      %v659 = vpack.c.b16 %v634, %v633
      %v660 = vpack.c.b16 %v636, %v635
      %v661 = vpack.c.b16 %v638, %v637
      %v662 = vpack.c.b16 %v640, %v639
      %v663 = vpack.c.b16 %v642, %v641
      %v664 = vpack.c.b16 %v644, %v643
      %v665 = vpack.c.b16 %v646, %v645
      %v666 = vpack.c.b16 %v648, %v647
      %v667 = vpack.c.b16 %v650, %v649
      %v668 = vpack.c.b16 %v652, %v651
      %vm669 = vcmask 31744
      %v671 = vsel %vm669, %v653, 0
      %v674 = vsel %vm669, %v654, 0
      %v677 = vsel %vm669, %v655, 0
      %v680 = vsel %vm669, %v656, 0
      %v683 = vsel %vm669, %v657, 0
      %v686 = vsel %vm669, %v658, 0
      %v689 = vsel %vm669, %v659, 0
      %v692 = vsel %vm669, %v660, 0
      %v695 = vsel %vm669, %v661, 0
      %v698 = vsel %vm669, %v662, 0
      %v701 = vsel %vm669, %v663, 0
      %v704 = vsel %vm669, %v664, 0
      %v707 = vsel %vm669, %v665, 0
      %v710 = vsel %vm669, %v666, 0
      %v713 = vsel %vm669, %v667, 0
      %v716 = vsel %vm669, %v668, 0
      %vm718 = vcmask 1041408
      %v720 = vsel %vm718, %v620, 0
      %722 = vmatprep.subr.bf16.mxu0 0
      %723 = vmatpush1.bf16.msra.mxu0 %v720
      %724 = vmatprep.subr.bf16.mxu0 0
      %725 = vmatpush1.bf16.msra.mxu0 0
      %726 = vmatprep.subr.bf16.mxu0 0
      %727 = vmatpush1.bf16.msra.mxu0 0
      %728 = vmatprep.subr.bf16.mxu0 0
      %729 = vmatpush1.bf16.msra.mxu0 0
      %730 = vmatprep.subr.bf16.mxu0 0
      %731 = vmatpush1.bf16.msra.mxu0 0
      %732 = vmatprep.subr.bf16.mxu0 0
      %733 = vmatpush1.bf16.msra.mxu0 0
      %734 = vmatprep.subr.bf16.mxu0 0
      %735 = vmatpush1.bf16.msra.mxu0 0
      %736 = vmatprep.subr.bf16.mxu0 0
      %737 = vmatpush1.bf16.msra.mxu0 0
      %738 = vmatprep.subr.bf16.mxu0 0
      %739 = vmatpush1.bf16.msra.mxu0 0
      %740 = vmatprep.subr.bf16.mxu0 0
      %741 = vmatpush1.bf16.msra.mxu0 0
      %742 = vmatprep.subr.bf16.mxu0 0
      %743 = vmatpush1.bf16.msra.mxu0 0
      %744 = vmatprep.subr.bf16.mxu0 0
      %745 = vmatpush1.bf16.msra.mxu0 0
      %746 = vmatprep.subr.bf16.mxu0 0
      %747 = vmatpush1.bf16.msra.mxu0 0
      %748 = vmatprep.subr.bf16.mxu0 0
      %749 = vmatpush1.bf16.msra.mxu0 0
      %750 = vmatprep.subr.bf16.mxu0 0
      %751 = vmatpush1.bf16.msra.mxu0 0
      %752 = vmatprep.subr.bf16.mxu0 0
      %753 = vmatpush1.bf16.msra.mxu0 0
      %754 = vmatprep.mubr.bf16.mxu0 0
      %755 = vmatmul.mubr.bf16.gmra.mrb[0].mxu0 %v671
      %v756 = vpop.f32.mrb[0].mxu0
      %v757 = vadd.f32 0.0, %v756
      %v758 = vpop.f32.mrb[0].mxu0
      %v759 = vpop.f32.mrb[0].mxu0
      %v760 = vadd.f32 0.0, %v759
      %v761 = vpop.f32.mrb[0].mxu0
      %762 = vmatprep.mubr.bf16.mxu0 0
      %763 = vmatmul.mubr.bf16.gmra.mrb[0].mxu0 %v674
      %v764 = vpop.f32.mrb[0].mxu0
      %v765 = vadd.f32 0.0, %v764
      %v766 = vpop.f32.mrb[0].mxu0
      %v767 = vpop.f32.mrb[0].mxu0
      %v768 = vadd.f32 0.0, %v767
      %v769 = vpop.f32.mrb[0].mxu0
      %770 = vmatprep.mubr.bf16.mxu0 0
      %771 = vmatmul.mubr.bf16.gmra.mrb[0].mxu0 %v677
      %v772 = vpop.f32.mrb[0].mxu0
      %v773 = vadd.f32 0.0, %v772
      %v774 = vpop.f32.mrb[0].mxu0
      %v775 = vpop.f32.mrb[0].mxu0
      %v776 = vadd.f32 0.0, %v775
      %v777 = vpop.f32.mrb[0].mxu0
      %778 = vmatprep.mubr.bf16.mxu0 0
      %779 = vmatmul.mubr.bf16.gmra.mrb[0].mxu0 %v680
      %v780 = vpop.f32.mrb[0].mxu0
      %v781 = vadd.f32 0.0, %v780
      %v782 = vpop.f32.mrb[0].mxu0
      %v783 = vpop.f32.mrb[0].mxu0
      %v784 = vadd.f32 0.0, %v783
      %v785 = vpop.f32.mrb[0].mxu0
      %786 = vmatprep.mubr.bf16.mxu0 0
      %787 = vmatmul.mubr.bf16.gmra.mrb[0].mxu0 %v683
      %v788 = vpop.f32.mrb[0].mxu0
      %v789 = vadd.f32 0.0, %v788
      %v790 = vpop.f32.mrb[0].mxu0
      %v791 = vpop.f32.mrb[0].mxu0
      %v792 = vadd.f32 0.0, %v791
      %v793 = vpop.f32.mrb[0].mxu0
      %794 = vmatprep.mubr.bf16.mxu0 0
      %795 = vmatmul.mubr.bf16.gmra.mrb[0].mxu0 %v686
      %v796 = vpop.f32.mrb[0].mxu0
      %v797 = vadd.f32 0.0, %v796
      %v798 = vpop.f32.mrb[0].mxu0
      %v799 = vpop.f32.mrb[0].mxu0
      %v800 = vadd.f32 0.0, %v799
      %v801 = vpop.f32.mrb[0].mxu0
      %802 = vmatprep.mubr.bf16.mxu0 0
      %803 = vmatmul.mubr.bf16.gmra.mrb[0].mxu0 %v689
      %v804 = vpop.f32.mrb[0].mxu0
      %v805 = vadd.f32 0.0, %v804
      %v806 = vpop.f32.mrb[0].mxu0
      %v807 = vpop.f32.mrb[0].mxu0
      %v808 = vadd.f32 0.0, %v807
      %v809 = vpop.f32.mrb[0].mxu0
      %810 = vmatprep.mubr.bf16.mxu0 0
      %811 = vmatmul.mubr.bf16.gmra.mrb[0].mxu0 %v692
      %v812 = vpop.f32.mrb[0].mxu0
      %v813 = vadd.f32 0.0, %v812
      %v814 = vpop.f32.mrb[0].mxu0
      %v815 = vpop.f32.mrb[0].mxu0
      %v816 = vadd.f32 0.0, %v815
      %v817 = vpop.f32.mrb[0].mxu0
      %818 = vmatprep.mubr.bf16.mxu0 0
      %819 = vmatmul.mubr.bf16.gmra.mrb[0].mxu0 %v695
      %v820 = vpop.f32.mrb[0].mxu0
      %v821 = vadd.f32 0.0, %v820
      %v822 = vpop.f32.mrb[0].mxu0
      %v823 = vpop.f32.mrb[0].mxu0
      %v824 = vadd.f32 0.0, %v823
      %v825 = vpop.f32.mrb[0].mxu0
      %826 = vmatprep.mubr.bf16.mxu0 0
      %827 = vmatmul.mubr.bf16.gmra.mrb[0].mxu0 %v698
      %v828 = vpop.f32.mrb[0].mxu0
      %v829 = vadd.f32 0.0, %v828
      %v830 = vpop.f32.mrb[0].mxu0
      %v831 = vpop.f32.mrb[0].mxu0
      %v832 = vadd.f32 0.0, %v831
      %v833 = vpop.f32.mrb[0].mxu0
      %834 = vmatprep.mubr.bf16.mxu0 0
      %835 = vmatmul.mubr.bf16.gmra.mrb[0].mxu0 %v701
      %v836 = vpop.f32.mrb[0].mxu0
      %v837 = vadd.f32 0.0, %v836
      %v838 = vpop.f32.mrb[0].mxu0
      %v839 = vpop.f32.mrb[0].mxu0
      %v840 = vadd.f32 0.0, %v839
      %v841 = vpop.f32.mrb[0].mxu0
      %842 = vmatprep.mubr.bf16.mxu0 0
      %843 = vmatmul.mubr.bf16.gmra.mrb[0].mxu0 %v704
      %v844 = vpop.f32.mrb[0].mxu0
      %v845 = vadd.f32 0.0, %v844
      %v846 = vpop.f32.mrb[0].mxu0
      %v847 = vpop.f32.mrb[0].mxu0
      %v848 = vadd.f32 0.0, %v847
      %v849 = vpop.f32.mrb[0].mxu0
      %850 = vmatprep.mubr.bf16.mxu0 0
      %851 = vmatmul.mubr.bf16.gmra.mrb[0].mxu0 %v707
      %v852 = vpop.f32.mrb[0].mxu0
      %v853 = vadd.f32 0.0, %v852
      %v854 = vpop.f32.mrb[0].mxu0
      %v855 = vpop.f32.mrb[0].mxu0
      %v856 = vadd.f32 0.0, %v855
      %v857 = vpop.f32.mrb[0].mxu0
      %858 = vmatprep.mubr.bf16.mxu0 0
      %859 = vmatmul.mubr.bf16.gmra.mrb[0].mxu0 %v710
      %v860 = vpop.f32.mrb[0].mxu0
      %v861 = vadd.f32 0.0, %v860
      %v862 = vpop.f32.mrb[0].mxu0
      %v863 = vpop.f32.mrb[0].mxu0
      %v864 = vadd.f32 0.0, %v863
      %v865 = vpop.f32.mrb[0].mxu0
      %866 = vmatprep.mubr.bf16.mxu0 0
      %867 = vmatmul.mubr.bf16.gmra.mrb[0].mxu0 %v713
      %v868 = vpop.f32.mrb[0].mxu0
      %v869 = vadd.f32 0.0, %v868
      %v870 = vpop.f32.mrb[0].mxu0
      %v871 = vpop.f32.mrb[0].mxu0
      %v872 = vadd.f32 0.0, %v871
      %v873 = vpop.f32.mrb[0].mxu0
      %874 = vmatprep.mubr.bf16.mxu0 0
      %875 = vmatmul.mubr.bf16.gmra.mrb[0].mxu0 %v716
      %v876 = vpop.f32.mrb[0].mxu0
      %v877 = vadd.f32 0.0, %v876
      %v878 = vpop.f32.mrb[0].mxu0
      %v879 = vpop.f32.mrb[0].mxu0
      %v880 = vadd.f32 0.0, %v879
      %v881 = vpop.f32.mrb[0].mxu0
      %882 = vdwg.mxu0
      %v915 = vunpack.c.l.b16 %v183
      %v916 = vunpack.c.l.b16 %v184
      %v917 = vunpack.c.l.b16 %v185
      %v918 = vunpack.c.l.b16 %v186
      %v919 = vunpack.c.l.b16 %v187
      %v920 = vunpack.c.l.b16 %v188
      %v921 = vunpack.c.l.b16 %v189
      %v922 = vunpack.c.l.b16 %v190
      %v923 = vunpack.c.l.b16 %v191
      %v924 = vunpack.c.l.b16 %v192
      %v925 = vunpack.c.l.b16 %v193
      %v926 = vunpack.c.l.b16 %v194
      %v927 = vunpack.c.l.b16 %v195
      %v928 = vunpack.c.l.b16 %v196
      %v929 = vunpack.c.l.b16 %v197
      %v930 = vunpack.c.l.b16 %v198
      %v931 = vunpack.c.l.b16 %v199
      %v932 = vunpack.c.l.b16 %v200
      %v933 = vunpack.c.l.b16 %v201
      %v934 = vunpack.c.l.b16 %v202
      %v935 = vunpack.c.l.b16 %v203
      %v936 = vunpack.c.l.b16 %v204
      %v937 = vunpack.c.l.b16 %v205
      %v938 = vunpack.c.l.b16 %v206
      %v939 = vunpack.c.l.b16 %v207
      %v940 = vunpack.c.l.b16 %v208
      %v941 = vunpack.c.l.b16 %v209
      %v942 = vunpack.c.l.b16 %v210
      %v943 = vunpack.c.l.b16 %v211
      %v944 = vunpack.c.l.b16 %v212
      %v945 = vunpack.c.l.b16 %v213
      %v946 = vunpack.c.l.b16 %v214
      %v947 = vpack.c.b16 %v916, %v915
      %v948 = vpack.c.b16 %v918, %v917
      %v949 = vpack.c.b16 %v920, %v919
      %v950 = vpack.c.b16 %v922, %v921
      %v951 = vpack.c.b16 %v924, %v923
      %v952 = vpack.c.b16 %v926, %v925
      %v953 = vpack.c.b16 %v928, %v927
      %v954 = vpack.c.b16 %v930, %v929
      %v955 = vpack.c.b16 %v932, %v931
      %v956 = vpack.c.b16 %v934, %v933
      %v957 = vpack.c.b16 %v936, %v935
      %v958 = vpack.c.b16 %v938, %v937
      %v959 = vpack.c.b16 %v940, %v939
      %v960 = vpack.c.b16 %v942, %v941
      %v961 = vpack.c.b16 %v944, %v943
      %v962 = vpack.c.b16 %v946, %v945
      %v964 = vsel %vm669, %v947, 0
      %v967 = vsel %vm669, %v948, 0
      %v970 = vsel %vm669, %v949, 0
      %v973 = vsel %vm669, %v950, 0
      %v976 = vsel %vm669, %v951, 0
      %v979 = vsel %vm669, %v952, 0
      %v982 = vsel %vm669, %v953, 0
      %v985 = vsel %vm669, %v954, 0
      %v988 = vsel %vm669, %v955, 0
      %v991 = vsel %vm669, %v956, 0
      %v994 = vsel %vm669, %v957, 0
      %v997 = vsel %vm669, %v958, 0
      %v1000 = vsel %vm669, %v959, 0
      %v1003 = vsel %vm669, %v960, 0
      %v1006 = vsel %vm669, %v961, 0
      %v1009 = vsel %vm669, %v962, 0
      %v1012 = vsel %vm718, %v215, 0
      %1014 = vmatprep.subr.bf16.mxu0 0
      %1015 = vmatpush1.bf16.msra.mxu0 %v1012
      %1016 = vmatprep.subr.bf16.mxu0 0
      %1017 = vmatpush1.bf16.msra.mxu0 0
      %1018 = vmatprep.subr.bf16.mxu0 0
      %1019 = vmatpush1.bf16.msra.mxu0 0
      %1020 = vmatprep.subr.bf16.mxu0 0
      %1021 = vmatpush1.bf16.msra.mxu0 0
      %1022 = vmatprep.subr.bf16.mxu0 0
      %1023 = vmatpush1.bf16.msra.mxu0 0
      %1024 = vmatprep.subr.bf16.mxu0 0
      %1025 = vmatpush1.bf16.msra.mxu0 0
      %1026 = vmatprep.subr.bf16.mxu0 0
      %1027 = vmatpush1.bf16.msra.mxu0 0
      %1028 = vmatprep.subr.bf16.mxu0 0
      %1029 = vmatpush1.bf16.msra.mxu0 0
      %1030 = vmatprep.subr.bf16.mxu0 0
      %1031 = vmatpush1.bf16.msra.mxu0 0
      %1032 = vmatprep.subr.bf16.mxu0 0
      %1033 = vmatpush1.bf16.msra.mxu0 0
      %1034 = vmatprep.subr.bf16.mxu0 0
      %1035 = vmatpush1.bf16.msra.mxu0 0
      %1036 = vmatprep.subr.bf16.mxu0 0
      %1037 = vmatpush1.bf16.msra.mxu0 0
      %1038 = vmatprep.subr.bf16.mxu0 0
      %1039 = vmatpush1.bf16.msra.mxu0 0
      %1040 = vmatprep.subr.bf16.mxu0 0
      %1041 = vmatpush1.bf16.msra.mxu0 0
      %1042 = vmatprep.subr.bf16.mxu0 0
      %1043 = vmatpush1.bf16.msra.mxu0 0
      %1044 = vmatprep.subr.bf16.mxu0 0
      %1045 = vmatpush1.bf16.msra.mxu0 0
      %1046 = vmatprep.mubr.bf16.mxu0 0
      %1047 = vmatmul.mubr.bf16.gmra.mrb[0].mxu0 %v964
      %v1048 = vpop.f32.mrb[0].mxu0
      %v1049 = vadd.f32 %v757, %v1048
      %v1050 = vpop.f32.mrb[0].mxu0
      %v1051 = vpop.f32.mrb[0].mxu0
      %v1052 = vadd.f32 %v760, %v1051
      %v1053 = vpop.f32.mrb[0].mxu0
      %1054 = vmatprep.mubr.bf16.mxu0 0
      %1055 = vmatmul.mubr.bf16.gmra.mrb[0].mxu0 %v967
      %v1056 = vpop.f32.mrb[0].mxu0
      %v1057 = vadd.f32 %v765, %v1056
      %v1058 = vpop.f32.mrb[0].mxu0
      %v1059 = vpop.f32.mrb[0].mxu0
      %v1060 = vadd.f32 %v768, %v1059
      %v1061 = vpop.f32.mrb[0].mxu0
      %1062 = vmatprep.mubr.bf16.mxu0 0
      %1063 = vmatmul.mubr.bf16.gmra.mrb[0].mxu0 %v970
      %v1064 = vpop.f32.mrb[0].mxu0
      %v1065 = vadd.f32 %v773, %v1064
      %v1066 = vpop.f32.mrb[0].mxu0
      %v1067 = vpop.f32.mrb[0].mxu0
      %v1068 = vadd.f32 %v776, %v1067
      %v1069 = vpop.f32.mrb[0].mxu0
      %1070 = vmatprep.mubr.bf16.mxu0 0
      %1071 = vmatmul.mubr.bf16.gmra.mrb[0].mxu0 %v973
      %v1072 = vpop.f32.mrb[0].mxu0
      %v1073 = vadd.f32 %v781, %v1072
      %v1074 = vpop.f32.mrb[0].mxu0
      %v1075 = vpop.f32.mrb[0].mxu0
      %v1076 = vadd.f32 %v784, %v1075
      %v1077 = vpop.f32.mrb[0].mxu0
      %1078 = vmatprep.mubr.bf16.mxu0 0
      %1079 = vmatmul.mubr.bf16.gmra.mrb[0].mxu0 %v976
      %v1080 = vpop.f32.mrb[0].mxu0
      %v1081 = vadd.f32 %v789, %v1080
      %v1082 = vpop.f32.mrb[0].mxu0
      %v1083 = vpop.f32.mrb[0].mxu0
      %v1084 = vadd.f32 %v792, %v1083
      %v1085 = vpop.f32.mrb[0].mxu0
      %1086 = vmatprep.mubr.bf16.mxu0 0
      %1087 = vmatmul.mubr.bf16.gmra.mrb[0].mxu0 %v979
      %v1088 = vpop.f32.mrb[0].mxu0
      %v1089 = vadd.f32 %v797, %v1088
      %v1090 = vpop.f32.mrb[0].mxu0
      %v1091 = vpop.f32.mrb[0].mxu0
      %v1092 = vadd.f32 %v800, %v1091
      %v1093 = vpop.f32.mrb[0].mxu0
      %1094 = vmatprep.mubr.bf16.mxu0 0
      %1095 = vmatmul.mubr.bf16.gmra.mrb[0].mxu0 %v982
      %v1096 = vpop.f32.mrb[0].mxu0
      %v1097 = vadd.f32 %v805, %v1096
      %v1098 = vpop.f32.mrb[0].mxu0
      %v1099 = vpop.f32.mrb[0].mxu0
      %v1100 = vadd.f32 %v808, %v1099
      %v1101 = vpop.f32.mrb[0].mxu0
      %1102 = vmatprep.mubr.bf16.mxu0 0
      %1103 = vmatmul.mubr.bf16.gmra.mrb[0].mxu0 %v985
      %v1104 = vpop.f32.mrb[0].mxu0
      %v1105 = vadd.f32 %v813, %v1104
      %v1106 = vpop.f32.mrb[0].mxu0
      %v1107 = vpop.f32.mrb[0].mxu0
      %v1108 = vadd.f32 %v816, %v1107
      %v1109 = vpop.f32.mrb[0].mxu0
      %1110 = vmatprep.mubr.bf16.mxu0 0
      %1111 = vmatmul.mubr.bf16.gmra.mrb[0].mxu0 %v988
      %v1112 = vpop.f32.mrb[0].mxu0
      %v1113 = vadd.f32 %v821, %v1112
      %v1114 = vpop.f32.mrb[0].mxu0
      %v1115 = vpop.f32.mrb[0].mxu0
      %v1116 = vadd.f32 %v824, %v1115
      %v1117 = vpop.f32.mrb[0].mxu0
      %1118 = vmatprep.mubr.bf16.mxu0 0
      %1119 = vmatmul.mubr.bf16.gmra.mrb[0].mxu0 %v991
      %v1120 = vpop.f32.mrb[0].mxu0
      %v1121 = vadd.f32 %v829, %v1120
      %v1122 = vpop.f32.mrb[0].mxu0
      %v1123 = vpop.f32.mrb[0].mxu0
      %v1124 = vadd.f32 %v832, %v1123
      %v1125 = vpop.f32.mrb[0].mxu0
      %1126 = vmatprep.mubr.bf16.mxu0 0
      %1127 = vmatmul.mubr.bf16.gmra.mrb[0].mxu0 %v994
      %v1128 = vpop.f32.mrb[0].mxu0
      %v1129 = vadd.f32 %v837, %v1128
      %v1130 = vpop.f32.mrb[0].mxu0
      %v1131 = vpop.f32.mrb[0].mxu0
      %v1132 = vadd.f32 %v840, %v1131
      %v1133 = vpop.f32.mrb[0].mxu0
      %1134 = vmatprep.mubr.bf16.mxu0 0
      %1135 = vmatmul.mubr.bf16.gmra.mrb[0].mxu0 %v997
      %v1136 = vpop.f32.mrb[0].mxu0
      %v1137 = vadd.f32 %v845, %v1136
      %v1138 = vpop.f32.mrb[0].mxu0
      %v1139 = vpop.f32.mrb[0].mxu0
      %v1140 = vadd.f32 %v848, %v1139
      %v1141 = vpop.f32.mrb[0].mxu0
      %1142 = vmatprep.mubr.bf16.mxu0 0
      %1143 = vmatmul.mubr.bf16.gmra.mrb[0].mxu0 %v1000
      %v1144 = vpop.f32.mrb[0].mxu0
      %v1145 = vadd.f32 %v853, %v1144
      %v1146 = vpop.f32.mrb[0].mxu0
      %v1147 = vpop.f32.mrb[0].mxu0
      %v1148 = vadd.f32 %v856, %v1147
      %v1149 = vpop.f32.mrb[0].mxu0
      %1150 = vmatprep.mubr.bf16.mxu0 0
      %1151 = vmatmul.mubr.bf16.gmra.mrb[0].mxu0 %v1003
      %v1152 = vpop.f32.mrb[0].mxu0
      %v1153 = vadd.f32 %v861, %v1152
      %v1154 = vpop.f32.mrb[0].mxu0
      %v1155 = vpop.f32.mrb[0].mxu0
      %v1156 = vadd.f32 %v864, %v1155
      %v1157 = vpop.f32.mrb[0].mxu0
      %1158 = vmatprep.mubr.bf16.mxu0 0
      %1159 = vmatmul.mubr.bf16.gmra.mrb[0].mxu0 %v1006
      %v1160 = vpop.f32.mrb[0].mxu0
      %v1161 = vadd.f32 %v869, %v1160
      %v1162 = vpop.f32.mrb[0].mxu0
      %v1163 = vpop.f32.mrb[0].mxu0
      %v1164 = vadd.f32 %v872, %v1163
      %v1165 = vpop.f32.mrb[0].mxu0
      %1166 = vmatprep.mubr.bf16.mxu0 0
      %1167 = vmatmul.mubr.bf16.gmra.mrb[0].mxu0 %v1009
      %v1168 = vpop.f32.mrb[0].mxu0
      %v1169 = vadd.f32 %v877, %v1168
      %v1170 = vpop.f32.mrb[0].mxu0
      %v1171 = vpop.f32.mrb[0].mxu0
      %v1172 = vadd.f32 %v880, %v1171
      %v1173 = vpop.f32.mrb[0].mxu0
      %1174 = vdwg.mxu0
      %v1175 = vld [vmem:[%s172] sm:$0xe]
      %v1176 = vld [vmem:[%s172 + $0xc] sm:$0xe]
      %v1177 = vld [vmem:[%s172 + $0x18] sm:$0xe]
      %v1178 = vld [vmem:[%s172 + $0x24] sm:$0xe]
      %v1179 = vld [vmem:[%s172 + $0x30] sm:$0xe]
      %v1180 = vld [vmem:[%s172 + $0x3c] sm:$0xe]
      %v1181 = vld [vmem:[%s172 + $0x48] sm:$0xe]
      %v1182 = vld [vmem:[%s172 + $0x54] sm:$0xe]
      %v1183 = vld [vmem:[%s172 + $0x60] sm:$0xe]
      %v1184 = vld [vmem:[%s172 + $0x6c] sm:$0xe]
      %v1185 = vld [vmem:[%s172 + $0x78] sm:$0xe]
      %v1186 = vld [vmem:[%s172 + $0x84] sm:$0xe]
      %v1187 = vld [vmem:[%s172 + $0x90] sm:$0xe]
      %v1188 = vld [vmem:[%s172 + $0x9c] sm:$0xe]
      %v1189 = vld [vmem:[%s172 + $0xa8] sm:$0xe]
      %v1190 = vld [vmem:[%s172 + $0xb4] sm:$0xe]
      %vm1223 = vcmask 1042432
      %vm1224 = vcmask 1046532
      %vm1225 = vmor %vm1223, %vm1224
      %v1226 = vrot.slane %v1175, 5
      %v1227 = vrot.slane %v1226, 4
      %v1228 = vrot.slane %v184, 5
      %v1229 = vsel %vm1225, %v1227, %v1228
      %v1230 = vrot.slane %v1228, 4
      %v1231 = vrot.slane %v216, 5
      %v1232 = vsel %vm1225, %v1230, %v1231
      %v1233 = vrot.slane %v1176, 5
      %v1234 = vrot.slane %v1233, 4
      %v1235 = vrot.slane %v186, 5
      %v1236 = vsel %vm1225, %v1234, %v1235
      %v1237 = vrot.slane %v1235, 4
      %v1238 = vrot.slane %v217, 5
      %v1239 = vsel %vm1225, %v1237, %v1238
      %v1240 = vrot.slane %v1177, 5
      %v1241 = vrot.slane %v1240, 4
      %v1242 = vrot.slane %v188, 5
      %v1243 = vsel %vm1225, %v1241, %v1242
      %v1244 = vrot.slane %v1242, 4
      %v1245 = vrot.slane %v218, 5
      %v1246 = vsel %vm1225, %v1244, %v1245
      %v1247 = vrot.slane %v1178, 5
      %v1248 = vrot.slane %v1247, 4
      %v1249 = vrot.slane %v190, 5
      %v1250 = vsel %vm1225, %v1248, %v1249
      %v1251 = vrot.slane %v1249, 4
      %v1252 = vrot.slane %v219, 5
      %v1253 = vsel %vm1225, %v1251, %v1252
      %v1254 = vrot.slane %v1179, 5
      %v1255 = vrot.slane %v1254, 4
      %v1256 = vrot.slane %v192, 5
      %v1257 = vsel %vm1225, %v1255, %v1256
      %v1258 = vrot.slane %v1256, 4
      %v1259 = vrot.slane %v220, 5
      %v1260 = vsel %vm1225, %v1258, %v1259
      %v1261 = vrot.slane %v1180, 5
      %v1262 = vrot.slane %v1261, 4
      %v1263 = vrot.slane %v194, 5
      %v1264 = vsel %vm1225, %v1262, %v1263
      %v1265 = vrot.slane %v1263, 4
      %v1266 = vrot.slane %v221, 5
      %v1267 = vsel %vm1225, %v1265, %v1266
      %v1268 = vrot.slane %v1181, 5
      %v1269 = vrot.slane %v1268, 4
      %v1270 = vrot.slane %v196, 5
      %v1271 = vsel %vm1225, %v1269, %v1270
      %v1272 = vrot.slane %v1270, 4
      %v1273 = vrot.slane %v222, 5
      %v1274 = vsel %vm1225, %v1272, %v1273
      %v1275 = vrot.slane %v1182, 5
      %v1276 = vrot.slane %v1275, 4
      %v1277 = vrot.slane %v198, 5
      %v1278 = vsel %vm1225, %v1276, %v1277
      %v1279 = vrot.slane %v1277, 4
      %v1280 = vrot.slane %v223, 5
      %v1281 = vsel %vm1225, %v1279, %v1280
      %v1282 = vrot.slane %v1183, 5
      %v1283 = vrot.slane %v1282, 4
      %v1284 = vrot.slane %v200, 5
      %v1285 = vsel %vm1225, %v1283, %v1284
      %v1286 = vrot.slane %v1284, 4
      %v1287 = vrot.slane %v224, 5
      %v1288 = vsel %vm1225, %v1286, %v1287
      %v1289 = vrot.slane %v1184, 5
      %v1290 = vrot.slane %v1289, 4
      %v1291 = vrot.slane %v202, 5
      %v1292 = vsel %vm1225, %v1290, %v1291
      %v1293 = vrot.slane %v1291, 4
      %v1294 = vrot.slane %v225, 5
      %v1295 = vsel %vm1225, %v1293, %v1294
      %v1296 = vrot.slane %v1185, 5
      %v1297 = vrot.slane %v1296, 4
      %v1298 = vrot.slane %v204, 5
      %v1299 = vsel %vm1225, %v1297, %v1298
      %v1300 = vrot.slane %v1298, 4
      %v1301 = vrot.slane %v226, 5
      %v1302 = vsel %vm1225, %v1300, %v1301
      %v1303 = vrot.slane %v1186, 5
      %v1304 = vrot.slane %v1303, 4
      %v1305 = vrot.slane %v206, 5
      %v1306 = vsel %vm1225, %v1304, %v1305
      %v1307 = vrot.slane %v1305, 4
      %v1308 = vrot.slane %v227, 5
      %v1309 = vsel %vm1225, %v1307, %v1308
      %v1310 = vrot.slane %v1187, 5
      %v1311 = vrot.slane %v1310, 4
      %v1312 = vrot.slane %v208, 5
      %v1313 = vsel %vm1225, %v1311, %v1312
      %v1314 = vrot.slane %v1312, 4
      %v1315 = vrot.slane %v228, 5
      %v1316 = vsel %vm1225, %v1314, %v1315
      %v1317 = vrot.slane %v1188, 5
      %v1318 = vrot.slane %v1317, 4
      %v1319 = vrot.slane %v210, 5
      %v1320 = vsel %vm1225, %v1318, %v1319
      %v1321 = vrot.slane %v1319, 4
      %v1322 = vrot.slane %v229, 5
      %v1323 = vsel %vm1225, %v1321, %v1322
      %v1324 = vrot.slane %v1189, 5
      %v1325 = vrot.slane %v1324, 4
      %v1326 = vrot.slane %v212, 5
      %v1327 = vsel %vm1225, %v1325, %v1326
      %v1328 = vrot.slane %v1326, 4
      %v1329 = vrot.slane %v230, 5
      %v1330 = vsel %vm1225, %v1328, %v1329
      %v1331 = vrot.slane %v1190, 5
      %v1332 = vrot.slane %v1331, 4
      %v1333 = vrot.slane %v214, 5
      %v1334 = vsel %vm1225, %v1332, %v1333
      %v1335 = vrot.slane %v1333, 4
      %v1336 = vrot.slane %v231, 5
      %v1337 = vsel %vm1225, %v1335, %v1336
      %s1338 = scalar_lea.vmem %s1, 4
      %v1339 = vld [vmem:[%s1338] sm:$0x3]
      %v1340 = vunpack.c.l.b16 %v1229
      %v1341 = vunpack.c.l.b16 %v1232
      %v1342 = vunpack.c.l.b16 %v1236
      %v1343 = vunpack.c.l.b16 %v1239
      %v1344 = vunpack.c.l.b16 %v1243
      %v1345 = vunpack.c.l.b16 %v1246
      %v1346 = vunpack.c.l.b16 %v1250
      %v1347 = vunpack.c.l.b16 %v1253
      %v1348 = vunpack.c.l.b16 %v1257
      %v1349 = vunpack.c.l.b16 %v1260
      %v1350 = vunpack.c.l.b16 %v1264
      %v1351 = vunpack.c.l.b16 %v1267
      %v1352 = vunpack.c.l.b16 %v1271
      %v1353 = vunpack.c.l.b16 %v1274
      %v1354 = vunpack.c.l.b16 %v1278
      %v1355 = vunpack.c.l.b16 %v1281
      %v1356 = vunpack.c.l.b16 %v1285
      %v1357 = vunpack.c.l.b16 %v1288
      %v1358 = vunpack.c.l.b16 %v1292
      %v1359 = vunpack.c.l.b16 %v1295
      %v1360 = vunpack.c.l.b16 %v1299
      %v1361 = vunpack.c.l.b16 %v1302
      %v1362 = vunpack.c.l.b16 %v1306
      %v1363 = vunpack.c.l.b16 %v1309
      %v1364 = vunpack.c.l.b16 %v1313
      %v1365 = vunpack.c.l.b16 %v1316
      %v1366 = vunpack.c.l.b16 %v1320
      %v1367 = vunpack.c.l.b16 %v1323
      %v1368 = vunpack.c.l.b16 %v1327
      %v1369 = vunpack.c.l.b16 %v1330
      %v1370 = vunpack.c.l.b16 %v1334
      %v1371 = vunpack.c.l.b16 %v1337
      %v1372 = vpack.c.b16 %v1341, %v1340
      %v1373 = vpack.c.b16 %v1343, %v1342
      %v1374 = vpack.c.b16 %v1345, %v1344
      %v1375 = vpack.c.b16 %v1347, %v1346
      %v1376 = vpack.c.b16 %v1349, %v1348
      %v1377 = vpack.c.b16 %v1351, %v1350
      %v1378 = vpack.c.b16 %v1353, %v1352
      %v1379 = vpack.c.b16 %v1355, %v1354
      %v1380 = vpack.c.b16 %v1357, %v1356
      %v1381 = vpack.c.b16 %v1359, %v1358
      %v1382 = vpack.c.b16 %v1361, %v1360
      %v1383 = vpack.c.b16 %v1363, %v1362
      %v1384 = vpack.c.b16 %v1365, %v1364
      %v1385 = vpack.c.b16 %v1367, %v1366
      %v1386 = vpack.c.b16 %v1369, %v1368
      %v1387 = vpack.c.b16 %v1371, %v1370
      %v1389 = vsel %vm669, %v1372, 0
      %v1392 = vsel %vm669, %v1373, 0
      %v1395 = vsel %vm669, %v1374, 0
      %v1398 = vsel %vm669, %v1375, 0
      %v1401 = vsel %vm669, %v1376, 0
      %v1404 = vsel %vm669, %v1377, 0
      %v1407 = vsel %vm669, %v1378, 0
      %v1410 = vsel %vm669, %v1379, 0
      %v1413 = vsel %vm669, %v1380, 0
      %v1416 = vsel %vm669, %v1381, 0
      %v1419 = vsel %vm669, %v1382, 0
      %v1422 = vsel %vm669, %v1383, 0
      %v1425 = vsel %vm669, %v1384, 0
      %v1428 = vsel %vm669, %v1385, 0
      %v1431 = vsel %vm669, %v1386, 0
      %v1434 = vsel %vm669, %v1387, 0
      %v1437 = vsel %vm718, %v1339, 0
      %1439 = vmatprep.subr.bf16.mxu0 0
      %1440 = vmatpush1.bf16.msra.mxu0 %v1437
      %1441 = vmatprep.subr.bf16.mxu0 0
      %1442 = vmatpush1.bf16.msra.mxu0 0
      %1443 = vmatprep.subr.bf16.mxu0 0
      %1444 = vmatpush1.bf16.msra.mxu0 0
      %1445 = vmatprep.subr.bf16.mxu0 0
      %1446 = vmatpush1.bf16.msra.mxu0 0
      %1447 = vmatprep.subr.bf16.mxu0 0
      %1448 = vmatpush1.bf16.msra.mxu0 0
      %1449 = vmatprep.subr.bf16.mxu0 0
      %1450 = vmatpush1.bf16.msra.mxu0 0
      %1451 = vmatprep.subr.bf16.mxu0 0
      %1452 = vmatpush1.bf16.msra.mxu0 0
      %1453 = vmatprep.subr.bf16.mxu0 0
      %1454 = vmatpush1.bf16.msra.mxu0 0
      %1455 = vmatprep.subr.bf16.mxu0 0
      %1456 = vmatpush1.bf16.msra.mxu0 0
      %1457 = vmatprep.subr.bf16.mxu0 0
      %1458 = vmatpush1.bf16.msra.mxu0 0
      %1459 = vmatprep.subr.bf16.mxu0 0
      %1460 = vmatpush1.bf16.msra.mxu0 0
      %1461 = vmatprep.subr.bf16.mxu0 0
      %1462 = vmatpush1.bf16.msra.mxu0 0
      %1463 = vmatprep.subr.bf16.mxu0 0
      %1464 = vmatpush1.bf16.msra.mxu0 0
      %1465 = vmatprep.subr.bf16.mxu0 0
      %1466 = vmatpush1.bf16.msra.mxu0 0
      %1467 = vmatprep.subr.bf16.mxu0 0
      %1468 = vmatpush1.bf16.msra.mxu0 0
      %1469 = vmatprep.subr.bf16.mxu0 0
      %1470 = vmatpush1.bf16.msra.mxu0 0
      %1471 = vmatprep.mubr.bf16.mxu0 0
      %1472 = vmatmul.mubr.bf16.gmra.mrb[0].mxu0 %v1389
      %v1473 = vpop.f32.mrb[0].mxu0
      %v1474 = vadd.f32 0.0, %v1473
      %v1475 = vpop.f32.mrb[0].mxu0
      %v1476 = vpop.f32.mrb[0].mxu0
      %v1477 = vadd.f32 0.0, %v1476
      %v1478 = vpop.f32.mrb[0].mxu0
      %1479 = vmatprep.mubr.bf16.mxu0 0
      %1480 = vmatmul.mubr.bf16.gmra.mrb[0].mxu0 %v1392
      %v1481 = vpop.f32.mrb[0].mxu0
      %v1482 = vadd.f32 0.0, %v1481
      %v1483 = vpop.f32.mrb[0].mxu0
      %v1484 = vpop.f32.mrb[0].mxu0
      %v1485 = vadd.f32 0.0, %v1484
      %v1486 = vpop.f32.mrb[0].mxu0
      %1487 = vmatprep.mubr.bf16.mxu0 0
      %1488 = vmatmul.mubr.bf16.gmra.mrb[0].mxu0 %v1395
      %v1489 = vpop.f32.mrb[0].mxu0
      %v1490 = vadd.f32 0.0, %v1489
      %v1491 = vpop.f32.mrb[0].mxu0
      %v1492 = vpop.f32.mrb[0].mxu0
      %v1493 = vadd.f32 0.0, %v1492
      %v1494 = vpop.f32.mrb[0].mxu0
      %1495 = vmatprep.mubr.bf16.mxu0 0
      %1496 = vmatmul.mubr.bf16.gmra.mrb[0].mxu0 %v1398
      %v1497 = vpop.f32.mrb[0].mxu0
      %v1498 = vadd.f32 0.0, %v1497
      %v1499 = vpop.f32.mrb[0].mxu0
      %v1500 = vpop.f32.mrb[0].mxu0
      %v1501 = vadd.f32 0.0, %v1500
      %v1502 = vpop.f32.mrb[0].mxu0
      %1503 = vmatprep.mubr.bf16.mxu0 0
      %1504 = vmatmul.mubr.bf16.gmra.mrb[0].mxu0 %v1401
      %v1505 = vpop.f32.mrb[0].mxu0
      %v1506 = vadd.f32 0.0, %v1505
      %v1507 = vpop.f32.mrb[0].mxu0
      %v1508 = vpop.f32.mrb[0].mxu0
      %v1509 = vadd.f32 0.0, %v1508
      %v1510 = vpop.f32.mrb[0].mxu0
      %1511 = vmatprep.mubr.bf16.mxu0 0
      %1512 = vmatmul.mubr.bf16.gmra.mrb[0].mxu0 %v1404
      %v1513 = vpop.f32.mrb[0].mxu0
      %v1514 = vadd.f32 0.0, %v1513
      %v1515 = vpop.f32.mrb[0].mxu0
      %v1516 = vpop.f32.mrb[0].mxu0
      %v1517 = vadd.f32 0.0, %v1516
      %v1518 = vpop.f32.mrb[0].mxu0
      %1519 = vmatprep.mubr.bf16.mxu0 0
      %1520 = vmatmul.mubr.bf16.gmra.mrb[0].mxu0 %v1407
      %v1521 = vpop.f32.mrb[0].mxu0
      %v1522 = vadd.f32 0.0, %v1521
      %v1523 = vpop.f32.mrb[0].mxu0
      %v1524 = vpop.f32.mrb[0].mxu0
      %v1525 = vadd.f32 0.0, %v1524
      %v1526 = vpop.f32.mrb[0].mxu0
      %1527 = vmatprep.mubr.bf16.mxu0 0
      %1528 = vmatmul.mubr.bf16.gmra.mrb[0].mxu0 %v1410
      %v1529 = vpop.f32.mrb[0].mxu0
      %v1530 = vadd.f32 0.0, %v1529
      %v1531 = vpop.f32.mrb[0].mxu0
      %v1532 = vpop.f32.mrb[0].mxu0
      %v1533 = vadd.f32 0.0, %v1532
      %v1534 = vpop.f32.mrb[0].mxu0
      %1535 = vmatprep.mubr.bf16.mxu0 0
      %1536 = vmatmul.mubr.bf16.gmra.mrb[0].mxu0 %v1413
      %v1537 = vpop.f32.mrb[0].mxu0
      %v1538 = vadd.f32 0.0, %v1537
      %v1539 = vpop.f32.mrb[0].mxu0
      %v1540 = vpop.f32.mrb[0].mxu0
      %v1541 = vadd.f32 0.0, %v1540
      %v1542 = vpop.f32.mrb[0].mxu0
      %1543 = vmatprep.mubr.bf16.mxu0 0
      %1544 = vmatmul.mubr.bf16.gmra.mrb[0].mxu0 %v1416
      %v1545 = vpop.f32.mrb[0].mxu0
      %v1546 = vadd.f32 0.0, %v1545
      %v1547 = vpop.f32.mrb[0].mxu0
      %v1548 = vpop.f32.mrb[0].mxu0
      %v1549 = vadd.f32 0.0, %v1548
      %v1550 = vpop.f32.mrb[0].mxu0
      %1551 = vmatprep.mubr.bf16.mxu0 0
      %1552 = vmatmul.mubr.bf16.gmra.mrb[0].mxu0 %v1419
      %v1553 = vpop.f32.mrb[0].mxu0
      %v1554 = vadd.f32 0.0, %v1553
      %v1555 = vpop.f32.mrb[0].mxu0
      %v1556 = vpop.f32.mrb[0].mxu0
      %v1557 = vadd.f32 0.0, %v1556
      %v1558 = vpop.f32.mrb[0].mxu0
      %1559 = vmatprep.mubr.bf16.mxu0 0
      %1560 = vmatmul.mubr.bf16.gmra.mrb[0].mxu0 %v1422
      %v1561 = vpop.f32.mrb[0].mxu0
      %v1562 = vadd.f32 0.0, %v1561
      %v1563 = vpop.f32.mrb[0].mxu0
      %v1564 = vpop.f32.mrb[0].mxu0
      %v1565 = vadd.f32 0.0, %v1564
      %v1566 = vpop.f32.mrb[0].mxu0
      %1567 = vmatprep.mubr.bf16.mxu0 0
      %1568 = vmatmul.mubr.bf16.gmra.mrb[0].mxu0 %v1425
      %v1569 = vpop.f32.mrb[0].mxu0
      %v1570 = vadd.f32 0.0, %v1569
      %v1571 = vpop.f32.mrb[0].mxu0
      %v1572 = vpop.f32.mrb[0].mxu0
      %v1573 = vadd.f32 0.0, %v1572
      %v1574 = vpop.f32.mrb[0].mxu0
      %1575 = vmatprep.mubr.bf16.mxu0 0
      %1576 = vmatmul.mubr.bf16.gmra.mrb[0].mxu0 %v1428
      %v1577 = vpop.f32.mrb[0].mxu0
      %v1578 = vadd.f32 0.0, %v1577
      %v1579 = vpop.f32.mrb[0].mxu0
      %v1580 = vpop.f32.mrb[0].mxu0
      %v1581 = vadd.f32 0.0, %v1580
      %v1582 = vpop.f32.mrb[0].mxu0
      %1583 = vmatprep.mubr.bf16.mxu0 0
      %1584 = vmatmul.mubr.bf16.gmra.mrb[0].mxu0 %v1431
      %v1585 = vpop.f32.mrb[0].mxu0
      %v1586 = vadd.f32 0.0, %v1585
      %v1587 = vpop.f32.mrb[0].mxu0
      %v1588 = vpop.f32.mrb[0].mxu0
      %v1589 = vadd.f32 0.0, %v1588
      %v1590 = vpop.f32.mrb[0].mxu0
      %1591 = vmatprep.mubr.bf16.mxu0 0
      %1592 = vmatmul.mubr.bf16.gmra.mrb[0].mxu0 %v1434
      %v1593 = vpop.f32.mrb[0].mxu0
      %v1594 = vadd.f32 0.0, %v1593
      %v1595 = vpop.f32.mrb[0].mxu0
      %v1596 = vpop.f32.mrb[0].mxu0
      %v1597 = vadd.f32 0.0, %v1596
      %v1598 = vpop.f32.mrb[0].mxu0
      %1599 = vdwg.mxu0
      %v1600 = vadd.f32 %v1049, %v1474
      %v1601 = vadd.f32 %v1052, %v1477
      %v1602 = vadd.f32 %v1057, %v1482
      %v1603 = vadd.f32 %v1060, %v1485
      %v1604 = vadd.f32 %v1065, %v1490
      %v1605 = vadd.f32 %v1068, %v1493
      %v1606 = vadd.f32 %v1073, %v1498
      %v1607 = vadd.f32 %v1076, %v1501
      %v1608 = vadd.f32 %v1081, %v1506
      %v1609 = vadd.f32 %v1084, %v1509
      %v1610 = vadd.f32 %v1089, %v1514
      %v1611 = vadd.f32 %v1092, %v1517
      %v1612 = vadd.f32 %v1097, %v1522
      %v1613 = vadd.f32 %v1100, %v1525
      %v1614 = vadd.f32 %v1105, %v1530
      %v1615 = vadd.f32 %v1108, %v1533
      %v1616 = vadd.f32 %v1113, %v1538
      %v1617 = vadd.f32 %v1116, %v1541
      %v1618 = vadd.f32 %v1121, %v1546
      %v1619 = vadd.f32 %v1124, %v1549
      %v1620 = vadd.f32 %v1129, %v1554
      %v1621 = vadd.f32 %v1132, %v1557
      %v1622 = vadd.f32 %v1137, %v1562
      %v1623 = vadd.f32 %v1140, %v1565
      %v1624 = vadd.f32 %v1145, %v1570
      %v1625 = vadd.f32 %v1148, %v1573
      %v1626 = vadd.f32 %v1153, %v1578
      %v1627 = vadd.f32 %v1156, %v1581
      %v1628 = vadd.f32 %v1161, %v1586
      %v1629 = vadd.f32 %v1164, %v1589
      %v1630 = vadd.f32 %v1169, %v1594
      %v1631 = vadd.f32 %v1172, %v1597
      %s1632 = scalar_lea.vmem %s172, 12
      %v1633 = vld [vmem:[%s1632] sm:$0xf]
      %v1634 = vld [vmem:[%s1632 + $0x4] sm:$0xf]
      %v1635 = vld [vmem:[%s1632 + $0xc] sm:$0xf]
      %v1636 = vld [vmem:[%s1632 + $0x10] sm:$0xf]
      %v1637 = vld [vmem:[%s1632 + $0x18] sm:$0xf]
      %v1638 = vld [vmem:[%s1632 + $0x1c] sm:$0xf]
      %v1639 = vld [vmem:[%s1632 + $0x24] sm:$0xf]
      %v1640 = vld [vmem:[%s1632 + $0x28] sm:$0xf]
      %v1641 = vld [vmem:[%s1632 + $0x30] sm:$0xf]
      %v1642 = vld [vmem:[%s1632 + $0x34] sm:$0xf]
      %v1643 = vld [vmem:[%s1632 + $0x3c] sm:$0xf]
      %v1644 = vld [vmem:[%s1632 + $0x40] sm:$0xf]
      %v1645 = vld [vmem:[%s1632 + $0x48] sm:$0xf]
      %v1646 = vld [vmem:[%s1632 + $0x4c] sm:$0xf]
      %v1647 = vld [vmem:[%s1632 + $0x54] sm:$0xf]
      %v1648 = vld [vmem:[%s1632 + $0x58] sm:$0xf]
      %v1649 = vld [vmem:[%s1632 + $0x60] sm:$0xf]
      %v1650 = vld [vmem:[%s1632 + $0x64] sm:$0xf]
      %v1651 = vld [vmem:[%s1632 + $0x6c] sm:$0xf]
      %v1652 = vld [vmem:[%s1632 + $0x70] sm:$0xf]
      %v1653 = vld [vmem:[%s1632 + $0x78] sm:$0xf]
      %v1654 = vld [vmem:[%s1632 + $0x7c] sm:$0xf]
      %v1655 = vld [vmem:[%s1632 + $0x84] sm:$0xf]
      %v1656 = vld [vmem:[%s1632 + $0x88] sm:$0xf]
      %v1657 = vld [vmem:[%s1632 + $0x90] sm:$0xf]
      %v1658 = vld [vmem:[%s1632 + $0x94] sm:$0xf]
      %v1659 = vld [vmem:[%s1632 + $0x9c] sm:$0xf]
      %v1660 = vld [vmem:[%s1632 + $0xa0] sm:$0xf]
      %v1661 = vld [vmem:[%s1632 + $0xa8] sm:$0xf]
      %v1662 = vld [vmem:[%s1632 + $0xac] sm:$0xf]
      %v1663 = vld [vmem:[%s1632 + $0xb4] sm:$0xf]
      %v1664 = vld [vmem:[%s1632 + $0xb8] sm:$0xf]
      %s1665 = scalar_lea.vmem %s1, 6
      %v1666 = vld [vmem:[%s1665] sm:$0x3]
      %v1699 = vunpack.c.l.b16 %v1633
      %v1700 = vunpack.c.l.b16 %v1634
      %v1701 = vunpack.c.l.b16 %v1635
      %v1702 = vunpack.c.l.b16 %v1636
      %v1703 = vunpack.c.l.b16 %v1637
      %v1704 = vunpack.c.l.b16 %v1638
      %v1705 = vunpack.c.l.b16 %v1639
      %v1706 = vunpack.c.l.b16 %v1640
      %v1707 = vunpack.c.l.b16 %v1641
      %v1708 = vunpack.c.l.b16 %v1642
      %v1709 = vunpack.c.l.b16 %v1643
      %v1710 = vunpack.c.l.b16 %v1644
      %v1711 = vunpack.c.l.b16 %v1645
      %v1712 = vunpack.c.l.b16 %v1646
      %v1713 = vunpack.c.l.b16 %v1647
      %v1714 = vunpack.c.l.b16 %v1648
      %v1715 = vunpack.c.l.b16 %v1649
      %v1716 = vunpack.c.l.b16 %v1650
      %v1717 = vunpack.c.l.b16 %v1651
      %v1718 = vunpack.c.l.b16 %v1652
      %v1719 = vunpack.c.l.b16 %v1653
      %v1720 = vunpack.c.l.b16 %v1654
      %v1721 = vunpack.c.l.b16 %v1655
      %v1722 = vunpack.c.l.b16 %v1656
      %v1723 = vunpack.c.l.b16 %v1657
      %v1724 = vunpack.c.l.b16 %v1658
      %v1725 = vunpack.c.l.b16 %v1659
      %v1726 = vunpack.c.l.b16 %v1660
      %v1727 = vunpack.c.l.b16 %v1661
      %v1728 = vunpack.c.l.b16 %v1662
      %v1729 = vunpack.c.l.b16 %v1663
      %v1730 = vunpack.c.l.b16 %v1664
      %v1731 = vpack.c.b16 %v1700, %v1699
      %v1732 = vpack.c.b16 %v1702, %v1701
      %v1733 = vpack.c.b16 %v1704, %v1703
      %v1734 = vpack.c.b16 %v1706, %v1705
      %v1735 = vpack.c.b16 %v1708, %v1707
      %v1736 = vpack.c.b16 %v1710, %v1709
      %v1737 = vpack.c.b16 %v1712, %v1711
      %v1738 = vpack.c.b16 %v1714, %v1713
      %v1739 = vpack.c.b16 %v1716, %v1715
      %v1740 = vpack.c.b16 %v1718, %v1717
      %v1741 = vpack.c.b16 %v1720, %v1719
      %v1742 = vpack.c.b16 %v1722, %v1721
      %v1743 = vpack.c.b16 %v1724, %v1723
      %v1744 = vpack.c.b16 %v1726, %v1725
      %v1745 = vpack.c.b16 %v1728, %v1727
      %v1746 = vpack.c.b16 %v1730, %v1729
      %v1748 = vsel %vm669, %v1731, 0
      %v1751 = vsel %vm669, %v1732, 0
      %v1754 = vsel %vm669, %v1733, 0
      %v1757 = vsel %vm669, %v1734, 0
      %v1760 = vsel %vm669, %v1735, 0
      %v1763 = vsel %vm669, %v1736, 0
      %v1766 = vsel %vm669, %v1737, 0
      %v1769 = vsel %vm669, %v1738, 0
      %v1772 = vsel %vm669, %v1739, 0
      %v1775 = vsel %vm669, %v1740, 0
      %v1778 = vsel %vm669, %v1741, 0
      %v1781 = vsel %vm669, %v1742, 0
      %v1784 = vsel %vm669, %v1743, 0
      %v1787 = vsel %vm669, %v1744, 0
      %v1790 = vsel %vm669, %v1745, 0
      %v1793 = vsel %vm669, %v1746, 0
      %v1796 = vsel %vm718, %v1666, 0
      %1798 = vmatprep.subr.bf16.mxu0 0
      %1799 = vmatpush1.bf16.msra.mxu0 %v1796
      %1800 = vmatprep.subr.bf16.mxu0 0
      %1801 = vmatpush1.bf16.msra.mxu0 0
      %1802 = vmatprep.subr.bf16.mxu0 0
      %1803 = vmatpush1.bf16.msra.mxu0 0
      %1804 = vmatprep.subr.bf16.mxu0 0
      %1805 = vmatpush1.bf16.msra.mxu0 0
      %1806 = vmatprep.subr.bf16.mxu0 0
      %1807 = vmatpush1.bf16.msra.mxu0 0
      %1808 = vmatprep.subr.bf16.mxu0 0
      %1809 = vmatpush1.bf16.msra.mxu0 0
      %1810 = vmatprep.subr.bf16.mxu0 0
      %1811 = vmatpush1.bf16.msra.mxu0 0
      %1812 = vmatprep.subr.bf16.mxu0 0
      %1813 = vmatpush1.bf16.msra.mxu0 0
      %1814 = vmatprep.subr.bf16.mxu0 0
      %1815 = vmatpush1.bf16.msra.mxu0 0
      %1816 = vmatprep.subr.bf16.mxu0 0
      %1817 = vmatpush1.bf16.msra.mxu0 0
      %1818 = vmatprep.subr.bf16.mxu0 0
      %1819 = vmatpush1.bf16.msra.mxu0 0
      %1820 = vmatprep.subr.bf16.mxu0 0
      %1821 = vmatpush1.bf16.msra.mxu0 0
      %1822 = vmatprep.subr.bf16.mxu0 0
      %1823 = vmatpush1.bf16.msra.mxu0 0
      %1824 = vmatprep.subr.bf16.mxu0 0
      %1825 = vmatpush1.bf16.msra.mxu0 0
      %1826 = vmatprep.subr.bf16.mxu0 0
      %1827 = vmatpush1.bf16.msra.mxu0 0
      %1828 = vmatprep.subr.bf16.mxu0 0
      %1829 = vmatpush1.bf16.msra.mxu0 0
      %1830 = vmatprep.mubr.bf16.mxu0 0
      %1831 = vmatmul.mubr.bf16.gmra.mrb[0].mxu0 %v1748
      %v1832 = vpop.f32.mrb[0].mxu0
      %v1833 = vadd.f32 0.0, %v1832
      %v1834 = vpop.f32.mrb[0].mxu0
      %v1835 = vpop.f32.mrb[0].mxu0
      %v1836 = vadd.f32 0.0, %v1835
      %v1837 = vpop.f32.mrb[0].mxu0
      %1838 = vmatprep.mubr.bf16.mxu0 0
      %1839 = vmatmul.mubr.bf16.gmra.mrb[0].mxu0 %v1751
      %v1840 = vpop.f32.mrb[0].mxu0
      %v1841 = vadd.f32 0.0, %v1840
      %v1842 = vpop.f32.mrb[0].mxu0
      %v1843 = vpop.f32.mrb[0].mxu0
      %v1844 = vadd.f32 0.0, %v1843
      %v1845 = vpop.f32.mrb[0].mxu0
      %1846 = vmatprep.mubr.bf16.mxu0 0
      %1847 = vmatmul.mubr.bf16.gmra.mrb[0].mxu0 %v1754
      %v1848 = vpop.f32.mrb[0].mxu0
      %v1849 = vadd.f32 0.0, %v1848
      %v1850 = vpop.f32.mrb[0].mxu0
      %v1851 = vpop.f32.mrb[0].mxu0
      %v1852 = vadd.f32 0.0, %v1851
      %v1853 = vpop.f32.mrb[0].mxu0
      %1854 = vmatprep.mubr.bf16.mxu0 0
      %1855 = vmatmul.mubr.bf16.gmra.mrb[0].mxu0 %v1757
      %v1856 = vpop.f32.mrb[0].mxu0
      %v1857 = vadd.f32 0.0, %v1856
      %v1858 = vpop.f32.mrb[0].mxu0
      %v1859 = vpop.f32.mrb[0].mxu0
      %v1860 = vadd.f32 0.0, %v1859
      %v1861 = vpop.f32.mrb[0].mxu0
      %1862 = vmatprep.mubr.bf16.mxu0 0
      %1863 = vmatmul.mubr.bf16.gmra.mrb[0].mxu0 %v1760
      %v1864 = vpop.f32.mrb[0].mxu0
      %v1865 = vadd.f32 0.0, %v1864
      %v1866 = vpop.f32.mrb[0].mxu0
      %v1867 = vpop.f32.mrb[0].mxu0
      %v1868 = vadd.f32 0.0, %v1867
      %v1869 = vpop.f32.mrb[0].mxu0
      %1870 = vmatprep.mubr.bf16.mxu0 0
      %1871 = vmatmul.mubr.bf16.gmra.mrb[0].mxu0 %v1763
      %v1872 = vpop.f32.mrb[0].mxu0
      %v1873 = vadd.f32 0.0, %v1872
      %v1874 = vpop.f32.mrb[0].mxu0
      %v1875 = vpop.f32.mrb[0].mxu0
      %v1876 = vadd.f32 0.0, %v1875
      %v1877 = vpop.f32.mrb[0].mxu0
      %1878 = vmatprep.mubr.bf16.mxu0 0
      %1879 = vmatmul.mubr.bf16.gmra.mrb[0].mxu0 %v1766
      %v1880 = vpop.f32.mrb[0].mxu0
      %v1881 = vadd.f32 0.0, %v1880
      %v1882 = vpop.f32.mrb[0].mxu0
      %v1883 = vpop.f32.mrb[0].mxu0
      %v1884 = vadd.f32 0.0, %v1883
      %v1885 = vpop.f32.mrb[0].mxu0
      %1886 = vmatprep.mubr.bf16.mxu0 0
      %1887 = vmatmul.mubr.bf16.gmra.mrb[0].mxu0 %v1769
      %v1888 = vpop.f32.mrb[0].mxu0
      %v1889 = vadd.f32 0.0, %v1888
      %v1890 = vpop.f32.mrb[0].mxu0
      %v1891 = vpop.f32.mrb[0].mxu0
      %v1892 = vadd.f32 0.0, %v1891
      %v1893 = vpop.f32.mrb[0].mxu0
      %1894 = vmatprep.mubr.bf16.mxu0 0
      %1895 = vmatmul.mubr.bf16.gmra.mrb[0].mxu0 %v1772
      %v1896 = vpop.f32.mrb[0].mxu0
      %v1897 = vadd.f32 0.0, %v1896
      %v1898 = vpop.f32.mrb[0].mxu0
      %v1899 = vpop.f32.mrb[0].mxu0
      %v1900 = vadd.f32 0.0, %v1899
      %v1901 = vpop.f32.mrb[0].mxu0
      %1902 = vmatprep.mubr.bf16.mxu0 0
      %1903 = vmatmul.mubr.bf16.gmra.mrb[0].mxu0 %v1775
      %v1904 = vpop.f32.mrb[0].mxu0
      %v1905 = vadd.f32 0.0, %v1904
      %v1906 = vpop.f32.mrb[0].mxu0
      %v1907 = vpop.f32.mrb[0].mxu0
      %v1908 = vadd.f32 0.0, %v1907
      %v1909 = vpop.f32.mrb[0].mxu0
      %1910 = vmatprep.mubr.bf16.mxu0 0
      %1911 = vmatmul.mubr.bf16.gmra.mrb[0].mxu0 %v1778
      %v1912 = vpop.f32.mrb[0].mxu0
      %v1913 = vadd.f32 0.0, %v1912
      %v1914 = vpop.f32.mrb[0].mxu0
      %v1915 = vpop.f32.mrb[0].mxu0
      %v1916 = vadd.f32 0.0, %v1915
      %v1917 = vpop.f32.mrb[0].mxu0
      %1918 = vmatprep.mubr.bf16.mxu0 0
      %1919 = vmatmul.mubr.bf16.gmra.mrb[0].mxu0 %v1781
      %v1920 = vpop.f32.mrb[0].mxu0
      %v1921 = vadd.f32 0.0, %v1920
      %v1922 = vpop.f32.mrb[0].mxu0
      %v1923 = vpop.f32.mrb[0].mxu0
      %v1924 = vadd.f32 0.0, %v1923
      %v1925 = vpop.f32.mrb[0].mxu0
      %1926 = vmatprep.mubr.bf16.mxu0 0
      %1927 = vmatmul.mubr.bf16.gmra.mrb[0].mxu0 %v1784
      %v1928 = vpop.f32.mrb[0].mxu0
      %v1929 = vadd.f32 0.0, %v1928
      %v1930 = vpop.f32.mrb[0].mxu0
      %v1931 = vpop.f32.mrb[0].mxu0
      %v1932 = vadd.f32 0.0, %v1931
      %v1933 = vpop.f32.mrb[0].mxu0
      %1934 = vmatprep.mubr.bf16.mxu0 0
      %1935 = vmatmul.mubr.bf16.gmra.mrb[0].mxu0 %v1787
      %v1936 = vpop.f32.mrb[0].mxu0
      %v1937 = vadd.f32 0.0, %v1936
      %v1938 = vpop.f32.mrb[0].mxu0
      %v1939 = vpop.f32.mrb[0].mxu0
      %v1940 = vadd.f32 0.0, %v1939
      %v1941 = vpop.f32.mrb[0].mxu0
      %1942 = vmatprep.mubr.bf16.mxu0 0
      %1943 = vmatmul.mubr.bf16.gmra.mrb[0].mxu0 %v1790
      %v1944 = vpop.f32.mrb[0].mxu0
      %v1945 = vadd.f32 0.0, %v1944
      %v1946 = vpop.f32.mrb[0].mxu0
      %v1947 = vpop.f32.mrb[0].mxu0
      %v1948 = vadd.f32 0.0, %v1947
      %v1949 = vpop.f32.mrb[0].mxu0
      %1950 = vmatprep.mubr.bf16.mxu0 0
      %1951 = vmatmul.mubr.bf16.gmra.mrb[0].mxu0 %v1793
      %v1952 = vpop.f32.mrb[0].mxu0
      %v1953 = vadd.f32 0.0, %v1952
      %v1954 = vpop.f32.mrb[0].mxu0
      %v1955 = vpop.f32.mrb[0].mxu0
      %v1956 = vadd.f32 0.0, %v1955
      %v1957 = vpop.f32.mrb[0].mxu0
      %1958 = vdwg.mxu0
      %v1959 = vadd.f32 %v1600, %v1833
      %v1960 = vadd.f32 %v1601, %v1836
      %v1961 = vadd.f32 %v1602, %v1841
      %v1962 = vadd.f32 %v1603, %v1844
      %v1963 = vadd.f32 %v1604, %v1849
      %v1964 = vadd.f32 %v1605, %v1852
      %v1965 = vadd.f32 %v1606, %v1857
      %v1966 = vadd.f32 %v1607, %v1860
      %v1967 = vadd.f32 %v1608, %v1865
      %v1968 = vadd.f32 %v1609, %v1868
      %v1969 = vadd.f32 %v1610, %v1873
      %v1970 = vadd.f32 %v1611, %v1876
      %v1971 = vadd.f32 %v1612, %v1881
      %v1972 = vadd.f32 %v1613, %v1884
      %v1973 = vadd.f32 %v1614, %v1889
      %v1974 = vadd.f32 %v1615, %v1892
      %v1975 = vadd.f32 %v1616, %v1897
      %v1976 = vadd.f32 %v1617, %v1900
      %v1977 = vadd.f32 %v1618, %v1905
      %v1978 = vadd.f32 %v1619, %v1908
      %v1979 = vadd.f32 %v1620, %v1913
      %v1980 = vadd.f32 %v1621, %v1916
      %v1981 = vadd.f32 %v1622, %v1921
      %v1982 = vadd.f32 %v1623, %v1924
      %v1983 = vadd.f32 %v1624, %v1929
      %v1984 = vadd.f32 %v1625, %v1932
      %v1985 = vadd.f32 %v1626, %v1937
      %v1986 = vadd.f32 %v1627, %v1940
      %v1987 = vadd.f32 %v1628, %v1945
      %v1988 = vadd.f32 %v1629, %v1948
      %v1989 = vadd.f32 %v1630, %v1953
      %v1990 = vadd.f32 %v1631, %v1956
      %v1991 = vld [vmem:[%s1632] sm:$0xf]
      %v1992 = vld [vmem:[%s1632 + $0x4] sm:$0xf]
      %v1993 = vld [vmem:[%s1632 + $0x8] sm:$0x1]
      %v1994 = vld [vmem:[%s1632 + $0xc] sm:$0xf]
      %v1995 = vld [vmem:[%s1632 + $0x10] sm:$0xf]
      %v1996 = vld [vmem:[%s1632 + $0x14] sm:$0x1]
      %v1997 = vld [vmem:[%s1632 + $0x18] sm:$0xf]
      %v1998 = vld [vmem:[%s1632 + $0x1c] sm:$0xf]
      %v1999 = vld [vmem:[%s1632 + $0x20] sm:$0x1]
      %v2000 = vld [vmem:[%s1632 + $0x24] sm:$0xf]
      %v2001 = vld [vmem:[%s1632 + $0x28] sm:$0xf]
      %v2002 = vld [vmem:[%s1632 + $0x2c] sm:$0x1]
      %v2003 = vld [vmem:[%s1632 + $0x30] sm:$0xf]
      %v2004 = vld [vmem:[%s1632 + $0x34] sm:$0xf]
      %v2005 = vld [vmem:[%s1632 + $0x38] sm:$0x1]
      %v2006 = vld [vmem:[%s1632 + $0x3c] sm:$0xf]
      %v2007 = vld [vmem:[%s1632 + $0x40] sm:$0xf]
      %v2008 = vld [vmem:[%s1632 + $0x44] sm:$0x1]
      %v2009 = vld [vmem:[%s1632 + $0x48] sm:$0xf]
      %v2010 = vld [vmem:[%s1632 + $0x4c] sm:$0xf]
      %v2011 = vld [vmem:[%s1632 + $0x50] sm:$0x1]
      %v2012 = vld [vmem:[%s1632 + $0x54] sm:$0xf]
      %v2013 = vld [vmem:[%s1632 + $0x58] sm:$0xf]
      %v2014 = vld [vmem:[%s1632 + $0x5c] sm:$0x1]
      %v2015 = vld [vmem:[%s1632 + $0x60] sm:$0xf]
      %v2016 = vld [vmem:[%s1632 + $0x64] sm:$0xf]
      %v2017 = vld [vmem:[%s1632 + $0x68] sm:$0x1]
      %v2018 = vld [vmem:[%s1632 + $0x6c] sm:$0xf]
      %v2019 = vld [vmem:[%s1632 + $0x70] sm:$0xf]
      %v2020 = vld [vmem:[%s1632 + $0x74] sm:$0x1]
      %v2021 = vld [vmem:[%s1632 + $0x78] sm:$0xf]
      %v2022 = vld [vmem:[%s1632 + $0x7c] sm:$0xf]
      %v2023 = vld [vmem:[%s1632 + $0x80] sm:$0x1]
      %v2024 = vld [vmem:[%s1632 + $0x84] sm:$0xf]
      %v2025 = vld [vmem:[%s1632 + $0x88] sm:$0xf]
      %v2026 = vld [vmem:[%s1632 + $0x8c] sm:$0x1]
      %v2027 = vld [vmem:[%s1632 + $0x90] sm:$0xf]
      %v2028 = vld [vmem:[%s1632 + $0x94] sm:$0xf]
      %v2029 = vld [vmem:[%s1632 + $0x98] sm:$0x1]
      %v2030 = vld [vmem:[%s1632 + $0x9c] sm:$0xf]
      %v2031 = vld [vmem:[%s1632 + $0xa0] sm:$0xf]
      %v2032 = vld [vmem:[%s1632 + $0xa4] sm:$0x1]
      %v2033 = vld [vmem:[%s1632 + $0xa8] sm:$0xf]
      %v2034 = vld [vmem:[%s1632 + $0xac] sm:$0xf]
      %v2035 = vld [vmem:[%s1632 + $0xb0] sm:$0x1]
      %v2036 = vld [vmem:[%s1632 + $0xb4] sm:$0xf]
      %v2037 = vld [vmem:[%s1632 + $0xb8] sm:$0xf]
      %v2038 = vld [vmem:[%s1632 + $0xbc] sm:$0x1]
      %v2040 = vshrl.u32 %v1991, 16
      %v2042 = vrot.slane %v2040, 4
      %v2043 = vshll.u32 %v1991, 16
      %v2045 = vrot.slane %v2043, 5
      %v2046 = vor.u32 %v2042, %v2045
      %v2047 = vrot.slane %v2046, 4
      %v2049 = vshll.u32 %v1992, 16
      %v2051 = vrot.slane %v2049, 5
      %v2052 = vsel %vm234, %v2047, %v2051
      %v2053 = vshrl.u32 %v1992, 16
      %v2055 = vrot.slane %v2053, 4
      %v2056 = vor.u32 %v2055, %v2051
      %v2057 = vrot.slane %v2056, 4
      %v2059 = vshll.u32 %v1993, 16
      %v2061 = vrot.slane %v2059, 5
      %v2062 = vsel %vm234, %v2057, %v2061
      %v2064 = vshrl.u32 %v1994, 16
      %v2066 = vrot.slane %v2064, 4
      %v2067 = vshll.u32 %v1994, 16
      %v2069 = vrot.slane %v2067, 5
      %v2070 = vor.u32 %v2066, %v2069
      %v2071 = vrot.slane %v2070, 4
      %v2073 = vshll.u32 %v1995, 16
      %v2075 = vrot.slane %v2073, 5
      %v2076 = vsel %vm234, %v2071, %v2075
      %v2077 = vshrl.u32 %v1995, 16
      %v2079 = vrot.slane %v2077, 4
      %v2080 = vor.u32 %v2079, %v2075
      %v2081 = vrot.slane %v2080, 4
      %v2083 = vshll.u32 %v1996, 16
      %v2085 = vrot.slane %v2083, 5
      %v2086 = vsel %vm234, %v2081, %v2085
      %v2088 = vshrl.u32 %v1997, 16
      %v2090 = vrot.slane %v2088, 4
      %v2091 = vshll.u32 %v1997, 16
      %v2093 = vrot.slane %v2091, 5
      %v2094 = vor.u32 %v2090, %v2093
      %v2095 = vrot.slane %v2094, 4
      %v2097 = vshll.u32 %v1998, 16
      %v2099 = vrot.slane %v2097, 5
      %v2100 = vsel %vm234, %v2095, %v2099
      %v2101 = vshrl.u32 %v1998, 16
      %v2103 = vrot.slane %v2101, 4
      %v2104 = vor.u32 %v2103, %v2099
      %v2105 = vrot.slane %v2104, 4
      %v2107 = vshll.u32 %v1999, 16
      %v2109 = vrot.slane %v2107, 5
      %v2110 = vsel %vm234, %v2105, %v2109
      %v2112 = vshrl.u32 %v2000, 16
      %v2114 = vrot.slane %v2112, 4
      %v2115 = vshll.u32 %v2000, 16
      %v2117 = vrot.slane %v2115, 5
      %v2118 = vor.u32 %v2114, %v2117
      %v2119 = vrot.slane %v2118, 4
      %v2121 = vshll.u32 %v2001, 16
      %v2123 = vrot.slane %v2121, 5
      %v2124 = vsel %vm234, %v2119, %v2123
      %v2125 = vshrl.u32 %v2001, 16
      %v2127 = vrot.slane %v2125, 4
      %v2128 = vor.u32 %v2127, %v2123
      %v2129 = vrot.slane %v2128, 4
      %v2131 = vshll.u32 %v2002, 16
      %v2133 = vrot.slane %v2131, 5
      %v2134 = vsel %vm234, %v2129, %v2133
      %v2136 = vshrl.u32 %v2003, 16
      %v2138 = vrot.slane %v2136, 4
      %v2139 = vshll.u32 %v2003, 16
      %v2141 = vrot.slane %v2139, 5
      %v2142 = vor.u32 %v2138, %v2141
      %v2143 = vrot.slane %v2142, 4
      %v2145 = vshll.u32 %v2004, 16
      %v2147 = vrot.slane %v2145, 5
      %v2148 = vsel %vm234, %v2143, %v2147
      %v2149 = vshrl.u32 %v2004, 16
      %v2151 = vrot.slane %v2149, 4
      %v2152 = vor.u32 %v2151, %v2147
      %v2153 = vrot.slane %v2152, 4
      %v2155 = vshll.u32 %v2005, 16
      %v2157 = vrot.slane %v2155, 5
      %v2158 = vsel %vm234, %v2153, %v2157
      %v2160 = vshrl.u32 %v2006, 16
      %v2162 = vrot.slane %v2160, 4
      %v2163 = vshll.u32 %v2006, 16
      %v2165 = vrot.slane %v2163, 5
      %v2166 = vor.u32 %v2162, %v2165
      %v2167 = vrot.slane %v2166, 4
      %v2169 = vshll.u32 %v2007, 16
      %v2171 = vrot.slane %v2169, 5
      %v2172 = vsel %vm234, %v2167, %v2171
      %v2173 = vshrl.u32 %v2007, 16
      %v2175 = vrot.slane %v2173, 4
      %v2176 = vor.u32 %v2175, %v2171
      %v2177 = vrot.slane %v2176, 4
      %v2179 = vshll.u32 %v2008, 16
      %v2181 = vrot.slane %v2179, 5
      %v2182 = vsel %vm234, %v2177, %v2181
      %v2184 = vshrl.u32 %v2009, 16
      %v2186 = vrot.slane %v2184, 4
      %v2187 = vshll.u32 %v2009, 16
      %v2189 = vrot.slane %v2187, 5
      %v2190 = vor.u32 %v2186, %v2189
      %v2191 = vrot.slane %v2190, 4
      %v2193 = vshll.u32 %v2010, 16
      %v2195 = vrot.slane %v2193, 5
      %v2196 = vsel %vm234, %v2191, %v2195
      %v2197 = vshrl.u32 %v2010, 16
      %v2199 = vrot.slane %v2197, 4
      %v2200 = vor.u32 %v2199, %v2195
      %v2201 = vrot.slane %v2200, 4
      %v2203 = vshll.u32 %v2011, 16
      %v2205 = vrot.slane %v2203, 5
      %v2206 = vsel %vm234, %v2201, %v2205
      %v2208 = vshrl.u32 %v2012, 16
      %v2210 = vrot.slane %v2208, 4
      %v2211 = vshll.u32 %v2012, 16
      %v2213 = vrot.slane %v2211, 5
      %v2214 = vor.u32 %v2210, %v2213
      %v2215 = vrot.slane %v2214, 4
      %v2217 = vshll.u32 %v2013, 16
      %v2219 = vrot.slane %v2217, 5
      %v2220 = vsel %vm234, %v2215, %v2219
      %v2221 = vshrl.u32 %v2013, 16
      %v2223 = vrot.slane %v2221, 4
      %v2224 = vor.u32 %v2223, %v2219
      %v2225 = vrot.slane %v2224, 4
      %v2227 = vshll.u32 %v2014, 16
      %v2229 = vrot.slane %v2227, 5
      %v2230 = vsel %vm234, %v2225, %v2229
      %v2232 = vshrl.u32 %v2015, 16
      %v2234 = vrot.slane %v2232, 4
      %v2235 = vshll.u32 %v2015, 16
      %v2237 = vrot.slane %v2235, 5
      %v2238 = vor.u32 %v2234, %v2237
      %v2239 = vrot.slane %v2238, 4
      %v2241 = vshll.u32 %v2016, 16
      %v2243 = vrot.slane %v2241, 5
      %v2244 = vsel %vm234, %v2239, %v2243
      %v2245 = vshrl.u32 %v2016, 16
      %v2247 = vrot.slane %v2245, 4
      %v2248 = vor.u32 %v2247, %v2243
      %v2249 = vrot.slane %v2248, 4
      %v2251 = vshll.u32 %v2017, 16
      %v2253 = vrot.slane %v2251, 5
      %v2254 = vsel %vm234, %v2249, %v2253
      %v2256 = vshrl.u32 %v2018, 16
      %v2258 = vrot.slane %v2256, 4
      %v2259 = vshll.u32 %v2018, 16
      %v2261 = vrot.slane %v2259, 5
      %v2262 = vor.u32 %v2258, %v2261
      %v2263 = vrot.slane %v2262, 4
      %v2265 = vshll.u32 %v2019, 16
      %v2267 = vrot.slane %v2265, 5
      %v2268 = vsel %vm234, %v2263, %v2267
      %v2269 = vshrl.u32 %v2019, 16
      %v2271 = vrot.slane %v2269, 4
      %v2272 = vor.u32 %v2271, %v2267
      %v2273 = vrot.slane %v2272, 4
      %v2275 = vshll.u32 %v2020, 16
      %v2277 = vrot.slane %v2275, 5
      %v2278 = vsel %vm234, %v2273, %v2277
      %v2280 = vshrl.u32 %v2021, 16
      %v2282 = vrot.slane %v2280, 4
      %v2283 = vshll.u32 %v2021, 16
      %v2285 = vrot.slane %v2283, 5
      %v2286 = vor.u32 %v2282, %v2285
      %v2287 = vrot.slane %v2286, 4
      %v2289 = vshll.u32 %v2022, 16
      %v2291 = vrot.slane %v2289, 5
      %v2292 = vsel %vm234, %v2287, %v2291
      %v2293 = vshrl.u32 %v2022, 16
      %v2295 = vrot.slane %v2293, 4
      %v2296 = vor.u32 %v2295, %v2291
      %v2297 = vrot.slane %v2296, 4
      %v2299 = vshll.u32 %v2023, 16
      %v2301 = vrot.slane %v2299, 5
      %v2302 = vsel %vm234, %v2297, %v2301
      %v2304 = vshrl.u32 %v2024, 16
      %v2306 = vrot.slane %v2304, 4
      %v2307 = vshll.u32 %v2024, 16
      %v2309 = vrot.slane %v2307, 5
      %v2310 = vor.u32 %v2306, %v2309
      %v2311 = vrot.slane %v2310, 4
      %v2313 = vshll.u32 %v2025, 16
      %v2315 = vrot.slane %v2313, 5
      %v2316 = vsel %vm234, %v2311, %v2315
      %v2317 = vshrl.u32 %v2025, 16
      %v2319 = vrot.slane %v2317, 4
      %v2320 = vor.u32 %v2319, %v2315
      %v2321 = vrot.slane %v2320, 4
      %v2323 = vshll.u32 %v2026, 16
      %v2325 = vrot.slane %v2323, 5
      %v2326 = vsel %vm234, %v2321, %v2325
      %v2328 = vshrl.u32 %v2027, 16
      %v2330 = vrot.slane %v2328, 4
      %v2331 = vshll.u32 %v2027, 16
      %v2333 = vrot.slane %v2331, 5
      %v2334 = vor.u32 %v2330, %v2333
      %v2335 = vrot.slane %v2334, 4
      %v2337 = vshll.u32 %v2028, 16
      %v2339 = vrot.slane %v2337, 5
      %v2340 = vsel %vm234, %v2335, %v2339
      %v2341 = vshrl.u32 %v2028, 16
      %v2343 = vrot.slane %v2341, 4
      %v2344 = vor.u32 %v2343, %v2339
      %v2345 = vrot.slane %v2344, 4
      %v2347 = vshll.u32 %v2029, 16
      %v2349 = vrot.slane %v2347, 5
      %v2350 = vsel %vm234, %v2345, %v2349
      %v2352 = vshrl.u32 %v2030, 16
      %v2354 = vrot.slane %v2352, 4
      %v2355 = vshll.u32 %v2030, 16
      %v2357 = vrot.slane %v2355, 5
      %v2358 = vor.u32 %v2354, %v2357
      %v2359 = vrot.slane %v2358, 4
      %v2361 = vshll.u32 %v2031, 16
      %v2363 = vrot.slane %v2361, 5
      %v2364 = vsel %vm234, %v2359, %v2363
      %v2365 = vshrl.u32 %v2031, 16
      %v2367 = vrot.slane %v2365, 4
      %v2368 = vor.u32 %v2367, %v2363
      %v2369 = vrot.slane %v2368, 4
      %v2371 = vshll.u32 %v2032, 16
      %v2373 = vrot.slane %v2371, 5
      %v2374 = vsel %vm234, %v2369, %v2373
      %v2376 = vshrl.u32 %v2033, 16
      %v2378 = vrot.slane %v2376, 4
      %v2379 = vshll.u32 %v2033, 16
      %v2381 = vrot.slane %v2379, 5
      %v2382 = vor.u32 %v2378, %v2381
      %v2383 = vrot.slane %v2382, 4
      %v2385 = vshll.u32 %v2034, 16
      %v2387 = vrot.slane %v2385, 5
      %v2388 = vsel %vm234, %v2383, %v2387
      %v2389 = vshrl.u32 %v2034, 16
      %v2391 = vrot.slane %v2389, 4
      %v2392 = vor.u32 %v2391, %v2387
      %v2393 = vrot.slane %v2392, 4
      %v2395 = vshll.u32 %v2035, 16
      %v2397 = vrot.slane %v2395, 5
      %v2398 = vsel %vm234, %v2393, %v2397
      %v2400 = vshrl.u32 %v2036, 16
      %v2402 = vrot.slane %v2400, 4
      %v2403 = vshll.u32 %v2036, 16
      %v2405 = vrot.slane %v2403, 5
      %v2406 = vor.u32 %v2402, %v2405
      %v2407 = vrot.slane %v2406, 4
      %v2409 = vshll.u32 %v2037, 16
      %v2411 = vrot.slane %v2409, 5
      %v2412 = vsel %vm234, %v2407, %v2411
      %v2413 = vshrl.u32 %v2037, 16
      %v2415 = vrot.slane %v2413, 4
      %v2416 = vor.u32 %v2415, %v2411
      %v2417 = vrot.slane %v2416, 4
      %v2419 = vshll.u32 %v2038, 16
      %v2421 = vrot.slane %v2419, 5
      %v2422 = vsel %vm234, %v2417, %v2421
      %s2423 = scalar_lea.vmem %s1, 8
      %v2424 = vld [vmem:[%s2423] sm:$0x3]
      %v2425 = vunpack.c.l.b16 %v2052
      %v2426 = vunpack.c.l.b16 %v2062
      %v2427 = vunpack.c.l.b16 %v2076
      %v2428 = vunpack.c.l.b16 %v2086
      %v2429 = vunpack.c.l.b16 %v2100
      %v2430 = vunpack.c.l.b16 %v2110
      %v2431 = vunpack.c.l.b16 %v2124
      %v2432 = vunpack.c.l.b16 %v2134
      %v2433 = vunpack.c.l.b16 %v2148
      %v2434 = vunpack.c.l.b16 %v2158
      %v2435 = vunpack.c.l.b16 %v2172
      %v2436 = vunpack.c.l.b16 %v2182
      %v2437 = vunpack.c.l.b16 %v2196
      %v2438 = vunpack.c.l.b16 %v2206
      %v2439 = vunpack.c.l.b16 %v2220
      %v2440 = vunpack.c.l.b16 %v2230
      %v2441 = vunpack.c.l.b16 %v2244
      %v2442 = vunpack.c.l.b16 %v2254
      %v2443 = vunpack.c.l.b16 %v2268
      %v2444 = vunpack.c.l.b16 %v2278
      %v2445 = vunpack.c.l.b16 %v2292
      %v2446 = vunpack.c.l.b16 %v2302
      %v2447 = vunpack.c.l.b16 %v2316
      %v2448 = vunpack.c.l.b16 %v2326
      %v2449 = vunpack.c.l.b16 %v2340
      %v2450 = vunpack.c.l.b16 %v2350
      %v2451 = vunpack.c.l.b16 %v2364
      %v2452 = vunpack.c.l.b16 %v2374
      %v2453 = vunpack.c.l.b16 %v2388
      %v2454 = vunpack.c.l.b16 %v2398
      %v2455 = vunpack.c.l.b16 %v2412
      %v2456 = vunpack.c.l.b16 %v2422
      %v2457 = vpack.c.b16 %v2426, %v2425
      %v2458 = vpack.c.b16 %v2428, %v2427
      %v2459 = vpack.c.b16 %v2430, %v2429
      %v2460 = vpack.c.b16 %v2432, %v2431
      %v2461 = vpack.c.b16 %v2434, %v2433
      %v2462 = vpack.c.b16 %v2436, %v2435
      %v2463 = vpack.c.b16 %v2438, %v2437
      %v2464 = vpack.c.b16 %v2440, %v2439
      %v2465 = vpack.c.b16 %v2442, %v2441
      %v2466 = vpack.c.b16 %v2444, %v2443
      %v2467 = vpack.c.b16 %v2446, %v2445
      %v2468 = vpack.c.b16 %v2448, %v2447
      %v2469 = vpack.c.b16 %v2450, %v2449
      %v2470 = vpack.c.b16 %v2452, %v2451
      %v2471 = vpack.c.b16 %v2454, %v2453
      %v2472 = vpack.c.b16 %v2456, %v2455
      %v2474 = vsel %vm669, %v2457, 0
      %v2477 = vsel %vm669, %v2458, 0
      %v2480 = vsel %vm669, %v2459, 0
      %v2483 = vsel %vm669, %v2460, 0
      %v2486 = vsel %vm669, %v2461, 0
      %v2489 = vsel %vm669, %v2462, 0
      %v2492 = vsel %vm669, %v2463, 0
      %v2495 = vsel %vm669, %v2464, 0
      %v2498 = vsel %vm669, %v2465, 0
      %v2501 = vsel %vm669, %v2466, 0
      %v2504 = vsel %vm669, %v2467, 0
      %v2507 = vsel %vm669, %v2468, 0
      %v2510 = vsel %vm669, %v2469, 0
      %v2513 = vsel %vm669, %v2470, 0
      %v2516 = vsel %vm669, %v2471, 0
      %v2519 = vsel %vm669, %v2472, 0
      %v2522 = vsel %vm718, %v2424, 0
      %2524 = vmatprep.subr.bf16.mxu0 0
      %2525 = vmatpush1.bf16.msra.mxu0 %v2522
      %2526 = vmatprep.subr.bf16.mxu0 0
      %2527 = vmatpush1.bf16.msra.mxu0 0
      %2528 = vmatprep.subr.bf16.mxu0 0
      %2529 = vmatpush1.bf16.msra.mxu0 0
      %2530 = vmatprep.subr.bf16.mxu0 0
      %2531 = vmatpush1.bf16.msra.mxu0 0
      %2532 = vmatprep.subr.bf16.mxu0 0
      %2533 = vmatpush1.bf16.msra.mxu0 0
      %2534 = vmatprep.subr.bf16.mxu0 0
      %2535 = vmatpush1.bf16.msra.mxu0 0
      %2536 = vmatprep.subr.bf16.mxu0 0
      %2537 = vmatpush1.bf16.msra.mxu0 0
      %2538 = vmatprep.subr.bf16.mxu0 0
      %2539 = vmatpush1.bf16.msra.mxu0 0
      %2540 = vmatprep.subr.bf16.mxu0 0
      %2541 = vmatpush1.bf16.msra.mxu0 0
      %2542 = vmatprep.subr.bf16.mxu0 0
      %2543 = vmatpush1.bf16.msra.mxu0 0
      %2544 = vmatprep.subr.bf16.mxu0 0
      %2545 = vmatpush1.bf16.msra.mxu0 0
      %2546 = vmatprep.subr.bf16.mxu0 0
      %2547 = vmatpush1.bf16.msra.mxu0 0
      %2548 = vmatprep.subr.bf16.mxu0 0
      %2549 = vmatpush1.bf16.msra.mxu0 0
      %2550 = vmatprep.subr.bf16.mxu0 0
      %2551 = vmatpush1.bf16.msra.mxu0 0
      %2552 = vmatprep.subr.bf16.mxu0 0
      %2553 = vmatpush1.bf16.msra.mxu0 0
      %2554 = vmatprep.subr.bf16.mxu0 0
      %2555 = vmatpush1.bf16.msra.mxu0 0
      %2556 = vmatprep.mubr.bf16.mxu0 0
      %2557 = vmatmul.mubr.bf16.gmra.mrb[0].mxu0 %v2474
      %v2558 = vpop.f32.mrb[0].mxu0
      %v2559 = vadd.f32 0.0, %v2558
      %v2560 = vpop.f32.mrb[0].mxu0
      %v2561 = vpop.f32.mrb[0].mxu0
      %v2562 = vadd.f32 0.0, %v2561
      %v2563 = vpop.f32.mrb[0].mxu0
      %2564 = vmatprep.mubr.bf16.mxu0 0
      %2565 = vmatmul.mubr.bf16.gmra.mrb[0].mxu0 %v2477
      %v2566 = vpop.f32.mrb[0].mxu0
      %v2567 = vadd.f32 0.0, %v2566
      %v2568 = vpop.f32.mrb[0].mxu0
      %v2569 = vpop.f32.mrb[0].mxu0
      %v2570 = vadd.f32 0.0, %v2569
      %v2571 = vpop.f32.mrb[0].mxu0
      %2572 = vmatprep.mubr.bf16.mxu0 0
      %2573 = vmatmul.mubr.bf16.gmra.mrb[0].mxu0 %v2480
      %v2574 = vpop.f32.mrb[0].mxu0
      %v2575 = vadd.f32 0.0, %v2574
      %v2576 = vpop.f32.mrb[0].mxu0
      %v2577 = vpop.f32.mrb[0].mxu0
      %v2578 = vadd.f32 0.0, %v2577
      %v2579 = vpop.f32.mrb[0].mxu0
      %2580 = vmatprep.mubr.bf16.mxu0 0
      %2581 = vmatmul.mubr.bf16.gmra.mrb[0].mxu0 %v2483
      %v2582 = vpop.f32.mrb[0].mxu0
      %v2583 = vadd.f32 0.0, %v2582
      %v2584 = vpop.f32.mrb[0].mxu0
      %v2585 = vpop.f32.mrb[0].mxu0
      %v2586 = vadd.f32 0.0, %v2585
      %v2587 = vpop.f32.mrb[0].mxu0
      %2588 = vmatprep.mubr.bf16.mxu0 0
      %2589 = vmatmul.mubr.bf16.gmra.mrb[0].mxu0 %v2486
      %v2590 = vpop.f32.mrb[0].mxu0
      %v2591 = vadd.f32 0.0, %v2590
      %v2592 = vpop.f32.mrb[0].mxu0
      %v2593 = vpop.f32.mrb[0].mxu0
      %v2594 = vadd.f32 0.0, %v2593
      %v2595 = vpop.f32.mrb[0].mxu0
      %2596 = vmatprep.mubr.bf16.mxu0 0
      %2597 = vmatmul.mubr.bf16.gmra.mrb[0].mxu0 %v2489
      %v2598 = vpop.f32.mrb[0].mxu0
      %v2599 = vadd.f32 0.0, %v2598
      %v2600 = vpop.f32.mrb[0].mxu0
      %v2601 = vpop.f32.mrb[0].mxu0
      %v2602 = vadd.f32 0.0, %v2601
      %v2603 = vpop.f32.mrb[0].mxu0
      %2604 = vmatprep.mubr.bf16.mxu0 0
      %2605 = vmatmul.mubr.bf16.gmra.mrb[0].mxu0 %v2492
      %v2606 = vpop.f32.mrb[0].mxu0
      %v2607 = vadd.f32 0.0, %v2606
      %v2608 = vpop.f32.mrb[0].mxu0
      %v2609 = vpop.f32.mrb[0].mxu0
      %v2610 = vadd.f32 0.0, %v2609
      %v2611 = vpop.f32.mrb[0].mxu0
      %2612 = vmatprep.mubr.bf16.mxu0 0
      %2613 = vmatmul.mubr.bf16.gmra.mrb[0].mxu0 %v2495
      %v2614 = vpop.f32.mrb[0].mxu0
      %v2615 = vadd.f32 0.0, %v2614
      %v2616 = vpop.f32.mrb[0].mxu0
      %v2617 = vpop.f32.mrb[0].mxu0
      %v2618 = vadd.f32 0.0, %v2617
      %v2619 = vpop.f32.mrb[0].mxu0
      %2620 = vmatprep.mubr.bf16.mxu0 0
      %2621 = vmatmul.mubr.bf16.gmra.mrb[0].mxu0 %v2498
      %v2622 = vpop.f32.mrb[0].mxu0
      %v2623 = vadd.f32 0.0, %v2622
      %v2624 = vpop.f32.mrb[0].mxu0
      %v2625 = vpop.f32.mrb[0].mxu0
      %v2626 = vadd.f32 0.0, %v2625
      %v2627 = vpop.f32.mrb[0].mxu0
      %2628 = vmatprep.mubr.bf16.mxu0 0
      %2629 = vmatmul.mubr.bf16.gmra.mrb[0].mxu0 %v2501
      %v2630 = vpop.f32.mrb[0].mxu0
      %v2631 = vadd.f32 0.0, %v2630
      %v2632 = vpop.f32.mrb[0].mxu0
      %v2633 = vpop.f32.mrb[0].mxu0
      %v2634 = vadd.f32 0.0, %v2633
      %v2635 = vpop.f32.mrb[0].mxu0
      %2636 = vmatprep.mubr.bf16.mxu0 0
      %2637 = vmatmul.mubr.bf16.gmra.mrb[0].mxu0 %v2504
      %v2638 = vpop.f32.mrb[0].mxu0
      %v2639 = vadd.f32 0.0, %v2638
      %v2640 = vpop.f32.mrb[0].mxu0
      %v2641 = vpop.f32.mrb[0].mxu0
      %v2642 = vadd.f32 0.0, %v2641
      %v2643 = vpop.f32.mrb[0].mxu0
      %2644 = vmatprep.mubr.bf16.mxu0 0
      %2645 = vmatmul.mubr.bf16.gmra.mrb[0].mxu0 %v2507
      %v2646 = vpop.f32.mrb[0].mxu0
      %v2647 = vadd.f32 0.0, %v2646
      %v2648 = vpop.f32.mrb[0].mxu0
      %v2649 = vpop.f32.mrb[0].mxu0
      %v2650 = vadd.f32 0.0, %v2649
      %v2651 = vpop.f32.mrb[0].mxu0
      %2652 = vmatprep.mubr.bf16.mxu0 0
      %2653 = vmatmul.mubr.bf16.gmra.mrb[0].mxu0 %v2510
      %v2654 = vpop.f32.mrb[0].mxu0
      %v2655 = vadd.f32 0.0, %v2654
      %v2656 = vpop.f32.mrb[0].mxu0
      %v2657 = vpop.f32.mrb[0].mxu0
      %v2658 = vadd.f32 0.0, %v2657
      %v2659 = vpop.f32.mrb[0].mxu0
      %2660 = vmatprep.mubr.bf16.mxu0 0
      %2661 = vmatmul.mubr.bf16.gmra.mrb[0].mxu0 %v2513
      %v2662 = vpop.f32.mrb[0].mxu0
      %v2663 = vadd.f32 0.0, %v2662
      %v2664 = vpop.f32.mrb[0].mxu0
      %v2665 = vpop.f32.mrb[0].mxu0
      %v2666 = vadd.f32 0.0, %v2665
      %v2667 = vpop.f32.mrb[0].mxu0
      %2668 = vmatprep.mubr.bf16.mxu0 0
      %2669 = vmatmul.mubr.bf16.gmra.mrb[0].mxu0 %v2516
      %v2670 = vpop.f32.mrb[0].mxu0
      %v2671 = vadd.f32 0.0, %v2670
      %v2672 = vpop.f32.mrb[0].mxu0
      %v2673 = vpop.f32.mrb[0].mxu0
      %v2674 = vadd.f32 0.0, %v2673
      %v2675 = vpop.f32.mrb[0].mxu0
      %2676 = vmatprep.mubr.bf16.mxu0 0
      %2677 = vmatmul.mubr.bf16.gmra.mrb[0].mxu0 %v2519
      %v2678 = vpop.f32.mrb[0].mxu0
      %v2679 = vadd.f32 0.0, %v2678
      %v2680 = vpop.f32.mrb[0].mxu0
      %v2681 = vpop.f32.mrb[0].mxu0
      %v2682 = vadd.f32 0.0, %v2681
      %v2683 = vpop.f32.mrb[0].mxu0
      %2684 = vdwg.mxu0
      %v2685 = vadd.f32 %v1959, %v2559
      %v2686 = vadd.f32 %v1960, %v2562
      %v2687 = vadd.f32 %v1961, %v2567
      %v2688 = vadd.f32 %v1962, %v2570
      %v2689 = vadd.f32 %v1963, %v2575
      %v2690 = vadd.f32 %v1964, %v2578
      %v2691 = vadd.f32 %v1965, %v2583
      %v2692 = vadd.f32 %v1966, %v2586
      %v2693 = vadd.f32 %v1967, %v2591
      %v2694 = vadd.f32 %v1968, %v2594
      %v2695 = vadd.f32 %v1969, %v2599
      %v2696 = vadd.f32 %v1970, %v2602
      %v2697 = vadd.f32 %v1971, %v2607
      %v2698 = vadd.f32 %v1972, %v2610
      %v2699 = vadd.f32 %v1973, %v2615
      %v2700 = vadd.f32 %v1974, %v2618
      %v2701 = vadd.f32 %v1975, %v2623
      %v2702 = vadd.f32 %v1976, %v2626
      %v2703 = vadd.f32 %v1977, %v2631
      %v2704 = vadd.f32 %v1978, %v2634
      %v2705 = vadd.f32 %v1979, %v2639
      %v2706 = vadd.f32 %v1980, %v2642
      %v2707 = vadd.f32 %v1981, %v2647
      %v2708 = vadd.f32 %v1982, %v2650
      %v2709 = vadd.f32 %v1983, %v2655
      %v2710 = vadd.f32 %v1984, %v2658
      %v2711 = vadd.f32 %v1985, %v2663
      %v2712 = vadd.f32 %v1986, %v2666
      %v2713 = vadd.f32 %v1987, %v2671
      %v2714 = vadd.f32 %v1988, %v2674
      %v2715 = vadd.f32 %v1989, %v2679
      %v2716 = vadd.f32 %v1990, %v2682
      %v2717 = vld [vmem:[%s1632] sm:$0xe]
      %v2718 = vld [vmem:[%s1632 + $0xc] sm:$0xe]
      %v2719 = vld [vmem:[%s1632 + $0x18] sm:$0xe]
      %v2720 = vld [vmem:[%s1632 + $0x24] sm:$0xe]
      %v2721 = vld [vmem:[%s1632 + $0x30] sm:$0xe]
      %v2722 = vld [vmem:[%s1632 + $0x3c] sm:$0xe]
      %v2723 = vld [vmem:[%s1632 + $0x48] sm:$0xe]
      %v2724 = vld [vmem:[%s1632 + $0x54] sm:$0xe]
      %v2725 = vld [vmem:[%s1632 + $0x60] sm:$0xe]
      %v2726 = vld [vmem:[%s1632 + $0x6c] sm:$0xe]
      %v2727 = vld [vmem:[%s1632 + $0x78] sm:$0xe]
      %v2728 = vld [vmem:[%s1632 + $0x84] sm:$0xe]
      %v2729 = vld [vmem:[%s1632 + $0x90] sm:$0xe]
      %v2730 = vld [vmem:[%s1632 + $0x9c] sm:$0xe]
      %v2731 = vld [vmem:[%s1632 + $0xa8] sm:$0xe]
      %v2732 = vld [vmem:[%s1632 + $0xb4] sm:$0xe]
      %v2781 = vrot.slane %v2717, 5
      %v2782 = vrot.slane %v2781, 4
      %v2783 = vrot.slane %v1992, 5
      %v2784 = vsel %vm1225, %v2782, %v2783
      %v2785 = vrot.slane %v2783, 4
      %v2786 = vrot.slane %v1993, 5
      %v2787 = vsel %vm1225, %v2785, %v2786
      %v2788 = vrot.slane %v2718, 5
      %v2789 = vrot.slane %v2788, 4
      %v2790 = vrot.slane %v1995, 5
      %v2791 = vsel %vm1225, %v2789, %v2790
      %v2792 = vrot.slane %v2790, 4
      %v2793 = vrot.slane %v1996, 5
      %v2794 = vsel %vm1225, %v2792, %v2793
      %v2795 = vrot.slane %v2719, 5
      %v2796 = vrot.slane %v2795, 4
      %v2797 = vrot.slane %v1998, 5
      %v2798 = vsel %vm1225, %v2796, %v2797
      %v2799 = vrot.slane %v2797, 4
      %v2800 = vrot.slane %v1999, 5
      %v2801 = vsel %vm1225, %v2799, %v2800
      %v2802 = vrot.slane %v2720, 5
      %v2803 = vrot.slane %v2802, 4
      %v2804 = vrot.slane %v2001, 5
      %v2805 = vsel %vm1225, %v2803, %v2804
      %v2806 = vrot.slane %v2804, 4
      %v2807 = vrot.slane %v2002, 5
      %v2808 = vsel %vm1225, %v2806, %v2807
      %v2809 = vrot.slane %v2721, 5
      %v2810 = vrot.slane %v2809, 4
      %v2811 = vrot.slane %v2004, 5
      %v2812 = vsel %vm1225, %v2810, %v2811
      %v2813 = vrot.slane %v2811, 4
      %v2814 = vrot.slane %v2005, 5
      %v2815 = vsel %vm1225, %v2813, %v2814
      %v2816 = vrot.slane %v2722, 5
      %v2817 = vrot.slane %v2816, 4
      %v2818 = vrot.slane %v2007, 5
      %v2819 = vsel %vm1225, %v2817, %v2818
      %v2820 = vrot.slane %v2818, 4
      %v2821 = vrot.slane %v2008, 5
      %v2822 = vsel %vm1225, %v2820, %v2821
      %v2823 = vrot.slane %v2723, 5
      %v2824 = vrot.slane %v2823, 4
      %v2825 = vrot.slane %v2010, 5
      %v2826 = vsel %vm1225, %v2824, %v2825
      %v2827 = vrot.slane %v2825, 4
      %v2828 = vrot.slane %v2011, 5
      %v2829 = vsel %vm1225, %v2827, %v2828
      %v2830 = vrot.slane %v2724, 5
      %v2831 = vrot.slane %v2830, 4
      %v2832 = vrot.slane %v2013, 5
      %v2833 = vsel %vm1225, %v2831, %v2832
      %v2834 = vrot.slane %v2832, 4
      %v2835 = vrot.slane %v2014, 5
      %v2836 = vsel %vm1225, %v2834, %v2835
      %v2837 = vrot.slane %v2725, 5
      %v2838 = vrot.slane %v2837, 4
      %v2839 = vrot.slane %v2016, 5
      %v2840 = vsel %vm1225, %v2838, %v2839
      %v2841 = vrot.slane %v2839, 4
      %v2842 = vrot.slane %v2017, 5
      %v2843 = vsel %vm1225, %v2841, %v2842
      %v2844 = vrot.slane %v2726, 5
      %v2845 = vrot.slane %v2844, 4
      %v2846 = vrot.slane %v2019, 5
      %v2847 = vsel %vm1225, %v2845, %v2846
      %v2848 = vrot.slane %v2846, 4
      %v2849 = vrot.slane %v2020, 5
      %v2850 = vsel %vm1225, %v2848, %v2849
      %v2851 = vrot.slane %v2727, 5
      %v2852 = vrot.slane %v2851, 4
      %v2853 = vrot.slane %v2022, 5
      %v2854 = vsel %vm1225, %v2852, %v2853
      %v2855 = vrot.slane %v2853, 4
      %v2856 = vrot.slane %v2023, 5
      %v2857 = vsel %vm1225, %v2855, %v2856
      %v2858 = vrot.slane %v2728, 5
      %v2859 = vrot.slane %v2858, 4
      %v2860 = vrot.slane %v2025, 5
      %v2861 = vsel %vm1225, %v2859, %v2860
      %v2862 = vrot.slane %v2860, 4
      %v2863 = vrot.slane %v2026, 5
      %v2864 = vsel %vm1225, %v2862, %v2863
      %v2865 = vrot.slane %v2729, 5
      %v2866 = vrot.slane %v2865, 4
      %v2867 = vrot.slane %v2028, 5
      %v2868 = vsel %vm1225, %v2866, %v2867
      %v2869 = vrot.slane %v2867, 4
      %v2870 = vrot.slane %v2029, 5
      %v2871 = vsel %vm1225, %v2869, %v2870
      %v2872 = vrot.slane %v2730, 5
      %v2873 = vrot.slane %v2872, 4
      %v2874 = vrot.slane %v2031, 5
      %v2875 = vsel %vm1225, %v2873, %v2874
      %v2876 = vrot.slane %v2874, 4
      %v2877 = vrot.slane %v2032, 5
      %v2878 = vsel %vm1225, %v2876, %v2877
      %v2879 = vrot.slane %v2731, 5
      %v2880 = vrot.slane %v2879, 4
      %v2881 = vrot.slane %v2034, 5
      %v2882 = vsel %vm1225, %v2880, %v2881
      %v2883 = vrot.slane %v2881, 4
      %v2884 = vrot.slane %v2035, 5
      %v2885 = vsel %vm1225, %v2883, %v2884
      %v2886 = vrot.slane %v2732, 5
      %v2887 = vrot.slane %v2886, 4
      %v2888 = vrot.slane %v2037, 5
      %v2889 = vsel %vm1225, %v2887, %v2888
      %v2890 = vrot.slane %v2888, 4
      %v2891 = vrot.slane %v2038, 5
      %v2892 = vsel %vm1225, %v2890, %v2891
      %s2893 = scalar_lea.vmem %s1, 10
      %v2894 = vld [vmem:[%s2893] sm:$0x3]
      %v2895 = vunpack.c.l.b16 %v2784
      %v2896 = vunpack.c.l.b16 %v2787
      %v2897 = vunpack.c.l.b16 %v2791
      %v2898 = vunpack.c.l.b16 %v2794
      %v2899 = vunpack.c.l.b16 %v2798
      %v2900 = vunpack.c.l.b16 %v2801
      %v2901 = vunpack.c.l.b16 %v2805
      %v2902 = vunpack.c.l.b16 %v2808
      %v2903 = vunpack.c.l.b16 %v2812
      %v2904 = vunpack.c.l.b16 %v2815
      %v2905 = vunpack.c.l.b16 %v2819
      %v2906 = vunpack.c.l.b16 %v2822
      %v2907 = vunpack.c.l.b16 %v2826
      %v2908 = vunpack.c.l.b16 %v2829
      %v2909 = vunpack.c.l.b16 %v2833
      %v2910 = vunpack.c.l.b16 %v2836
      %v2911 = vunpack.c.l.b16 %v2840
      %v2912 = vunpack.c.l.b16 %v2843
      %v2913 = vunpack.c.l.b16 %v2847
      %v2914 = vunpack.c.l.b16 %v2850
      %v2915 = vunpack.c.l.b16 %v2854
      %v2916 = vunpack.c.l.b16 %v2857
      %v2917 = vunpack.c.l.b16 %v2861
      %v2918 = vunpack.c.l.b16 %v2864
      %v2919 = vunpack.c.l.b16 %v2868
      %v2920 = vunpack.c.l.b16 %v2871
      %v2921 = vunpack.c.l.b16 %v2875
      %v2922 = vunpack.c.l.b16 %v2878
      %v2923 = vunpack.c.l.b16 %v2882
      %v2924 = vunpack.c.l.b16 %v2885
      %v2925 = vunpack.c.l.b16 %v2889
      %v2926 = vunpack.c.l.b16 %v2892
      %v2927 = vpack.c.b16 %v2896, %v2895
      %v2928 = vpack.c.b16 %v2898, %v2897
      %v2929 = vpack.c.b16 %v2900, %v2899
      %v2930 = vpack.c.b16 %v2902, %v2901
      %v2931 = vpack.c.b16 %v2904, %v2903
      %v2932 = vpack.c.b16 %v2906, %v2905
      %v2933 = vpack.c.b16 %v2908, %v2907
      %v2934 = vpack.c.b16 %v2910, %v2909
      %v2935 = vpack.c.b16 %v2912, %v2911
      %v2936 = vpack.c.b16 %v2914, %v2913
      %v2937 = vpack.c.b16 %v2916, %v2915
      %v2938 = vpack.c.b16 %v2918, %v2917
      %v2939 = vpack.c.b16 %v2920, %v2919
      %v2940 = vpack.c.b16 %v2922, %v2921
      %v2941 = vpack.c.b16 %v2924, %v2923
      %v2942 = vpack.c.b16 %v2926, %v2925
      %v2944 = vsel %vm669, %v2927, 0
      %v2947 = vsel %vm669, %v2928, 0
      %v2950 = vsel %vm669, %v2929, 0
      %v2953 = vsel %vm669, %v2930, 0
      %v2956 = vsel %vm669, %v2931, 0
      %v2959 = vsel %vm669, %v2932, 0
      %v2962 = vsel %vm669, %v2933, 0
      %v2965 = vsel %vm669, %v2934, 0
      %v2968 = vsel %vm669, %v2935, 0
      %v2971 = vsel %vm669, %v2936, 0
      %v2974 = vsel %vm669, %v2937, 0
      %v2977 = vsel %vm669, %v2938, 0
      %v2980 = vsel %vm669, %v2939, 0
      %v2983 = vsel %vm669, %v2940, 0
      %v2986 = vsel %vm669, %v2941, 0
      %v2989 = vsel %vm669, %v2942, 0
      %v2992 = vsel %vm718, %v2894, 0
      %2994 = vmatprep.subr.bf16.mxu0 0
      %2995 = vmatpush1.bf16.msra.mxu0 %v2992
      %2996 = vmatprep.subr.bf16.mxu0 0
      %2997 = vmatpush1.bf16.msra.mxu0 0
      %2998 = vmatprep.subr.bf16.mxu0 0
      %2999 = vmatpush1.bf16.msra.mxu0 0
      %3000 = vmatprep.subr.bf16.mxu0 0
      %3001 = vmatpush1.bf16.msra.mxu0 0
      %3002 = vmatprep.subr.bf16.mxu0 0
      %3003 = vmatpush1.bf16.msra.mxu0 0
      %3004 = vmatprep.subr.bf16.mxu0 0
      %3005 = vmatpush1.bf16.msra.mxu0 0
      %3006 = vmatprep.subr.bf16.mxu0 0
      %3007 = vmatpush1.bf16.msra.mxu0 0
      %3008 = vmatprep.subr.bf16.mxu0 0
      %3009 = vmatpush1.bf16.msra.mxu0 0
      %3010 = vmatprep.subr.bf16.mxu0 0
      %3011 = vmatpush1.bf16.msra.mxu0 0
      %3012 = vmatprep.subr.bf16.mxu0 0
      %3013 = vmatpush1.bf16.msra.mxu0 0
      %3014 = vmatprep.subr.bf16.mxu0 0
      %3015 = vmatpush1.bf16.msra.mxu0 0
      %3016 = vmatprep.subr.bf16.mxu0 0
      %3017 = vmatpush1.bf16.msra.mxu0 0
      %3018 = vmatprep.subr.bf16.mxu0 0
      %3019 = vmatpush1.bf16.msra.mxu0 0
      %3020 = vmatprep.subr.bf16.mxu0 0
      %3021 = vmatpush1.bf16.msra.mxu0 0
      %3022 = vmatprep.subr.bf16.mxu0 0
      %3023 = vmatpush1.bf16.msra.mxu0 0
      %3024 = vmatprep.subr.bf16.mxu0 0
      %3025 = vmatpush1.bf16.msra.mxu0 0
      %3026 = vmatprep.mubr.bf16.mxu0 0
      %3027 = vmatmul.mubr.bf16.gmra.mrb[0].mxu0 %v2944
      %v3028 = vpop.f32.mrb[0].mxu0
      %v3029 = vadd.f32 0.0, %v3028
      %v3030 = vpop.f32.mrb[0].mxu0
      %v3031 = vpop.f32.mrb[0].mxu0
      %v3032 = vadd.f32 0.0, %v3031
      %v3033 = vpop.f32.mrb[0].mxu0
      %3034 = vmatprep.mubr.bf16.mxu0 0
      %3035 = vmatmul.mubr.bf16.gmra.mrb[0].mxu0 %v2947
      %v3036 = vpop.f32.mrb[0].mxu0
      %v3037 = vadd.f32 0.0, %v3036
      %v3038 = vpop.f32.mrb[0].mxu0
      %v3039 = vpop.f32.mrb[0].mxu0
      %v3040 = vadd.f32 0.0, %v3039
      %v3041 = vpop.f32.mrb[0].mxu0
      %3042 = vmatprep.mubr.bf16.mxu0 0
      %3043 = vmatmul.mubr.bf16.gmra.mrb[0].mxu0 %v2950
      %v3044 = vpop.f32.mrb[0].mxu0
      %v3045 = vadd.f32 0.0, %v3044
      %v3046 = vpop.f32.mrb[0].mxu0
      %v3047 = vpop.f32.mrb[0].mxu0
      %v3048 = vadd.f32 0.0, %v3047
      %v3049 = vpop.f32.mrb[0].mxu0
      %3050 = vmatprep.mubr.bf16.mxu0 0
      %3051 = vmatmul.mubr.bf16.gmra.mrb[0].mxu0 %v2953
      %v3052 = vpop.f32.mrb[0].mxu0
      %v3053 = vadd.f32 0.0, %v3052
      %v3054 = vpop.f32.mrb[0].mxu0
      %v3055 = vpop.f32.mrb[0].mxu0
      %v3056 = vadd.f32 0.0, %v3055
      %v3057 = vpop.f32.mrb[0].mxu0
      %3058 = vmatprep.mubr.bf16.mxu0 0
      %3059 = vmatmul.mubr.bf16.gmra.mrb[0].mxu0 %v2956
      %v3060 = vpop.f32.mrb[0].mxu0
      %v3061 = vadd.f32 0.0, %v3060
      %v3062 = vpop.f32.mrb[0].mxu0
      %v3063 = vpop.f32.mrb[0].mxu0
      %v3064 = vadd.f32 0.0, %v3063
      %v3065 = vpop.f32.mrb[0].mxu0
      %3066 = vmatprep.mubr.bf16.mxu0 0
      %3067 = vmatmul.mubr.bf16.gmra.mrb[0].mxu0 %v2959
      %v3068 = vpop.f32.mrb[0].mxu0
      %v3069 = vadd.f32 0.0, %v3068
      %v3070 = vpop.f32.mrb[0].mxu0
      %v3071 = vpop.f32.mrb[0].mxu0
      %v3072 = vadd.f32 0.0, %v3071
      %v3073 = vpop.f32.mrb[0].mxu0
      %3074 = vmatprep.mubr.bf16.mxu0 0
      %3075 = vmatmul.mubr.bf16.gmra.mrb[0].mxu0 %v2962
      %v3076 = vpop.f32.mrb[0].mxu0
      %v3077 = vadd.f32 0.0, %v3076
      %v3078 = vpop.f32.mrb[0].mxu0
      %v3079 = vpop.f32.mrb[0].mxu0
      %v3080 = vadd.f32 0.0, %v3079
      %v3081 = vpop.f32.mrb[0].mxu0
      %3082 = vmatprep.mubr.bf16.mxu0 0
      %3083 = vmatmul.mubr.bf16.gmra.mrb[0].mxu0 %v2965
      %v3084 = vpop.f32.mrb[0].mxu0
      %v3085 = vadd.f32 0.0, %v3084
      %v3086 = vpop.f32.mrb[0].mxu0
      %v3087 = vpop.f32.mrb[0].mxu0
      %v3088 = vadd.f32 0.0, %v3087
      %v3089 = vpop.f32.mrb[0].mxu0
      %3090 = vmatprep.mubr.bf16.mxu0 0
      %3091 = vmatmul.mubr.bf16.gmra.mrb[0].mxu0 %v2968
      %v3092 = vpop.f32.mrb[0].mxu0
      %v3093 = vadd.f32 0.0, %v3092
      %v3094 = vpop.f32.mrb[0].mxu0
      %v3095 = vpop.f32.mrb[0].mxu0
      %v3096 = vadd.f32 0.0, %v3095
      %v3097 = vpop.f32.mrb[0].mxu0
      %3098 = vmatprep.mubr.bf16.mxu0 0
      %3099 = vmatmul.mubr.bf16.gmra.mrb[0].mxu0 %v2971
      %v3100 = vpop.f32.mrb[0].mxu0
      %v3101 = vadd.f32 0.0, %v3100
      %v3102 = vpop.f32.mrb[0].mxu0
      %v3103 = vpop.f32.mrb[0].mxu0
      %v3104 = vadd.f32 0.0, %v3103
      %v3105 = vpop.f32.mrb[0].mxu0
      %3106 = vmatprep.mubr.bf16.mxu0 0
      %3107 = vmatmul.mubr.bf16.gmra.mrb[0].mxu0 %v2974
      %v3108 = vpop.f32.mrb[0].mxu0
      %v3109 = vadd.f32 0.0, %v3108
      %v3110 = vpop.f32.mrb[0].mxu0
      %v3111 = vpop.f32.mrb[0].mxu0
      %v3112 = vadd.f32 0.0, %v3111
      %v3113 = vpop.f32.mrb[0].mxu0
      %3114 = vmatprep.mubr.bf16.mxu0 0
      %3115 = vmatmul.mubr.bf16.gmra.mrb[0].mxu0 %v2977
      %v3116 = vpop.f32.mrb[0].mxu0
      %v3117 = vadd.f32 0.0, %v3116
      %v3118 = vpop.f32.mrb[0].mxu0
      %v3119 = vpop.f32.mrb[0].mxu0
      %v3120 = vadd.f32 0.0, %v3119
      %v3121 = vpop.f32.mrb[0].mxu0
      %3122 = vmatprep.mubr.bf16.mxu0 0
      %3123 = vmatmul.mubr.bf16.gmra.mrb[0].mxu0 %v2980
      %v3124 = vpop.f32.mrb[0].mxu0
      %v3125 = vadd.f32 0.0, %v3124
      %v3126 = vpop.f32.mrb[0].mxu0
      %v3127 = vpop.f32.mrb[0].mxu0
      %v3128 = vadd.f32 0.0, %v3127
      %v3129 = vpop.f32.mrb[0].mxu0
      %3130 = vmatprep.mubr.bf16.mxu0 0
      %3131 = vmatmul.mubr.bf16.gmra.mrb[0].mxu0 %v2983
      %v3132 = vpop.f32.mrb[0].mxu0
      %v3133 = vadd.f32 0.0, %v3132
      %v3134 = vpop.f32.mrb[0].mxu0
      %v3135 = vpop.f32.mrb[0].mxu0
      %v3136 = vadd.f32 0.0, %v3135
      %v3137 = vpop.f32.mrb[0].mxu0
      %3138 = vmatprep.mubr.bf16.mxu0 0
      %3139 = vmatmul.mubr.bf16.gmra.mrb[0].mxu0 %v2986
      %v3140 = vpop.f32.mrb[0].mxu0
      %v3141 = vadd.f32 0.0, %v3140
      %v3142 = vpop.f32.mrb[0].mxu0
      %v3143 = vpop.f32.mrb[0].mxu0
      %v3144 = vadd.f32 0.0, %v3143
      %v3145 = vpop.f32.mrb[0].mxu0
      %3146 = vmatprep.mubr.bf16.mxu0 0
      %3147 = vmatmul.mubr.bf16.gmra.mrb[0].mxu0 %v2989
      %v3148 = vpop.f32.mrb[0].mxu0
      %v3149 = vadd.f32 0.0, %v3148
      %v3150 = vpop.f32.mrb[0].mxu0
      %v3151 = vpop.f32.mrb[0].mxu0
      %v3152 = vadd.f32 0.0, %v3151
      %v3153 = vpop.f32.mrb[0].mxu0
      %3154 = vdwg.mxu0
      %v3155 = vadd.f32 %v2685, %v3029
      %v3156 = vadd.f32 %v2686, %v3032
      %v3157 = vadd.f32 %v2687, %v3037
      %v3158 = vadd.f32 %v2688, %v3040
      %v3159 = vadd.f32 %v2689, %v3045
      %v3160 = vadd.f32 %v2690, %v3048
      %v3161 = vadd.f32 %v2691, %v3053
      %v3162 = vadd.f32 %v2692, %v3056
      %v3163 = vadd.f32 %v2693, %v3061
      %v3164 = vadd.f32 %v2694, %v3064
      %v3165 = vadd.f32 %v2695, %v3069
      %v3166 = vadd.f32 %v2696, %v3072
      %v3167 = vadd.f32 %v2697, %v3077
      %v3168 = vadd.f32 %v2698, %v3080
      %v3169 = vadd.f32 %v2699, %v3085
      %v3170 = vadd.f32 %v2700, %v3088
      %v3171 = vadd.f32 %v2701, %v3093
      %v3172 = vadd.f32 %v2702, %v3096
      %v3173 = vadd.f32 %v2703, %v3101
      %v3174 = vadd.f32 %v2704, %v3104
      %v3175 = vadd.f32 %v2705, %v3109
      %v3176 = vadd.f32 %v2706, %v3112
      %v3177 = vadd.f32 %v2707, %v3117
      %v3178 = vadd.f32 %v2708, %v3120
      %v3179 = vadd.f32 %v2709, %v3125
      %v3180 = vadd.f32 %v2710, %v3128
      %v3181 = vadd.f32 %v2711, %v3133
      %v3182 = vadd.f32 %v2712, %v3136
      %v3183 = vadd.f32 %v2713, %v3141
      %v3184 = vadd.f32 %v2714, %v3144
      %v3185 = vadd.f32 %v2715, %v3149
      %v3186 = vadd.f32 %v2716, %v3152
      %s3187 = scalar_lea.vmem %s172, 24
      %v3188 = vld [vmem:[%s3187] sm:$0xf]
      %v3189 = vld [vmem:[%s3187 + $0x4] sm:$0xf]
      %v3190 = vld [vmem:[%s3187 + $0xc] sm:$0xf]
      %v3191 = vld [vmem:[%s3187 + $0x10] sm:$0xf]
      %v3192 = vld [vmem:[%s3187 + $0x18] sm:$0xf]
      %v3193 = vld [vmem:[%s3187 + $0x1c] sm:$0xf]
      %v3194 = vld [vmem:[%s3187 + $0x24] sm:$0xf]
      %v3195 = vld [vmem:[%s3187 + $0x28] sm:$0xf]
      %v3196 = vld [vmem:[%s3187 + $0x30] sm:$0xf]
      %v3197 = vld [vmem:[%s3187 + $0x34] sm:$0xf]
      %v3198 = vld [vmem:[%s3187 + $0x3c] sm:$0xf]
      %v3199 = vld [vmem:[%s3187 + $0x40] sm:$0xf]
      %v3200 = vld [vmem:[%s3187 + $0x48] sm:$0xf]
      %v3201 = vld [vmem:[%s3187 + $0x4c] sm:$0xf]
      %v3202 = vld [vmem:[%s3187 + $0x54] sm:$0xf]
      %v3203 = vld [vmem:[%s3187 + $0x58] sm:$0xf]
      %v3204 = vld [vmem:[%s3187 + $0x60] sm:$0xf]
      %v3205 = vld [vmem:[%s3187 + $0x64] sm:$0xf]
      %v3206 = vld [vmem:[%s3187 + $0x6c] sm:$0xf]
      %v3207 = vld [vmem:[%s3187 + $0x70] sm:$0xf]
      %v3208 = vld [vmem:[%s3187 + $0x78] sm:$0xf]
      %v3209 = vld [vmem:[%s3187 + $0x7c] sm:$0xf]
      %v3210 = vld [vmem:[%s3187 + $0x84] sm:$0xf]
      %v3211 = vld [vmem:[%s3187 + $0x88] sm:$0xf]
      %v3212 = vld [vmem:[%s3187 + $0x90] sm:$0xf]
      %v3213 = vld [vmem:[%s3187 + $0x94] sm:$0xf]
      %v3214 = vld [vmem:[%s3187 + $0x9c] sm:$0xf]
      %v3215 = vld [vmem:[%s3187 + $0xa0] sm:$0xf]
      %v3216 = vld [vmem:[%s3187 + $0xa8] sm:$0xf]
      %v3217 = vld [vmem:[%s3187 + $0xac] sm:$0xf]
      %v3218 = vld [vmem:[%s3187 + $0xb4] sm:$0xf]
      %v3219 = vld [vmem:[%s3187 + $0xb8] sm:$0xf]
      %s3220 = scalar_lea.vmem %s1, 12
      %v3221 = vld [vmem:[%s3220] sm:$0x3]
      %v3254 = vunpack.c.l.b16 %v3188
      %v3255 = vunpack.c.l.b16 %v3189
      %v3256 = vunpack.c.l.b16 %v3190
      %v3257 = vunpack.c.l.b16 %v3191
      %v3258 = vunpack.c.l.b16 %v3192
      %v3259 = vunpack.c.l.b16 %v3193
      %v3260 = vunpack.c.l.b16 %v3194
      %v3261 = vunpack.c.l.b16 %v3195
      %v3262 = vunpack.c.l.b16 %v3196
      %v3263 = vunpack.c.l.b16 %v3197
      %v3264 = vunpack.c.l.b16 %v3198
      %v3265 = vunpack.c.l.b16 %v3199
      %v3266 = vunpack.c.l.b16 %v3200
      %v3267 = vunpack.c.l.b16 %v3201
      %v3268 = vunpack.c.l.b16 %v3202
      %v3269 = vunpack.c.l.b16 %v3203
      %v3270 = vunpack.c.l.b16 %v3204
      %v3271 = vunpack.c.l.b16 %v3205
      %v3272 = vunpack.c.l.b16 %v3206
      %v3273 = vunpack.c.l.b16 %v3207
      %v3274 = vunpack.c.l.b16 %v3208
      %v3275 = vunpack.c.l.b16 %v3209
      %v3276 = vunpack.c.l.b16 %v3210
      %v3277 = vunpack.c.l.b16 %v3211
      %v3278 = vunpack.c.l.b16 %v3212
      %v3279 = vunpack.c.l.b16 %v3213
      %v3280 = vunpack.c.l.b16 %v3214
      %v3281 = vunpack.c.l.b16 %v3215
      %v3282 = vunpack.c.l.b16 %v3216
      %v3283 = vunpack.c.l.b16 %v3217
      %v3284 = vunpack.c.l.b16 %v3218
      %v3285 = vunpack.c.l.b16 %v3219
      %v3286 = vpack.c.b16 %v3255, %v3254
      %v3287 = vpack.c.b16 %v3257, %v3256
      %v3288 = vpack.c.b16 %v3259, %v3258
      %v3289 = vpack.c.b16 %v3261, %v3260
      %v3290 = vpack.c.b16 %v3263, %v3262
      %v3291 = vpack.c.b16 %v3265, %v3264
      %v3292 = vpack.c.b16 %v3267, %v3266
      %v3293 = vpack.c.b16 %v3269, %v3268
      %v3294 = vpack.c.b16 %v3271, %v3270
      %v3295 = vpack.c.b16 %v3273, %v3272
      %v3296 = vpack.c.b16 %v3275, %v3274
      %v3297 = vpack.c.b16 %v3277, %v3276
      %v3298 = vpack.c.b16 %v3279, %v3278
      %v3299 = vpack.c.b16 %v3281, %v3280
      %v3300 = vpack.c.b16 %v3283, %v3282
      %v3301 = vpack.c.b16 %v3285, %v3284
      %v3303 = vsel %vm669, %v3286, 0
      %v3306 = vsel %vm669, %v3287, 0
      %v3309 = vsel %vm669, %v3288, 0
      %v3312 = vsel %vm669, %v3289, 0
      %v3315 = vsel %vm669, %v3290, 0
      %v3318 = vsel %vm669, %v3291, 0
      %v3321 = vsel %vm669, %v3292, 0
      %v3324 = vsel %vm669, %v3293, 0
      %v3327 = vsel %vm669, %v3294, 0
      %v3330 = vsel %vm669, %v3295, 0
      %v3333 = vsel %vm669, %v3296, 0
      %v3336 = vsel %vm669, %v3297, 0
      %v3339 = vsel %vm669, %v3298, 0
      %v3342 = vsel %vm669, %v3299, 0
      %v3345 = vsel %vm669, %v3300, 0
      %v3348 = vsel %vm669, %v3301, 0
      %v3351 = vsel %vm718, %v3221, 0
      %3353 = vmatprep.subr.bf16.mxu0 0
      %3354 = vmatpush1.bf16.msra.mxu0 %v3351
      %3355 = vmatprep.subr.bf16.mxu0 0
      %3356 = vmatpush1.bf16.msra.mxu0 0
      %3357 = vmatprep.subr.bf16.mxu0 0
      %3358 = vmatpush1.bf16.msra.mxu0 0
      %3359 = vmatprep.subr.bf16.mxu0 0
      %3360 = vmatpush1.bf16.msra.mxu0 0
      %3361 = vmatprep.subr.bf16.mxu0 0
      %3362 = vmatpush1.bf16.msra.mxu0 0
      %3363 = vmatprep.subr.bf16.mxu0 0
      %3364 = vmatpush1.bf16.msra.mxu0 0
      %3365 = vmatprep.subr.bf16.mxu0 0
      %3366 = vmatpush1.bf16.msra.mxu0 0
      %3367 = vmatprep.subr.bf16.mxu0 0
      %3368 = vmatpush1.bf16.msra.mxu0 0
      %3369 = vmatprep.subr.bf16.mxu0 0
      %3370 = vmatpush1.bf16.msra.mxu0 0
      %3371 = vmatprep.subr.bf16.mxu0 0
      %3372 = vmatpush1.bf16.msra.mxu0 0
      %3373 = vmatprep.subr.bf16.mxu0 0
      %3374 = vmatpush1.bf16.msra.mxu0 0
      %3375 = vmatprep.subr.bf16.mxu0 0
      %3376 = vmatpush1.bf16.msra.mxu0 0
      %3377 = vmatprep.subr.bf16.mxu0 0
      %3378 = vmatpush1.bf16.msra.mxu0 0
      %3379 = vmatprep.subr.bf16.mxu0 0
      %3380 = vmatpush1.bf16.msra.mxu0 0
      %3381 = vmatprep.subr.bf16.mxu0 0
      %3382 = vmatpush1.bf16.msra.mxu0 0
      %3383 = vmatprep.subr.bf16.mxu0 0
      %3384 = vmatpush1.bf16.msra.mxu0 0
      %3385 = vmatprep.mubr.bf16.mxu0 0
      %3386 = vmatmul.mubr.bf16.gmra.mrb[0].mxu0 %v3303
      %v3387 = vpop.f32.mrb[0].mxu0
      %v3388 = vadd.f32 0.0, %v3387
      %v3389 = vpop.f32.mrb[0].mxu0
      %v3390 = vpop.f32.mrb[0].mxu0
      %v3391 = vadd.f32 0.0, %v3390
      %v3392 = vpop.f32.mrb[0].mxu0
      %3393 = vmatprep.mubr.bf16.mxu0 0
      %3394 = vmatmul.mubr.bf16.gmra.mrb[0].mxu0 %v3306
      %v3395 = vpop.f32.mrb[0].mxu0
      %v3396 = vadd.f32 0.0, %v3395
      %v3397 = vpop.f32.mrb[0].mxu0
      %v3398 = vpop.f32.mrb[0].mxu0
      %v3399 = vadd.f32 0.0, %v3398
      %v3400 = vpop.f32.mrb[0].mxu0
      %3401 = vmatprep.mubr.bf16.mxu0 0
      %3402 = vmatmul.mubr.bf16.gmra.mrb[0].mxu0 %v3309
      %v3403 = vpop.f32.mrb[0].mxu0
      %v3404 = vadd.f32 0.0, %v3403
      %v3405 = vpop.f32.mrb[0].mxu0
      %v3406 = vpop.f32.mrb[0].mxu0
      %v3407 = vadd.f32 0.0, %v3406
      %v3408 = vpop.f32.mrb[0].mxu0
      %3409 = vmatprep.mubr.bf16.mxu0 0
      %3410 = vmatmul.mubr.bf16.gmra.mrb[0].mxu0 %v3312
      %v3411 = vpop.f32.mrb[0].mxu0
      %v3412 = vadd.f32 0.0, %v3411
      %v3413 = vpop.f32.mrb[0].mxu0
      %v3414 = vpop.f32.mrb[0].mxu0
      %v3415 = vadd.f32 0.0, %v3414
      %v3416 = vpop.f32.mrb[0].mxu0
      %3417 = vmatprep.mubr.bf16.mxu0 0
      %3418 = vmatmul.mubr.bf16.gmra.mrb[0].mxu0 %v3315
      %v3419 = vpop.f32.mrb[0].mxu0
      %v3420 = vadd.f32 0.0, %v3419
      %v3421 = vpop.f32.mrb[0].mxu0
      %v3422 = vpop.f32.mrb[0].mxu0
      %v3423 = vadd.f32 0.0, %v3422
      %v3424 = vpop.f32.mrb[0].mxu0
      %3425 = vmatprep.mubr.bf16.mxu0 0
      %3426 = vmatmul.mubr.bf16.gmra.mrb[0].mxu0 %v3318
      %v3427 = vpop.f32.mrb[0].mxu0
      %v3428 = vadd.f32 0.0, %v3427
      %v3429 = vpop.f32.mrb[0].mxu0
      %v3430 = vpop.f32.mrb[0].mxu0
      %v3431 = vadd.f32 0.0, %v3430
      %v3432 = vpop.f32.mrb[0].mxu0
      %3433 = vmatprep.mubr.bf16.mxu0 0
      %3434 = vmatmul.mubr.bf16.gmra.mrb[0].mxu0 %v3321
      %v3435 = vpop.f32.mrb[0].mxu0
      %v3436 = vadd.f32 0.0, %v3435
      %v3437 = vpop.f32.mrb[0].mxu0
      %v3438 = vpop.f32.mrb[0].mxu0
      %v3439 = vadd.f32 0.0, %v3438
      %v3440 = vpop.f32.mrb[0].mxu0
      %3441 = vmatprep.mubr.bf16.mxu0 0
      %3442 = vmatmul.mubr.bf16.gmra.mrb[0].mxu0 %v3324
      %v3443 = vpop.f32.mrb[0].mxu0
      %v3444 = vadd.f32 0.0, %v3443
      %v3445 = vpop.f32.mrb[0].mxu0
      %v3446 = vpop.f32.mrb[0].mxu0
      %v3447 = vadd.f32 0.0, %v3446
      %v3448 = vpop.f32.mrb[0].mxu0
      %3449 = vmatprep.mubr.bf16.mxu0 0
      %3450 = vmatmul.mubr.bf16.gmra.mrb[0].mxu0 %v3327
      %v3451 = vpop.f32.mrb[0].mxu0
      %v3452 = vadd.f32 0.0, %v3451
      %v3453 = vpop.f32.mrb[0].mxu0
      %v3454 = vpop.f32.mrb[0].mxu0
      %v3455 = vadd.f32 0.0, %v3454
      %v3456 = vpop.f32.mrb[0].mxu0
      %3457 = vmatprep.mubr.bf16.mxu0 0
      %3458 = vmatmul.mubr.bf16.gmra.mrb[0].mxu0 %v3330
      %v3459 = vpop.f32.mrb[0].mxu0
      %v3460 = vadd.f32 0.0, %v3459
      %v3461 = vpop.f32.mrb[0].mxu0
      %v3462 = vpop.f32.mrb[0].mxu0
      %v3463 = vadd.f32 0.0, %v3462
      %v3464 = vpop.f32.mrb[0].mxu0
      %3465 = vmatprep.mubr.bf16.mxu0 0
      %3466 = vmatmul.mubr.bf16.gmra.mrb[0].mxu0 %v3333
      %v3467 = vpop.f32.mrb[0].mxu0
      %v3468 = vadd.f32 0.0, %v3467
      %v3469 = vpop.f32.mrb[0].mxu0
      %v3470 = vpop.f32.mrb[0].mxu0
      %v3471 = vadd.f32 0.0, %v3470
      %v3472 = vpop.f32.mrb[0].mxu0
      %3473 = vmatprep.mubr.bf16.mxu0 0
      %3474 = vmatmul.mubr.bf16.gmra.mrb[0].mxu0 %v3336
      %v3475 = vpop.f32.mrb[0].mxu0
      %v3476 = vadd.f32 0.0, %v3475
      %v3477 = vpop.f32.mrb[0].mxu0
      %v3478 = vpop.f32.mrb[0].mxu0
      %v3479 = vadd.f32 0.0, %v3478
      %v3480 = vpop.f32.mrb[0].mxu0
      %3481 = vmatprep.mubr.bf16.mxu0 0
      %3482 = vmatmul.mubr.bf16.gmra.mrb[0].mxu0 %v3339
      %v3483 = vpop.f32.mrb[0].mxu0
      %v3484 = vadd.f32 0.0, %v3483
      %v3485 = vpop.f32.mrb[0].mxu0
      %v3486 = vpop.f32.mrb[0].mxu0
      %v3487 = vadd.f32 0.0, %v3486
      %v3488 = vpop.f32.mrb[0].mxu0
      %3489 = vmatprep.mubr.bf16.mxu0 0
      %3490 = vmatmul.mubr.bf16.gmra.mrb[0].mxu0 %v3342
      %v3491 = vpop.f32.mrb[0].mxu0
      %v3492 = vadd.f32 0.0, %v3491
      %v3493 = vpop.f32.mrb[0].mxu0
      %v3494 = vpop.f32.mrb[0].mxu0
      %v3495 = vadd.f32 0.0, %v3494
      %v3496 = vpop.f32.mrb[0].mxu0
      %3497 = vmatprep.mubr.bf16.mxu0 0
      %3498 = vmatmul.mubr.bf16.gmra.mrb[0].mxu0 %v3345
      %v3499 = vpop.f32.mrb[0].mxu0
      %v3500 = vadd.f32 0.0, %v3499
      %v3501 = vpop.f32.mrb[0].mxu0
      %v3502 = vpop.f32.mrb[0].mxu0
      %v3503 = vadd.f32 0.0, %v3502
      %v3504 = vpop.f32.mrb[0].mxu0
      %3505 = vmatprep.mubr.bf16.mxu0 0
      %3506 = vmatmul.mubr.bf16.gmra.mrb[0].mxu0 %v3348
      %v3507 = vpop.f32.mrb[0].mxu0
      %v3508 = vadd.f32 0.0, %v3507
      %v3509 = vpop.f32.mrb[0].mxu0
      %v3510 = vpop.f32.mrb[0].mxu0
      %v3511 = vadd.f32 0.0, %v3510
      %v3512 = vpop.f32.mrb[0].mxu0
      %3513 = vdwg.mxu0
      %v3514 = vadd.f32 %v3155, %v3388
      %v3515 = vadd.f32 %v3156, %v3391
      %v3516 = vadd.f32 %v3157, %v3396
      %v3517 = vadd.f32 %v3158, %v3399
      %v3518 = vadd.f32 %v3159, %v3404
      %v3519 = vadd.f32 %v3160, %v3407
      %v3520 = vadd.f32 %v3161, %v3412
      %v3521 = vadd.f32 %v3162, %v3415
      %v3522 = vadd.f32 %v3163, %v3420
      %v3523 = vadd.f32 %v3164, %v3423
      %v3524 = vadd.f32 %v3165, %v3428
      %v3525 = vadd.f32 %v3166, %v3431
      %v3526 = vadd.f32 %v3167, %v3436
      %v3527 = vadd.f32 %v3168, %v3439
      %v3528 = vadd.f32 %v3169, %v3444
      %v3529 = vadd.f32 %v3170, %v3447
      %v3530 = vadd.f32 %v3171, %v3452
      %v3531 = vadd.f32 %v3172, %v3455
      %v3532 = vadd.f32 %v3173, %v3460
      %v3533 = vadd.f32 %v3174, %v3463
      %v3534 = vadd.f32 %v3175, %v3468
      %v3535 = vadd.f32 %v3176, %v3471
      %v3536 = vadd.f32 %v3177, %v3476
      %v3537 = vadd.f32 %v3178, %v3479
      %v3538 = vadd.f32 %v3179, %v3484
      %v3539 = vadd.f32 %v3180, %v3487
      %v3540 = vadd.f32 %v3181, %v3492
      %v3541 = vadd.f32 %v3182, %v3495
      %v3542 = vadd.f32 %v3183, %v3500
      %v3543 = vadd.f32 %v3184, %v3503
      %v3544 = vadd.f32 %v3185, %v3508
      %v3545 = vadd.f32 %v3186, %v3511
      %v3546 = vld [vmem:[%s3187] sm:$0xf]
      %v3547 = vld [vmem:[%s3187 + $0x4] sm:$0xf]
      %v3548 = vld [vmem:[%s3187 + $0x8] sm:$0x1]
      %v3549 = vld [vmem:[%s3187 + $0xc] sm:$0xf]
      %v3550 = vld [vmem:[%s3187 + $0x10] sm:$0xf]
      %v3551 = vld [vmem:[%s3187 + $0x14] sm:$0x1]
      %v3552 = vld [vmem:[%s3187 + $0x18] sm:$0xf]
      %v3553 = vld [vmem:[%s3187 + $0x1c] sm:$0xf]
      %v3554 = vld [vmem:[%s3187 + $0x20] sm:$0x1]
      %v3555 = vld [vmem:[%s3187 + $0x24] sm:$0xf]
      %v3556 = vld [vmem:[%s3187 + $0x28] sm:$0xf]
      %v3557 = vld [vmem:[%s3187 + $0x2c] sm:$0x1]
      %v3558 = vld [vmem:[%s3187 + $0x30] sm:$0xf]
      %v3559 = vld [vmem:[%s3187 + $0x34] sm:$0xf]
      %v3560 = vld [vmem:[%s3187 + $0x38] sm:$0x1]
      %v3561 = vld [vmem:[%s3187 + $0x3c] sm:$0xf]
      %v3562 = vld [vmem:[%s3187 + $0x40] sm:$0xf]
      %v3563 = vld [vmem:[%s3187 + $0x44] sm:$0x1]
      %v3564 = vld [vmem:[%s3187 + $0x48] sm:$0xf]
      %v3565 = vld [vmem:[%s3187 + $0x4c] sm:$0xf]
      %v3566 = vld [vmem:[%s3187 + $0x50] sm:$0x1]
      %v3567 = vld [vmem:[%s3187 + $0x54] sm:$0xf]
      %v3568 = vld [vmem:[%s3187 + $0x58] sm:$0xf]
      %v3569 = vld [vmem:[%s3187 + $0x5c] sm:$0x1]
      %v3570 = vld [vmem:[%s3187 + $0x60] sm:$0xf]
      %v3571 = vld [vmem:[%s3187 + $0x64] sm:$0xf]
      %v3572 = vld [vmem:[%s3187 + $0x68] sm:$0x1]
      %v3573 = vld [vmem:[%s3187 + $0x6c] sm:$0xf]
      %v3574 = vld [vmem:[%s3187 + $0x70] sm:$0xf]
      %v3575 = vld [vmem:[%s3187 + $0x74] sm:$0x1]
      %v3576 = vld [vmem:[%s3187 + $0x78] sm:$0xf]
      %v3577 = vld [vmem:[%s3187 + $0x7c] sm:$0xf]
      %v3578 = vld [vmem:[%s3187 + $0x80] sm:$0x1]
      %v3579 = vld [vmem:[%s3187 + $0x84] sm:$0xf]
      %v3580 = vld [vmem:[%s3187 + $0x88] sm:$0xf]
      %v3581 = vld [vmem:[%s3187 + $0x8c] sm:$0x1]
      %v3582 = vld [vmem:[%s3187 + $0x90] sm:$0xf]
      %v3583 = vld [vmem:[%s3187 + $0x94] sm:$0xf]
      %v3584 = vld [vmem:[%s3187 + $0x98] sm:$0x1]
      %v3585 = vld [vmem:[%s3187 + $0x9c] sm:$0xf]
      %v3586 = vld [vmem:[%s3187 + $0xa0] sm:$0xf]
      %v3587 = vld [vmem:[%s3187 + $0xa4] sm:$0x1]
      %v3588 = vld [vmem:[%s3187 + $0xa8] sm:$0xf]
      %v3589 = vld [vmem:[%s3187 + $0xac] sm:$0xf]
      %v3590 = vld [vmem:[%s3187 + $0xb0] sm:$0x1]
      %v3591 = vld [vmem:[%s3187 + $0xb4] sm:$0xf]
      %v3592 = vld [vmem:[%s3187 + $0xb8] sm:$0xf]
      %v3593 = vld [vmem:[%s3187 + $0xbc] sm:$0x1]
      %v3595 = vshrl.u32 %v3546, 16
      %v3597 = vrot.slane %v3595, 4
      %v3598 = vshll.u32 %v3546, 16
      %v3600 = vrot.slane %v3598, 5
      %v3601 = vor.u32 %v3597, %v3600
      %v3602 = vrot.slane %v3601, 4
      %v3604 = vshll.u32 %v3547, 16
      %v3606 = vrot.slane %v3604, 5
      %v3607 = vsel %vm234, %v3602, %v3606
      %v3608 = vshrl.u32 %v3547, 16
      %v3610 = vrot.slane %v3608, 4
      %v3611 = vor.u32 %v3610, %v3606
      %v3612 = vrot.slane %v3611, 4
      %v3614 = vshll.u32 %v3548, 16
      %v3616 = vrot.slane %v3614, 5
      %v3617 = vsel %vm234, %v3612, %v3616
      %v3619 = vshrl.u32 %v3549, 16
      %v3621 = vrot.slane %v3619, 4
      %v3622 = vshll.u32 %v3549, 16
      %v3624 = vrot.slane %v3622, 5
      %v3625 = vor.u32 %v3621, %v3624
      %v3626 = vrot.slane %v3625, 4
      %v3628 = vshll.u32 %v3550, 16
      %v3630 = vrot.slane %v3628, 5
      %v3631 = vsel %vm234, %v3626, %v3630
      %v3632 = vshrl.u32 %v3550, 16
      %v3634 = vrot.slane %v3632, 4
      %v3635 = vor.u32 %v3634, %v3630
      %v3636 = vrot.slane %v3635, 4
      %v3638 = vshll.u32 %v3551, 16
      %v3640 = vrot.slane %v3638, 5
      %v3641 = vsel %vm234, %v3636, %v3640
      %v3643 = vshrl.u32 %v3552, 16
      %v3645 = vrot.slane %v3643, 4
      %v3646 = vshll.u32 %v3552, 16
      %v3648 = vrot.slane %v3646, 5
      %v3649 = vor.u32 %v3645, %v3648
      %v3650 = vrot.slane %v3649, 4
      %v3652 = vshll.u32 %v3553, 16
      %v3654 = vrot.slane %v3652, 5
      %v3655 = vsel %vm234, %v3650, %v3654
      %v3656 = vshrl.u32 %v3553, 16
      %v3658 = vrot.slane %v3656, 4
      %v3659 = vor.u32 %v3658, %v3654
      %v3660 = vrot.slane %v3659, 4
      %v3662 = vshll.u32 %v3554, 16
      %v3664 = vrot.slane %v3662, 5
      %v3665 = vsel %vm234, %v3660, %v3664
      %v3667 = vshrl.u32 %v3555, 16
      %v3669 = vrot.slane %v3667, 4
      %v3670 = vshll.u32 %v3555, 16
      %v3672 = vrot.slane %v3670, 5
      %v3673 = vor.u32 %v3669, %v3672
      %v3674 = vrot.slane %v3673, 4
      %v3676 = vshll.u32 %v3556, 16
      %v3678 = vrot.slane %v3676, 5
      %v3679 = vsel %vm234, %v3674, %v3678
      %v3680 = vshrl.u32 %v3556, 16
      %v3682 = vrot.slane %v3680, 4
      %v3683 = vor.u32 %v3682, %v3678
      %v3684 = vrot.slane %v3683, 4
      %v3686 = vshll.u32 %v3557, 16
      %v3688 = vrot.slane %v3686, 5
      %v3689 = vsel %vm234, %v3684, %v3688
      %v3691 = vshrl.u32 %v3558, 16
      %v3693 = vrot.slane %v3691, 4
      %v3694 = vshll.u32 %v3558, 16
      %v3696 = vrot.slane %v3694, 5
      %v3697 = vor.u32 %v3693, %v3696
      %v3698 = vrot.slane %v3697, 4
      %v3700 = vshll.u32 %v3559, 16
      %v3702 = vrot.slane %v3700, 5
      %v3703 = vsel %vm234, %v3698, %v3702
      %v3704 = vshrl.u32 %v3559, 16
      %v3706 = vrot.slane %v3704, 4
      %v3707 = vor.u32 %v3706, %v3702
      %v3708 = vrot.slane %v3707, 4
      %v3710 = vshll.u32 %v3560, 16
      %v3712 = vrot.slane %v3710, 5
      %v3713 = vsel %vm234, %v3708, %v3712
      %v3715 = vshrl.u32 %v3561, 16
      %v3717 = vrot.slane %v3715, 4
      %v3718 = vshll.u32 %v3561, 16
      %v3720 = vrot.slane %v3718, 5
      %v3721 = vor.u32 %v3717, %v3720
      %v3722 = vrot.slane %v3721, 4
      %v3724 = vshll.u32 %v3562, 16
      %v3726 = vrot.slane %v3724, 5
      %v3727 = vsel %vm234, %v3722, %v3726
      %v3728 = vshrl.u32 %v3562, 16
      %v3730 = vrot.slane %v3728, 4
      %v3731 = vor.u32 %v3730, %v3726
      %v3732 = vrot.slane %v3731, 4
      %v3734 = vshll.u32 %v3563, 16
      %v3736 = vrot.slane %v3734, 5
      %v3737 = vsel %vm234, %v3732, %v3736
      %v3739 = vshrl.u32 %v3564, 16
      %v3741 = vrot.slane %v3739, 4
      %v3742 = vshll.u32 %v3564, 16
      %v3744 = vrot.slane %v3742, 5
      %v3745 = vor.u32 %v3741, %v3744
      %v3746 = vrot.slane %v3745, 4
      %v3748 = vshll.u32 %v3565, 16
      %v3750 = vrot.slane %v3748, 5
      %v3751 = vsel %vm234, %v3746, %v3750
      %v3752 = vshrl.u32 %v3565, 16
      %v3754 = vrot.slane %v3752, 4
      %v3755 = vor.u32 %v3754, %v3750
      %v3756 = vrot.slane %v3755, 4
      %v3758 = vshll.u32 %v3566, 16
      %v3760 = vrot.slane %v3758, 5
      %v3761 = vsel %vm234, %v3756, %v3760
      %v3763 = vshrl.u32 %v3567, 16
      %v3765 = vrot.slane %v3763, 4
      %v3766 = vshll.u32 %v3567, 16
      %v3768 = vrot.slane %v3766, 5
      %v3769 = vor.u32 %v3765, %v3768
      %v3770 = vrot.slane %v3769, 4
      %v3772 = vshll.u32 %v3568, 16
      %v3774 = vrot.slane %v3772, 5
      %v3775 = vsel %vm234, %v3770, %v3774
      %v3776 = vshrl.u32 %v3568, 16
      %v3778 = vrot.slane %v3776, 4
      %v3779 = vor.u32 %v3778, %v3774
      %v3780 = vrot.slane %v3779, 4
      %v3782 = vshll.u32 %v3569, 16
      %v3784 = vrot.slane %v3782, 5
      %v3785 = vsel %vm234, %v3780, %v3784
      %v3787 = vshrl.u32 %v3570, 16
      %v3789 = vrot.slane %v3787, 4
      %v3790 = vshll.u32 %v3570, 16
      %v3792 = vrot.slane %v3790, 5
      %v3793 = vor.u32 %v3789, %v3792
      %v3794 = vrot.slane %v3793, 4
      %v3796 = vshll.u32 %v3571, 16
      %v3798 = vrot.slane %v3796, 5
      %v3799 = vsel %vm234, %v3794, %v3798
      %v3800 = vshrl.u32 %v3571, 16
      %v3802 = vrot.slane %v3800, 4
      %v3803 = vor.u32 %v3802, %v3798
      %v3804 = vrot.slane %v3803, 4
      %v3806 = vshll.u32 %v3572, 16
      %v3808 = vrot.slane %v3806, 5
      %v3809 = vsel %vm234, %v3804, %v3808
      %v3811 = vshrl.u32 %v3573, 16
      %v3813 = vrot.slane %v3811, 4
      %v3814 = vshll.u32 %v3573, 16
      %v3816 = vrot.slane %v3814, 5
      %v3817 = vor.u32 %v3813, %v3816
      %v3818 = vrot.slane %v3817, 4
      %v3820 = vshll.u32 %v3574, 16
      %v3822 = vrot.slane %v3820, 5
      %v3823 = vsel %vm234, %v3818, %v3822
      %v3824 = vshrl.u32 %v3574, 16
      %v3826 = vrot.slane %v3824, 4
      %v3827 = vor.u32 %v3826, %v3822
      %v3828 = vrot.slane %v3827, 4
      %v3830 = vshll.u32 %v3575, 16
      %v3832 = vrot.slane %v3830, 5
      %v3833 = vsel %vm234, %v3828, %v3832
      %v3835 = vshrl.u32 %v3576, 16
      %v3837 = vrot.slane %v3835, 4
      %v3838 = vshll.u32 %v3576, 16
      %v3840 = vrot.slane %v3838, 5
      %v3841 = vor.u32 %v3837, %v3840
      %v3842 = vrot.slane %v3841, 4
      %v3844 = vshll.u32 %v3577, 16
      %v3846 = vrot.slane %v3844, 5
      %v3847 = vsel %vm234, %v3842, %v3846
      %v3848 = vshrl.u32 %v3577, 16
      %v3850 = vrot.slane %v3848, 4
      %v3851 = vor.u32 %v3850, %v3846
      %v3852 = vrot.slane %v3851, 4
      %v3854 = vshll.u32 %v3578, 16
      %v3856 = vrot.slane %v3854, 5
      %v3857 = vsel %vm234, %v3852, %v3856
      %v3859 = vshrl.u32 %v3579, 16
      %v3861 = vrot.slane %v3859, 4
      %v3862 = vshll.u32 %v3579, 16
      %v3864 = vrot.slane %v3862, 5
      %v3865 = vor.u32 %v3861, %v3864
      %v3866 = vrot.slane %v3865, 4
      %v3868 = vshll.u32 %v3580, 16
      %v3870 = vrot.slane %v3868, 5
      %v3871 = vsel %vm234, %v3866, %v3870
      %v3872 = vshrl.u32 %v3580, 16
      %v3874 = vrot.slane %v3872, 4
      %v3875 = vor.u32 %v3874, %v3870
      %v3876 = vrot.slane %v3875, 4
      %v3878 = vshll.u32 %v3581, 16
      %v3880 = vrot.slane %v3878, 5
      %v3881 = vsel %vm234, %v3876, %v3880
      %v3883 = vshrl.u32 %v3582, 16
      %v3885 = vrot.slane %v3883, 4
      %v3886 = vshll.u32 %v3582, 16
      %v3888 = vrot.slane %v3886, 5
      %v3889 = vor.u32 %v3885, %v3888
      %v3890 = vrot.slane %v3889, 4
      %v3892 = vshll.u32 %v3583, 16
      %v3894 = vrot.slane %v3892, 5
      %v3895 = vsel %vm234, %v3890, %v3894
      %v3896 = vshrl.u32 %v3583, 16
      %v3898 = vrot.slane %v3896, 4
      %v3899 = vor.u32 %v3898, %v3894
      %v3900 = vrot.slane %v3899, 4
      %v3902 = vshll.u32 %v3584, 16
      %v3904 = vrot.slane %v3902, 5
      %v3905 = vsel %vm234, %v3900, %v3904
      %v3907 = vshrl.u32 %v3585, 16
      %v3909 = vrot.slane %v3907, 4
      %v3910 = vshll.u32 %v3585, 16
      %v3912 = vrot.slane %v3910, 5
      %v3913 = vor.u32 %v3909, %v3912
      %v3914 = vrot.slane %v3913, 4
      %v3916 = vshll.u32 %v3586, 16
      %v3918 = vrot.slane %v3916, 5
      %v3919 = vsel %vm234, %v3914, %v3918
      %v3920 = vshrl.u32 %v3586, 16
      %v3922 = vrot.slane %v3920, 4
      %v3923 = vor.u32 %v3922, %v3918
      %v3924 = vrot.slane %v3923, 4
      %v3926 = vshll.u32 %v3587, 16
      %v3928 = vrot.slane %v3926, 5
      %v3929 = vsel %vm234, %v3924, %v3928
      %v3931 = vshrl.u32 %v3588, 16
      %v3933 = vrot.slane %v3931, 4
      %v3934 = vshll.u32 %v3588, 16
      %v3936 = vrot.slane %v3934, 5
      %v3937 = vor.u32 %v3933, %v3936
      %v3938 = vrot.slane %v3937, 4
      %v3940 = vshll.u32 %v3589, 16
      %v3942 = vrot.slane %v3940, 5
      %v3943 = vsel %vm234, %v3938, %v3942
      %v3944 = vshrl.u32 %v3589, 16
      %v3946 = vrot.slane %v3944, 4
      %v3947 = vor.u32 %v3946, %v3942
      %v3948 = vrot.slane %v3947, 4
      %v3950 = vshll.u32 %v3590, 16
      %v3952 = vrot.slane %v3950, 5
      %v3953 = vsel %vm234, %v3948, %v3952
      %v3955 = vshrl.u32 %v3591, 16
      %v3957 = vrot.slane %v3955, 4
      %v3958 = vshll.u32 %v3591, 16
      %v3960 = vrot.slane %v3958, 5
      %v3961 = vor.u32 %v3957, %v3960
      %v3962 = vrot.slane %v3961, 4
      %v3964 = vshll.u32 %v3592, 16
      %v3966 = vrot.slane %v3964, 5
      %v3967 = vsel %vm234, %v3962, %v3966
      %v3968 = vshrl.u32 %v3592, 16
      %v3970 = vrot.slane %v3968, 4
      %v3971 = vor.u32 %v3970, %v3966
      %v3972 = vrot.slane %v3971, 4
      %v3974 = vshll.u32 %v3593, 16
      %v3976 = vrot.slane %v3974, 5
      %v3977 = vsel %vm234, %v3972, %v3976
      %s3978 = scalar_lea.vmem %s1, 14
      %v3979 = vld [vmem:[%s3978] sm:$0x3]
      %v3980 = vunpack.c.l.b16 %v3607
      %v3981 = vunpack.c.l.b16 %v3617
      %v3982 = vunpack.c.l.b16 %v3631
      %v3983 = vunpack.c.l.b16 %v3641
      %v3984 = vunpack.c.l.b16 %v3655
      %v3985 = vunpack.c.l.b16 %v3665
      %v3986 = vunpack.c.l.b16 %v3679
      %v3987 = vunpack.c.l.b16 %v3689
      %v3988 = vunpack.c.l.b16 %v3703
      %v3989 = vunpack.c.l.b16 %v3713
      %v3990 = vunpack.c.l.b16 %v3727
      %v3991 = vunpack.c.l.b16 %v3737
      %v3992 = vunpack.c.l.b16 %v3751
      %v3993 = vunpack.c.l.b16 %v3761
      %v3994 = vunpack.c.l.b16 %v3775
      %v3995 = vunpack.c.l.b16 %v3785
      %v3996 = vunpack.c.l.b16 %v3799
      %v3997 = vunpack.c.l.b16 %v3809
      %v3998 = vunpack.c.l.b16 %v3823
      %v3999 = vunpack.c.l.b16 %v3833
      %v4000 = vunpack.c.l.b16 %v3847
      %v4001 = vunpack.c.l.b16 %v3857
      %v4002 = vunpack.c.l.b16 %v3871
      %v4003 = vunpack.c.l.b16 %v3881
      %v4004 = vunpack.c.l.b16 %v3895
      %v4005 = vunpack.c.l.b16 %v3905
      %v4006 = vunpack.c.l.b16 %v3919
      %v4007 = vunpack.c.l.b16 %v3929
      %v4008 = vunpack.c.l.b16 %v3943
      %v4009 = vunpack.c.l.b16 %v3953
      %v4010 = vunpack.c.l.b16 %v3967
      %v4011 = vunpack.c.l.b16 %v3977
      %v4012 = vpack.c.b16 %v3981, %v3980
      %v4013 = vpack.c.b16 %v3983, %v3982
      %v4014 = vpack.c.b16 %v3985, %v3984
      %v4015 = vpack.c.b16 %v3987, %v3986
      %v4016 = vpack.c.b16 %v3989, %v3988
      %v4017 = vpack.c.b16 %v3991, %v3990
      %v4018 = vpack.c.b16 %v3993, %v3992
      %v4019 = vpack.c.b16 %v3995, %v3994
      %v4020 = vpack.c.b16 %v3997, %v3996
      %v4021 = vpack.c.b16 %v3999, %v3998
      %v4022 = vpack.c.b16 %v4001, %v4000
      %v4023 = vpack.c.b16 %v4003, %v4002
      %v4024 = vpack.c.b16 %v4005, %v4004
      %v4025 = vpack.c.b16 %v4007, %v4006
      %v4026 = vpack.c.b16 %v4009, %v4008
      %v4027 = vpack.c.b16 %v4011, %v4010
      %v4029 = vsel %vm669, %v4012, 0
      %v4032 = vsel %vm669, %v4013, 0
      %v4035 = vsel %vm669, %v4014, 0
      %v4038 = vsel %vm669, %v4015, 0
      %v4041 = vsel %vm669, %v4016, 0
      %v4044 = vsel %vm669, %v4017, 0
      %v4047 = vsel %vm669, %v4018, 0
      %v4050 = vsel %vm669, %v4019, 0
      %v4053 = vsel %vm669, %v4020, 0
      %v4056 = vsel %vm669, %v4021, 0
      %v4059 = vsel %vm669, %v4022, 0
      %v4062 = vsel %vm669, %v4023, 0
      %v4065 = vsel %vm669, %v4024, 0
      %v4068 = vsel %vm669, %v4025, 0
      %v4071 = vsel %vm669, %v4026, 0
      %v4074 = vsel %vm669, %v4027, 0
      %v4077 = vsel %vm718, %v3979, 0
      %4079 = vmatprep.subr.bf16.mxu0 0
      %4080 = vmatpush1.bf16.msra.mxu0 %v4077
      %4081 = vmatprep.subr.bf16.mxu0 0
      %4082 = vmatpush1.bf16.msra.mxu0 0
      %4083 = vmatprep.subr.bf16.mxu0 0
      %4084 = vmatpush1.bf16.msra.mxu0 0
      %4085 = vmatprep.subr.bf16.mxu0 0
      %4086 = vmatpush1.bf16.msra.mxu0 0
      %4087 = vmatprep.subr.bf16.mxu0 0
      %4088 = vmatpush1.bf16.msra.mxu0 0
      %4089 = vmatprep.subr.bf16.mxu0 0
      %4090 = vmatpush1.bf16.msra.mxu0 0
      %4091 = vmatprep.subr.bf16.mxu0 0
      %4092 = vmatpush1.bf16.msra.mxu0 0
      %4093 = vmatprep.subr.bf16.mxu0 0
      %4094 = vmatpush1.bf16.msra.mxu0 0
      %4095 = vmatprep.subr.bf16.mxu0 0
      %4096 = vmatpush1.bf16.msra.mxu0 0
      %4097 = vmatprep.subr.bf16.mxu0 0
      %4098 = vmatpush1.bf16.msra.mxu0 0
      %4099 = vmatprep.subr.bf16.mxu0 0
      %4100 = vmatpush1.bf16.msra.mxu0 0
      %4101 = vmatprep.subr.bf16.mxu0 0
      %4102 = vmatpush1.bf16.msra.mxu0 0
      %4103 = vmatprep.subr.bf16.mxu0 0
      %4104 = vmatpush1.bf16.msra.mxu0 0
      %4105 = vmatprep.subr.bf16.mxu0 0
      %4106 = vmatpush1.bf16.msra.mxu0 0
      %4107 = vmatprep.subr.bf16.mxu0 0
      %4108 = vmatpush1.bf16.msra.mxu0 0
      %4109 = vmatprep.subr.bf16.mxu0 0
      %4110 = vmatpush1.bf16.msra.mxu0 0
      %4111 = vmatprep.mubr.bf16.mxu0 0
      %4112 = vmatmul.mubr.bf16.gmra.mrb[0].mxu0 %v4029
      %v4113 = vpop.f32.mrb[0].mxu0
      %v4114 = vadd.f32 0.0, %v4113
      %v4115 = vpop.f32.mrb[0].mxu0
      %v4116 = vpop.f32.mrb[0].mxu0
      %v4117 = vadd.f32 0.0, %v4116
      %v4118 = vpop.f32.mrb[0].mxu0
      %4119 = vmatprep.mubr.bf16.mxu0 0
      %4120 = vmatmul.mubr.bf16.gmra.mrb[0].mxu0 %v4032
      %v4121 = vpop.f32.mrb[0].mxu0
      %v4122 = vadd.f32 0.0, %v4121
      %v4123 = vpop.f32.mrb[0].mxu0
      %v4124 = vpop.f32.mrb[0].mxu0
      %v4125 = vadd.f32 0.0, %v4124
      %v4126 = vpop.f32.mrb[0].mxu0
      %4127 = vmatprep.mubr.bf16.mxu0 0
      %4128 = vmatmul.mubr.bf16.gmra.mrb[0].mxu0 %v4035
      %v4129 = vpop.f32.mrb[0].mxu0
      %v4130 = vadd.f32 0.0, %v4129
      %v4131 = vpop.f32.mrb[0].mxu0
      %v4132 = vpop.f32.mrb[0].mxu0
      %v4133 = vadd.f32 0.0, %v4132
      %v4134 = vpop.f32.mrb[0].mxu0
      %4135 = vmatprep.mubr.bf16.mxu0 0
      %4136 = vmatmul.mubr.bf16.gmra.mrb[0].mxu0 %v4038
      %v4137 = vpop.f32.mrb[0].mxu0
      %v4138 = vadd.f32 0.0, %v4137
      %v4139 = vpop.f32.mrb[0].mxu0
      %v4140 = vpop.f32.mrb[0].mxu0
      %v4141 = vadd.f32 0.0, %v4140
      %v4142 = vpop.f32.mrb[0].mxu0
      %4143 = vmatprep.mubr.bf16.mxu0 0
      %4144 = vmatmul.mubr.bf16.gmra.mrb[0].mxu0 %v4041
      %v4145 = vpop.f32.mrb[0].mxu0
      %v4146 = vadd.f32 0.0, %v4145
      %v4147 = vpop.f32.mrb[0].mxu0
      %v4148 = vpop.f32.mrb[0].mxu0
      %v4149 = vadd.f32 0.0, %v4148
      %v4150 = vpop.f32.mrb[0].mxu0
      %4151 = vmatprep.mubr.bf16.mxu0 0
      %4152 = vmatmul.mubr.bf16.gmra.mrb[0].mxu0 %v4044
      %v4153 = vpop.f32.mrb[0].mxu0
      %v4154 = vadd.f32 0.0, %v4153
      %v4155 = vpop.f32.mrb[0].mxu0
      %v4156 = vpop.f32.mrb[0].mxu0
      %v4157 = vadd.f32 0.0, %v4156
      %v4158 = vpop.f32.mrb[0].mxu0
      %4159 = vmatprep.mubr.bf16.mxu0 0
      %4160 = vmatmul.mubr.bf16.gmra.mrb[0].mxu0 %v4047
      %v4161 = vpop.f32.mrb[0].mxu0
      %v4162 = vadd.f32 0.0, %v4161
      %v4163 = vpop.f32.mrb[0].mxu0
      %v4164 = vpop.f32.mrb[0].mxu0
      %v4165 = vadd.f32 0.0, %v4164
      %v4166 = vpop.f32.mrb[0].mxu0
      %4167 = vmatprep.mubr.bf16.mxu0 0
      %4168 = vmatmul.mubr.bf16.gmra.mrb[0].mxu0 %v4050
      %v4169 = vpop.f32.mrb[0].mxu0
      %v4170 = vadd.f32 0.0, %v4169
      %v4171 = vpop.f32.mrb[0].mxu0
      %v4172 = vpop.f32.mrb[0].mxu0
      %v4173 = vadd.f32 0.0, %v4172
      %v4174 = vpop.f32.mrb[0].mxu0
      %4175 = vmatprep.mubr.bf16.mxu0 0
      %4176 = vmatmul.mubr.bf16.gmra.mrb[0].mxu0 %v4053
      %v4177 = vpop.f32.mrb[0].mxu0
      %v4178 = vadd.f32 0.0, %v4177
      %v4179 = vpop.f32.mrb[0].mxu0
      %v4180 = vpop.f32.mrb[0].mxu0
      %v4181 = vadd.f32 0.0, %v4180
      %v4182 = vpop.f32.mrb[0].mxu0
      %4183 = vmatprep.mubr.bf16.mxu0 0
      %4184 = vmatmul.mubr.bf16.gmra.mrb[0].mxu0 %v4056
      %v4185 = vpop.f32.mrb[0].mxu0
      %v4186 = vadd.f32 0.0, %v4185
      %v4187 = vpop.f32.mrb[0].mxu0
      %v4188 = vpop.f32.mrb[0].mxu0
      %v4189 = vadd.f32 0.0, %v4188
      %v4190 = vpop.f32.mrb[0].mxu0
      %4191 = vmatprep.mubr.bf16.mxu0 0
      %4192 = vmatmul.mubr.bf16.gmra.mrb[0].mxu0 %v4059
      %v4193 = vpop.f32.mrb[0].mxu0
      %v4194 = vadd.f32 0.0, %v4193
      %v4195 = vpop.f32.mrb[0].mxu0
      %v4196 = vpop.f32.mrb[0].mxu0
      %v4197 = vadd.f32 0.0, %v4196
      %v4198 = vpop.f32.mrb[0].mxu0
      %4199 = vmatprep.mubr.bf16.mxu0 0
      %4200 = vmatmul.mubr.bf16.gmra.mrb[0].mxu0 %v4062
      %v4201 = vpop.f32.mrb[0].mxu0
      %v4202 = vadd.f32 0.0, %v4201
      %v4203 = vpop.f32.mrb[0].mxu0
      %v4204 = vpop.f32.mrb[0].mxu0
      %v4205 = vadd.f32 0.0, %v4204
      %v4206 = vpop.f32.mrb[0].mxu0
      %4207 = vmatprep.mubr.bf16.mxu0 0
      %4208 = vmatmul.mubr.bf16.gmra.mrb[0].mxu0 %v4065
      %v4209 = vpop.f32.mrb[0].mxu0
      %v4210 = vadd.f32 0.0, %v4209
      %v4211 = vpop.f32.mrb[0].mxu0
      %v4212 = vpop.f32.mrb[0].mxu0
      %v4213 = vadd.f32 0.0, %v4212
      %v4214 = vpop.f32.mrb[0].mxu0
      %4215 = vmatprep.mubr.bf16.mxu0 0
      %4216 = vmatmul.mubr.bf16.gmra.mrb[0].mxu0 %v4068
      %v4217 = vpop.f32.mrb[0].mxu0
      %v4218 = vadd.f32 0.0, %v4217
      %v4219 = vpop.f32.mrb[0].mxu0
      %v4220 = vpop.f32.mrb[0].mxu0
      %v4221 = vadd.f32 0.0, %v4220
      %v4222 = vpop.f32.mrb[0].mxu0
      %4223 = vmatprep.mubr.bf16.mxu0 0
      %4224 = vmatmul.mubr.bf16.gmra.mrb[0].mxu0 %v4071
      %v4225 = vpop.f32.mrb[0].mxu0
      %v4226 = vadd.f32 0.0, %v4225
      %v4227 = vpop.f32.mrb[0].mxu0
      %v4228 = vpop.f32.mrb[0].mxu0
      %v4229 = vadd.f32 0.0, %v4228
      %v4230 = vpop.f32.mrb[0].mxu0
      %4231 = vmatprep.mubr.bf16.mxu0 0
      %4232 = vmatmul.mubr.bf16.gmra.mrb[0].mxu0 %v4074
      %v4233 = vpop.f32.mrb[0].mxu0
      %v4234 = vadd.f32 0.0, %v4233
      %v4235 = vpop.f32.mrb[0].mxu0
      %v4236 = vpop.f32.mrb[0].mxu0
      %v4237 = vadd.f32 0.0, %v4236
      %v4238 = vpop.f32.mrb[0].mxu0
      %4239 = vdwg.mxu0
      %v4240 = vadd.f32 %v3514, %v4114
      %v4241 = vadd.f32 %v3515, %v4117
      %v4242 = vadd.f32 %v3516, %v4122
      %v4243 = vadd.f32 %v3517, %v4125
      %v4244 = vadd.f32 %v3518, %v4130
      %v4245 = vadd.f32 %v3519, %v4133
      %v4246 = vadd.f32 %v3520, %v4138
      %v4247 = vadd.f32 %v3521, %v4141
      %v4248 = vadd.f32 %v3522, %v4146
      %v4249 = vadd.f32 %v3523, %v4149
      %v4250 = vadd.f32 %v3524, %v4154
      %v4251 = vadd.f32 %v3525, %v4157
      %v4252 = vadd.f32 %v3526, %v4162
      %v4253 = vadd.f32 %v3527, %v4165
      %v4254 = vadd.f32 %v3528, %v4170
      %v4255 = vadd.f32 %v3529, %v4173
      %v4256 = vadd.f32 %v3530, %v4178
      %v4257 = vadd.f32 %v3531, %v4181
      %v4258 = vadd.f32 %v3532, %v4186
      %v4259 = vadd.f32 %v3533, %v4189
      %v4260 = vadd.f32 %v3534, %v4194
      %v4261 = vadd.f32 %v3535, %v4197
      %v4262 = vadd.f32 %v3536, %v4202
      %v4263 = vadd.f32 %v3537, %v4205
      %v4264 = vadd.f32 %v3538, %v4210
      %v4265 = vadd.f32 %v3539, %v4213
      %v4266 = vadd.f32 %v3540, %v4218
      %v4267 = vadd.f32 %v3541, %v4221
      %v4268 = vadd.f32 %v3542, %v4226
      %v4269 = vadd.f32 %v3543, %v4229
      %v4270 = vadd.f32 %v3544, %v4234
      %v4271 = vadd.f32 %v3545, %v4237
      %v4272 = vld [vmem:[%s3187] sm:$0xe]
      %v4273 = vld [vmem:[%s3187 + $0xc] sm:$0xe]
      %v4274 = vld [vmem:[%s3187 + $0x18] sm:$0xe]
      %v4275 = vld [vmem:[%s3187 + $0x24] sm:$0xe]
      %v4276 = vld [vmem:[%s3187 + $0x30] sm:$0xe]
      %v4277 = vld [vmem:[%s3187 + $0x3c] sm:$0xe]
      %v4278 = vld [vmem:[%s3187 + $0x48] sm:$0xe]
      %v4279 = vld [vmem:[%s3187 + $0x54] sm:$0xe]
      %v4280 = vld [vmem:[%s3187 + $0x60] sm:$0xe]
      %v4281 = vld [vmem:[%s3187 + $0x6c] sm:$0xe]
      %v4282 = vld [vmem:[%s3187 + $0x78] sm:$0xe]
      %v4283 = vld [vmem:[%s3187 + $0x84] sm:$0xe]
      %v4284 = vld [vmem:[%s3187 + $0x90] sm:$0xe]
      %v4285 = vld [vmem:[%s3187 + $0x9c] sm:$0xe]
      %v4286 = vld [vmem:[%s3187 + $0xa8] sm:$0xe]
      %v4287 = vld [vmem:[%s3187 + $0xb4] sm:$0xe]
      %v4336 = vrot.slane %v4272, 5
      %v4337 = vrot.slane %v4336, 4
      %v4338 = vrot.slane %v3547, 5
      %v4339 = vsel %vm1225, %v4337, %v4338
      %v4340 = vrot.slane %v4338, 4
      %v4341 = vrot.slane %v3548, 5
      %v4342 = vsel %vm1225, %v4340, %v4341
      %v4343 = vrot.slane %v4273, 5
      %v4344 = vrot.slane %v4343, 4
      %v4345 = vrot.slane %v3550, 5
      %v4346 = vsel %vm1225, %v4344, %v4345
      %v4347 = vrot.slane %v4345, 4
      %v4348 = vrot.slane %v3551, 5
      %v4349 = vsel %vm1225, %v4347, %v4348
      %v4350 = vrot.slane %v4274, 5
      %v4351 = vrot.slane %v4350, 4
      %v4352 = vrot.slane %v3553, 5
      %v4353 = vsel %vm1225, %v4351, %v4352
      %v4354 = vrot.slane %v4352, 4
      %v4355 = vrot.slane %v3554, 5
      %v4356 = vsel %vm1225, %v4354, %v4355
      %v4357 = vrot.slane %v4275, 5
      %v4358 = vrot.slane %v4357, 4
      %v4359 = vrot.slane %v3556, 5
      %v4360 = vsel %vm1225, %v4358, %v4359
      %v4361 = vrot.slane %v4359, 4
      %v4362 = vrot.slane %v3557, 5
      %v4363 = vsel %vm1225, %v4361, %v4362
      %v4364 = vrot.slane %v4276, 5
      %v4365 = vrot.slane %v4364, 4
      %v4366 = vrot.slane %v3559, 5
      %v4367 = vsel %vm1225, %v4365, %v4366
      %v4368 = vrot.slane %v4366, 4
      %v4369 = vrot.slane %v3560, 5
      %v4370 = vsel %vm1225, %v4368, %v4369
      %v4371 = vrot.slane %v4277, 5
      %v4372 = vrot.slane %v4371, 4
      %v4373 = vrot.slane %v3562, 5
      %v4374 = vsel %vm1225, %v4372, %v4373
      %v4375 = vrot.slane %v4373, 4
      %v4376 = vrot.slane %v3563, 5
      %v4377 = vsel %vm1225, %v4375, %v4376
      %v4378 = vrot.slane %v4278, 5
      %v4379 = vrot.slane %v4378, 4
      %v4380 = vrot.slane %v3565, 5
      %v4381 = vsel %vm1225, %v4379, %v4380
      %v4382 = vrot.slane %v4380, 4
      %v4383 = vrot.slane %v3566, 5
      %v4384 = vsel %vm1225, %v4382, %v4383
      %v4385 = vrot.slane %v4279, 5
      %v4386 = vrot.slane %v4385, 4
      %v4387 = vrot.slane %v3568, 5
      %v4388 = vsel %vm1225, %v4386, %v4387
      %v4389 = vrot.slane %v4387, 4
      %v4390 = vrot.slane %v3569, 5
      %v4391 = vsel %vm1225, %v4389, %v4390
      %v4392 = vrot.slane %v4280, 5
      %v4393 = vrot.slane %v4392, 4
      %v4394 = vrot.slane %v3571, 5
      %v4395 = vsel %vm1225, %v4393, %v4394
      %v4396 = vrot.slane %v4394, 4
      %v4397 = vrot.slane %v3572, 5
      %v4398 = vsel %vm1225, %v4396, %v4397
      %v4399 = vrot.slane %v4281, 5
      %v4400 = vrot.slane %v4399, 4
      %v4401 = vrot.slane %v3574, 5
      %v4402 = vsel %vm1225, %v4400, %v4401
      %v4403 = vrot.slane %v4401, 4
      %v4404 = vrot.slane %v3575, 5
      %v4405 = vsel %vm1225, %v4403, %v4404
      %v4406 = vrot.slane %v4282, 5
      %v4407 = vrot.slane %v4406, 4
      %v4408 = vrot.slane %v3577, 5
      %v4409 = vsel %vm1225, %v4407, %v4408
      %v4410 = vrot.slane %v4408, 4
      %v4411 = vrot.slane %v3578, 5
      %v4412 = vsel %vm1225, %v4410, %v4411
      %v4413 = vrot.slane %v4283, 5
      %v4414 = vrot.slane %v4413, 4
      %v4415 = vrot.slane %v3580, 5
      %v4416 = vsel %vm1225, %v4414, %v4415
      %v4417 = vrot.slane %v4415, 4
      %v4418 = vrot.slane %v3581, 5
      %v4419 = vsel %vm1225, %v4417, %v4418
      %v4420 = vrot.slane %v4284, 5
      %v4421 = vrot.slane %v4420, 4
      %v4422 = vrot.slane %v3583, 5
      %v4423 = vsel %vm1225, %v4421, %v4422
      %v4424 = vrot.slane %v4422, 4
      %v4425 = vrot.slane %v3584, 5
      %v4426 = vsel %vm1225, %v4424, %v4425
      %v4427 = vrot.slane %v4285, 5
      %v4428 = vrot.slane %v4427, 4
      %v4429 = vrot.slane %v3586, 5
      %v4430 = vsel %vm1225, %v4428, %v4429
      %v4431 = vrot.slane %v4429, 4
      %v4432 = vrot.slane %v3587, 5
      %v4433 = vsel %vm1225, %v4431, %v4432
      %v4434 = vrot.slane %v4286, 5
      %v4435 = vrot.slane %v4434, 4
      %v4436 = vrot.slane %v3589, 5
      %v4437 = vsel %vm1225, %v4435, %v4436
      %v4438 = vrot.slane %v4436, 4
      %v4439 = vrot.slane %v3590, 5
      %v4440 = vsel %vm1225, %v4438, %v4439
      %v4441 = vrot.slane %v4287, 5
      %v4442 = vrot.slane %v4441, 4
      %v4443 = vrot.slane %v3592, 5
      %v4444 = vsel %vm1225, %v4442, %v4443
      %v4445 = vrot.slane %v4443, 4
      %v4446 = vrot.slane %v3593, 5
      %v4447 = vsel %vm1225, %v4445, %v4446
      %s4448 = scalar_lea.vmem %s1, 16
      %v4449 = vld [vmem:[%s4448] sm:$0x3]
      %v4450 = vunpack.c.l.b16 %v4339
      %v4451 = vunpack.c.l.b16 %v4342
      %v4452 = vunpack.c.l.b16 %v4346
      %v4453 = vunpack.c.l.b16 %v4349
      %v4454 = vunpack.c.l.b16 %v4353
      %v4455 = vunpack.c.l.b16 %v4356
      %v4456 = vunpack.c.l.b16 %v4360
      %v4457 = vunpack.c.l.b16 %v4363
      %v4458 = vunpack.c.l.b16 %v4367
      %v4459 = vunpack.c.l.b16 %v4370
      %v4460 = vunpack.c.l.b16 %v4374
      %v4461 = vunpack.c.l.b16 %v4377
      %v4462 = vunpack.c.l.b16 %v4381
      %v4463 = vunpack.c.l.b16 %v4384
      %v4464 = vunpack.c.l.b16 %v4388
      %v4465 = vunpack.c.l.b16 %v4391
      %v4466 = vunpack.c.l.b16 %v4395
      %v4467 = vunpack.c.l.b16 %v4398
      %v4468 = vunpack.c.l.b16 %v4402
      %v4469 = vunpack.c.l.b16 %v4405
      %v4470 = vunpack.c.l.b16 %v4409
      %v4471 = vunpack.c.l.b16 %v4412
      %v4472 = vunpack.c.l.b16 %v4416
      %v4473 = vunpack.c.l.b16 %v4419
      %v4474 = vunpack.c.l.b16 %v4423
      %v4475 = vunpack.c.l.b16 %v4426
      %v4476 = vunpack.c.l.b16 %v4430
      %v4477 = vunpack.c.l.b16 %v4433
      %v4478 = vunpack.c.l.b16 %v4437
      %v4479 = vunpack.c.l.b16 %v4440
      %v4480 = vunpack.c.l.b16 %v4444
      %v4481 = vunpack.c.l.b16 %v4447
      %v4482 = vpack.c.b16 %v4451, %v4450
      %v4483 = vpack.c.b16 %v4453, %v4452
      %v4484 = vpack.c.b16 %v4455, %v4454
      %v4485 = vpack.c.b16 %v4457, %v4456
      %v4486 = vpack.c.b16 %v4459, %v4458
      %v4487 = vpack.c.b16 %v4461, %v4460
      %v4488 = vpack.c.b16 %v4463, %v4462
      %v4489 = vpack.c.b16 %v4465, %v4464
      %v4490 = vpack.c.b16 %v4467, %v4466
      %v4491 = vpack.c.b16 %v4469, %v4468
      %v4492 = vpack.c.b16 %v4471, %v4470
      %v4493 = vpack.c.b16 %v4473, %v4472
      %v4494 = vpack.c.b16 %v4475, %v4474
      %v4495 = vpack.c.b16 %v4477, %v4476
      %v4496 = vpack.c.b16 %v4479, %v4478
      %v4497 = vpack.c.b16 %v4481, %v4480
      %v4499 = vsel %vm669, %v4482, 0
      %v4502 = vsel %vm669, %v4483, 0
      %v4505 = vsel %vm669, %v4484, 0
      %v4508 = vsel %vm669, %v4485, 0
      %v4511 = vsel %vm669, %v4486, 0
      %v4514 = vsel %vm669, %v4487, 0
      %v4517 = vsel %vm669, %v4488, 0
      %v4520 = vsel %vm669, %v4489, 0
      %v4523 = vsel %vm669, %v4490, 0
      %v4526 = vsel %vm669, %v4491, 0
      %v4529 = vsel %vm669, %v4492, 0
      %v4532 = vsel %vm669, %v4493, 0
      %v4535 = vsel %vm669, %v4494, 0
      %v4538 = vsel %vm669, %v4495, 0
      %v4541 = vsel %vm669, %v4496, 0
      %v4544 = vsel %vm669, %v4497, 0
      %v4547 = vsel %vm718, %v4449, 0
      %4549 = vmatprep.subr.bf16.mxu0 0
      %4550 = vmatpush1.bf16.msra.mxu0 %v4547
      %4551 = vmatprep.subr.bf16.mxu0 0
      %4552 = vmatpush1.bf16.msra.mxu0 0
      %4553 = vmatprep.subr.bf16.mxu0 0
      %4554 = vmatpush1.bf16.msra.mxu0 0
      %4555 = vmatprep.subr.bf16.mxu0 0
      %4556 = vmatpush1.bf16.msra.mxu0 0
      %4557 = vmatprep.subr.bf16.mxu0 0
      %4558 = vmatpush1.bf16.msra.mxu0 0
      %4559 = vmatprep.subr.bf16.mxu0 0
      %4560 = vmatpush1.bf16.msra.mxu0 0
      %4561 = vmatprep.subr.bf16.mxu0 0
      %4562 = vmatpush1.bf16.msra.mxu0 0
      %4563 = vmatprep.subr.bf16.mxu0 0
      %4564 = vmatpush1.bf16.msra.mxu0 0
      %4565 = vmatprep.subr.bf16.mxu0 0
      %4566 = vmatpush1.bf16.msra.mxu0 0
      %4567 = vmatprep.subr.bf16.mxu0 0
      %4568 = vmatpush1.bf16.msra.mxu0 0
      %4569 = vmatprep.subr.bf16.mxu0 0
      %4570 = vmatpush1.bf16.msra.mxu0 0
      %4571 = vmatprep.subr.bf16.mxu0 0
      %4572 = vmatpush1.bf16.msra.mxu0 0
      %4573 = vmatprep.subr.bf16.mxu0 0
      %4574 = vmatpush1.bf16.msra.mxu0 0
      %4575 = vmatprep.subr.bf16.mxu0 0
      %4576 = vmatpush1.bf16.msra.mxu0 0
      %4577 = vmatprep.subr.bf16.mxu0 0
      %4578 = vmatpush1.bf16.msra.mxu0 0
      %4579 = vmatprep.subr.bf16.mxu0 0
      %4580 = vmatpush1.bf16.msra.mxu0 0
      %4581 = vmatprep.mubr.bf16.mxu0 0
      %4582 = vmatmul.mubr.bf16.gmra.mrb[0].mxu0 %v4499
      %v4583 = vpop.f32.mrb[0].mxu0
      %v4584 = vadd.f32 0.0, %v4583
      %v4585 = vpop.f32.mrb[0].mxu0
      %v4586 = vpop.f32.mrb[0].mxu0
      %v4587 = vadd.f32 0.0, %v4586
      %v4588 = vpop.f32.mrb[0].mxu0
      %4589 = vmatprep.mubr.bf16.mxu0 0
      %4590 = vmatmul.mubr.bf16.gmra.mrb[0].mxu0 %v4502
      %v4591 = vpop.f32.mrb[0].mxu0
      %v4592 = vadd.f32 0.0, %v4591
      %v4593 = vpop.f32.mrb[0].mxu0
      %v4594 = vpop.f32.mrb[0].mxu0
      %v4595 = vadd.f32 0.0, %v4594
      %v4596 = vpop.f32.mrb[0].mxu0
      %4597 = vmatprep.mubr.bf16.mxu0 0
      %4598 = vmatmul.mubr.bf16.gmra.mrb[0].mxu0 %v4505
      %v4599 = vpop.f32.mrb[0].mxu0
      %v4600 = vadd.f32 0.0, %v4599
      %v4601 = vpop.f32.mrb[0].mxu0
      %v4602 = vpop.f32.mrb[0].mxu0
      %v4603 = vadd.f32 0.0, %v4602
      %v4604 = vpop.f32.mrb[0].mxu0
      %4605 = vmatprep.mubr.bf16.mxu0 0
      %4606 = vmatmul.mubr.bf16.gmra.mrb[0].mxu0 %v4508
      %v4607 = vpop.f32.mrb[0].mxu0
      %v4608 = vadd.f32 0.0, %v4607
      %v4609 = vpop.f32.mrb[0].mxu0
      %v4610 = vpop.f32.mrb[0].mxu0
      %v4611 = vadd.f32 0.0, %v4610
      %v4612 = vpop.f32.mrb[0].mxu0
      %4613 = vmatprep.mubr.bf16.mxu0 0
      %4614 = vmatmul.mubr.bf16.gmra.mrb[0].mxu0 %v4511
      %v4615 = vpop.f32.mrb[0].mxu0
      %v4616 = vadd.f32 0.0, %v4615
      %v4617 = vpop.f32.mrb[0].mxu0
      %v4618 = vpop.f32.mrb[0].mxu0
      %v4619 = vadd.f32 0.0, %v4618
      %v4620 = vpop.f32.mrb[0].mxu0
      %4621 = vmatprep.mubr.bf16.mxu0 0
      %4622 = vmatmul.mubr.bf16.gmra.mrb[0].mxu0 %v4514
      %v4623 = vpop.f32.mrb[0].mxu0
      %v4624 = vadd.f32 0.0, %v4623
      %v4625 = vpop.f32.mrb[0].mxu0
      %v4626 = vpop.f32.mrb[0].mxu0
      %v4627 = vadd.f32 0.0, %v4626
      %v4628 = vpop.f32.mrb[0].mxu0
      %4629 = vmatprep.mubr.bf16.mxu0 0
      %4630 = vmatmul.mubr.bf16.gmra.mrb[0].mxu0 %v4517
      %v4631 = vpop.f32.mrb[0].mxu0
      %v4632 = vadd.f32 0.0, %v4631
      %v4633 = vpop.f32.mrb[0].mxu0
      %v4634 = vpop.f32.mrb[0].mxu0
      %v4635 = vadd.f32 0.0, %v4634
      %v4636 = vpop.f32.mrb[0].mxu0
      %4637 = vmatprep.mubr.bf16.mxu0 0
      %4638 = vmatmul.mubr.bf16.gmra.mrb[0].mxu0 %v4520
      %v4639 = vpop.f32.mrb[0].mxu0
      %v4640 = vadd.f32 0.0, %v4639
      %v4641 = vpop.f32.mrb[0].mxu0
      %v4642 = vpop.f32.mrb[0].mxu0
      %v4643 = vadd.f32 0.0, %v4642
      %v4644 = vpop.f32.mrb[0].mxu0
      %4645 = vmatprep.mubr.bf16.mxu0 0
      %4646 = vmatmul.mubr.bf16.gmra.mrb[0].mxu0 %v4523
      %v4647 = vpop.f32.mrb[0].mxu0
      %v4648 = vadd.f32 0.0, %v4647
      %v4649 = vpop.f32.mrb[0].mxu0
      %v4650 = vpop.f32.mrb[0].mxu0
      %v4651 = vadd.f32 0.0, %v4650
      %v4652 = vpop.f32.mrb[0].mxu0
      %4653 = vmatprep.mubr.bf16.mxu0 0
      %4654 = vmatmul.mubr.bf16.gmra.mrb[0].mxu0 %v4526
      %v4655 = vpop.f32.mrb[0].mxu0
      %v4656 = vadd.f32 0.0, %v4655
      %v4657 = vpop.f32.mrb[0].mxu0
      %v4658 = vpop.f32.mrb[0].mxu0
      %v4659 = vadd.f32 0.0, %v4658
      %v4660 = vpop.f32.mrb[0].mxu0
      %4661 = vmatprep.mubr.bf16.mxu0 0
      %4662 = vmatmul.mubr.bf16.gmra.mrb[0].mxu0 %v4529
      %v4663 = vpop.f32.mrb[0].mxu0
      %v4664 = vadd.f32 0.0, %v4663
      %v4665 = vpop.f32.mrb[0].mxu0
      %v4666 = vpop.f32.mrb[0].mxu0
      %v4667 = vadd.f32 0.0, %v4666
      %v4668 = vpop.f32.mrb[0].mxu0
      %4669 = vmatprep.mubr.bf16.mxu0 0
      %4670 = vmatmul.mubr.bf16.gmra.mrb[0].mxu0 %v4532
      %v4671 = vpop.f32.mrb[0].mxu0
      %v4672 = vadd.f32 0.0, %v4671
      %v4673 = vpop.f32.mrb[0].mxu0
      %v4674 = vpop.f32.mrb[0].mxu0
      %v4675 = vadd.f32 0.0, %v4674
      %v4676 = vpop.f32.mrb[0].mxu0
      %4677 = vmatprep.mubr.bf16.mxu0 0
      %4678 = vmatmul.mubr.bf16.gmra.mrb[0].mxu0 %v4535
      %v4679 = vpop.f32.mrb[0].mxu0
      %v4680 = vadd.f32 0.0, %v4679
      %v4681 = vpop.f32.mrb[0].mxu0
      %v4682 = vpop.f32.mrb[0].mxu0
      %v4683 = vadd.f32 0.0, %v4682
      %v4684 = vpop.f32.mrb[0].mxu0
      %4685 = vmatprep.mubr.bf16.mxu0 0
      %4686 = vmatmul.mubr.bf16.gmra.mrb[0].mxu0 %v4538
      %v4687 = vpop.f32.mrb[0].mxu0
      %v4688 = vadd.f32 0.0, %v4687
      %v4689 = vpop.f32.mrb[0].mxu0
      %v4690 = vpop.f32.mrb[0].mxu0
      %v4691 = vadd.f32 0.0, %v4690
      %v4692 = vpop.f32.mrb[0].mxu0
      %4693 = vmatprep.mubr.bf16.mxu0 0
      %4694 = vmatmul.mubr.bf16.gmra.mrb[0].mxu0 %v4541
      %v4695 = vpop.f32.mrb[0].mxu0
      %v4696 = vadd.f32 0.0, %v4695
      %v4697 = vpop.f32.mrb[0].mxu0
      %v4698 = vpop.f32.mrb[0].mxu0
      %v4699 = vadd.f32 0.0, %v4698
      %v4700 = vpop.f32.mrb[0].mxu0
      %4701 = vmatprep.mubr.bf16.mxu0 0
      %4702 = vmatmul.mubr.bf16.gmra.mrb[0].mxu0 %v4544
      %v4703 = vpop.f32.mrb[0].mxu0
      %v4704 = vadd.f32 0.0, %v4703
      %v4705 = vpop.f32.mrb[0].mxu0
      %v4706 = vpop.f32.mrb[0].mxu0
      %v4707 = vadd.f32 0.0, %v4706
      %v4708 = vpop.f32.mrb[0].mxu0
      %4709 = vdwg.mxu0
      %v4710 = vadd.f32 %v4240, %v4584
      %v4711 = vadd.f32 %v4241, %v4587
      %v4712 = vadd.f32 %v4242, %v4592
      %v4713 = vadd.f32 %v4243, %v4595
      %v4714 = vadd.f32 %v4244, %v4600
      %v4715 = vadd.f32 %v4245, %v4603
      %v4716 = vadd.f32 %v4246, %v4608
      %v4717 = vadd.f32 %v4247, %v4611
      %v4718 = vadd.f32 %v4248, %v4616
      %v4719 = vadd.f32 %v4249, %v4619
      %v4720 = vadd.f32 %v4250, %v4624
      %v4721 = vadd.f32 %v4251, %v4627
      %v4722 = vadd.f32 %v4252, %v4632
      %v4723 = vadd.f32 %v4253, %v4635
      %v4724 = vadd.f32 %v4254, %v4640
      %v4725 = vadd.f32 %v4255, %v4643
      %v4726 = vadd.f32 %v4256, %v4648
      %v4727 = vadd.f32 %v4257, %v4651
      %v4728 = vadd.f32 %v4258, %v4656
      %v4729 = vadd.f32 %v4259, %v4659
      %v4730 = vadd.f32 %v4260, %v4664
      %v4731 = vadd.f32 %v4261, %v4667
      %v4732 = vadd.f32 %v4262, %v4672
      %v4733 = vadd.f32 %v4263, %v4675
      %v4734 = vadd.f32 %v4264, %v4680
      %v4735 = vadd.f32 %v4265, %v4683
      %v4736 = vadd.f32 %v4266, %v4688
      %v4737 = vadd.f32 %v4267, %v4691
      %v4738 = vadd.f32 %v4268, %v4696
      %v4739 = vadd.f32 %v4269, %v4699
      %v4740 = vadd.f32 %v4270, %v4704
      %v4741 = vadd.f32 %v4271, %v4707
      %v4742 = vpack.c.bf16 %v4711, %v4710
      %v4743 = vpack.c.bf16 %v4713, %v4712
      %v4744 = vpack.c.bf16 %v4715, %v4714
      %v4745 = vpack.c.bf16 %v4717, %v4716
      %v4746 = vpack.c.bf16 %v4719, %v4718
      %v4747 = vpack.c.bf16 %v4721, %v4720
      %v4748 = vpack.c.bf16 %v4723, %v4722
      %v4749 = vpack.c.bf16 %v4725, %v4724
      %v4750 = vpack.c.bf16 %v4727, %v4726
      %v4751 = vpack.c.bf16 %v4729, %v4728
      %v4752 = vpack.c.bf16 %v4731, %v4730
      %v4753 = vpack.c.bf16 %v4733, %v4732
      %v4754 = vpack.c.bf16 %v4735, %v4734
      %v4755 = vpack.c.bf16 %v4737, %v4736
      %v4756 = vpack.c.bf16 %v4739, %v4738
      %v4757 = vpack.c.bf16 %v4741, %v4740
      %v4774 = vunpack.c.l.b16 %v4742
      %v4775 = vunpack.c.h.b16 %v4742
      %v4776 = vunpack.c.l.b16 %v4743
      %v4777 = vunpack.c.h.b16 %v4743
      %v4778 = vunpack.c.l.b16 %v4744
      %v4779 = vunpack.c.h.b16 %v4744
      %v4780 = vunpack.c.l.b16 %v4745
      %v4781 = vunpack.c.h.b16 %v4745
      %v4782 = vunpack.c.l.b16 %v4746
      %v4783 = vunpack.c.h.b16 %v4746
      %v4784 = vunpack.c.l.b16 %v4747
      %v4785 = vunpack.c.h.b16 %v4747
      %v4786 = vunpack.c.l.b16 %v4748
      %v4787 = vunpack.c.h.b16 %v4748
      %v4788 = vunpack.c.l.b16 %v4749
      %v4789 = vunpack.c.h.b16 %v4749
      %v4790 = vunpack.c.l.b16 %v4750
      %v4791 = vunpack.c.h.b16 %v4750
      %v4792 = vunpack.c.l.b16 %v4751
      %v4793 = vunpack.c.h.b16 %v4751
      %v4794 = vunpack.c.l.b16 %v4752
      %v4795 = vunpack.c.h.b16 %v4752
      %v4796 = vunpack.c.l.b16 %v4753
      %v4797 = vunpack.c.h.b16 %v4753
      %v4798 = vunpack.c.l.b16 %v4754
      %v4799 = vunpack.c.h.b16 %v4754
      %v4800 = vunpack.c.l.b16 %v4755
      %v4801 = vunpack.c.h.b16 %v4755
      %v4802 = vunpack.c.l.b16 %v4756
      %v4803 = vunpack.c.h.b16 %v4756
      %v4804 = vunpack.c.l.b16 %v4757
      %v4805 = vunpack.c.h.b16 %v4757
      %v4806 = vpack.c.b16 %v4774, %v4774
      %v4807 = vpack.c.b16 %v4775, %v4775
      %v4808 = vpack.c.b16 %v4776, %v4776
      %v4809 = vpack.c.b16 %v4777, %v4777
      %v4810 = vpack.c.b16 %v4778, %v4778
      %v4811 = vpack.c.b16 %v4779, %v4779
      %v4812 = vpack.c.b16 %v4780, %v4780
      %v4813 = vpack.c.b16 %v4781, %v4781
      %v4814 = vpack.c.b16 %v4782, %v4782
      %v4815 = vpack.c.b16 %v4783, %v4783
      %v4816 = vpack.c.b16 %v4784, %v4784
      %v4817 = vpack.c.b16 %v4785, %v4785
      %v4818 = vpack.c.b16 %v4786, %v4786
      %v4819 = vpack.c.b16 %v4787, %v4787
      %v4820 = vpack.c.b16 %v4788, %v4788
      %v4821 = vpack.c.b16 %v4789, %v4789
      %v4822 = vpack.c.b16 %v4790, %v4790
      %v4823 = vpack.c.b16 %v4791, %v4791
      %v4824 = vpack.c.b16 %v4792, %v4792
      %v4825 = vpack.c.b16 %v4793, %v4793
      %v4826 = vpack.c.b16 %v4794, %v4794
      %v4827 = vpack.c.b16 %v4795, %v4795
      %v4828 = vpack.c.b16 %v4796, %v4796
      %v4829 = vpack.c.b16 %v4797, %v4797
      %v4830 = vpack.c.b16 %v4798, %v4798
      %v4831 = vpack.c.b16 %v4799, %v4799
      %v4832 = vpack.c.b16 %v4800, %v4800
      %v4833 = vpack.c.b16 %v4801, %v4801
      %v4834 = vpack.c.b16 %v4802, %v4802
      %v4835 = vpack.c.b16 %v4803, %v4803
      %v4836 = vpack.c.b16 %v4804, %v4804
      %v4837 = vpack.c.b16 %v4805, %v4805
      %vm4870 = vcmask 27648
      %4871 = vst.msk [vmem:[%s177] sm:$0xf] %vm4870, %v4806
      %4872 = vst.msk [vmem:[%s177 + $0x4] sm:$0xf] %vm4870, %v4807
      %4873 = vst.msk [vmem:[%s177 + $0x8] sm:$0xf] %vm4870, %v4808
      %4874 = vst.msk [vmem:[%s177 + $0xc] sm:$0xf] %vm4870, %v4809
      %4875 = vst.msk [vmem:[%s177 + $0x10] sm:$0xf] %vm4870, %v4810
      %4876 = vst.msk [vmem:[%s177 + $0x14] sm:$0xf] %vm4870, %v4811
      %4877 = vst.msk [vmem:[%s177 + $0x18] sm:$0xf] %vm4870, %v4812
      %4878 = vst.msk [vmem:[%s177 + $0x1c] sm:$0xf] %vm4870, %v4813
      %4879 = vst.msk [vmem:[%s177 + $0x20] sm:$0xf] %vm4870, %v4814
      %4880 = vst.msk [vmem:[%s177 + $0x24] sm:$0xf] %vm4870, %v4815
      %4881 = vst.msk [vmem:[%s177 + $0x28] sm:$0xf] %vm4870, %v4816
      %4882 = vst.msk [vmem:[%s177 + $0x2c] sm:$0xf] %vm4870, %v4817
      %4883 = vst.msk [vmem:[%s177 + $0x30] sm:$0xf] %vm4870, %v4818
      %4884 = vst.msk [vmem:[%s177 + $0x34] sm:$0xf] %vm4870, %v4819
      %4885 = vst.msk [vmem:[%s177 + $0x38] sm:$0xf] %vm4870, %v4820
      %4886 = vst.msk [vmem:[%s177 + $0x3c] sm:$0xf] %vm4870, %v4821
      %4887 = vst.msk [vmem:[%s177 + $0x40] sm:$0xf] %vm4870, %v4822
      %4888 = vst.msk [vmem:[%s177 + $0x44] sm:$0xf] %vm4870, %v4823
      %4889 = vst.msk [vmem:[%s177 + $0x48] sm:$0xf] %vm4870, %v4824
      %4890 = vst.msk [vmem:[%s177 + $0x4c] sm:$0xf] %vm4870, %v4825
      %4891 = vst.msk [vmem:[%s177 + $0x50] sm:$0xf] %vm4870, %v4826
      %4892 = vst.msk [vmem:[%s177 + $0x54] sm:$0xf] %vm4870, %v4827
      %4893 = vst.msk [vmem:[%s177 + $0x58] sm:$0xf] %vm4870, %v4828
      %4894 = vst.msk [vmem:[%s177 + $0x5c] sm:$0xf] %vm4870, %v4829
      %4895 = vst.msk [vmem:[%s177 + $0x60] sm:$0xf] %vm4870, %v4830
      %4896 = vst.msk [vmem:[%s177 + $0x64] sm:$0xf] %vm4870, %v4831
      %4897 = vst.msk [vmem:[%s177 + $0x68] sm:$0xf] %vm4870, %v4832
      %4898 = vst.msk [vmem:[%s177 + $0x6c] sm:$0xf] %vm4870, %v4833
      %4899 = vst.msk [vmem:[%s177 + $0x70] sm:$0xf] %vm4870, %v4834
      %4900 = vst.msk [vmem:[%s177 + $0x74] sm:$0xf] %vm4870, %v4835
      %4901 = vst.msk [vmem:[%s177 + $0x78] sm:$0xf] %vm4870, %v4836
      %4902 = vst.msk [vmem:[%s177 + $0x7c] sm:$0xf] %vm4870, %v4837
      %v4903 = vsel %vm669, %v4710, 0.0
      %v4904 = vsel %vm669, %v4711, 0.0
      %v4905 = vadd.f32 %v4903, %v4904
      %v4906 = vsel %vm669, %v4712, 0.0
      %v4907 = vadd.f32 %v4905, %v4906
      %v4908 = vsel %vm669, %v4713, 0.0
      %v4909 = vadd.f32 %v4907, %v4908
      %v4910 = vsel %vm669, %v4714, 0.0
      %v4911 = vadd.f32 %v4909, %v4910
      %v4912 = vsel %vm669, %v4715, 0.0
      %v4913 = vadd.f32 %v4911, %v4912
      %v4914 = vsel %vm669, %v4716, 0.0
      %v4915 = vadd.f32 %v4913, %v4914
      %v4916 = vsel %vm669, %v4717, 0.0
      %v4917 = vadd.f32 %v4915, %v4916
      %v4918 = vsel %vm669, %v4718, 0.0
      %v4919 = vadd.f32 %v4917, %v4918
      %v4920 = vsel %vm669, %v4719, 0.0
      %v4921 = vadd.f32 %v4919, %v4920
      %v4922 = vsel %vm669, %v4720, 0.0
      %v4923 = vadd.f32 %v4921, %v4922
      %v4924 = vsel %vm669, %v4721, 0.0
      %v4925 = vadd.f32 %v4923, %v4924
      %v4926 = vsel %vm669, %v4722, 0.0
      %v4927 = vadd.f32 %v4925, %v4926
      %v4928 = vsel %vm669, %v4723, 0.0
      %v4929 = vadd.f32 %v4927, %v4928
      %v4930 = vsel %vm669, %v4724, 0.0
      %v4931 = vadd.f32 %v4929, %v4930
      %v4932 = vsel %vm669, %v4725, 0.0
      %v4933 = vadd.f32 %v4931, %v4932
      %v4934 = vsel %vm669, %v4726, 0.0
      %v4935 = vadd.f32 %v4933, %v4934
      %v4936 = vsel %vm669, %v4727, 0.0
      %v4937 = vadd.f32 %v4935, %v4936
      %v4938 = vsel %vm669, %v4728, 0.0
      %v4939 = vadd.f32 %v4937, %v4938
      %v4940 = vsel %vm669, %v4729, 0.0
      %v4941 = vadd.f32 %v4939, %v4940
      %v4942 = vsel %vm669, %v4730, 0.0
      %v4943 = vadd.f32 %v4941, %v4942
      %v4944 = vsel %vm669, %v4731, 0.0
      %v4945 = vadd.f32 %v4943, %v4944
      %v4946 = vsel %vm669, %v4732, 0.0
      %v4947 = vadd.f32 %v4945, %v4946
      %v4948 = vsel %vm669, %v4733, 0.0
      %v4949 = vadd.f32 %v4947, %v4948
      %v4950 = vsel %vm669, %v4734, 0.0
      %v4951 = vadd.f32 %v4949, %v4950
      %v4952 = vsel %vm669, %v4735, 0.0
      %v4953 = vadd.f32 %v4951, %v4952
      %v4954 = vsel %vm669, %v4736, 0.0
      %v4955 = vadd.f32 %v4953, %v4954
      %v4956 = vsel %vm669, %v4737, 0.0
      %v4957 = vadd.f32 %v4955, %v4956
      %v4958 = vsel %vm669, %v4738, 0.0
      %v4959 = vadd.f32 %v4957, %v4958
      %v4960 = vsel %vm669, %v4739, 0.0
      %v4961 = vadd.f32 %v4959, %v4960
      %v4962 = vsel %vm669, %v4740, 0.0
      %v4963 = vadd.f32 %v4961, %v4962
      %v4964 = vsel %vm669, %v4741, 0.0
      %v4965 = vadd.f32 %v4963, %v4964
      %v4966 = vrot.slane %v4965, 4
      %v4967 = vadd.f32 %v4965, %v4966
      %v4968 = vrot.slane %v4967, 2
      %v4969 = vadd.f32 %v4967, %v4968
      %v4970 = vrot.slane %v4969, 1
      %v4971 = vadd.f32 %v4969, %v4970
      %vm4972 = vcmask 24576
      %4973 = vst.msk [vmem:[%s181] sm:$0x1] %vm4972, %v4971
      %v4974 = vmul.f32 %v4710, %v4710
      %v4975 = vmul.f32 %v4711, %v4711
      %v4976 = vmul.f32 %v4712, %v4712
      %v4977 = vmul.f32 %v4713, %v4713
      %v4978 = vmul.f32 %v4714, %v4714
      %v4979 = vmul.f32 %v4715, %v4715
      %v4980 = vmul.f32 %v4716, %v4716
      %v4981 = vmul.f32 %v4717, %v4717
      %v4982 = vmul.f32 %v4718, %v4718
      %v4983 = vmul.f32 %v4719, %v4719
      %v4984 = vmul.f32 %v4720, %v4720
      %v4985 = vmul.f32 %v4721, %v4721
      %v4986 = vmul.f32 %v4722, %v4722
      %v4987 = vmul.f32 %v4723, %v4723
      %v4988 = vmul.f32 %v4724, %v4724
      %v4989 = vmul.f32 %v4725, %v4725
      %v4990 = vmul.f32 %v4726, %v4726
      %v4991 = vmul.f32 %v4727, %v4727
      %v4992 = vmul.f32 %v4728, %v4728
      %v4993 = vmul.f32 %v4729, %v4729
      %v4994 = vmul.f32 %v4730, %v4730
      %v4995 = vmul.f32 %v4731, %v4731
      %v4996 = vmul.f32 %v4732, %v4732
      %v4997 = vmul.f32 %v4733, %v4733
      %v4998 = vmul.f32 %v4734, %v4734
      %v4999 = vmul.f32 %v4735, %v4735
      %v5000 = vmul.f32 %v4736, %v4736
      %v5001 = vmul.f32 %v4737, %v4737
      %v5002 = vmul.f32 %v4738, %v4738
      %v5003 = vmul.f32 %v4739, %v4739
      %v5004 = vmul.f32 %v4740, %v4740
      %v5005 = vmul.f32 %v4741, %v4741
      %v5006 = vsel %vm669, %v4974, 0.0
      %v5007 = vsel %vm669, %v4975, 0.0
      %v5008 = vadd.f32 %v5006, %v5007
      %v5009 = vsel %vm669, %v4976, 0.0
      %v5010 = vadd.f32 %v5008, %v5009
      %v5011 = vsel %vm669, %v4977, 0.0
      %v5012 = vadd.f32 %v5010, %v5011
      %v5013 = vsel %vm669, %v4978, 0.0
      %v5014 = vadd.f32 %v5012, %v5013
      %v5015 = vsel %vm669, %v4979, 0.0
      %v5016 = vadd.f32 %v5014, %v5015
      %v5017 = vsel %vm669, %v4980, 0.0
      %v5018 = vadd.f32 %v5016, %v5017
      %v5019 = vsel %vm669, %v4981, 0.0
      %v5020 = vadd.f32 %v5018, %v5019
      %v5021 = vsel %vm669, %v4982, 0.0
      %v5022 = vadd.f32 %v5020, %v5021
      %v5023 = vsel %vm669, %v4983, 0.0
      %v5024 = vadd.f32 %v5022, %v5023
      %v5025 = vsel %vm669, %v4984, 0.0
      %v5026 = vadd.f32 %v5024, %v5025
      %v5027 = vsel %vm669, %v4985, 0.0
      %v5028 = vadd.f32 %v5026, %v5027
      %v5029 = vsel %vm669, %v4986, 0.0
      %v5030 = vadd.f32 %v5028, %v5029
      %v5031 = vsel %vm669, %v4987, 0.0
      %v5032 = vadd.f32 %v5030, %v5031
      %v5033 = vsel %vm669, %v4988, 0.0
      %v5034 = vadd.f32 %v5032, %v5033
      %v5035 = vsel %vm669, %v4989, 0.0
      %v5036 = vadd.f32 %v5034, %v5035
      %v5037 = vsel %vm669, %v4990, 0.0
      %v5038 = vadd.f32 %v5036, %v5037
      %v5039 = vsel %vm669, %v4991, 0.0
      %v5040 = vadd.f32 %v5038, %v5039
      %v5041 = vsel %vm669, %v4992, 0.0
      %v5042 = vadd.f32 %v5040, %v5041
      %v5043 = vsel %vm669, %v4993, 0.0
      %v5044 = vadd.f32 %v5042, %v5043
      %v5045 = vsel %vm669, %v4994, 0.0
      %v5046 = vadd.f32 %v5044, %v5045
      %v5047 = vsel %vm669, %v4995, 0.0
      %v5048 = vadd.f32 %v5046, %v5047
      %v5049 = vsel %vm669, %v4996, 0.0
      %v5050 = vadd.f32 %v5048, %v5049
      %v5051 = vsel %vm669, %v4997, 0.0
      %v5052 = vadd.f32 %v5050, %v5051
      %v5053 = vsel %vm669, %v4998, 0.0
      %v5054 = vadd.f32 %v5052, %v5053
      %v5055 = vsel %vm669, %v4999, 0.0
      %v5056 = vadd.f32 %v5054, %v5055
      %v5057 = vsel %vm669, %v5000, 0.0
      %v5058 = vadd.f32 %v5056, %v5057
      %v5059 = vsel %vm669, %v5001, 0.0
      %v5060 = vadd.f32 %v5058, %v5059
      %v5061 = vsel %vm669, %v5002, 0.0
      %v5062 = vadd.f32 %v5060, %v5061
      %v5063 = vsel %vm669, %v5003, 0.0
      %v5064 = vadd.f32 %v5062, %v5063
      %v5065 = vsel %vm669, %v5004, 0.0
      %v5066 = vadd.f32 %v5064, %v5065
      %v5067 = vsel %vm669, %v5005, 0.0
      %v5068 = vadd.f32 %v5066, %v5067
      %v5069 = vrot.slane %v5068, 4
      %v5070 = vadd.f32 %v5068, %v5069
      %v5071 = vrot.slane %v5070, 2
      %v5072 = vadd.f32 %v5070, %v5071
      %v5073 = vrot.slane %v5072, 1
      %v5074 = vadd.f32 %v5072, %v5073
      %5075 = vst.msk [vmem:[%s181 + $0x1] sm:$0x1] %vm4972, %v5074
      %p5076 = scmp.lt.s32.totalorder %s15, 1
      %s5077 = scalar_select %p5076, %s15, 1
      %s5078 = smul.addr %s5077, 32
      %s5079 = smul.addr %s5078, 4
      %s5080 = scalar_lea.vmem %s2, %s5079
      %p5081 = scmp.lt.s32.totalorder %s15, 1
      %s5082 = scalar_select %p5081, %s15, 1
      %s5083 = smul.addr %s5082, 2
      %s5084 = scalar_lea.vmem %s3, %s5083
      // Predicated region
      $region29: #{basic_res_block_2d.3} parent=27 // pred_check
        %p5085 = pneg %p80
      $region30: #{basic_res_block_2d.3} parent=27 // pred_check_branch
        %5087 = sbr.rel (%p5085) target = $region32
      $region31: #{basic_res_block_2d.3} parent=27 // pred_region
        _
      $region32: #{basic_res_block_2d.3} parent=27 // pred_fallthru
        _
      // Predicated region
      $region33: #{basic_res_block_2d.3} parent=27 // pred_check
        %p5088 = pneg %p106
      $region34: #{basic_res_block_2d.3} parent=27 // pred_check_branch
        %5090 = sbr.rel (%p5088) target = $region36
      $region35: #{basic_res_block_2d.3} parent=27 // pred_region
        _
      $region36: #{basic_res_block_2d.3} parent=27 // pred_fallthru
        _
    $region28: #{basic_res_block_2d.3} parent=5 // pred_fallthru
      _
    %p5091 = scmp.le.s32.totalorder 2, %s10
    // Predicated region
    $region37: #{basic_res_block_2d.3} parent=5 // pred_check
      %p5092 = pneg %p5091
    $region38: #{basic_res_block_2d.3} parent=5 // pred_check_branch
      %5094 = sbr.rel (%p5092) target = $region40
    $region39: #{basic_res_block_2d.3} parent=5 // pred_region
      %s5095 = ssub.s32 %s10, 2
      // Predicated region
      $region41: #{basic_res_block_2d.3} parent=39 // pred_check
        %p5096 = pneg %p86
      $region42: #{basic_res_block_2d.3} parent=39 // pred_check_branch
        %5098 = sbr.rel (%p5096) target = $region44
      $region43: #{basic_res_block_2d.3} parent=39 // pred_region
        %p5099 = scmp.lt.s32.totalorder %s16, 1
        %s5100 = scalar_select %p5099, %s16, 1
        %s5101 = smul.addr %s5100, 32
        %s5102 = smul.addr %s5101, 4
        %s5103 = scalar_lea.vmem %s2, %s5102
      $region44: #{basic_res_block_2d.3} parent=39 // pred_fallthru
        _
      // Predicated region
      $region45: #{basic_res_block_2d.3} parent=39 // pred_check
        %p5104 = pneg %p112
      $region46: #{basic_res_block_2d.3} parent=39 // pred_check_branch
        %5106 = sbr.rel (%p5104) target = $region48
      $region47: #{basic_res_block_2d.3} parent=39 // pred_region
        %p5107 = scmp.lt.s32.totalorder %s16, 1
        %s5108 = scalar_select %p5107, %s16, 1
        %s5109 = smul.addr %s5108, 2
        %s5110 = scalar_lea.vmem %s3, %s5109
      $region48: #{basic_res_block_2d.3} parent=39 // pred_fallthru
        _
    $region40: #{basic_res_block_2d.3} parent=5 // pred_fallthru
      _
  $region6: #{basic_res_block_2d.3} parent=0 // loop_footer
    %s14 = sadd.s32 1, %s10
  $region7: #{basic_res_block_2d.3} parent=0 // loop_footer_branch
    %9 = sbr.rel target = $region3
  $region8: #{basic_res_block_2d.3} parent=0 // loop_exit
    _

// kernel: basic_res_block_2d.4
$region0: #{basic_res_block_2d.4}
  #allocation0 [shape = 'u32[]', space=smem, size = 0x4, offset = 0x4, fixed_abs, tag = 'smem constant byte address 0x4 - core index']
  #allocation1 [shape = 'u32[144,128]{1,0:T(1,128)}', space=vmem, size = 0x12000, scoped, tag = 'internal scratch']
  #allocation2 [shape = 'bf16[18,18,4]{2,1,0:T(8,128)(2,1)}', space=vmem, size = 0x1b000, scoped, tag = 'scratch operand']
  %s0 = inlined_call_operand.vmem [shape: bf16[2,256,4], index: 0, kind: input, shape index: {}]
  %s1 = inlined_call_operand.vmem [shape: bf16[9,4,4], index: 1, kind: input, shape index: {}]
  %s2 = inlined_call_operand.vmem [shape: f32[1,4], index: 2, kind: input, shape index: {}]
  %s3 = inlined_call_operand.vmem [shape: f32[1,4], index: 3, kind: input, shape index: {}]
  %s4 = inlined_call_operand.vmem [shape: bf16[2,256,4], index: 4, kind: output, shape index: {0}]
  %s5 = inlined_call_operand.vmem [shape: f32[2,2,4], index: 5, kind: output, shape index: {1}]
  %6 = xla_tuple %s4, %s5
  %s7 = sld [smem:[#allocation0]]
  $region57: #{basic_res_block_2d.4} parent=0
    _
  %s9 = ssub.s32 1, %s7
  %s10 = scalar_select 0, %s9, %s7
  loop: start=0, step=1, limit=4
  $region2: #{basic_res_block_2d.4} parent=0 // loop_pre_header
    _
  $region3: #{basic_res_block_2d.4} parent=0 // loop_header
    %s12 = sphi 0, %s16
    %p13 = scmp.ge.s32.totalorder %s12, 4
    %s22 = sphi 0, %s24
    %s25 = sphi 0, %s22
    %s26 = sphi 0, %s25
    %s42 = sphi 0, %s26
    %s46 = sphi 0, %s46
    %s48 = sphi 0, %s46
    %s49 = sphi 0, %s48
    %s63 = sphi 0, %s49
    %s67 = sphi 0, %s67
    %s69 = sphi 0, %s67
    %s70 = sphi 0, %s69
    %s84 = sphi 0, %s70
    %s88 = sphi 0, %s88
    %s90 = sphi 0, %s88
    %s91 = sphi 0, %s90
    %s105 = sphi 0, %s91
    %s111 = sphi 0, %s113
    %s114 = sphi 0, %s111
    %s115 = sphi 0, %s114
    %s131 = sphi 0, %s115
    %s137 = sphi 0, %s139
    %s140 = sphi 0, %s137
    %s141 = sphi 0, %s140
    %s157 = sphi 0, %s141
  $region4: #{basic_res_block_2d.4} parent=0 // loop_header_branch
    %15 = sbr.rel (%p13) target = $region8
  $region5: #{basic_res_block_2d.4} parent=0 // loop_body
    %s17 = ssub.s32 %s12, 1
    %s18 = ssub.s32 %s12, 2
    %s19 = sadd.s32 %s12, 1
    %s20 = ssub.s32 %s12, %s19
    %p21 = scmp.eq.s32.totalorder %s20, 0
    %s23 = sadd.s32 %s22, 1
    %s24 = scalar_select %p21, %s22, %s23
    %p27 = pneg %p21
    %p28 = scmp.eq.s32.totalorder %s12, 1
    %p29 = por %p27, %p28
    %p30 = scmp.ne.s32.totalorder %s22, %s25
    %p31 = scmp.eq.s32.totalorder %s12, 0
    %p32 = por %p30, %p31
    %p33 = scmp.ne.s32.totalorder %s22, %s25
    %p34 = scmp.eq.s32.totalorder %s17, 1
    %p35 = por %p33, %p34
    %p36 = scmp.ne.s32.totalorder %s25, %s26
    %p37 = scmp.eq.s32.totalorder %s17, 0
    %p38 = por %p36, %p37
    %p39 = scmp.ne.s32.totalorder %s25, %s26
    %p40 = scmp.eq.s32.totalorder %s18, 1
    %p41 = por %p39, %p40
    %p43 = scmp.ne.s32.totalorder %s26, %s42
    %p44 = scmp.eq.s32.totalorder %s18, 0
    %p45 = por %p43, %p44
    %s47 = sadd.s32 %s46, 1
    %p50 = scmp.eq.s32.totalorder %s12, 1
    %p51 = scmp.ne.s32.totalorder %s46, %s48
    %p52 = scmp.eq.s32.totalorder %s12, 0
    %p53 = por %p51, %p52
    %p54 = scmp.ne.s32.totalorder %s46, %s48
    %p55 = scmp.eq.s32.totalorder %s17, 1
    %p56 = por %p54, %p55
    %p57 = scmp.ne.s32.totalorder %s48, %s49
    %p58 = scmp.eq.s32.totalorder %s17, 0
    %p59 = por %p57, %p58
    %p60 = scmp.ne.s32.totalorder %s48, %s49
    %p61 = scmp.eq.s32.totalorder %s18, 1
    %p62 = por %p60, %p61
    %p64 = scmp.ne.s32.totalorder %s49, %s63
    %p65 = scmp.eq.s32.totalorder %s18, 0
    %p66 = por %p64, %p65
    %s68 = sadd.s32 %s67, 1
    %p71 = scmp.eq.s32.totalorder %s12, 1
    %p72 = scmp.ne.s32.totalorder %s67, %s69
    %p73 = scmp.eq.s32.totalorder %s12, 0
    %p74 = por %p72, %p73
    %p75 = scmp.ne.s32.totalorder %s67, %s69
    %p76 = scmp.eq.s32.totalorder %s17, 1
    %p77 = por %p75, %p76
    %p78 = scmp.ne.s32.totalorder %s69, %s70
    %p79 = scmp.eq.s32.totalorder %s17, 0
    %p80 = por %p78, %p79
    %p81 = scmp.ne.s32.totalorder %s69, %s70
    %p82 = scmp.eq.s32.totalorder %s18, 1
    %p83 = por %p81, %p82
    %p85 = scmp.ne.s32.totalorder %s70, %s84
    %p86 = scmp.eq.s32.totalorder %s18, 0
    %p87 = por %p85, %p86
    %s89 = sadd.s32 %s88, 1
    %p92 = scmp.eq.s32.totalorder %s12, 1
    %p93 = scmp.ne.s32.totalorder %s88, %s90
    %p94 = scmp.eq.s32.totalorder %s12, 0
    %p95 = por %p93, %p94
    %p96 = scmp.ne.s32.totalorder %s88, %s90
    %p97 = scmp.eq.s32.totalorder %s17, 1
    %p98 = por %p96, %p97
    %p99 = scmp.ne.s32.totalorder %s90, %s91
    %p100 = scmp.eq.s32.totalorder %s17, 0
    %p101 = por %p99, %p100
    %p102 = scmp.ne.s32.totalorder %s90, %s91
    %p103 = scmp.eq.s32.totalorder %s18, 1
    %p104 = por %p102, %p103
    %p106 = scmp.ne.s32.totalorder %s91, %s105
    %p107 = scmp.eq.s32.totalorder %s18, 0
    %p108 = por %p106, %p107
    %s109 = ssub.s32 %s12, %s19
    %p110 = scmp.eq.s32.totalorder %s109, 0
    %s112 = sadd.s32 %s111, 1
    %s113 = scalar_select %p110, %s111, %s112
    %p116 = pneg %p110
    %p117 = scmp.eq.s32.totalorder %s12, 1
    %p118 = por %p116, %p117
    %p119 = scmp.ne.s32.totalorder %s111, %s114
    %p120 = scmp.eq.s32.totalorder %s12, 0
    %p121 = por %p119, %p120
    %p122 = scmp.ne.s32.totalorder %s111, %s114
    %p123 = scmp.eq.s32.totalorder %s17, 1
    %p124 = por %p122, %p123
    %p125 = scmp.ne.s32.totalorder %s114, %s115
    %p126 = scmp.eq.s32.totalorder %s17, 0
    %p127 = por %p125, %p126
    %p128 = scmp.ne.s32.totalorder %s114, %s115
    %p129 = scmp.eq.s32.totalorder %s18, 1
    %p130 = por %p128, %p129
    %p132 = scmp.ne.s32.totalorder %s115, %s131
    %p133 = scmp.eq.s32.totalorder %s18, 0
    %p134 = por %p132, %p133
    %s135 = ssub.s32 %s12, %s19
    %p136 = scmp.eq.s32.totalorder %s135, 0
    %s138 = sadd.s32 %s137, 1
    %s139 = scalar_select %p136, %s137, %s138
    %p142 = pneg %p136
    %p143 = scmp.eq.s32.totalorder %s12, 1
    %p144 = por %p142, %p143
    %p145 = scmp.ne.s32.totalorder %s137, %s140
    %p146 = scmp.eq.s32.totalorder %s12, 0
    %p147 = por %p145, %p146
    %p148 = scmp.ne.s32.totalorder %s137, %s140
    %p149 = scmp.eq.s32.totalorder %s17, 1
    %p150 = por %p148, %p149
    %p151 = scmp.ne.s32.totalorder %s140, %s141
    %p152 = scmp.eq.s32.totalorder %s17, 0
    %p153 = por %p151, %p152
    %p154 = scmp.ne.s32.totalorder %s140, %s141
    %p155 = scmp.eq.s32.totalorder %s18, 1
    %p156 = por %p154, %p155
    %p158 = scmp.ne.s32.totalorder %s141, %s157
    %p159 = scmp.eq.s32.totalorder %s18, 0
    %p160 = por %p158, %p159
    %p161 = scmp.le.s32.totalorder 1, %s12
    %p162 = scmp.lt.s32.totalorder %s12, 3
    %p163 = pnand %p161, %p162
    %p164 = pneg %p163
    // Predicated region
    $region9: #{basic_res_block_2d.4} parent=5 // pred_check
      _
    $region10: #{basic_res_block_2d.4} parent=5 // pred_check_branch
      %166 = sbr.rel (%p163) target = $region12
    $region11: #{basic_res_block_2d.4} parent=5 // pred_region
      %s167 = ssub.s32 %s12, 1
      // Predicated region
      $region13: #{basic_res_block_2d.4} parent=11 // pred_check
        %p168 = pneg %p59
      $region14: #{basic_res_block_2d.4} parent=11 // pred_check_branch
        %170 = sbr.rel (%p168) target = $region16
      $region15: #{basic_res_block_2d.4} parent=11 // pred_region
        _
      $region16: #{basic_res_block_2d.4} parent=11 // pred_fallthru
        _
      // Predicated region
      $region17: #{basic_res_block_2d.4} parent=11 // pred_check
        %p171 = pneg %p80
      $region18: #{basic_res_block_2d.4} parent=11 // pred_check_branch
        %173 = sbr.rel (%p171) target = $region20
      $region19: #{basic_res_block_2d.4} parent=11 // pred_region
        _
      $region20: #{basic_res_block_2d.4} parent=11 // pred_fallthru
        _
      // Predicated region
      $region21: #{basic_res_block_2d.4} parent=11 // pred_check
        %p174 = pneg %p101
      $region22: #{basic_res_block_2d.4} parent=11 // pred_check_branch
        %176 = sbr.rel (%p174) target = $region24
      $region23: #{basic_res_block_2d.4} parent=11 // pred_region
        _
      $region24: #{basic_res_block_2d.4} parent=11 // pred_fallthru
        _
    $region12: #{basic_res_block_2d.4} parent=5 // pred_fallthru
      _
    %p177 = scmp.lt.s32.totalorder %s12, 2
    // Predicated region
    $region25: #{basic_res_block_2d.4} parent=5 // pred_check
      %p178 = pneg %p177
    $region26: #{basic_res_block_2d.4} parent=5 // pred_check_branch
      %180 = sbr.rel (%p178) target = $region28
    $region27: #{basic_res_block_2d.4} parent=5 // pred_region
      // Predicated region
      $region29: #{basic_res_block_2d.4} parent=27 // pred_check
        %p181 = pneg %p32
      $region30: #{basic_res_block_2d.4} parent=27 // pred_check_branch
        %183 = sbr.rel (%p181) target = $region32
      $region31: #{basic_res_block_2d.4} parent=27 // pred_region
        %p184 = scmp.lt.s32.totalorder %s12, 1
        %s185 = scalar_select %p184, %s12, 1
        %s186 = smul.addr %s185, 32
        %s187 = smul.addr %s186, 4
        %s188 = scalar_lea.vmem %s0, %s187
      $region32: #{basic_res_block_2d.4} parent=27 // pred_fallthru
        _
    $region28: #{basic_res_block_2d.4} parent=5 // pred_fallthru
      _
    %p189 = scmp.le.s32.totalorder 1, %s12
    %p190 = scmp.lt.s32.totalorder %s12, 3
    %p191 = pnand %p189, %p190
    %p192 = pneg %p191
    // Predicated region
    $region33: #{basic_res_block_2d.4} parent=5 // pred_check
      _
    $region34: #{basic_res_block_2d.4} parent=5 // pred_check_branch
      %194 = sbr.rel (%p191) target = $region36
    $region35: #{basic_res_block_2d.4} parent=5 // pred_region
      %s195 = ssub.s32 %s12, 1
      %p196 = scmp.lt.s32.totalorder %s17, 1
      %s197 = scalar_select %p196, %s17, 1
      %s198 = smul.addr %s197, 32
      %s199 = smul.addr %s198, 4
      %s200 = scalar_lea.vmem %s0, %s199
      %p201 = pneg %p38
      %p202 = pneg %p35
      %p203 = pneg %p59
      %p204 = pneg %p56
      %p205 = pneg %p80
      %p206 = pneg %p77
      %p207 = pneg %p101
      %p208 = pneg %p98
      %p209 = pneg %p127
      %p210 = pneg %p124
      %p211 = scmp.lt.s32.totalorder %s17, 1
      %s212 = scalar_select %p211, %s17, 1
      %s213 = smul.addr %s212, 32
      %s214 = smul.addr %s213, 4
      %s215 = scalar_lea.vmem %s4, %s214
      %p216 = pneg %p153
      %p217 = pneg %p150
      %p218 = scmp.lt.s32.totalorder %s17, 1
      %s219 = scalar_select %p218, %s17, 1
      %s220 = smul.addr %s219, 2
      %s221 = scalar_lea.vmem %s5, %s220
      %p222 = scmp.lt.s32.totalorder %s17, 1
      %s223 = scalar_select %p222, %s17, 1
      %s224 = smul.addr %s223, 32
      %s225 = smul.addr %s224, 4
      %s226 = scalar_lea.vmem %s0, %s225
      %p227 = scmp.lt.s32.totalorder %s17, 1
      %s228 = scalar_select %p227, %s17, 1
      %s229 = smul.addr %s228, 32
      %s230 = smul.addr %s229, 4
      %s231 = scalar_lea.vmem %s4, %s230
      %p232 = scmp.lt.s32.totalorder %s17, 1
      %s233 = scalar_select %p232, %s17, 1
      %s234 = smul.addr %s233, 2
      %s235 = scalar_lea.vmem %s5, %s234
      %vm237 = vcmask 27648
      %238 = vst.msk [vmem:[#allocation2] sm:$0xf] %vm237, 0
      %239 = vst.msk [vmem:[#allocation2 + $0x4] sm:$0xf] %vm237, 0
      %vm240 = vcmask 24576
      %241 = vst.msk [vmem:[#allocation2 + $0x8] sm:$0x1] %vm240, 0
      %s242 = scalar_lea.vmem [#allocation2], 204
      %243 = vst.msk [vmem:[%s242] sm:$0xf] %vm237, 0
      %244 = vst.msk [vmem:[%s242 + $0x4] sm:$0xf] %vm237, 0
      %245 = vst.msk [vmem:[%s242 + $0x8] sm:$0x1] %vm240, 0
      %vm246 = vcmask 24576
      %vm247 = vsmask.f32 256
      %vm248 = vmand %vm246, %vm247
      %v249 = vld [vmem:[#allocation2] sm:$0x1]
      %v250 = vsel %vm248, 0, %v249
      %251 = vst [vmem:[#allocation2] sm:$0x1] %v250
      %v252 = vld [vmem:[#allocation2 + $0xc] sm:$0x1]
      %v253 = vsel %vm248, 0, %v252
      %254 = vst [vmem:[#allocation2 + $0xc] sm:$0x1] %v253
      %v255 = vld [vmem:[#allocation2 + $0x18] sm:$0x1]
      %v256 = vsel %vm248, 0, %v255
      %257 = vst [vmem:[#allocation2 + $0x18] sm:$0x1] %v256
      %v258 = vld [vmem:[#allocation2 + $0x24] sm:$0x1]
      %v259 = vsel %vm248, 0, %v258
      %260 = vst [vmem:[#allocation2 + $0x24] sm:$0x1] %v259
      %v261 = vld [vmem:[#allocation2 + $0x30] sm:$0x1]
      %v262 = vsel %vm248, 0, %v261
      %263 = vst [vmem:[#allocation2 + $0x30] sm:$0x1] %v262
      %v264 = vld [vmem:[#allocation2 + $0x3c] sm:$0x1]
      %v265 = vsel %vm248, 0, %v264
      %266 = vst [vmem:[#allocation2 + $0x3c] sm:$0x1] %v265
      %v267 = vld [vmem:[#allocation2 + $0x48] sm:$0x1]
      %v268 = vsel %vm248, 0, %v267
      %269 = vst [vmem:[#allocation2 + $0x48] sm:$0x1] %v268
      %v270 = vld [vmem:[#allocation2 + $0x54] sm:$0x1]
      %v271 = vsel %vm248, 0, %v270
      %272 = vst [vmem:[#allocation2 + $0x54] sm:$0x1] %v271
      %v273 = vld [vmem:[#allocation2 + $0x60] sm:$0x1]
      %v274 = vsel %vm248, 0, %v273
      %275 = vst [vmem:[#allocation2 + $0x60] sm:$0x1] %v274
      %v276 = vld [vmem:[#allocation2 + $0x6c] sm:$0x1]
      %v277 = vsel %vm248, 0, %v276
      %278 = vst [vmem:[#allocation2 + $0x6c] sm:$0x1] %v277
      %v279 = vld [vmem:[#allocation2 + $0x78] sm:$0x1]
      %v280 = vsel %vm248, 0, %v279
      %281 = vst [vmem:[#allocation2 + $0x78] sm:$0x1] %v280
      %v282 = vld [vmem:[#allocation2 + $0x84] sm:$0x1]
      %v283 = vsel %vm248, 0, %v282
      %284 = vst [vmem:[#allocation2 + $0x84] sm:$0x1] %v283
      %v285 = vld [vmem:[#allocation2 + $0x90] sm:$0x1]
      %v286 = vsel %vm248, 0, %v285
      %287 = vst [vmem:[#allocation2 + $0x90] sm:$0x1] %v286
      %v288 = vld [vmem:[#allocation2 + $0x9c] sm:$0x1]
      %v289 = vsel %vm248, 0, %v288
      %290 = vst [vmem:[#allocation2 + $0x9c] sm:$0x1] %v289
      %v291 = vld [vmem:[#allocation2 + $0xa8] sm:$0x1]
      %v292 = vsel %vm248, 0, %v291
      %293 = vst [vmem:[#allocation2 + $0xa8] sm:$0x1] %v292
      %v294 = vld [vmem:[#allocation2 + $0xb4] sm:$0x1]
      %v295 = vsel %vm248, 0, %v294
      %296 = vst [vmem:[#allocation2 + $0xb4] sm:$0x1] %v295
      %v297 = vld [vmem:[#allocation2 + $0xc0] sm:$0x1]
      %v298 = vsel %vm248, 0, %v297
      %299 = vst [vmem:[#allocation2 + $0xc0] sm:$0x1] %v298
      %v300 = vld [vmem:[#allocation2 + $0xcc] sm:$0x1]
      %v301 = vsel %vm248, 0, %v300
      %302 = vst [vmem:[#allocation2 + $0xcc] sm:$0x1] %v301
      %vm303 = vsmask.f32 7938
      %vm304 = vmand %vm246, %vm303
      %v305 = vld [vmem:[#allocation2 + $0x8] sm:$0x1]
      %v306 = vsel %vm304, 0, %v305
      %307 = vst [vmem:[#allocation2 + $0x8] sm:$0x1] %v306
      %v308 = vld [vmem:[#allocation2 + $0x14] sm:$0x1]
      %v309 = vsel %vm304, 0, %v308
      %310 = vst [vmem:[#allocation2 + $0x14] sm:$0x1] %v309
      %v311 = vld [vmem:[#allocation2 + $0x20] sm:$0x1]
      %v312 = vsel %vm304, 0, %v311
      %313 = vst [vmem:[#allocation2 + $0x20] sm:$0x1] %v312
      %v314 = vld [vmem:[#allocation2 + $0x2c] sm:$0x1]
      %v315 = vsel %vm304, 0, %v314
      %316 = vst [vmem:[#allocation2 + $0x2c] sm:$0x1] %v315
      %v317 = vld [vmem:[#allocation2 + $0x38] sm:$0x1]
      %v318 = vsel %vm304, 0, %v317
      %319 = vst [vmem:[#allocation2 + $0x38] sm:$0x1] %v318
      %v320 = vld [vmem:[#allocation2 + $0x44] sm:$0x1]
      %v321 = vsel %vm304, 0, %v320
      %322 = vst [vmem:[#allocation2 + $0x44] sm:$0x1] %v321
      %v323 = vld [vmem:[#allocation2 + $0x50] sm:$0x1]
      %v324 = vsel %vm304, 0, %v323
      %325 = vst [vmem:[#allocation2 + $0x50] sm:$0x1] %v324
      %v326 = vld [vmem:[#allocation2 + $0x5c] sm:$0x1]
      %v327 = vsel %vm304, 0, %v326
      %328 = vst [vmem:[#allocation2 + $0x5c] sm:$0x1] %v327
      %v329 = vld [vmem:[#allocation2 + $0x68] sm:$0x1]
      %v330 = vsel %vm304, 0, %v329
      %331 = vst [vmem:[#allocation2 + $0x68] sm:$0x1] %v330
      %v332 = vld [vmem:[#allocation2 + $0x74] sm:$0x1]
      %v333 = vsel %vm304, 0, %v332
      %334 = vst [vmem:[#allocation2 + $0x74] sm:$0x1] %v333
      %v335 = vld [vmem:[#allocation2 + $0x80] sm:$0x1]
      %v336 = vsel %vm304, 0, %v335
      %337 = vst [vmem:[#allocation2 + $0x80] sm:$0x1] %v336
      %v338 = vld [vmem:[#allocation2 + $0x8c] sm:$0x1]
      %v339 = vsel %vm304, 0, %v338
      %340 = vst [vmem:[#allocation2 + $0x8c] sm:$0x1] %v339
      %v341 = vld [vmem:[#allocation2 + $0x98] sm:$0x1]
      %v342 = vsel %vm304, 0, %v341
      %343 = vst [vmem:[#allocation2 + $0x98] sm:$0x1] %v342
      %v344 = vld [vmem:[#allocation2 + $0xa4] sm:$0x1]
      %v345 = vsel %vm304, 0, %v344
      %346 = vst [vmem:[#allocation2 + $0xa4] sm:$0x1] %v345
      %v347 = vld [vmem:[#allocation2 + $0xb0] sm:$0x1]
      %v348 = vsel %vm304, 0, %v347
      %349 = vst [vmem:[#allocation2 + $0xb0] sm:$0x1] %v348
      %v350 = vld [vmem:[#allocation2 + $0xbc] sm:$0x1]
      %v351 = vsel %vm304, 0, %v350
      %352 = vst [vmem:[#allocation2 + $0xbc] sm:$0x1] %v351
      %v353 = vld [vmem:[#allocation2 + $0xc8] sm:$0x1]
      %v354 = vsel %vm304, 0, %v353
      %355 = vst [vmem:[#allocation2 + $0xc8] sm:$0x1] %v354
      %v356 = vld [vmem:[#allocation2 + $0xd4] sm:$0x1]
      %v357 = vsel %vm304, 0, %v356
      %358 = vst [vmem:[#allocation2 + $0xd4] sm:$0x1] %v357
      %v359 = vld [vmem:[%s226] sm:$0xf]
      %v360 = vld [vmem:[%s226 + $0x4] sm:$0xf]
      %v361 = vld [vmem:[%s226 + $0x8] sm:$0xf]
      %v362 = vld [vmem:[%s226 + $0xc] sm:$0xf]
      %v363 = vld [vmem:[%s226 + $0x10] sm:$0xf]
      %v364 = vld [vmem:[%s226 + $0x14] sm:$0xf]
      %v365 = vld [vmem:[%s226 + $0x18] sm:$0xf]
      %v366 = vld [vmem:[%s226 + $0x1c] sm:$0xf]
      %v367 = vld [vmem:[%s226 + $0x20] sm:$0xf]
      %v368 = vld [vmem:[%s226 + $0x24] sm:$0xf]
      %v369 = vld [vmem:[%s226 + $0x28] sm:$0xf]
      %v370 = vld [vmem:[%s226 + $0x2c] sm:$0xf]
      %v371 = vld [vmem:[%s226 + $0x30] sm:$0xf]
      %v372 = vld [vmem:[%s226 + $0x34] sm:$0xf]
      %v373 = vld [vmem:[%s226 + $0x38] sm:$0xf]
      %v374 = vld [vmem:[%s226 + $0x3c] sm:$0xf]
      %v375 = vld [vmem:[%s226 + $0x40] sm:$0xf]
      %v376 = vld [vmem:[%s226 + $0x44] sm:$0xf]
      %v377 = vld [vmem:[%s226 + $0x48] sm:$0xf]
      %v378 = vld [vmem:[%s226 + $0x4c] sm:$0xf]
      %v379 = vld [vmem:[%s226 + $0x50] sm:$0xf]
      %v380 = vld [vmem:[%s226 + $0x54] sm:$0xf]
      %v381 = vld [vmem:[%s226 + $0x58] sm:$0xf]
      %v382 = vld [vmem:[%s226 + $0x5c] sm:$0xf]
      %v383 = vld [vmem:[%s226 + $0x60] sm:$0xf]
      %v384 = vld [vmem:[%s226 + $0x64] sm:$0xf]
      %v385 = vld [vmem:[%s226 + $0x68] sm:$0xf]
      %v386 = vld [vmem:[%s226 + $0x6c] sm:$0xf]
      %v387 = vld [vmem:[%s226 + $0x70] sm:$0xf]
      %v388 = vld [vmem:[%s226 + $0x74] sm:$0xf]
      %v389 = vld [vmem:[%s226 + $0x78] sm:$0xf]
      %v390 = vld [vmem:[%s226 + $0x7c] sm:$0xf]
      %v391 = vunpack.c.l.bf16 %v359
      %v392 = vunpack.c.l.bf16 %v360
      %v393 = vunpack.c.l.bf16 %v361
      %v394 = vunpack.c.l.bf16 %v362
      %v395 = vunpack.c.l.bf16 %v363
      %v396 = vunpack.c.l.bf16 %v364
      %v397 = vunpack.c.l.bf16 %v365
      %v398 = vunpack.c.l.bf16 %v366
      %v399 = vunpack.c.l.bf16 %v367
      %v400 = vunpack.c.l.bf16 %v368
      %v401 = vunpack.c.l.bf16 %v369
      %v402 = vunpack.c.l.bf16 %v370
      %v403 = vunpack.c.l.bf16 %v371
      %v404 = vunpack.c.l.bf16 %v372
      %v405 = vunpack.c.l.bf16 %v373
      %v406 = vunpack.c.l.bf16 %v374
      %v407 = vunpack.c.l.bf16 %v375
      %v408 = vunpack.c.l.bf16 %v376
      %v409 = vunpack.c.l.bf16 %v377
      %v410 = vunpack.c.l.bf16 %v378
      %v411 = vunpack.c.l.bf16 %v379
      %v412 = vunpack.c.l.bf16 %v380
      %v413 = vunpack.c.l.bf16 %v381
      %v414 = vunpack.c.l.bf16 %v382
      %v415 = vunpack.c.l.bf16 %v383
      %v416 = vunpack.c.l.bf16 %v384
      %v417 = vunpack.c.l.bf16 %v385
      %v418 = vunpack.c.l.bf16 %v386
      %v419 = vunpack.c.l.bf16 %v387
      %v420 = vunpack.c.l.bf16 %v388
      %v421 = vunpack.c.l.bf16 %v389
      %v422 = vunpack.c.l.bf16 %v390
      %v423 = vld [vmem:[%s2] sm:$0x1]
      %v425 = vlaneseq
      %v426 = vshrl.u32 %v425, 7
      %v427 = vsub.s32 0, %v426
      %v428 = vrot.slane %v423, %v427
      %v430 = vmul.f32 %v391, %v428
      %v431 = vmul.f32 %v392, %v428
      %v432 = vmul.f32 %v393, %v428
      %v433 = vmul.f32 %v394, %v428
      %v434 = vmul.f32 %v395, %v428
      %v435 = vmul.f32 %v396, %v428
      %v436 = vmul.f32 %v397, %v428
      %v437 = vmul.f32 %v398, %v428
      %v438 = vmul.f32 %v399, %v428
      %v439 = vmul.f32 %v400, %v428
      %v440 = vmul.f32 %v401, %v428
      %v441 = vmul.f32 %v402, %v428
      %v442 = vmul.f32 %v403, %v428
      %v443 = vmul.f32 %v404, %v428
      %v444 = vmul.f32 %v405, %v428
      %v445 = vmul.f32 %v406, %v428
      %v446 = vmul.f32 %v407, %v428
      %v447 = vmul.f32 %v408, %v428
      %v448 = vmul.f32 %v409, %v428
      %v449 = vmul.f32 %v410, %v428
      %v450 = vmul.f32 %v411, %v428
      %v451 = vmul.f32 %v412, %v428
      %v452 = vmul.f32 %v413, %v428
      %v453 = vmul.f32 %v414, %v428
      %v454 = vmul.f32 %v415, %v428
      %v455 = vmul.f32 %v416, %v428
      %v456 = vmul.f32 %v417, %v428
      %v457 = vmul.f32 %v418, %v428
      %v458 = vmul.f32 %v419, %v428
      %v459 = vmul.f32 %v420, %v428
      %v460 = vmul.f32 %v421, %v428
      %v461 = vmul.f32 %v422, %v428
      %v462 = vld [vmem:[%s3] sm:$0x1]
      %v464 = vlaneseq
      %v465 = vshrl.u32 %v464, 7
      %v466 = vsub.s32 0, %v465
      %v467 = vrot.slane %v462, %v466
      %v469 = vadd.f32 %v430, %v467
      %v470 = vadd.f32 %v431, %v467
      %v471 = vadd.f32 %v432, %v467
      %v472 = vadd.f32 %v433, %v467
      %v473 = vadd.f32 %v434, %v467
      %v474 = vadd.f32 %v435, %v467
      %v475 = vadd.f32 %v436, %v467
      %v476 = vadd.f32 %v437, %v467
      %v477 = vadd.f32 %v438, %v467
      %v478 = vadd.f32 %v439, %v467
      %v479 = vadd.f32 %v440, %v467
      %v480 = vadd.f32 %v441, %v467
      %v481 = vadd.f32 %v442, %v467
      %v482 = vadd.f32 %v443, %v467
      %v483 = vadd.f32 %v444, %v467
      %v484 = vadd.f32 %v445, %v467
      %v485 = vadd.f32 %v446, %v467
      %v486 = vadd.f32 %v447, %v467
      %v487 = vadd.f32 %v448, %v467
      %v488 = vadd.f32 %v449, %v467
      %v489 = vadd.f32 %v450, %v467
      %v490 = vadd.f32 %v451, %v467
      %v491 = vadd.f32 %v452, %v467
      %v492 = vadd.f32 %v453, %v467
      %v493 = vadd.f32 %v454, %v467
      %v494 = vadd.f32 %v455, %v467
      %v495 = vadd.f32 %v456, %v467
      %v496 = vadd.f32 %v457, %v467
      %v497 = vadd.f32 %v458, %v467
      %v498 = vadd.f32 %v459, %v467
      %v499 = vadd.f32 %v460, %v467
      %v500 = vadd.f32 %v461, %v467
      %v501 = vmax.f32 %v469, 0.0
      %v502 = vmax.f32 %v470, 0.0
      %v503 = vmax.f32 %v471, 0.0
      %v504 = vmax.f32 %v472, 0.0
      %v505 = vmax.f32 %v473, 0.0
      %v506 = vmax.f32 %v474, 0.0
      %v507 = vmax.f32 %v475, 0.0
      %v508 = vmax.f32 %v476, 0.0
      %v509 = vmax.f32 %v477, 0.0
      %v510 = vmax.f32 %v478, 0.0
      %v511 = vmax.f32 %v479, 0.0
      %v512 = vmax.f32 %v480, 0.0
      %v513 = vmax.f32 %v481, 0.0
      %v514 = vmax.f32 %v482, 0.0
      %v515 = vmax.f32 %v483, 0.0
      %v516 = vmax.f32 %v484, 0.0
      %v517 = vmax.f32 %v485, 0.0
      %v518 = vmax.f32 %v486, 0.0
      %v519 = vmax.f32 %v487, 0.0
      %v520 = vmax.f32 %v488, 0.0
      %v521 = vmax.f32 %v489, 0.0
      %v522 = vmax.f32 %v490, 0.0
      %v523 = vmax.f32 %v491, 0.0
      %v524 = vmax.f32 %v492, 0.0
      %v525 = vmax.f32 %v493, 0.0
      %v526 = vmax.f32 %v494, 0.0
      %v527 = vmax.f32 %v495, 0.0
      %v528 = vmax.f32 %v496, 0.0
      %v529 = vmax.f32 %v497, 0.0
      %v530 = vmax.f32 %v498, 0.0
      %v531 = vmax.f32 %v499, 0.0
      %v532 = vmax.f32 %v500, 0.0
      %v533 = vpack.c.bf16 %v502, %v501
      %v534 = vpack.c.bf16 %v504, %v503
      %v535 = vpack.c.bf16 %v506, %v505
      %v536 = vpack.c.bf16 %v508, %v507
      %v537 = vpack.c.bf16 %v510, %v509
      %v538 = vpack.c.bf16 %v512, %v511
      %v539 = vpack.c.bf16 %v514, %v513
      %v540 = vpack.c.bf16 %v516, %v515
      %v541 = vpack.c.bf16 %v518, %v517
      %v542 = vpack.c.bf16 %v520, %v519
      %v543 = vpack.c.bf16 %v522, %v521
      %v544 = vpack.c.bf16 %v524, %v523
      %v545 = vpack.c.bf16 %v526, %v525
      %v546 = vpack.c.bf16 %v528, %v527
      %v547 = vpack.c.bf16 %v530, %v529
      %v548 = vpack.c.bf16 %v532, %v531
      %v565 = vunpack.c.l.b16 %v533
      %v566 = vunpack.c.h.b16 %v533
      %v567 = vunpack.c.l.b16 %v534
      %v568 = vunpack.c.h.b16 %v534
      %v569 = vunpack.c.l.b16 %v535
      %v570 = vunpack.c.h.b16 %v535
      %v571 = vunpack.c.l.b16 %v536
      %v572 = vunpack.c.h.b16 %v536
      %v573 = vunpack.c.l.b16 %v537
      %v574 = vunpack.c.h.b16 %v537
      %v575 = vunpack.c.l.b16 %v538
      %v576 = vunpack.c.h.b16 %v538
      %v577 = vunpack.c.l.b16 %v539
      %v578 = vunpack.c.h.b16 %v539
      %v579 = vunpack.c.l.b16 %v540
      %v580 = vunpack.c.h.b16 %v540
      %v581 = vunpack.c.l.b16 %v541
      %v582 = vunpack.c.h.b16 %v541
      %v583 = vunpack.c.l.b16 %v542
      %v584 = vunpack.c.h.b16 %v542
      %v585 = vunpack.c.l.b16 %v543
      %v586 = vunpack.c.h.b16 %v543
      %v587 = vunpack.c.l.b16 %v544
      %v588 = vunpack.c.h.b16 %v544
      %v589 = vunpack.c.l.b16 %v545
      %v590 = vunpack.c.h.b16 %v545
      %v591 = vunpack.c.l.b16 %v546
      %v592 = vunpack.c.h.b16 %v546
      %v593 = vunpack.c.l.b16 %v547
      %v594 = vunpack.c.h.b16 %v547
      %v595 = vunpack.c.l.b16 %v548
      %v596 = vunpack.c.h.b16 %v548
      %v597 = vpack.c.b16 %v565, %v565
      %v598 = vpack.c.b16 %v566, %v566
      %v599 = vpack.c.b16 %v567, %v567
      %v600 = vpack.c.b16 %v568, %v568
      %v601 = vpack.c.b16 %v569, %v569
      %v602 = vpack.c.b16 %v570, %v570
      %v603 = vpack.c.b16 %v571, %v571
      %v604 = vpack.c.b16 %v572, %v572
      %v605 = vpack.c.b16 %v573, %v573
      %v606 = vpack.c.b16 %v574, %v574
      %v607 = vpack.c.b16 %v575, %v575
      %v608 = vpack.c.b16 %v576, %v576
      %v609 = vpack.c.b16 %v577, %v577
      %v610 = vpack.c.b16 %v578, %v578
      %v611 = vpack.c.b16 %v579, %v579
      %v612 = vpack.c.b16 %v580, %v580
      %v613 = vpack.c.b16 %v581, %v581
      %v614 = vpack.c.b16 %v582, %v582
      %v615 = vpack.c.b16 %v583, %v583
      %v616 = vpack.c.b16 %v584, %v584
      %v617 = vpack.c.b16 %v585, %v585
      %v618 = vpack.c.b16 %v586, %v586
      %v619 = vpack.c.b16 %v587, %v587
      %v620 = vpack.c.b16 %v588, %v588
      %v621 = vpack.c.b16 %v589, %v589
      %v622 = vpack.c.b16 %v590, %v590
      %v623 = vpack.c.b16 %v591, %v591
      %v624 = vpack.c.b16 %v592, %v592
      %v625 = vpack.c.b16 %v593, %v593
      %v626 = vpack.c.b16 %v594, %v594
      %v627 = vpack.c.b16 %v595, %v595
      %v628 = vpack.c.b16 %v596, %v596
      %vm629 = vsmask.f32 4368
      %vm630 = vmor %vm247, %vm629
      %v632 = vshrl.u32 %v597, 16
      %v634 = vrot.slane %v632, 7
      %v635 = vshll.u32 %v597, 16
      %v637 = vor.u32 %v634, %v635
      %v638 = vrot.slane %v634, 4
      %v640 = vshrl.u32 %v598, 16
      %v642 = vrot.slane %v640, 7
      %v643 = vshll.u32 %v598, 16
      %v645 = vor.u32 %v642, %v643
      %v646 = vsel %vm630, %v638, %v645
      %v647 = vrot.slane %v642, 4
      %v649 = vshrl.u32 %v599, 16
      %v651 = vrot.slane %v649, 7
      %v652 = vshll.u32 %v599, 16
      %v654 = vor.u32 %v651, %v652
      %v655 = vrot.slane %v651, 4
      %v657 = vshrl.u32 %v600, 16
      %v659 = vrot.slane %v657, 7
      %v660 = vshll.u32 %v600, 16
      %v662 = vor.u32 %v659, %v660
      %v663 = vsel %vm630, %v655, %v662
      %v664 = vrot.slane %v659, 4
      %v666 = vshrl.u32 %v601, 16
      %v668 = vrot.slane %v666, 7
      %v669 = vshll.u32 %v601, 16
      %v671 = vor.u32 %v668, %v669
      %v672 = vrot.slane %v668, 4
      %v674 = vshrl.u32 %v602, 16
      %v676 = vrot.slane %v674, 7
      %v677 = vshll.u32 %v602, 16
      %v679 = vor.u32 %v676, %v677
      %v680 = vsel %vm630, %v672, %v679
      %v681 = vrot.slane %v676, 4
      %v683 = vshrl.u32 %v603, 16
      %v685 = vrot.slane %v683, 7
      %v686 = vshll.u32 %v603, 16
      %v688 = vor.u32 %v685, %v686
      %v689 = vrot.slane %v685, 4
      %v691 = vshrl.u32 %v604, 16
      %v693 = vrot.slane %v691, 7
      %v694 = vshll.u32 %v604, 16
      %v696 = vor.u32 %v693, %v694
      %v697 = vsel %vm630, %v689, %v696
      %v698 = vrot.slane %v693, 4
      %v700 = vshrl.u32 %v605, 16
      %v702 = vrot.slane %v700, 7
      %v703 = vshll.u32 %v605, 16
      %v705 = vor.u32 %v702, %v703
      %v706 = vrot.slane %v702, 4
      %v708 = vshrl.u32 %v606, 16
      %v710 = vrot.slane %v708, 7
      %v711 = vshll.u32 %v606, 16
      %v713 = vor.u32 %v710, %v711
      %v714 = vsel %vm630, %v706, %v713
      %v715 = vrot.slane %v710, 4
      %v717 = vshrl.u32 %v607, 16
      %v719 = vrot.slane %v717, 7
      %v720 = vshll.u32 %v607, 16
      %v722 = vor.u32 %v719, %v720
      %v723 = vrot.slane %v719, 4
      %v725 = vshrl.u32 %v608, 16
      %v727 = vrot.slane %v725, 7
      %v728 = vshll.u32 %v608, 16
      %v730 = vor.u32 %v727, %v728
      %v731 = vsel %vm630, %v723, %v730
      %v732 = vrot.slane %v727, 4
      %v734 = vshrl.u32 %v609, 16
      %v736 = vrot.slane %v734, 7
      %v737 = vshll.u32 %v609, 16
      %v739 = vor.u32 %v736, %v737
      %v740 = vrot.slane %v736, 4
      %v742 = vshrl.u32 %v610, 16
      %v744 = vrot.slane %v742, 7
      %v745 = vshll.u32 %v610, 16
      %v747 = vor.u32 %v744, %v745
      %v748 = vsel %vm630, %v740, %v747
      %v749 = vrot.slane %v744, 4
      %v751 = vshrl.u32 %v611, 16
      %v753 = vrot.slane %v751, 7
      %v754 = vshll.u32 %v611, 16
      %v756 = vor.u32 %v753, %v754
      %v757 = vrot.slane %v753, 4
      %v759 = vshrl.u32 %v612, 16
      %v761 = vrot.slane %v759, 7
      %v762 = vshll.u32 %v612, 16
      %v764 = vor.u32 %v761, %v762
      %v765 = vsel %vm630, %v757, %v764
      %v766 = vrot.slane %v761, 4
      %v768 = vshrl.u32 %v613, 16
      %v770 = vrot.slane %v768, 7
      %v771 = vshll.u32 %v613, 16
      %v773 = vor.u32 %v770, %v771
      %v774 = vrot.slane %v770, 4
      %v776 = vshrl.u32 %v614, 16
      %v778 = vrot.slane %v776, 7
      %v779 = vshll.u32 %v614, 16
      %v781 = vor.u32 %v778, %v779
      %v782 = vsel %vm630, %v774, %v781
      %v783 = vrot.slane %v778, 4
      %v785 = vshrl.u32 %v615, 16
      %v787 = vrot.slane %v785, 7
      %v788 = vshll.u32 %v615, 16
      %v790 = vor.u32 %v787, %v788
      %v791 = vrot.slane %v787, 4
      %v793 = vshrl.u32 %v616, 16
      %v795 = vrot.slane %v793, 7
      %v796 = vshll.u32 %v616, 16
      %v798 = vor.u32 %v795, %v796
      %v799 = vsel %vm630, %v791, %v798
      %v800 = vrot.slane %v795, 4
      %v802 = vshrl.u32 %v617, 16
      %v804 = vrot.slane %v802, 7
      %v805 = vshll.u32 %v617, 16
      %v807 = vor.u32 %v804, %v805
      %v808 = vrot.slane %v804, 4
      %v810 = vshrl.u32 %v618, 16
      %v812 = vrot.slane %v810, 7
      %v813 = vshll.u32 %v618, 16
      %v815 = vor.u32 %v812, %v813
      %v816 = vsel %vm630, %v808, %v815
      %v817 = vrot.slane %v812, 4
      %v819 = vshrl.u32 %v619, 16
      %v821 = vrot.slane %v819, 7
      %v822 = vshll.u32 %v619, 16
      %v824 = vor.u32 %v821, %v822
      %v825 = vrot.slane %v821, 4
      %v827 = vshrl.u32 %v620, 16
      %v829 = vrot.slane %v827, 7
      %v830 = vshll.u32 %v620, 16
      %v832 = vor.u32 %v829, %v830
      %v833 = vsel %vm630, %v825, %v832
      %v834 = vrot.slane %v829, 4
      %v836 = vshrl.u32 %v621, 16
      %v838 = vrot.slane %v836, 7
      %v839 = vshll.u32 %v621, 16
      %v841 = vor.u32 %v838, %v839
      %v842 = vrot.slane %v838, 4
      %v844 = vshrl.u32 %v622, 16
      %v846 = vrot.slane %v844, 7
      %v847 = vshll.u32 %v622, 16
      %v849 = vor.u32 %v846, %v847
      %v850 = vsel %vm630, %v842, %v849
      %v851 = vrot.slane %v846, 4
      %v853 = vshrl.u32 %v623, 16
      %v855 = vrot.slane %v853, 7
      %v856 = vshll.u32 %v623, 16
      %v858 = vor.u32 %v855, %v856
      %v859 = vrot.slane %v855, 4
      %v861 = vshrl.u32 %v624, 16
      %v863 = vrot.slane %v861, 7
      %v864 = vshll.u32 %v624, 16
      %v866 = vor.u32 %v863, %v864
      %v867 = vsel %vm630, %v859, %v866
      %v868 = vrot.slane %v863, 4
      %v870 = vshrl.u32 %v625, 16
      %v872 = vrot.slane %v870, 7
      %v873 = vshll.u32 %v625, 16
      %v875 = vor.u32 %v872, %v873
      %v876 = vrot.slane %v872, 4
      %v878 = vshrl.u32 %v626, 16
      %v880 = vrot.slane %v878, 7
      %v881 = vshll.u32 %v626, 16
      %v883 = vor.u32 %v880, %v881
      %v884 = vsel %vm630, %v876, %v883
      %v885 = vrot.slane %v880, 4
      %v887 = vshrl.u32 %v627, 16
      %v889 = vrot.slane %v887, 7
      %v890 = vshll.u32 %v627, 16
      %v892 = vor.u32 %v889, %v890
      %v893 = vrot.slane %v889, 4
      %v895 = vshrl.u32 %v628, 16
      %v897 = vrot.slane %v895, 7
      %v898 = vshll.u32 %v628, 16
      %v900 = vor.u32 %v897, %v898
      %v901 = vsel %vm630, %v893, %v900
      %v902 = vrot.slane %v897, 4
      %s951 = scalar_lea.vmem [#allocation2], 12
      %vm952 = vcmask 27648
      %vm953 = vmand %vm952, %vm303
      %v954 = vld [vmem:[%s951] sm:$0xf]
      %v955 = vsel %vm953, %v637, %v954
      %956 = vst [vmem:[%s951] sm:$0xf] %v955
      %957 = vst.msk [vmem:[%s951 + $0x4] sm:$0xf] %vm237, %v646
      %v958 = vld [vmem:[%s951 + $0x8] sm:$0x1]
      %v959 = vsel %vm248, %v647, %v958
      %960 = vst [vmem:[%s951 + $0x8] sm:$0x1] %v959
      %v961 = vld [vmem:[%s951 + $0xc] sm:$0xf]
      %v962 = vsel %vm953, %v654, %v961
      %963 = vst [vmem:[%s951 + $0xc] sm:$0xf] %v962
      %964 = vst.msk [vmem:[%s951 + $0x10] sm:$0xf] %vm237, %v663
      %v965 = vld [vmem:[%s951 + $0x14] sm:$0x1]
      %v966 = vsel %vm248, %v664, %v965
      %967 = vst [vmem:[%s951 + $0x14] sm:$0x1] %v966
      %v968 = vld [vmem:[%s951 + $0x18] sm:$0xf]
      %v969 = vsel %vm953, %v671, %v968
      %970 = vst [vmem:[%s951 + $0x18] sm:$0xf] %v969
      %971 = vst.msk [vmem:[%s951 + $0x1c] sm:$0xf] %vm237, %v680
      %v972 = vld [vmem:[%s951 + $0x20] sm:$0x1]
      %v973 = vsel %vm248, %v681, %v972
      %974 = vst [vmem:[%s951 + $0x20] sm:$0x1] %v973
      %v975 = vld [vmem:[%s951 + $0x24] sm:$0xf]
      %v976 = vsel %vm953, %v688, %v975
      %977 = vst [vmem:[%s951 + $0x24] sm:$0xf] %v976
      %978 = vst.msk [vmem:[%s951 + $0x28] sm:$0xf] %vm237, %v697
      %v979 = vld [vmem:[%s951 + $0x2c] sm:$0x1]
      %v980 = vsel %vm248, %v698, %v979
      %981 = vst [vmem:[%s951 + $0x2c] sm:$0x1] %v980
      %v982 = vld [vmem:[%s951 + $0x30] sm:$0xf]
      %v983 = vsel %vm953, %v705, %v982
      %984 = vst [vmem:[%s951 + $0x30] sm:$0xf] %v983
      %985 = vst.msk [vmem:[%s951 + $0x34] sm:$0xf] %vm237, %v714
      %v986 = vld [vmem:[%s951 + $0x38] sm:$0x1]
      %v987 = vsel %vm248, %v715, %v986
      %988 = vst [vmem:[%s951 + $0x38] sm:$0x1] %v987
      %v989 = vld [vmem:[%s951 + $0x3c] sm:$0xf]
      %v990 = vsel %vm953, %v722, %v989
      %991 = vst [vmem:[%s951 + $0x3c] sm:$0xf] %v990
      %992 = vst.msk [vmem:[%s951 + $0x40] sm:$0xf] %vm237, %v731
      %v993 = vld [vmem:[%s951 + $0x44] sm:$0x1]
      %v994 = vsel %vm248, %v732, %v993
      %995 = vst [vmem:[%s951 + $0x44] sm:$0x1] %v994
      %v996 = vld [vmem:[%s951 + $0x48] sm:$0xf]
      %v997 = vsel %vm953, %v739, %v996
      %998 = vst [vmem:[%s951 + $0x48] sm:$0xf] %v997
      %999 = vst.msk [vmem:[%s951 + $0x4c] sm:$0xf] %vm237, %v748
      %v1000 = vld [vmem:[%s951 + $0x50] sm:$0x1]
      %v1001 = vsel %vm248, %v749, %v1000
      %1002 = vst [vmem:[%s951 + $0x50] sm:$0x1] %v1001
      %v1003 = vld [vmem:[%s951 + $0x54] sm:$0xf]
      %v1004 = vsel %vm953, %v756, %v1003
      %1005 = vst [vmem:[%s951 + $0x54] sm:$0xf] %v1004
      %1006 = vst.msk [vmem:[%s951 + $0x58] sm:$0xf] %vm237, %v765
      %v1007 = vld [vmem:[%s951 + $0x5c] sm:$0x1]
      %v1008 = vsel %vm248, %v766, %v1007
      %1009 = vst [vmem:[%s951 + $0x5c] sm:$0x1] %v1008
      %v1010 = vld [vmem:[%s951 + $0x60] sm:$0xf]
      %v1011 = vsel %vm953, %v773, %v1010
      %1012 = vst [vmem:[%s951 + $0x60] sm:$0xf] %v1011
      %1013 = vst.msk [vmem:[%s951 + $0x64] sm:$0xf] %vm237, %v782
      %v1014 = vld [vmem:[%s951 + $0x68] sm:$0x1]
      %v1015 = vsel %vm248, %v783, %v1014
      %1016 = vst [vmem:[%s951 + $0x68] sm:$0x1] %v1015
      %v1017 = vld [vmem:[%s951 + $0x6c] sm:$0xf]
      %v1018 = vsel %vm953, %v790, %v1017
      %1019 = vst [vmem:[%s951 + $0x6c] sm:$0xf] %v1018
      %1020 = vst.msk [vmem:[%s951 + $0x70] sm:$0xf] %vm237, %v799
      %v1021 = vld [vmem:[%s951 + $0x74] sm:$0x1]
      %v1022 = vsel %vm248, %v800, %v1021
      %1023 = vst [vmem:[%s951 + $0x74] sm:$0x1] %v1022
      %v1024 = vld [vmem:[%s951 + $0x78] sm:$0xf]
      %v1025 = vsel %vm953, %v807, %v1024
      %1026 = vst [vmem:[%s951 + $0x78] sm:$0xf] %v1025
      %1027 = vst.msk [vmem:[%s951 + $0x7c] sm:$0xf] %vm237, %v816
      %v1028 = vld [vmem:[%s951 + $0x80] sm:$0x1]
      %v1029 = vsel %vm248, %v817, %v1028
      %1030 = vst [vmem:[%s951 + $0x80] sm:$0x1] %v1029
      %v1031 = vld [vmem:[%s951 + $0x84] sm:$0xf]
      %v1032 = vsel %vm953, %v824, %v1031
      %1033 = vst [vmem:[%s951 + $0x84] sm:$0xf] %v1032
      %1034 = vst.msk [vmem:[%s951 + $0x88] sm:$0xf] %vm237, %v833
      %v1035 = vld [vmem:[%s951 + $0x8c] sm:$0x1]
      %v1036 = vsel %vm248, %v834, %v1035
      %1037 = vst [vmem:[%s951 + $0x8c] sm:$0x1] %v1036
      %v1038 = vld [vmem:[%s951 + $0x90] sm:$0xf]
      %v1039 = vsel %vm953, %v841, %v1038
      %1040 = vst [vmem:[%s951 + $0x90] sm:$0xf] %v1039
      %1041 = vst.msk [vmem:[%s951 + $0x94] sm:$0xf] %vm237, %v850
      %v1042 = vld [vmem:[%s951 + $0x98] sm:$0x1]
      %v1043 = vsel %vm248, %v851, %v1042
      %1044 = vst [vmem:[%s951 + $0x98] sm:$0x1] %v1043
      %v1045 = vld [vmem:[%s951 + $0x9c] sm:$0xf]
      %v1046 = vsel %vm953, %v858, %v1045
      %1047 = vst [vmem:[%s951 + $0x9c] sm:$0xf] %v1046
      %1048 = vst.msk [vmem:[%s951 + $0xa0] sm:$0xf] %vm237, %v867
      %v1049 = vld [vmem:[%s951 + $0xa4] sm:$0x1]
      %v1050 = vsel %vm248, %v868, %v1049
      %1051 = vst [vmem:[%s951 + $0xa4] sm:$0x1] %v1050
      %v1052 = vld [vmem:[%s951 + $0xa8] sm:$0xf]
      %v1053 = vsel %vm953, %v875, %v1052
      %1054 = vst [vmem:[%s951 + $0xa8] sm:$0xf] %v1053
      %1055 = vst.msk [vmem:[%s951 + $0xac] sm:$0xf] %vm237, %v884
      %v1056 = vld [vmem:[%s951 + $0xb0] sm:$0x1]
      %v1057 = vsel %vm248, %v885, %v1056
      %1058 = vst [vmem:[%s951 + $0xb0] sm:$0x1] %v1057
      %v1059 = vld [vmem:[%s951 + $0xb4] sm:$0xf]
      %v1060 = vsel %vm953, %v892, %v1059
      %1061 = vst [vmem:[%s951 + $0xb4] sm:$0xf] %v1060
      %1062 = vst.msk [vmem:[%s951 + $0xb8] sm:$0xf] %vm237, %v901
      %v1063 = vld [vmem:[%s951 + $0xbc] sm:$0x1]
      %v1064 = vsel %vm248, %v902, %v1063
      %1065 = vst [vmem:[%s951 + $0xbc] sm:$0x1] %v1064
      %v1066 = vld [vmem:[#allocation2] sm:$0xf]
      %v1067 = vld [vmem:[#allocation2 + $0x4] sm:$0xf]
      %v1068 = vld [vmem:[#allocation2 + $0xc] sm:$0xf]
      %v1069 = vld [vmem:[#allocation2 + $0x10] sm:$0xf]
      %v1070 = vld [vmem:[#allocation2 + $0x18] sm:$0xf]
      %v1071 = vld [vmem:[#allocation2 + $0x1c] sm:$0xf]
      %v1072 = vld [vmem:[#allocation2 + $0x24] sm:$0xf]
      %v1073 = vld [vmem:[#allocation2 + $0x28] sm:$0xf]
      %v1074 = vld [vmem:[#allocation2 + $0x30] sm:$0xf]
      %v1075 = vld [vmem:[#allocation2 + $0x34] sm:$0xf]
      %v1076 = vld [vmem:[#allocation2 + $0x3c] sm:$0xf]
      %v1077 = vld [vmem:[#allocation2 + $0x40] sm:$0xf]
      %v1078 = vld [vmem:[#allocation2 + $0x48] sm:$0xf]
      %v1079 = vld [vmem:[#allocation2 + $0x4c] sm:$0xf]
      %v1080 = vld [vmem:[#allocation2 + $0x54] sm:$0xf]
      %v1081 = vld [vmem:[#allocation2 + $0x58] sm:$0xf]
      %v1082 = vld [vmem:[#allocation2 + $0x60] sm:$0xf]
      %v1083 = vld [vmem:[#allocation2 + $0x64] sm:$0xf]
      %v1084 = vld [vmem:[#allocation2 + $0x6c] sm:$0xf]
      %v1085 = vld [vmem:[#allocation2 + $0x70] sm:$0xf]
      %v1086 = vld [vmem:[#allocation2 + $0x78] sm:$0xf]
      %v1087 = vld [vmem:[#allocation2 + $0x7c] sm:$0xf]
      %v1088 = vld [vmem:[#allocation2 + $0x84] sm:$0xf]
      %v1089 = vld [vmem:[#allocation2 + $0x88] sm:$0xf]
      %v1090 = vld [vmem:[#allocation2 + $0x90] sm:$0xf]
      %v1091 = vld [vmem:[#allocation2 + $0x94] sm:$0xf]
      %v1092 = vld [vmem:[#allocation2 + $0x9c] sm:$0xf]
      %v1093 = vld [vmem:[#allocation2 + $0xa0] sm:$0xf]
      %v1094 = vld [vmem:[#allocation2 + $0xa8] sm:$0xf]
      %v1095 = vld [vmem:[#allocation2 + $0xac] sm:$0xf]
      %v1096 = vld [vmem:[#allocation2 + $0xb4] sm:$0xf]
      %v1097 = vld [vmem:[#allocation2 + $0xb8] sm:$0xf]
      %v1098 = vld [vmem:[%s1] sm:$0x3]
      %v1099 = vld [vmem:[#allocation2 + $0x8] sm:$0x1]
      %v1100 = vld [vmem:[#allocation2 + $0x14] sm:$0x1]
      %v1101 = vld [vmem:[#allocation2 + $0x20] sm:$0x1]
      %v1102 = vld [vmem:[#allocation2 + $0x2c] sm:$0x1]
      %v1103 = vld [vmem:[#allocation2 + $0x38] sm:$0x1]
      %v1104 = vld [vmem:[#allocation2 + $0x44] sm:$0x1]
      %v1105 = vld [vmem:[#allocation2 + $0x50] sm:$0x1]
      %v1106 = vld [vmem:[#allocation2 + $0x5c] sm:$0x1]
      %v1107 = vld [vmem:[#allocation2 + $0x68] sm:$0x1]
      %v1108 = vld [vmem:[#allocation2 + $0x74] sm:$0x1]
      %v1109 = vld [vmem:[#allocation2 + $0x80] sm:$0x1]
      %v1110 = vld [vmem:[#allocation2 + $0x8c] sm:$0x1]
      %v1111 = vld [vmem:[#allocation2 + $0x98] sm:$0x1]
      %v1112 = vld [vmem:[#allocation2 + $0xa4] sm:$0x1]
      %v1113 = vld [vmem:[#allocation2 + $0xb0] sm:$0x1]
      %v1114 = vld [vmem:[#allocation2 + $0xbc] sm:$0x1]
      %vm1115 = vsmask.f32 3328
      %vm1116 = vsmask.f32 7440
      %vm1117 = vmor %vm1115, %vm1116
      %v1119 = vshrl.u32 %v1066, 16
      %v1121 = vrot.slane %v1119, 4
      %v1122 = vshll.u32 %v1066, 16
      %v1124 = vrot.slane %v1122, 5
      %v1125 = vor.u32 %v1121, %v1124
      %v1126 = vrot.slane %v1125, 4
      %v1128 = vshll.u32 %v1067, 16
      %v1130 = vrot.slane %v1128, 5
      %v1131 = vsel %vm1117, %v1126, %v1130
      %v1132 = vshrl.u32 %v1067, 16
      %v1134 = vrot.slane %v1132, 4
      %v1135 = vor.u32 %v1134, %v1130
      %v1136 = vrot.slane %v1135, 4
      %v1138 = vshll.u32 %v1099, 16
      %v1140 = vrot.slane %v1138, 5
      %v1141 = vsel %vm1117, %v1136, %v1140
      %v1143 = vshrl.u32 %v1068, 16
      %v1145 = vrot.slane %v1143, 4
      %v1146 = vshll.u32 %v1068, 16
      %v1148 = vrot.slane %v1146, 5
      %v1149 = vor.u32 %v1145, %v1148
      %v1150 = vrot.slane %v1149, 4
      %v1152 = vshll.u32 %v1069, 16
      %v1154 = vrot.slane %v1152, 5
      %v1155 = vsel %vm1117, %v1150, %v1154
      %v1156 = vshrl.u32 %v1069, 16
      %v1158 = vrot.slane %v1156, 4
      %v1159 = vor.u32 %v1158, %v1154
      %v1160 = vrot.slane %v1159, 4
      %v1162 = vshll.u32 %v1100, 16
      %v1164 = vrot.slane %v1162, 5
      %v1165 = vsel %vm1117, %v1160, %v1164
      %v1167 = vshrl.u32 %v1070, 16
      %v1169 = vrot.slane %v1167, 4
      %v1170 = vshll.u32 %v1070, 16
      %v1172 = vrot.slane %v1170, 5
      %v1173 = vor.u32 %v1169, %v1172
      %v1174 = vrot.slane %v1173, 4
      %v1176 = vshll.u32 %v1071, 16
      %v1178 = vrot.slane %v1176, 5
      %v1179 = vsel %vm1117, %v1174, %v1178
      %v1180 = vshrl.u32 %v1071, 16
      %v1182 = vrot.slane %v1180, 4
      %v1183 = vor.u32 %v1182, %v1178
      %v1184 = vrot.slane %v1183, 4
      %v1186 = vshll.u32 %v1101, 16
      %v1188 = vrot.slane %v1186, 5
      %v1189 = vsel %vm1117, %v1184, %v1188
      %v1191 = vshrl.u32 %v1072, 16
      %v1193 = vrot.slane %v1191, 4
      %v1194 = vshll.u32 %v1072, 16
      %v1196 = vrot.slane %v1194, 5
      %v1197 = vor.u32 %v1193, %v1196
      %v1198 = vrot.slane %v1197, 4
      %v1200 = vshll.u32 %v1073, 16
      %v1202 = vrot.slane %v1200, 5
      %v1203 = vsel %vm1117, %v1198, %v1202
      %v1204 = vshrl.u32 %v1073, 16
      %v1206 = vrot.slane %v1204, 4
      %v1207 = vor.u32 %v1206, %v1202
      %v1208 = vrot.slane %v1207, 4
      %v1210 = vshll.u32 %v1102, 16
      %v1212 = vrot.slane %v1210, 5
      %v1213 = vsel %vm1117, %v1208, %v1212
      %v1215 = vshrl.u32 %v1074, 16
      %v1217 = vrot.slane %v1215, 4
      %v1218 = vshll.u32 %v1074, 16
      %v1220 = vrot.slane %v1218, 5
      %v1221 = vor.u32 %v1217, %v1220
      %v1222 = vrot.slane %v1221, 4
      %v1224 = vshll.u32 %v1075, 16
      %v1226 = vrot.slane %v1224, 5
      %v1227 = vsel %vm1117, %v1222, %v1226
      %v1228 = vshrl.u32 %v1075, 16
      %v1230 = vrot.slane %v1228, 4
      %v1231 = vor.u32 %v1230, %v1226
      %v1232 = vrot.slane %v1231, 4
      %v1234 = vshll.u32 %v1103, 16
      %v1236 = vrot.slane %v1234, 5
      %v1237 = vsel %vm1117, %v1232, %v1236
      %v1239 = vshrl.u32 %v1076, 16
      %v1241 = vrot.slane %v1239, 4
      %v1242 = vshll.u32 %v1076, 16
      %v1244 = vrot.slane %v1242, 5
      %v1245 = vor.u32 %v1241, %v1244
      %v1246 = vrot.slane %v1245, 4
      %v1248 = vshll.u32 %v1077, 16
      %v1250 = vrot.slane %v1248, 5
      %v1251 = vsel %vm1117, %v1246, %v1250
      %v1252 = vshrl.u32 %v1077, 16
      %v1254 = vrot.slane %v1252, 4
      %v1255 = vor.u32 %v1254, %v1250
      %v1256 = vrot.slane %v1255, 4
      %v1258 = vshll.u32 %v1104, 16
      %v1260 = vrot.slane %v1258, 5
      %v1261 = vsel %vm1117, %v1256, %v1260
      %v1263 = vshrl.u32 %v1078, 16
      %v1265 = vrot.slane %v1263, 4
      %v1266 = vshll.u32 %v1078, 16
      %v1268 = vrot.slane %v1266, 5
      %v1269 = vor.u32 %v1265, %v1268
      %v1270 = vrot.slane %v1269, 4
      %v1272 = vshll.u32 %v1079, 16
      %v1274 = vrot.slane %v1272, 5
      %v1275 = vsel %vm1117, %v1270, %v1274
      %v1276 = vshrl.u32 %v1079, 16
      %v1278 = vrot.slane %v1276, 4
      %v1279 = vor.u32 %v1278, %v1274
      %v1280 = vrot.slane %v1279, 4
      %v1282 = vshll.u32 %v1105, 16
      %v1284 = vrot.slane %v1282, 5
      %v1285 = vsel %vm1117, %v1280, %v1284
      %v1287 = vshrl.u32 %v1080, 16
      %v1289 = vrot.slane %v1287, 4
      %v1290 = vshll.u32 %v1080, 16
      %v1292 = vrot.slane %v1290, 5
      %v1293 = vor.u32 %v1289, %v1292
      %v1294 = vrot.slane %v1293, 4
      %v1296 = vshll.u32 %v1081, 16
      %v1298 = vrot.slane %v1296, 5
      %v1299 = vsel %vm1117, %v1294, %v1298
      %v1300 = vshrl.u32 %v1081, 16
      %v1302 = vrot.slane %v1300, 4
      %v1303 = vor.u32 %v1302, %v1298
      %v1304 = vrot.slane %v1303, 4
      %v1306 = vshll.u32 %v1106, 16
      %v1308 = vrot.slane %v1306, 5
      %v1309 = vsel %vm1117, %v1304, %v1308
      %v1311 = vshrl.u32 %v1082, 16
      %v1313 = vrot.slane %v1311, 4
      %v1314 = vshll.u32 %v1082, 16
      %v1316 = vrot.slane %v1314, 5
      %v1317 = vor.u32 %v1313, %v1316
      %v1318 = vrot.slane %v1317, 4
      %v1320 = vshll.u32 %v1083, 16
      %v1322 = vrot.slane %v1320, 5
      %v1323 = vsel %vm1117, %v1318, %v1322
      %v1324 = vshrl.u32 %v1083, 16
      %v1326 = vrot.slane %v1324, 4
      %v1327 = vor.u32 %v1326, %v1322
      %v1328 = vrot.slane %v1327, 4
      %v1330 = vshll.u32 %v1107, 16
      %v1332 = vrot.slane %v1330, 5
      %v1333 = vsel %vm1117, %v1328, %v1332
      %v1335 = vshrl.u32 %v1084, 16
      %v1337 = vrot.slane %v1335, 4
      %v1338 = vshll.u32 %v1084, 16
      %v1340 = vrot.slane %v1338, 5
      %v1341 = vor.u32 %v1337, %v1340
      %v1342 = vrot.slane %v1341, 4
      %v1344 = vshll.u32 %v1085, 16
      %v1346 = vrot.slane %v1344, 5
      %v1347 = vsel %vm1117, %v1342, %v1346
      %v1348 = vshrl.u32 %v1085, 16
      %v1350 = vrot.slane %v1348, 4
      %v1351 = vor.u32 %v1350, %v1346
      %v1352 = vrot.slane %v1351, 4
      %v1354 = vshll.u32 %v1108, 16
      %v1356 = vrot.slane %v1354, 5
      %v1357 = vsel %vm1117, %v1352, %v1356
      %v1359 = vshrl.u32 %v1086, 16
      %v1361 = vrot.slane %v1359, 4
      %v1362 = vshll.u32 %v1086, 16
      %v1364 = vrot.slane %v1362, 5
      %v1365 = vor.u32 %v1361, %v1364
      %v1366 = vrot.slane %v1365, 4
      %v1368 = vshll.u32 %v1087, 16
      %v1370 = vrot.slane %v1368, 5
      %v1371 = vsel %vm1117, %v1366, %v1370
      %v1372 = vshrl.u32 %v1087, 16
      %v1374 = vrot.slane %v1372, 4
      %v1375 = vor.u32 %v1374, %v1370
      %v1376 = vrot.slane %v1375, 4
      %v1378 = vshll.u32 %v1109, 16
      %v1380 = vrot.slane %v1378, 5
      %v1381 = vsel %vm1117, %v1376, %v1380
      %v1383 = vshrl.u32 %v1088, 16
      %v1385 = vrot.slane %v1383, 4
      %v1386 = vshll.u32 %v1088, 16
      %v1388 = vrot.slane %v1386, 5
      %v1389 = vor.u32 %v1385, %v1388
      %v1390 = vrot.slane %v1389, 4
      %v1392 = vshll.u32 %v1089, 16
      %v1394 = vrot.slane %v1392, 5
      %v1395 = vsel %vm1117, %v1390, %v1394
      %v1396 = vshrl.u32 %v1089, 16
      %v1398 = vrot.slane %v1396, 4
      %v1399 = vor.u32 %v1398, %v1394
      %v1400 = vrot.slane %v1399, 4
      %v1402 = vshll.u32 %v1110, 16
      %v1404 = vrot.slane %v1402, 5
      %v1405 = vsel %vm1117, %v1400, %v1404
      %v1407 = vshrl.u32 %v1090, 16
      %v1409 = vrot.slane %v1407, 4
      %v1410 = vshll.u32 %v1090, 16
      %v1412 = vrot.slane %v1410, 5
      %v1413 = vor.u32 %v1409, %v1412
      %v1414 = vrot.slane %v1413, 4
      %v1416 = vshll.u32 %v1091, 16
      %v1418 = vrot.slane %v1416, 5
      %v1419 = vsel %vm1117, %v1414, %v1418
      %v1420 = vshrl.u32 %v1091, 16
      %v1422 = vrot.slane %v1420, 4
      %v1423 = vor.u32 %v1422, %v1418
      %v1424 = vrot.slane %v1423, 4
      %v1426 = vshll.u32 %v1111, 16
      %v1428 = vrot.slane %v1426, 5
      %v1429 = vsel %vm1117, %v1424, %v1428
      %v1431 = vshrl.u32 %v1092, 16
      %v1433 = vrot.slane %v1431, 4
      %v1434 = vshll.u32 %v1092, 16
      %v1436 = vrot.slane %v1434, 5
      %v1437 = vor.u32 %v1433, %v1436
      %v1438 = vrot.slane %v1437, 4
      %v1440 = vshll.u32 %v1093, 16
      %v1442 = vrot.slane %v1440, 5
      %v1443 = vsel %vm1117, %v1438, %v1442
      %v1444 = vshrl.u32 %v1093, 16
      %v1446 = vrot.slane %v1444, 4
      %v1447 = vor.u32 %v1446, %v1442
      %v1448 = vrot.slane %v1447, 4
      %v1450 = vshll.u32 %v1112, 16
      %v1452 = vrot.slane %v1450, 5
      %v1453 = vsel %vm1117, %v1448, %v1452
      %v1455 = vshrl.u32 %v1094, 16
      %v1457 = vrot.slane %v1455, 4
      %v1458 = vshll.u32 %v1094, 16
      %v1460 = vrot.slane %v1458, 5
      %v1461 = vor.u32 %v1457, %v1460
      %v1462 = vrot.slane %v1461, 4
      %v1464 = vshll.u32 %v1095, 16
      %v1466 = vrot.slane %v1464, 5
      %v1467 = vsel %vm1117, %v1462, %v1466
      %v1468 = vshrl.u32 %v1095, 16
      %v1470 = vrot.slane %v1468, 4
      %v1471 = vor.u32 %v1470, %v1466
      %v1472 = vrot.slane %v1471, 4
      %v1474 = vshll.u32 %v1113, 16
      %v1476 = vrot.slane %v1474, 5
      %v1477 = vsel %vm1117, %v1472, %v1476
      %v1479 = vshrl.u32 %v1096, 16
      %v1481 = vrot.slane %v1479, 4
      %v1482 = vshll.u32 %v1096, 16
      %v1484 = vrot.slane %v1482, 5
      %v1485 = vor.u32 %v1481, %v1484
      %v1486 = vrot.slane %v1485, 4
      %v1488 = vshll.u32 %v1097, 16
      %v1490 = vrot.slane %v1488, 5
      %v1491 = vsel %vm1117, %v1486, %v1490
      %v1492 = vshrl.u32 %v1097, 16
      %v1494 = vrot.slane %v1492, 4
      %v1495 = vor.u32 %v1494, %v1490
      %v1496 = vrot.slane %v1495, 4
      %v1498 = vshll.u32 %v1114, 16
      %v1500 = vrot.slane %v1498, 5
      %v1501 = vsel %vm1117, %v1496, %v1500
      %s1502 = scalar_lea.vmem %s1, 2
      %v1503 = vld [vmem:[%s1502] sm:$0x3]
      %v1504 = vunpack.c.l.b16 %v1131
      %v1505 = vunpack.c.l.b16 %v1141
      %v1506 = vunpack.c.l.b16 %v1155
      %v1507 = vunpack.c.l.b16 %v1165
      %v1508 = vunpack.c.l.b16 %v1179
      %v1509 = vunpack.c.l.b16 %v1189
      %v1510 = vunpack.c.l.b16 %v1203
      %v1511 = vunpack.c.l.b16 %v1213
      %v1512 = vunpack.c.l.b16 %v1227
      %v1513 = vunpack.c.l.b16 %v1237
      %v1514 = vunpack.c.l.b16 %v1251
      %v1515 = vunpack.c.l.b16 %v1261
      %v1516 = vunpack.c.l.b16 %v1275
      %v1517 = vunpack.c.l.b16 %v1285
      %v1518 = vunpack.c.l.b16 %v1299
      %v1519 = vunpack.c.l.b16 %v1309
      %v1520 = vunpack.c.l.b16 %v1323
      %v1521 = vunpack.c.l.b16 %v1333
      %v1522 = vunpack.c.l.b16 %v1347
      %v1523 = vunpack.c.l.b16 %v1357
      %v1524 = vunpack.c.l.b16 %v1371
      %v1525 = vunpack.c.l.b16 %v1381
      %v1526 = vunpack.c.l.b16 %v1395
      %v1527 = vunpack.c.l.b16 %v1405
      %v1528 = vunpack.c.l.b16 %v1419
      %v1529 = vunpack.c.l.b16 %v1429
      %v1530 = vunpack.c.l.b16 %v1443
      %v1531 = vunpack.c.l.b16 %v1453
      %v1532 = vunpack.c.l.b16 %v1467
      %v1533 = vunpack.c.l.b16 %v1477
      %v1534 = vunpack.c.l.b16 %v1491
      %v1535 = vunpack.c.l.b16 %v1501
      %v1536 = vpack.c.b16 %v1505, %v1504
      %v1537 = vpack.c.b16 %v1507, %v1506
      %v1538 = vpack.c.b16 %v1509, %v1508
      %v1539 = vpack.c.b16 %v1511, %v1510
      %v1540 = vpack.c.b16 %v1513, %v1512
      %v1541 = vpack.c.b16 %v1515, %v1514
      %v1542 = vpack.c.b16 %v1517, %v1516
      %v1543 = vpack.c.b16 %v1519, %v1518
      %v1544 = vpack.c.b16 %v1521, %v1520
      %v1545 = vpack.c.b16 %v1523, %v1522
      %v1546 = vpack.c.b16 %v1525, %v1524
      %v1547 = vpack.c.b16 %v1527, %v1526
      %v1548 = vpack.c.b16 %v1529, %v1528
      %v1549 = vpack.c.b16 %v1531, %v1530
      %v1550 = vpack.c.b16 %v1533, %v1532
      %v1551 = vpack.c.b16 %v1535, %v1534
      %vm1552 = vcmask 31744
      %v1554 = vsel %vm1552, %v1536, 0
      %v1557 = vsel %vm1552, %v1537, 0
      %v1560 = vsel %vm1552, %v1538, 0
      %v1563 = vsel %vm1552, %v1539, 0
      %v1566 = vsel %vm1552, %v1540, 0
      %v1569 = vsel %vm1552, %v1541, 0
      %v1572 = vsel %vm1552, %v1542, 0
      %v1575 = vsel %vm1552, %v1543, 0
      %v1578 = vsel %vm1552, %v1544, 0
      %v1581 = vsel %vm1552, %v1545, 0
      %v1584 = vsel %vm1552, %v1546, 0
      %v1587 = vsel %vm1552, %v1547, 0
      %v1590 = vsel %vm1552, %v1548, 0
      %v1593 = vsel %vm1552, %v1549, 0
      %v1596 = vsel %vm1552, %v1550, 0
      %v1599 = vsel %vm1552, %v1551, 0
      %vm1601 = vcmask 1041408
      %v1603 = vsel %vm1601, %v1503, 0
      %1605 = vmatprep.subr.bf16.mxu0 0
      %1606 = vmatpush1.bf16.msra.mxu0 %v1603
      %1607 = vmatprep.subr.bf16.mxu0 0
      %1608 = vmatpush1.bf16.msra.mxu0 0
      %1609 = vmatprep.subr.bf16.mxu0 0
      %1610 = vmatpush1.bf16.msra.mxu0 0
      %1611 = vmatprep.subr.bf16.mxu0 0
      %1612 = vmatpush1.bf16.msra.mxu0 0
      %1613 = vmatprep.subr.bf16.mxu0 0
      %1614 = vmatpush1.bf16.msra.mxu0 0
      %1615 = vmatprep.subr.bf16.mxu0 0
      %1616 = vmatpush1.bf16.msra.mxu0 0
      %1617 = vmatprep.subr.bf16.mxu0 0
      %1618 = vmatpush1.bf16.msra.mxu0 0
      %1619 = vmatprep.subr.bf16.mxu0 0
      %1620 = vmatpush1.bf16.msra.mxu0 0
      %1621 = vmatprep.subr.bf16.mxu0 0
      %1622 = vmatpush1.bf16.msra.mxu0 0
      %1623 = vmatprep.subr.bf16.mxu0 0
      %1624 = vmatpush1.bf16.msra.mxu0 0
      %1625 = vmatprep.subr.bf16.mxu0 0
      %1626 = vmatpush1.bf16.msra.mxu0 0
      %1627 = vmatprep.subr.bf16.mxu0 0
      %1628 = vmatpush1.bf16.msra.mxu0 0
      %1629 = vmatprep.subr.bf16.mxu0 0
      %1630 = vmatpush1.bf16.msra.mxu0 0
      %1631 = vmatprep.subr.bf16.mxu0 0
      %1632 = vmatpush1.bf16.msra.mxu0 0
      %1633 = vmatprep.subr.bf16.mxu0 0
      %1634 = vmatpush1.bf16.msra.mxu0 0
      %1635 = vmatprep.subr.bf16.mxu0 0
      %1636 = vmatpush1.bf16.msra.mxu0 0
      %1637 = vmatprep.mubr.bf16.mxu0 0
      %1638 = vmatmul.mubr.bf16.gmra.mrb[0].mxu0 %v1554
      %v1639 = vpop.f32.mrb[0].mxu0
      %v1640 = vadd.f32 0.0, %v1639
      %v1641 = vpop.f32.mrb[0].mxu0
      %v1642 = vpop.f32.mrb[0].mxu0
      %v1643 = vadd.f32 0.0, %v1642
      %v1644 = vpop.f32.mrb[0].mxu0
      %1645 = vmatprep.mubr.bf16.mxu0 0
      %1646 = vmatmul.mubr.bf16.gmra.mrb[0].mxu0 %v1557
      %v1647 = vpop.f32.mrb[0].mxu0
      %v1648 = vadd.f32 0.0, %v1647
      %v1649 = vpop.f32.mrb[0].mxu0
      %v1650 = vpop.f32.mrb[0].mxu0
      %v1651 = vadd.f32 0.0, %v1650
      %v1652 = vpop.f32.mrb[0].mxu0
      %1653 = vmatprep.mubr.bf16.mxu0 0
      %1654 = vmatmul.mubr.bf16.gmra.mrb[0].mxu0 %v1560
      %v1655 = vpop.f32.mrb[0].mxu0
      %v1656 = vadd.f32 0.0, %v1655
      %v1657 = vpop.f32.mrb[0].mxu0
      %v1658 = vpop.f32.mrb[0].mxu0
      %v1659 = vadd.f32 0.0, %v1658
      %v1660 = vpop.f32.mrb[0].mxu0
      %1661 = vmatprep.mubr.bf16.mxu0 0
      %1662 = vmatmul.mubr.bf16.gmra.mrb[0].mxu0 %v1563
      %v1663 = vpop.f32.mrb[0].mxu0
      %v1664 = vadd.f32 0.0, %v1663
      %v1665 = vpop.f32.mrb[0].mxu0
      %v1666 = vpop.f32.mrb[0].mxu0
      %v1667 = vadd.f32 0.0, %v1666
      %v1668 = vpop.f32.mrb[0].mxu0
      %1669 = vmatprep.mubr.bf16.mxu0 0
      %1670 = vmatmul.mubr.bf16.gmra.mrb[0].mxu0 %v1566
      %v1671 = vpop.f32.mrb[0].mxu0
      %v1672 = vadd.f32 0.0, %v1671
      %v1673 = vpop.f32.mrb[0].mxu0
      %v1674 = vpop.f32.mrb[0].mxu0
      %v1675 = vadd.f32 0.0, %v1674
      %v1676 = vpop.f32.mrb[0].mxu0
      %1677 = vmatprep.mubr.bf16.mxu0 0
      %1678 = vmatmul.mubr.bf16.gmra.mrb[0].mxu0 %v1569
      %v1679 = vpop.f32.mrb[0].mxu0
      %v1680 = vadd.f32 0.0, %v1679
      %v1681 = vpop.f32.mrb[0].mxu0
      %v1682 = vpop.f32.mrb[0].mxu0
      %v1683 = vadd.f32 0.0, %v1682
      %v1684 = vpop.f32.mrb[0].mxu0
      %1685 = vmatprep.mubr.bf16.mxu0 0
      %1686 = vmatmul.mubr.bf16.gmra.mrb[0].mxu0 %v1572
      %v1687 = vpop.f32.mrb[0].mxu0
      %v1688 = vadd.f32 0.0, %v1687
      %v1689 = vpop.f32.mrb[0].mxu0
      %v1690 = vpop.f32.mrb[0].mxu0
      %v1691 = vadd.f32 0.0, %v1690
      %v1692 = vpop.f32.mrb[0].mxu0
      %1693 = vmatprep.mubr.bf16.mxu0 0
      %1694 = vmatmul.mubr.bf16.gmra.mrb[0].mxu0 %v1575
      %v1695 = vpop.f32.mrb[0].mxu0
      %v1696 = vadd.f32 0.0, %v1695
      %v1697 = vpop.f32.mrb[0].mxu0
      %v1698 = vpop.f32.mrb[0].mxu0
      %v1699 = vadd.f32 0.0, %v1698
      %v1700 = vpop.f32.mrb[0].mxu0
      %1701 = vmatprep.mubr.bf16.mxu0 0
      %1702 = vmatmul.mubr.bf16.gmra.mrb[0].mxu0 %v1578
      %v1703 = vpop.f32.mrb[0].mxu0
      %v1704 = vadd.f32 0.0, %v1703
      %v1705 = vpop.f32.mrb[0].mxu0
      %v1706 = vpop.f32.mrb[0].mxu0
      %v1707 = vadd.f32 0.0, %v1706
      %v1708 = vpop.f32.mrb[0].mxu0
      %1709 = vmatprep.mubr.bf16.mxu0 0
      %1710 = vmatmul.mubr.bf16.gmra.mrb[0].mxu0 %v1581
      %v1711 = vpop.f32.mrb[0].mxu0
      %v1712 = vadd.f32 0.0, %v1711
      %v1713 = vpop.f32.mrb[0].mxu0
      %v1714 = vpop.f32.mrb[0].mxu0
      %v1715 = vadd.f32 0.0, %v1714
      %v1716 = vpop.f32.mrb[0].mxu0
      %1717 = vmatprep.mubr.bf16.mxu0 0
      %1718 = vmatmul.mubr.bf16.gmra.mrb[0].mxu0 %v1584
      %v1719 = vpop.f32.mrb[0].mxu0
      %v1720 = vadd.f32 0.0, %v1719
      %v1721 = vpop.f32.mrb[0].mxu0
      %v1722 = vpop.f32.mrb[0].mxu0
      %v1723 = vadd.f32 0.0, %v1722
      %v1724 = vpop.f32.mrb[0].mxu0
      %1725 = vmatprep.mubr.bf16.mxu0 0
      %1726 = vmatmul.mubr.bf16.gmra.mrb[0].mxu0 %v1587
      %v1727 = vpop.f32.mrb[0].mxu0
      %v1728 = vadd.f32 0.0, %v1727
      %v1729 = vpop.f32.mrb[0].mxu0
      %v1730 = vpop.f32.mrb[0].mxu0
      %v1731 = vadd.f32 0.0, %v1730
      %v1732 = vpop.f32.mrb[0].mxu0
      %1733 = vmatprep.mubr.bf16.mxu0 0
      %1734 = vmatmul.mubr.bf16.gmra.mrb[0].mxu0 %v1590
      %v1735 = vpop.f32.mrb[0].mxu0
      %v1736 = vadd.f32 0.0, %v1735
      %v1737 = vpop.f32.mrb[0].mxu0
      %v1738 = vpop.f32.mrb[0].mxu0
      %v1739 = vadd.f32 0.0, %v1738
      %v1740 = vpop.f32.mrb[0].mxu0
      %1741 = vmatprep.mubr.bf16.mxu0 0
      %1742 = vmatmul.mubr.bf16.gmra.mrb[0].mxu0 %v1593
      %v1743 = vpop.f32.mrb[0].mxu0
      %v1744 = vadd.f32 0.0, %v1743
      %v1745 = vpop.f32.mrb[0].mxu0
      %v1746 = vpop.f32.mrb[0].mxu0
      %v1747 = vadd.f32 0.0, %v1746
      %v1748 = vpop.f32.mrb[0].mxu0
      %1749 = vmatprep.mubr.bf16.mxu0 0
      %1750 = vmatmul.mubr.bf16.gmra.mrb[0].mxu0 %v1596
      %v1751 = vpop.f32.mrb[0].mxu0
      %v1752 = vadd.f32 0.0, %v1751
      %v1753 = vpop.f32.mrb[0].mxu0
      %v1754 = vpop.f32.mrb[0].mxu0
      %v1755 = vadd.f32 0.0, %v1754
      %v1756 = vpop.f32.mrb[0].mxu0
      %1757 = vmatprep.mubr.bf16.mxu0 0
      %1758 = vmatmul.mubr.bf16.gmra.mrb[0].mxu0 %v1599
      %v1759 = vpop.f32.mrb[0].mxu0
      %v1760 = vadd.f32 0.0, %v1759
      %v1761 = vpop.f32.mrb[0].mxu0
      %v1762 = vpop.f32.mrb[0].mxu0
      %v1763 = vadd.f32 0.0, %v1762
      %v1764 = vpop.f32.mrb[0].mxu0
      %1765 = vdwg.mxu0
      %v1798 = vunpack.c.l.b16 %v1066
      %v1799 = vunpack.c.l.b16 %v1067
      %v1800 = vunpack.c.l.b16 %v1068
      %v1801 = vunpack.c.l.b16 %v1069
      %v1802 = vunpack.c.l.b16 %v1070
      %v1803 = vunpack.c.l.b16 %v1071
      %v1804 = vunpack.c.l.b16 %v1072
      %v1805 = vunpack.c.l.b16 %v1073
      %v1806 = vunpack.c.l.b16 %v1074
      %v1807 = vunpack.c.l.b16 %v1075
      %v1808 = vunpack.c.l.b16 %v1076
      %v1809 = vunpack.c.l.b16 %v1077
      %v1810 = vunpack.c.l.b16 %v1078
      %v1811 = vunpack.c.l.b16 %v1079
      %v1812 = vunpack.c.l.b16 %v1080
      %v1813 = vunpack.c.l.b16 %v1081
      %v1814 = vunpack.c.l.b16 %v1082
      %v1815 = vunpack.c.l.b16 %v1083
      %v1816 = vunpack.c.l.b16 %v1084
      %v1817 = vunpack.c.l.b16 %v1085
      %v1818 = vunpack.c.l.b16 %v1086
      %v1819 = vunpack.c.l.b16 %v1087
      %v1820 = vunpack.c.l.b16 %v1088
      %v1821 = vunpack.c.l.b16 %v1089
      %v1822 = vunpack.c.l.b16 %v1090
      %v1823 = vunpack.c.l.b16 %v1091
      %v1824 = vunpack.c.l.b16 %v1092
      %v1825 = vunpack.c.l.b16 %v1093
      %v1826 = vunpack.c.l.b16 %v1094
      %v1827 = vunpack.c.l.b16 %v1095
      %v1828 = vunpack.c.l.b16 %v1096
      %v1829 = vunpack.c.l.b16 %v1097
      %v1830 = vpack.c.b16 %v1799, %v1798
      %v1831 = vpack.c.b16 %v1801, %v1800
      %v1832 = vpack.c.b16 %v1803, %v1802
      %v1833 = vpack.c.b16 %v1805, %v1804
      %v1834 = vpack.c.b16 %v1807, %v1806
      %v1835 = vpack.c.b16 %v1809, %v1808
      %v1836 = vpack.c.b16 %v1811, %v1810
      %v1837 = vpack.c.b16 %v1813, %v1812
      %v1838 = vpack.c.b16 %v1815, %v1814
      %v1839 = vpack.c.b16 %v1817, %v1816
      %v1840 = vpack.c.b16 %v1819, %v1818
      %v1841 = vpack.c.b16 %v1821, %v1820
      %v1842 = vpack.c.b16 %v1823, %v1822
      %v1843 = vpack.c.b16 %v1825, %v1824
      %v1844 = vpack.c.b16 %v1827, %v1826
      %v1845 = vpack.c.b16 %v1829, %v1828
      %v1847 = vsel %vm1552, %v1830, 0
      %v1850 = vsel %vm1552, %v1831, 0
      %v1853 = vsel %vm1552, %v1832, 0
      %v1856 = vsel %vm1552, %v1833, 0
      %v1859 = vsel %vm1552, %v1834, 0
      %v1862 = vsel %vm1552, %v1835, 0
      %v1865 = vsel %vm1552, %v1836, 0
      %v1868 = vsel %vm1552, %v1837, 0
      %v1871 = vsel %vm1552, %v1838, 0
      %v1874 = vsel %vm1552, %v1839, 0
      %v1877 = vsel %vm1552, %v1840, 0
      %v1880 = vsel %vm1552, %v1841, 0
      %v1883 = vsel %vm1552, %v1842, 0
      %v1886 = vsel %vm1552, %v1843, 0
      %v1889 = vsel %vm1552, %v1844, 0
      %v1892 = vsel %vm1552, %v1845, 0
      %v1895 = vsel %vm1601, %v1098, 0
      %1897 = vmatprep.subr.bf16.mxu0 0
      %1898 = vmatpush1.bf16.msra.mxu0 %v1895
      %1899 = vmatprep.subr.bf16.mxu0 0
      %1900 = vmatpush1.bf16.msra.mxu0 0
      %1901 = vmatprep.subr.bf16.mxu0 0
      %1902 = vmatpush1.bf16.msra.mxu0 0
      %1903 = vmatprep.subr.bf16.mxu0 0
      %1904 = vmatpush1.bf16.msra.mxu0 0
      %1905 = vmatprep.subr.bf16.mxu0 0
      %1906 = vmatpush1.bf16.msra.mxu0 0
      %1907 = vmatprep.subr.bf16.mxu0 0
      %1908 = vmatpush1.bf16.msra.mxu0 0
      %1909 = vmatprep.subr.bf16.mxu0 0
      %1910 = vmatpush1.bf16.msra.mxu0 0
      %1911 = vmatprep.subr.bf16.mxu0 0
      %1912 = vmatpush1.bf16.msra.mxu0 0
      %1913 = vmatprep.subr.bf16.mxu0 0
      %1914 = vmatpush1.bf16.msra.mxu0 0
      %1915 = vmatprep.subr.bf16.mxu0 0
      %1916 = vmatpush1.bf16.msra.mxu0 0
      %1917 = vmatprep.subr.bf16.mxu0 0
      %1918 = vmatpush1.bf16.msra.mxu0 0
      %1919 = vmatprep.subr.bf16.mxu0 0
      %1920 = vmatpush1.bf16.msra.mxu0 0
      %1921 = vmatprep.subr.bf16.mxu0 0
      %1922 = vmatpush1.bf16.msra.mxu0 0
      %1923 = vmatprep.subr.bf16.mxu0 0
      %1924 = vmatpush1.bf16.msra.mxu0 0
      %1925 = vmatprep.subr.bf16.mxu0 0
      %1926 = vmatpush1.bf16.msra.mxu0 0
      %1927 = vmatprep.subr.bf16.mxu0 0
      %1928 = vmatpush1.bf16.msra.mxu0 0
      %1929 = vmatprep.mubr.bf16.mxu0 0
      %1930 = vmatmul.mubr.bf16.gmra.mrb[0].mxu0 %v1847
      %v1931 = vpop.f32.mrb[0].mxu0
      %v1932 = vadd.f32 %v1640, %v1931
      %v1933 = vpop.f32.mrb[0].mxu0
      %v1934 = vpop.f32.mrb[0].mxu0
      %v1935 = vadd.f32 %v1643, %v1934
      %v1936 = vpop.f32.mrb[0].mxu0
      %1937 = vmatprep.mubr.bf16.mxu0 0
      %1938 = vmatmul.mubr.bf16.gmra.mrb[0].mxu0 %v1850
      %v1939 = vpop.f32.mrb[0].mxu0
      %v1940 = vadd.f32 %v1648, %v1939
      %v1941 = vpop.f32.mrb[0].mxu0
      %v1942 = vpop.f32.mrb[0].mxu0
      %v1943 = vadd.f32 %v1651, %v1942
      %v1944 = vpop.f32.mrb[0].mxu0
      %1945 = vmatprep.mubr.bf16.mxu0 0
      %1946 = vmatmul.mubr.bf16.gmra.mrb[0].mxu0 %v1853
      %v1947 = vpop.f32.mrb[0].mxu0
      %v1948 = vadd.f32 %v1656, %v1947
      %v1949 = vpop.f32.mrb[0].mxu0
      %v1950 = vpop.f32.mrb[0].mxu0
      %v1951 = vadd.f32 %v1659, %v1950
      %v1952 = vpop.f32.mrb[0].mxu0
      %1953 = vmatprep.mubr.bf16.mxu0 0
      %1954 = vmatmul.mubr.bf16.gmra.mrb[0].mxu0 %v1856
      %v1955 = vpop.f32.mrb[0].mxu0
      %v1956 = vadd.f32 %v1664, %v1955
      %v1957 = vpop.f32.mrb[0].mxu0
      %v1958 = vpop.f32.mrb[0].mxu0
      %v1959 = vadd.f32 %v1667, %v1958
      %v1960 = vpop.f32.mrb[0].mxu0
      %1961 = vmatprep.mubr.bf16.mxu0 0
      %1962 = vmatmul.mubr.bf16.gmra.mrb[0].mxu0 %v1859
      %v1963 = vpop.f32.mrb[0].mxu0
      %v1964 = vadd.f32 %v1672, %v1963
      %v1965 = vpop.f32.mrb[0].mxu0
      %v1966 = vpop.f32.mrb[0].mxu0
      %v1967 = vadd.f32 %v1675, %v1966
      %v1968 = vpop.f32.mrb[0].mxu0
      %1969 = vmatprep.mubr.bf16.mxu0 0
      %1970 = vmatmul.mubr.bf16.gmra.mrb[0].mxu0 %v1862
      %v1971 = vpop.f32.mrb[0].mxu0
      %v1972 = vadd.f32 %v1680, %v1971
      %v1973 = vpop.f32.mrb[0].mxu0
      %v1974 = vpop.f32.mrb[0].mxu0
      %v1975 = vadd.f32 %v1683, %v1974
      %v1976 = vpop.f32.mrb[0].mxu0
      %1977 = vmatprep.mubr.bf16.mxu0 0
      %1978 = vmatmul.mubr.bf16.gmra.mrb[0].mxu0 %v1865
      %v1979 = vpop.f32.mrb[0].mxu0
      %v1980 = vadd.f32 %v1688, %v1979
      %v1981 = vpop.f32.mrb[0].mxu0
      %v1982 = vpop.f32.mrb[0].mxu0
      %v1983 = vadd.f32 %v1691, %v1982
      %v1984 = vpop.f32.mrb[0].mxu0
      %1985 = vmatprep.mubr.bf16.mxu0 0
      %1986 = vmatmul.mubr.bf16.gmra.mrb[0].mxu0 %v1868
      %v1987 = vpop.f32.mrb[0].mxu0
      %v1988 = vadd.f32 %v1696, %v1987
      %v1989 = vpop.f32.mrb[0].mxu0
      %v1990 = vpop.f32.mrb[0].mxu0
      %v1991 = vadd.f32 %v1699, %v1990
      %v1992 = vpop.f32.mrb[0].mxu0
      %1993 = vmatprep.mubr.bf16.mxu0 0
      %1994 = vmatmul.mubr.bf16.gmra.mrb[0].mxu0 %v1871
      %v1995 = vpop.f32.mrb[0].mxu0
      %v1996 = vadd.f32 %v1704, %v1995
      %v1997 = vpop.f32.mrb[0].mxu0
      %v1998 = vpop.f32.mrb[0].mxu0
      %v1999 = vadd.f32 %v1707, %v1998
      %v2000 = vpop.f32.mrb[0].mxu0
      %2001 = vmatprep.mubr.bf16.mxu0 0
      %2002 = vmatmul.mubr.bf16.gmra.mrb[0].mxu0 %v1874
      %v2003 = vpop.f32.mrb[0].mxu0
      %v2004 = vadd.f32 %v1712, %v2003
      %v2005 = vpop.f32.mrb[0].mxu0
      %v2006 = vpop.f32.mrb[0].mxu0
      %v2007 = vadd.f32 %v1715, %v2006
      %v2008 = vpop.f32.mrb[0].mxu0
      %2009 = vmatprep.mubr.bf16.mxu0 0
      %2010 = vmatmul.mubr.bf16.gmra.mrb[0].mxu0 %v1877
      %v2011 = vpop.f32.mrb[0].mxu0
      %v2012 = vadd.f32 %v1720, %v2011
      %v2013 = vpop.f32.mrb[0].mxu0
      %v2014 = vpop.f32.mrb[0].mxu0
      %v2015 = vadd.f32 %v1723, %v2014
      %v2016 = vpop.f32.mrb[0].mxu0
      %2017 = vmatprep.mubr.bf16.mxu0 0
      %2018 = vmatmul.mubr.bf16.gmra.mrb[0].mxu0 %v1880
      %v2019 = vpop.f32.mrb[0].mxu0
      %v2020 = vadd.f32 %v1728, %v2019
      %v2021 = vpop.f32.mrb[0].mxu0
      %v2022 = vpop.f32.mrb[0].mxu0
      %v2023 = vadd.f32 %v1731, %v2022
      %v2024 = vpop.f32.mrb[0].mxu0
      %2025 = vmatprep.mubr.bf16.mxu0 0
      %2026 = vmatmul.mubr.bf16.gmra.mrb[0].mxu0 %v1883
      %v2027 = vpop.f32.mrb[0].mxu0
      %v2028 = vadd.f32 %v1736, %v2027
      %v2029 = vpop.f32.mrb[0].mxu0
      %v2030 = vpop.f32.mrb[0].mxu0
      %v2031 = vadd.f32 %v1739, %v2030
      %v2032 = vpop.f32.mrb[0].mxu0
      %2033 = vmatprep.mubr.bf16.mxu0 0
      %2034 = vmatmul.mubr.bf16.gmra.mrb[0].mxu0 %v1886
      %v2035 = vpop.f32.mrb[0].mxu0
      %v2036 = vadd.f32 %v1744, %v2035
      %v2037 = vpop.f32.mrb[0].mxu0
      %v2038 = vpop.f32.mrb[0].mxu0
      %v2039 = vadd.f32 %v1747, %v2038
      %v2040 = vpop.f32.mrb[0].mxu0
      %2041 = vmatprep.mubr.bf16.mxu0 0
      %2042 = vmatmul.mubr.bf16.gmra.mrb[0].mxu0 %v1889
      %v2043 = vpop.f32.mrb[0].mxu0
      %v2044 = vadd.f32 %v1752, %v2043
      %v2045 = vpop.f32.mrb[0].mxu0
      %v2046 = vpop.f32.mrb[0].mxu0
      %v2047 = vadd.f32 %v1755, %v2046
      %v2048 = vpop.f32.mrb[0].mxu0
      %2049 = vmatprep.mubr.bf16.mxu0 0
      %2050 = vmatmul.mubr.bf16.gmra.mrb[0].mxu0 %v1892
      %v2051 = vpop.f32.mrb[0].mxu0
      %v2052 = vadd.f32 %v1760, %v2051
      %v2053 = vpop.f32.mrb[0].mxu0
      %v2054 = vpop.f32.mrb[0].mxu0
      %v2055 = vadd.f32 %v1763, %v2054
      %v2056 = vpop.f32.mrb[0].mxu0
      %2057 = vdwg.mxu0
      %v2058 = vld [vmem:[#allocation2] sm:$0xe]
      %v2059 = vld [vmem:[#allocation2 + $0xc] sm:$0xe]
      %v2060 = vld [vmem:[#allocation2 + $0x18] sm:$0xe]
      %v2061 = vld [vmem:[#allocation2 + $0x24] sm:$0xe]
      %v2062 = vld [vmem:[#allocation2 + $0x30] sm:$0xe]
      %v2063 = vld [vmem:[#allocation2 + $0x3c] sm:$0xe]
      %v2064 = vld [vmem:[#allocation2 + $0x48] sm:$0xe]
      %v2065 = vld [vmem:[#allocation2 + $0x54] sm:$0xe]
      %v2066 = vld [vmem:[#allocation2 + $0x60] sm:$0xe]
      %v2067 = vld [vmem:[#allocation2 + $0x6c] sm:$0xe]
      %v2068 = vld [vmem:[#allocation2 + $0x78] sm:$0xe]
      %v2069 = vld [vmem:[#allocation2 + $0x84] sm:$0xe]
      %v2070 = vld [vmem:[#allocation2 + $0x90] sm:$0xe]
      %v2071 = vld [vmem:[#allocation2 + $0x9c] sm:$0xe]
      %v2072 = vld [vmem:[#allocation2 + $0xa8] sm:$0xe]
      %v2073 = vld [vmem:[#allocation2 + $0xb4] sm:$0xe]
      %vm2106 = vcmask 1042432
      %vm2107 = vcmask 1046532
      %vm2108 = vmor %vm2106, %vm2107
      %v2109 = vrot.slane %v2058, 5
      %v2110 = vrot.slane %v2109, 4
      %v2111 = vrot.slane %v1067, 5
      %v2112 = vsel %vm2108, %v2110, %v2111
      %v2113 = vrot.slane %v2111, 4
      %v2114 = vrot.slane %v1099, 5
      %v2115 = vsel %vm2108, %v2113, %v2114
      %v2116 = vrot.slane %v2059, 5
      %v2117 = vrot.slane %v2116, 4
      %v2118 = vrot.slane %v1069, 5
      %v2119 = vsel %vm2108, %v2117, %v2118
      %v2120 = vrot.slane %v2118, 4
      %v2121 = vrot.slane %v1100, 5
      %v2122 = vsel %vm2108, %v2120, %v2121
      %v2123 = vrot.slane %v2060, 5
      %v2124 = vrot.slane %v2123, 4
      %v2125 = vrot.slane %v1071, 5
      %v2126 = vsel %vm2108, %v2124, %v2125
      %v2127 = vrot.slane %v2125, 4
      %v2128 = vrot.slane %v1101, 5
      %v2129 = vsel %vm2108, %v2127, %v2128
      %v2130 = vrot.slane %v2061, 5
      %v2131 = vrot.slane %v2130, 4
      %v2132 = vrot.slane %v1073, 5
      %v2133 = vsel %vm2108, %v2131, %v2132
      %v2134 = vrot.slane %v2132, 4
      %v2135 = vrot.slane %v1102, 5
      %v2136 = vsel %vm2108, %v2134, %v2135
      %v2137 = vrot.slane %v2062, 5
      %v2138 = vrot.slane %v2137, 4
      %v2139 = vrot.slane %v1075, 5
      %v2140 = vsel %vm2108, %v2138, %v2139
      %v2141 = vrot.slane %v2139, 4
      %v2142 = vrot.slane %v1103, 5
      %v2143 = vsel %vm2108, %v2141, %v2142
      %v2144 = vrot.slane %v2063, 5
      %v2145 = vrot.slane %v2144, 4
      %v2146 = vrot.slane %v1077, 5
      %v2147 = vsel %vm2108, %v2145, %v2146
      %v2148 = vrot.slane %v2146, 4
      %v2149 = vrot.slane %v1104, 5
      %v2150 = vsel %vm2108, %v2148, %v2149
      %v2151 = vrot.slane %v2064, 5
      %v2152 = vrot.slane %v2151, 4
      %v2153 = vrot.slane %v1079, 5
      %v2154 = vsel %vm2108, %v2152, %v2153
      %v2155 = vrot.slane %v2153, 4
      %v2156 = vrot.slane %v1105, 5
      %v2157 = vsel %vm2108, %v2155, %v2156
      %v2158 = vrot.slane %v2065, 5
      %v2159 = vrot.slane %v2158, 4
      %v2160 = vrot.slane %v1081, 5
      %v2161 = vsel %vm2108, %v2159, %v2160
      %v2162 = vrot.slane %v2160, 4
      %v2163 = vrot.slane %v1106, 5
      %v2164 = vsel %vm2108, %v2162, %v2163
      %v2165 = vrot.slane %v2066, 5
      %v2166 = vrot.slane %v2165, 4
      %v2167 = vrot.slane %v1083, 5
      %v2168 = vsel %vm2108, %v2166, %v2167
      %v2169 = vrot.slane %v2167, 4
      %v2170 = vrot.slane %v1107, 5
      %v2171 = vsel %vm2108, %v2169, %v2170
      %v2172 = vrot.slane %v2067, 5
      %v2173 = vrot.slane %v2172, 4
      %v2174 = vrot.slane %v1085, 5
      %v2175 = vsel %vm2108, %v2173, %v2174
      %v2176 = vrot.slane %v2174, 4
      %v2177 = vrot.slane %v1108, 5
      %v2178 = vsel %vm2108, %v2176, %v2177
      %v2179 = vrot.slane %v2068, 5
      %v2180 = vrot.slane %v2179, 4
      %v2181 = vrot.slane %v1087, 5
      %v2182 = vsel %vm2108, %v2180, %v2181
      %v2183 = vrot.slane %v2181, 4
      %v2184 = vrot.slane %v1109, 5
      %v2185 = vsel %vm2108, %v2183, %v2184
      %v2186 = vrot.slane %v2069, 5
      %v2187 = vrot.slane %v2186, 4
      %v2188 = vrot.slane %v1089, 5
      %v2189 = vsel %vm2108, %v2187, %v2188
      %v2190 = vrot.slane %v2188, 4
      %v2191 = vrot.slane %v1110, 5
      %v2192 = vsel %vm2108, %v2190, %v2191
      %v2193 = vrot.slane %v2070, 5
      %v2194 = vrot.slane %v2193, 4
      %v2195 = vrot.slane %v1091, 5
      %v2196 = vsel %vm2108, %v2194, %v2195
      %v2197 = vrot.slane %v2195, 4
      %v2198 = vrot.slane %v1111, 5
      %v2199 = vsel %vm2108, %v2197, %v2198
      %v2200 = vrot.slane %v2071, 5
      %v2201 = vrot.slane %v2200, 4
      %v2202 = vrot.slane %v1093, 5
      %v2203 = vsel %vm2108, %v2201, %v2202
      %v2204 = vrot.slane %v2202, 4
      %v2205 = vrot.slane %v1112, 5
      %v2206 = vsel %vm2108, %v2204, %v2205
      %v2207 = vrot.slane %v2072, 5
      %v2208 = vrot.slane %v2207, 4
      %v2209 = vrot.slane %v1095, 5
      %v2210 = vsel %vm2108, %v2208, %v2209
      %v2211 = vrot.slane %v2209, 4
      %v2212 = vrot.slane %v1113, 5
      %v2213 = vsel %vm2108, %v2211, %v2212
      %v2214 = vrot.slane %v2073, 5
      %v2215 = vrot.slane %v2214, 4
      %v2216 = vrot.slane %v1097, 5
      %v2217 = vsel %vm2108, %v2215, %v2216
      %v2218 = vrot.slane %v2216, 4
      %v2219 = vrot.slane %v1114, 5
      %v2220 = vsel %vm2108, %v2218, %v2219
      %s2221 = scalar_lea.vmem %s1, 4
      %v2222 = vld [vmem:[%s2221] sm:$0x3]
      %v2223 = vunpack.c.l.b16 %v2112
      %v2224 = vunpack.c.l.b16 %v2115
      %v2225 = vunpack.c.l.b16 %v2119
      %v2226 = vunpack.c.l.b16 %v2122
      %v2227 = vunpack.c.l.b16 %v2126
      %v2228 = vunpack.c.l.b16 %v2129
      %v2229 = vunpack.c.l.b16 %v2133
      %v2230 = vunpack.c.l.b16 %v2136
      %v2231 = vunpack.c.l.b16 %v2140
      %v2232 = vunpack.c.l.b16 %v2143
      %v2233 = vunpack.c.l.b16 %v2147
      %v2234 = vunpack.c.l.b16 %v2150
      %v2235 = vunpack.c.l.b16 %v2154
      %v2236 = vunpack.c.l.b16 %v2157
      %v2237 = vunpack.c.l.b16 %v2161
      %v2238 = vunpack.c.l.b16 %v2164
      %v2239 = vunpack.c.l.b16 %v2168
      %v2240 = vunpack.c.l.b16 %v2171
      %v2241 = vunpack.c.l.b16 %v2175
      %v2242 = vunpack.c.l.b16 %v2178
      %v2243 = vunpack.c.l.b16 %v2182
      %v2244 = vunpack.c.l.b16 %v2185
      %v2245 = vunpack.c.l.b16 %v2189
      %v2246 = vunpack.c.l.b16 %v2192
      %v2247 = vunpack.c.l.b16 %v2196
      %v2248 = vunpack.c.l.b16 %v2199
      %v2249 = vunpack.c.l.b16 %v2203
      %v2250 = vunpack.c.l.b16 %v2206
      %v2251 = vunpack.c.l.b16 %v2210
      %v2252 = vunpack.c.l.b16 %v2213
      %v2253 = vunpack.c.l.b16 %v2217
      %v2254 = vunpack.c.l.b16 %v2220
      %v2255 = vpack.c.b16 %v2224, %v2223
      %v2256 = vpack.c.b16 %v2226, %v2225
      %v2257 = vpack.c.b16 %v2228, %v2227
      %v2258 = vpack.c.b16 %v2230, %v2229
      %v2259 = vpack.c.b16 %v2232, %v2231
      %v2260 = vpack.c.b16 %v2234, %v2233
      %v2261 = vpack.c.b16 %v2236, %v2235
      %v2262 = vpack.c.b16 %v2238, %v2237
      %v2263 = vpack.c.b16 %v2240, %v2239
      %v2264 = vpack.c.b16 %v2242, %v2241
      %v2265 = vpack.c.b16 %v2244, %v2243
      %v2266 = vpack.c.b16 %v2246, %v2245
      %v2267 = vpack.c.b16 %v2248, %v2247
      %v2268 = vpack.c.b16 %v2250, %v2249
      %v2269 = vpack.c.b16 %v2252, %v2251
      %v2270 = vpack.c.b16 %v2254, %v2253
      %v2272 = vsel %vm1552, %v2255, 0
      %v2275 = vsel %vm1552, %v2256, 0
      %v2278 = vsel %vm1552, %v2257, 0
      %v2281 = vsel %vm1552, %v2258, 0
      %v2284 = vsel %vm1552, %v2259, 0
      %v2287 = vsel %vm1552, %v2260, 0
      %v2290 = vsel %vm1552, %v2261, 0
      %v2293 = vsel %vm1552, %v2262, 0
      %v2296 = vsel %vm1552, %v2263, 0
      %v2299 = vsel %vm1552, %v2264, 0
      %v2302 = vsel %vm1552, %v2265, 0
      %v2305 = vsel %vm1552, %v2266, 0
      %v2308 = vsel %vm1552, %v2267, 0
      %v2311 = vsel %vm1552, %v2268, 0
      %v2314 = vsel %vm1552, %v2269, 0
      %v2317 = vsel %vm1552, %v2270, 0
      %v2320 = vsel %vm1601, %v2222, 0
      %2322 = vmatprep.subr.bf16.mxu0 0
      %2323 = vmatpush1.bf16.msra.mxu0 %v2320
      %2324 = vmatprep.subr.bf16.mxu0 0
      %2325 = vmatpush1.bf16.msra.mxu0 0
      %2326 = vmatprep.subr.bf16.mxu0 0
      %2327 = vmatpush1.bf16.msra.mxu0 0
      %2328 = vmatprep.subr.bf16.mxu0 0
      %2329 = vmatpush1.bf16.msra.mxu0 0
      %2330 = vmatprep.subr.bf16.mxu0 0
      %2331 = vmatpush1.bf16.msra.mxu0 0
      %2332 = vmatprep.subr.bf16.mxu0 0
      %2333 = vmatpush1.bf16.msra.mxu0 0
      %2334 = vmatprep.subr.bf16.mxu0 0
      %2335 = vmatpush1.bf16.msra.mxu0 0
      %2336 = vmatprep.subr.bf16.mxu0 0
      %2337 = vmatpush1.bf16.msra.mxu0 0
      %2338 = vmatprep.subr.bf16.mxu0 0
      %2339 = vmatpush1.bf16.msra.mxu0 0
      %2340 = vmatprep.subr.bf16.mxu0 0
      %2341 = vmatpush1.bf16.msra.mxu0 0
      %2342 = vmatprep.subr.bf16.mxu0 0
      %2343 = vmatpush1.bf16.msra.mxu0 0
      %2344 = vmatprep.subr.bf16.mxu0 0
      %2345 = vmatpush1.bf16.msra.mxu0 0
      %2346 = vmatprep.subr.bf16.mxu0 0
      %2347 = vmatpush1.bf16.msra.mxu0 0
      %2348 = vmatprep.subr.bf16.mxu0 0
      %2349 = vmatpush1.bf16.msra.mxu0 0
      %2350 = vmatprep.subr.bf16.mxu0 0
      %2351 = vmatpush1.bf16.msra.mxu0 0
      %2352 = vmatprep.subr.bf16.mxu0 0
      %2353 = vmatpush1.bf16.msra.mxu0 0
      %2354 = vmatprep.mubr.bf16.mxu0 0
      %2355 = vmatmul.mubr.bf16.gmra.mrb[0].mxu0 %v2272
      %v2356 = vpop.f32.mrb[0].mxu0
      %v2357 = vadd.f32 0.0, %v2356
      %v2358 = vpop.f32.mrb[0].mxu0
      %v2359 = vpop.f32.mrb[0].mxu0
      %v2360 = vadd.f32 0.0, %v2359
      %v2361 = vpop.f32.mrb[0].mxu0
      %2362 = vmatprep.mubr.bf16.mxu0 0
      %2363 = vmatmul.mubr.bf16.gmra.mrb[0].mxu0 %v2275
      %v2364 = vpop.f32.mrb[0].mxu0
      %v2365 = vadd.f32 0.0, %v2364
      %v2366 = vpop.f32.mrb[0].mxu0
      %v2367 = vpop.f32.mrb[0].mxu0
      %v2368 = vadd.f32 0.0, %v2367
      %v2369 = vpop.f32.mrb[0].mxu0
      %2370 = vmatprep.mubr.bf16.mxu0 0
      %2371 = vmatmul.mubr.bf16.gmra.mrb[0].mxu0 %v2278
      %v2372 = vpop.f32.mrb[0].mxu0
      %v2373 = vadd.f32 0.0, %v2372
      %v2374 = vpop.f32.mrb[0].mxu0
      %v2375 = vpop.f32.mrb[0].mxu0
      %v2376 = vadd.f32 0.0, %v2375
      %v2377 = vpop.f32.mrb[0].mxu0
      %2378 = vmatprep.mubr.bf16.mxu0 0
      %2379 = vmatmul.mubr.bf16.gmra.mrb[0].mxu0 %v2281
      %v2380 = vpop.f32.mrb[0].mxu0
      %v2381 = vadd.f32 0.0, %v2380
      %v2382 = vpop.f32.mrb[0].mxu0
      %v2383 = vpop.f32.mrb[0].mxu0
      %v2384 = vadd.f32 0.0, %v2383
      %v2385 = vpop.f32.mrb[0].mxu0
      %2386 = vmatprep.mubr.bf16.mxu0 0
      %2387 = vmatmul.mubr.bf16.gmra.mrb[0].mxu0 %v2284
      %v2388 = vpop.f32.mrb[0].mxu0
      %v2389 = vadd.f32 0.0, %v2388
      %v2390 = vpop.f32.mrb[0].mxu0
      %v2391 = vpop.f32.mrb[0].mxu0
      %v2392 = vadd.f32 0.0, %v2391
      %v2393 = vpop.f32.mrb[0].mxu0
      %2394 = vmatprep.mubr.bf16.mxu0 0
      %2395 = vmatmul.mubr.bf16.gmra.mrb[0].mxu0 %v2287
      %v2396 = vpop.f32.mrb[0].mxu0
      %v2397 = vadd.f32 0.0, %v2396
      %v2398 = vpop.f32.mrb[0].mxu0
      %v2399 = vpop.f32.mrb[0].mxu0
      %v2400 = vadd.f32 0.0, %v2399
      %v2401 = vpop.f32.mrb[0].mxu0
      %2402 = vmatprep.mubr.bf16.mxu0 0
      %2403 = vmatmul.mubr.bf16.gmra.mrb[0].mxu0 %v2290
      %v2404 = vpop.f32.mrb[0].mxu0
      %v2405 = vadd.f32 0.0, %v2404
      %v2406 = vpop.f32.mrb[0].mxu0
      %v2407 = vpop.f32.mrb[0].mxu0
      %v2408 = vadd.f32 0.0, %v2407
      %v2409 = vpop.f32.mrb[0].mxu0
      %2410 = vmatprep.mubr.bf16.mxu0 0
      %2411 = vmatmul.mubr.bf16.gmra.mrb[0].mxu0 %v2293
      %v2412 = vpop.f32.mrb[0].mxu0
      %v2413 = vadd.f32 0.0, %v2412
      %v2414 = vpop.f32.mrb[0].mxu0
      %v2415 = vpop.f32.mrb[0].mxu0
      %v2416 = vadd.f32 0.0, %v2415
      %v2417 = vpop.f32.mrb[0].mxu0
      %2418 = vmatprep.mubr.bf16.mxu0 0
      %2419 = vmatmul.mubr.bf16.gmra.mrb[0].mxu0 %v2296
      %v2420 = vpop.f32.mrb[0].mxu0
      %v2421 = vadd.f32 0.0, %v2420
      %v2422 = vpop.f32.mrb[0].mxu0
      %v2423 = vpop.f32.mrb[0].mxu0
      %v2424 = vadd.f32 0.0, %v2423
      %v2425 = vpop.f32.mrb[0].mxu0
      %2426 = vmatprep.mubr.bf16.mxu0 0
      %2427 = vmatmul.mubr.bf16.gmra.mrb[0].mxu0 %v2299
      %v2428 = vpop.f32.mrb[0].mxu0
      %v2429 = vadd.f32 0.0, %v2428
      %v2430 = vpop.f32.mrb[0].mxu0
      %v2431 = vpop.f32.mrb[0].mxu0
      %v2432 = vadd.f32 0.0, %v2431
      %v2433 = vpop.f32.mrb[0].mxu0
      %2434 = vmatprep.mubr.bf16.mxu0 0
      %2435 = vmatmul.mubr.bf16.gmra.mrb[0].mxu0 %v2302
      %v2436 = vpop.f32.mrb[0].mxu0
      %v2437 = vadd.f32 0.0, %v2436
      %v2438 = vpop.f32.mrb[0].mxu0
      %v2439 = vpop.f32.mrb[0].mxu0
      %v2440 = vadd.f32 0.0, %v2439
      %v2441 = vpop.f32.mrb[0].mxu0
      %2442 = vmatprep.mubr.bf16.mxu0 0
      %2443 = vmatmul.mubr.bf16.gmra.mrb[0].mxu0 %v2305
      %v2444 = vpop.f32.mrb[0].mxu0
      %v2445 = vadd.f32 0.0, %v2444
      %v2446 = vpop.f32.mrb[0].mxu0
      %v2447 = vpop.f32.mrb[0].mxu0
      %v2448 = vadd.f32 0.0, %v2447
      %v2449 = vpop.f32.mrb[0].mxu0
      %2450 = vmatprep.mubr.bf16.mxu0 0
      %2451 = vmatmul.mubr.bf16.gmra.mrb[0].mxu0 %v2308
      %v2452 = vpop.f32.mrb[0].mxu0
      %v2453 = vadd.f32 0.0, %v2452
      %v2454 = vpop.f32.mrb[0].mxu0
      %v2455 = vpop.f32.mrb[0].mxu0
      %v2456 = vadd.f32 0.0, %v2455
      %v2457 = vpop.f32.mrb[0].mxu0
      %2458 = vmatprep.mubr.bf16.mxu0 0
      %2459 = vmatmul.mubr.bf16.gmra.mrb[0].mxu0 %v2311
      %v2460 = vpop.f32.mrb[0].mxu0
      %v2461 = vadd.f32 0.0, %v2460
      %v2462 = vpop.f32.mrb[0].mxu0
      %v2463 = vpop.f32.mrb[0].mxu0
      %v2464 = vadd.f32 0.0, %v2463
      %v2465 = vpop.f32.mrb[0].mxu0
      %2466 = vmatprep.mubr.bf16.mxu0 0
      %2467 = vmatmul.mubr.bf16.gmra.mrb[0].mxu0 %v2314
      %v2468 = vpop.f32.mrb[0].mxu0
      %v2469 = vadd.f32 0.0, %v2468
      %v2470 = vpop.f32.mrb[0].mxu0
      %v2471 = vpop.f32.mrb[0].mxu0
      %v2472 = vadd.f32 0.0, %v2471
      %v2473 = vpop.f32.mrb[0].mxu0
      %2474 = vmatprep.mubr.bf16.mxu0 0
      %2475 = vmatmul.mubr.bf16.gmra.mrb[0].mxu0 %v2317
      %v2476 = vpop.f32.mrb[0].mxu0
      %v2477 = vadd.f32 0.0, %v2476
      %v2478 = vpop.f32.mrb[0].mxu0
      %v2479 = vpop.f32.mrb[0].mxu0
      %v2480 = vadd.f32 0.0, %v2479
      %v2481 = vpop.f32.mrb[0].mxu0
      %2482 = vdwg.mxu0
      %v2483 = vadd.f32 %v1932, %v2357
      %v2484 = vadd.f32 %v1935, %v2360
      %v2485 = vadd.f32 %v1940, %v2365
      %v2486 = vadd.f32 %v1943, %v2368
      %v2487 = vadd.f32 %v1948, %v2373
      %v2488 = vadd.f32 %v1951, %v2376
      %v2489 = vadd.f32 %v1956, %v2381
      %v2490 = vadd.f32 %v1959, %v2384
      %v2491 = vadd.f32 %v1964, %v2389
      %v2492 = vadd.f32 %v1967, %v2392
      %v2493 = vadd.f32 %v1972, %v2397
      %v2494 = vadd.f32 %v1975, %v2400
      %v2495 = vadd.f32 %v1980, %v2405
      %v2496 = vadd.f32 %v1983, %v2408
      %v2497 = vadd.f32 %v1988, %v2413
      %v2498 = vadd.f32 %v1991, %v2416
      %v2499 = vadd.f32 %v1996, %v2421
      %v2500 = vadd.f32 %v1999, %v2424
      %v2501 = vadd.f32 %v2004, %v2429
      %v2502 = vadd.f32 %v2007, %v2432
      %v2503 = vadd.f32 %v2012, %v2437
      %v2504 = vadd.f32 %v2015, %v2440
      %v2505 = vadd.f32 %v2020, %v2445
      %v2506 = vadd.f32 %v2023, %v2448
      %v2507 = vadd.f32 %v2028, %v2453
      %v2508 = vadd.f32 %v2031, %v2456
      %v2509 = vadd.f32 %v2036, %v2461
      %v2510 = vadd.f32 %v2039, %v2464
      %v2511 = vadd.f32 %v2044, %v2469
      %v2512 = vadd.f32 %v2047, %v2472
      %v2513 = vadd.f32 %v2052, %v2477
      %v2514 = vadd.f32 %v2055, %v2480
      %v2515 = vld [vmem:[%s951] sm:$0xf]
      %v2516 = vld [vmem:[%s951 + $0x4] sm:$0xf]
      %v2517 = vld [vmem:[%s951 + $0xc] sm:$0xf]
      %v2518 = vld [vmem:[%s951 + $0x10] sm:$0xf]
      %v2519 = vld [vmem:[%s951 + $0x18] sm:$0xf]
      %v2520 = vld [vmem:[%s951 + $0x1c] sm:$0xf]
      %v2521 = vld [vmem:[%s951 + $0x24] sm:$0xf]
      %v2522 = vld [vmem:[%s951 + $0x28] sm:$0xf]
      %v2523 = vld [vmem:[%s951 + $0x30] sm:$0xf]
      %v2524 = vld [vmem:[%s951 + $0x34] sm:$0xf]
      %v2525 = vld [vmem:[%s951 + $0x3c] sm:$0xf]
      %v2526 = vld [vmem:[%s951 + $0x40] sm:$0xf]
      %v2527 = vld [vmem:[%s951 + $0x48] sm:$0xf]
      %v2528 = vld [vmem:[%s951 + $0x4c] sm:$0xf]
      %v2529 = vld [vmem:[%s951 + $0x54] sm:$0xf]
      %v2530 = vld [vmem:[%s951 + $0x58] sm:$0xf]
      %v2531 = vld [vmem:[%s951 + $0x60] sm:$0xf]
      %v2532 = vld [vmem:[%s951 + $0x64] sm:$0xf]
      %v2533 = vld [vmem:[%s951 + $0x6c] sm:$0xf]
      %v2534 = vld [vmem:[%s951 + $0x70] sm:$0xf]
      %v2535 = vld [vmem:[%s951 + $0x78] sm:$0xf]
      %v2536 = vld [vmem:[%s951 + $0x7c] sm:$0xf]
      %v2537 = vld [vmem:[%s951 + $0x84] sm:$0xf]
      %v2538 = vld [vmem:[%s951 + $0x88] sm:$0xf]
      %v2539 = vld [vmem:[%s951 + $0x90] sm:$0xf]
      %v2540 = vld [vmem:[%s951 + $0x94] sm:$0xf]
      %v2541 = vld [vmem:[%s951 + $0x9c] sm:$0xf]
      %v2542 = vld [vmem:[%s951 + $0xa0] sm:$0xf]
      %v2543 = vld [vmem:[%s951 + $0xa8] sm:$0xf]
      %v2544 = vld [vmem:[%s951 + $0xac] sm:$0xf]
      %v2545 = vld [vmem:[%s951 + $0xb4] sm:$0xf]
      %v2546 = vld [vmem:[%s951 + $0xb8] sm:$0xf]
      %s2547 = scalar_lea.vmem %s1, 6
      %v2548 = vld [vmem:[%s2547] sm:$0x3]
      %v2581 = vunpack.c.l.b16 %v2515
      %v2582 = vunpack.c.l.b16 %v2516
      %v2583 = vunpack.c.l.b16 %v2517
      %v2584 = vunpack.c.l.b16 %v2518
      %v2585 = vunpack.c.l.b16 %v2519
      %v2586 = vunpack.c.l.b16 %v2520
      %v2587 = vunpack.c.l.b16 %v2521
      %v2588 = vunpack.c.l.b16 %v2522
      %v2589 = vunpack.c.l.b16 %v2523
      %v2590 = vunpack.c.l.b16 %v2524
      %v2591 = vunpack.c.l.b16 %v2525
      %v2592 = vunpack.c.l.b16 %v2526
      %v2593 = vunpack.c.l.b16 %v2527
      %v2594 = vunpack.c.l.b16 %v2528
      %v2595 = vunpack.c.l.b16 %v2529
      %v2596 = vunpack.c.l.b16 %v2530
      %v2597 = vunpack.c.l.b16 %v2531
      %v2598 = vunpack.c.l.b16 %v2532
      %v2599 = vunpack.c.l.b16 %v2533
      %v2600 = vunpack.c.l.b16 %v2534
      %v2601 = vunpack.c.l.b16 %v2535
      %v2602 = vunpack.c.l.b16 %v2536
      %v2603 = vunpack.c.l.b16 %v2537
      %v2604 = vunpack.c.l.b16 %v2538
      %v2605 = vunpack.c.l.b16 %v2539
      %v2606 = vunpack.c.l.b16 %v2540
      %v2607 = vunpack.c.l.b16 %v2541
      %v2608 = vunpack.c.l.b16 %v2542
      %v2609 = vunpack.c.l.b16 %v2543
      %v2610 = vunpack.c.l.b16 %v2544
      %v2611 = vunpack.c.l.b16 %v2545
      %v2612 = vunpack.c.l.b16 %v2546
      %v2613 = vpack.c.b16 %v2582, %v2581
      %v2614 = vpack.c.b16 %v2584, %v2583
      %v2615 = vpack.c.b16 %v2586, %v2585
      %v2616 = vpack.c.b16 %v2588, %v2587
      %v2617 = vpack.c.b16 %v2590, %v2589
      %v2618 = vpack.c.b16 %v2592, %v2591
      %v2619 = vpack.c.b16 %v2594, %v2593
      %v2620 = vpack.c.b16 %v2596, %v2595
      %v2621 = vpack.c.b16 %v2598, %v2597
      %v2622 = vpack.c.b16 %v2600, %v2599
      %v2623 = vpack.c.b16 %v2602, %v2601
      %v2624 = vpack.c.b16 %v2604, %v2603
      %v2625 = vpack.c.b16 %v2606, %v2605
      %v2626 = vpack.c.b16 %v2608, %v2607
      %v2627 = vpack.c.b16 %v2610, %v2609
      %v2628 = vpack.c.b16 %v2612, %v2611
      %v2630 = vsel %vm1552, %v2613, 0
      %v2633 = vsel %vm1552, %v2614, 0
      %v2636 = vsel %vm1552, %v2615, 0
      %v2639 = vsel %vm1552, %v2616, 0
      %v2642 = vsel %vm1552, %v2617, 0
      %v2645 = vsel %vm1552, %v2618, 0
      %v2648 = vsel %vm1552, %v2619, 0
      %v2651 = vsel %vm1552, %v2620, 0
      %v2654 = vsel %vm1552, %v2621, 0
      %v2657 = vsel %vm1552, %v2622, 0
      %v2660 = vsel %vm1552, %v2623, 0
      %v2663 = vsel %vm1552, %v2624, 0
      %v2666 = vsel %vm1552, %v2625, 0
      %v2669 = vsel %vm1552, %v2626, 0
      %v2672 = vsel %vm1552, %v2627, 0
      %v2675 = vsel %vm1552, %v2628, 0
      %v2678 = vsel %vm1601, %v2548, 0
      %2680 = vmatprep.subr.bf16.mxu0 0
      %2681 = vmatpush1.bf16.msra.mxu0 %v2678
      %2682 = vmatprep.subr.bf16.mxu0 0
      %2683 = vmatpush1.bf16.msra.mxu0 0
      %2684 = vmatprep.subr.bf16.mxu0 0
      %2685 = vmatpush1.bf16.msra.mxu0 0
      %2686 = vmatprep.subr.bf16.mxu0 0
      %2687 = vmatpush1.bf16.msra.mxu0 0
      %2688 = vmatprep.subr.bf16.mxu0 0
      %2689 = vmatpush1.bf16.msra.mxu0 0
      %2690 = vmatprep.subr.bf16.mxu0 0
      %2691 = vmatpush1.bf16.msra.mxu0 0
      %2692 = vmatprep.subr.bf16.mxu0 0
      %2693 = vmatpush1.bf16.msra.mxu0 0
      %2694 = vmatprep.subr.bf16.mxu0 0
      %2695 = vmatpush1.bf16.msra.mxu0 0
      %2696 = vmatprep.subr.bf16.mxu0 0
      %2697 = vmatpush1.bf16.msra.mxu0 0
      %2698 = vmatprep.subr.bf16.mxu0 0
      %2699 = vmatpush1.bf16.msra.mxu0 0
      %2700 = vmatprep.subr.bf16.mxu0 0
      %2701 = vmatpush1.bf16.msra.mxu0 0
      %2702 = vmatprep.subr.bf16.mxu0 0
      %2703 = vmatpush1.bf16.msra.mxu0 0
      %2704 = vmatprep.subr.bf16.mxu0 0
      %2705 = vmatpush1.bf16.msra.mxu0 0
      %2706 = vmatprep.subr.bf16.mxu0 0
      %2707 = vmatpush1.bf16.msra.mxu0 0
      %2708 = vmatprep.subr.bf16.mxu0 0
      %2709 = vmatpush1.bf16.msra.mxu0 0
      %2710 = vmatprep.subr.bf16.mxu0 0
      %2711 = vmatpush1.bf16.msra.mxu0 0
      %2712 = vmatprep.mubr.bf16.mxu0 0
      %2713 = vmatmul.mubr.bf16.gmra.mrb[0].mxu0 %v2630
      %v2714 = vpop.f32.mrb[0].mxu0
      %v2715 = vadd.f32 0.0, %v2714
      %v2716 = vpop.f32.mrb[0].mxu0
      %v2717 = vpop.f32.mrb[0].mxu0
      %v2718 = vadd.f32 0.0, %v2717
      %v2719 = vpop.f32.mrb[0].mxu0
      %2720 = vmatprep.mubr.bf16.mxu0 0
      %2721 = vmatmul.mubr.bf16.gmra.mrb[0].mxu0 %v2633
      %v2722 = vpop.f32.mrb[0].mxu0
      %v2723 = vadd.f32 0.0, %v2722
      %v2724 = vpop.f32.mrb[0].mxu0
      %v2725 = vpop.f32.mrb[0].mxu0
      %v2726 = vadd.f32 0.0, %v2725
      %v2727 = vpop.f32.mrb[0].mxu0
      %2728 = vmatprep.mubr.bf16.mxu0 0
      %2729 = vmatmul.mubr.bf16.gmra.mrb[0].mxu0 %v2636
      %v2730 = vpop.f32.mrb[0].mxu0
      %v2731 = vadd.f32 0.0, %v2730
      %v2732 = vpop.f32.mrb[0].mxu0
      %v2733 = vpop.f32.mrb[0].mxu0
      %v2734 = vadd.f32 0.0, %v2733
      %v2735 = vpop.f32.mrb[0].mxu0
      %2736 = vmatprep.mubr.bf16.mxu0 0
      %2737 = vmatmul.mubr.bf16.gmra.mrb[0].mxu0 %v2639
      %v2738 = vpop.f32.mrb[0].mxu0
      %v2739 = vadd.f32 0.0, %v2738
      %v2740 = vpop.f32.mrb[0].mxu0
      %v2741 = vpop.f32.mrb[0].mxu0
      %v2742 = vadd.f32 0.0, %v2741
      %v2743 = vpop.f32.mrb[0].mxu0
      %2744 = vmatprep.mubr.bf16.mxu0 0
      %2745 = vmatmul.mubr.bf16.gmra.mrb[0].mxu0 %v2642
      %v2746 = vpop.f32.mrb[0].mxu0
      %v2747 = vadd.f32 0.0, %v2746
      %v2748 = vpop.f32.mrb[0].mxu0
      %v2749 = vpop.f32.mrb[0].mxu0
      %v2750 = vadd.f32 0.0, %v2749
      %v2751 = vpop.f32.mrb[0].mxu0
      %2752 = vmatprep.mubr.bf16.mxu0 0
      %2753 = vmatmul.mubr.bf16.gmra.mrb[0].mxu0 %v2645
      %v2754 = vpop.f32.mrb[0].mxu0
      %v2755 = vadd.f32 0.0, %v2754
      %v2756 = vpop.f32.mrb[0].mxu0
      %v2757 = vpop.f32.mrb[0].mxu0
      %v2758 = vadd.f32 0.0, %v2757
      %v2759 = vpop.f32.mrb[0].mxu0
      %2760 = vmatprep.mubr.bf16.mxu0 0
      %2761 = vmatmul.mubr.bf16.gmra.mrb[0].mxu0 %v2648
      %v2762 = vpop.f32.mrb[0].mxu0
      %v2763 = vadd.f32 0.0, %v2762
      %v2764 = vpop.f32.mrb[0].mxu0
      %v2765 = vpop.f32.mrb[0].mxu0
      %v2766 = vadd.f32 0.0, %v2765
      %v2767 = vpop.f32.mrb[0].mxu0
      %2768 = vmatprep.mubr.bf16.mxu0 0
      %2769 = vmatmul.mubr.bf16.gmra.mrb[0].mxu0 %v2651
      %v2770 = vpop.f32.mrb[0].mxu0
      %v2771 = vadd.f32 0.0, %v2770
      %v2772 = vpop.f32.mrb[0].mxu0
      %v2773 = vpop.f32.mrb[0].mxu0
      %v2774 = vadd.f32 0.0, %v2773
      %v2775 = vpop.f32.mrb[0].mxu0
      %2776 = vmatprep.mubr.bf16.mxu0 0
      %2777 = vmatmul.mubr.bf16.gmra.mrb[0].mxu0 %v2654
      %v2778 = vpop.f32.mrb[0].mxu0
      %v2779 = vadd.f32 0.0, %v2778
      %v2780 = vpop.f32.mrb[0].mxu0
      %v2781 = vpop.f32.mrb[0].mxu0
      %v2782 = vadd.f32 0.0, %v2781
      %v2783 = vpop.f32.mrb[0].mxu0
      %2784 = vmatprep.mubr.bf16.mxu0 0
      %2785 = vmatmul.mubr.bf16.gmra.mrb[0].mxu0 %v2657
      %v2786 = vpop.f32.mrb[0].mxu0
      %v2787 = vadd.f32 0.0, %v2786
      %v2788 = vpop.f32.mrb[0].mxu0
      %v2789 = vpop.f32.mrb[0].mxu0
      %v2790 = vadd.f32 0.0, %v2789
      %v2791 = vpop.f32.mrb[0].mxu0
      %2792 = vmatprep.mubr.bf16.mxu0 0
      %2793 = vmatmul.mubr.bf16.gmra.mrb[0].mxu0 %v2660
      %v2794 = vpop.f32.mrb[0].mxu0
      %v2795 = vadd.f32 0.0, %v2794
      %v2796 = vpop.f32.mrb[0].mxu0
      %v2797 = vpop.f32.mrb[0].mxu0
      %v2798 = vadd.f32 0.0, %v2797
      %v2799 = vpop.f32.mrb[0].mxu0
      %2800 = vmatprep.mubr.bf16.mxu0 0
      %2801 = vmatmul.mubr.bf16.gmra.mrb[0].mxu0 %v2663
      %v2802 = vpop.f32.mrb[0].mxu0
      %v2803 = vadd.f32 0.0, %v2802
      %v2804 = vpop.f32.mrb[0].mxu0
      %v2805 = vpop.f32.mrb[0].mxu0
      %v2806 = vadd.f32 0.0, %v2805
      %v2807 = vpop.f32.mrb[0].mxu0
      %2808 = vmatprep.mubr.bf16.mxu0 0
      %2809 = vmatmul.mubr.bf16.gmra.mrb[0].mxu0 %v2666
      %v2810 = vpop.f32.mrb[0].mxu0
      %v2811 = vadd.f32 0.0, %v2810
      %v2812 = vpop.f32.mrb[0].mxu0
      %v2813 = vpop.f32.mrb[0].mxu0
      %v2814 = vadd.f32 0.0, %v2813
      %v2815 = vpop.f32.mrb[0].mxu0
      %2816 = vmatprep.mubr.bf16.mxu0 0
      %2817 = vmatmul.mubr.bf16.gmra.mrb[0].mxu0 %v2669
      %v2818 = vpop.f32.mrb[0].mxu0
      %v2819 = vadd.f32 0.0, %v2818
      %v2820 = vpop.f32.mrb[0].mxu0
      %v2821 = vpop.f32.mrb[0].mxu0
      %v2822 = vadd.f32 0.0, %v2821
      %v2823 = vpop.f32.mrb[0].mxu0
      %2824 = vmatprep.mubr.bf16.mxu0 0
      %2825 = vmatmul.mubr.bf16.gmra.mrb[0].mxu0 %v2672
      %v2826 = vpop.f32.mrb[0].mxu0
      %v2827 = vadd.f32 0.0, %v2826
      %v2828 = vpop.f32.mrb[0].mxu0
      %v2829 = vpop.f32.mrb[0].mxu0
      %v2830 = vadd.f32 0.0, %v2829
      %v2831 = vpop.f32.mrb[0].mxu0
      %2832 = vmatprep.mubr.bf16.mxu0 0
      %2833 = vmatmul.mubr.bf16.gmra.mrb[0].mxu0 %v2675
      %v2834 = vpop.f32.mrb[0].mxu0
      %v2835 = vadd.f32 0.0, %v2834
      %v2836 = vpop.f32.mrb[0].mxu0
      %v2837 = vpop.f32.mrb[0].mxu0
      %v2838 = vadd.f32 0.0, %v2837
      %v2839 = vpop.f32.mrb[0].mxu0
      %2840 = vdwg.mxu0
      %v2841 = vadd.f32 %v2483, %v2715
      %v2842 = vadd.f32 %v2484, %v2718
      %v2843 = vadd.f32 %v2485, %v2723
      %v2844 = vadd.f32 %v2486, %v2726
      %v2845 = vadd.f32 %v2487, %v2731
      %v2846 = vadd.f32 %v2488, %v2734
      %v2847 = vadd.f32 %v2489, %v2739
      %v2848 = vadd.f32 %v2490, %v2742
      %v2849 = vadd.f32 %v2491, %v2747
      %v2850 = vadd.f32 %v2492, %v2750
      %v2851 = vadd.f32 %v2493, %v2755
      %v2852 = vadd.f32 %v2494, %v2758
      %v2853 = vadd.f32 %v2495, %v2763
      %v2854 = vadd.f32 %v2496, %v2766
      %v2855 = vadd.f32 %v2497, %v2771
      %v2856 = vadd.f32 %v2498, %v2774
      %v2857 = vadd.f32 %v2499, %v2779
      %v2858 = vadd.f32 %v2500, %v2782
      %v2859 = vadd.f32 %v2501, %v2787
      %v2860 = vadd.f32 %v2502, %v2790
      %v2861 = vadd.f32 %v2503, %v2795
      %v2862 = vadd.f32 %v2504, %v2798
      %v2863 = vadd.f32 %v2505, %v2803
      %v2864 = vadd.f32 %v2506, %v2806
      %v2865 = vadd.f32 %v2507, %v2811
      %v2866 = vadd.f32 %v2508, %v2814
      %v2867 = vadd.f32 %v2509, %v2819
      %v2868 = vadd.f32 %v2510, %v2822
      %v2869 = vadd.f32 %v2511, %v2827
      %v2870 = vadd.f32 %v2512, %v2830
      %v2871 = vadd.f32 %v2513, %v2835
      %v2872 = vadd.f32 %v2514, %v2838
      %v2873 = vld [vmem:[%s951] sm:$0xf]
      %v2874 = vld [vmem:[%s951 + $0x4] sm:$0xf]
      %v2875 = vld [vmem:[%s951 + $0x8] sm:$0x1]
      %v2876 = vld [vmem:[%s951 + $0xc] sm:$0xf]
      %v2877 = vld [vmem:[%s951 + $0x10] sm:$0xf]
      %v2878 = vld [vmem:[%s951 + $0x14] sm:$0x1]
      %v2879 = vld [vmem:[%s951 + $0x18] sm:$0xf]
      %v2880 = vld [vmem:[%s951 + $0x1c] sm:$0xf]
      %v2881 = vld [vmem:[%s951 + $0x20] sm:$0x1]
      %v2882 = vld [vmem:[%s951 + $0x24] sm:$0xf]
      %v2883 = vld [vmem:[%s951 + $0x28] sm:$0xf]
      %v2884 = vld [vmem:[%s951 + $0x2c] sm:$0x1]
      %v2885 = vld [vmem:[%s951 + $0x30] sm:$0xf]
      %v2886 = vld [vmem:[%s951 + $0x34] sm:$0xf]
      %v2887 = vld [vmem:[%s951 + $0x38] sm:$0x1]
      %v2888 = vld [vmem:[%s951 + $0x3c] sm:$0xf]
      %v2889 = vld [vmem:[%s951 + $0x40] sm:$0xf]
      %v2890 = vld [vmem:[%s951 + $0x44] sm:$0x1]
      %v2891 = vld [vmem:[%s951 + $0x48] sm:$0xf]
      %v2892 = vld [vmem:[%s951 + $0x4c] sm:$0xf]
      %v2893 = vld [vmem:[%s951 + $0x50] sm:$0x1]
      %v2894 = vld [vmem:[%s951 + $0x54] sm:$0xf]
      %v2895 = vld [vmem:[%s951 + $0x58] sm:$0xf]
      %v2896 = vld [vmem:[%s951 + $0x5c] sm:$0x1]
      %v2897 = vld [vmem:[%s951 + $0x60] sm:$0xf]
      %v2898 = vld [vmem:[%s951 + $0x64] sm:$0xf]
      %v2899 = vld [vmem:[%s951 + $0x68] sm:$0x1]
      %v2900 = vld [vmem:[%s951 + $0x6c] sm:$0xf]
      %v2901 = vld [vmem:[%s951 + $0x70] sm:$0xf]
      %v2902 = vld [vmem:[%s951 + $0x74] sm:$0x1]
      %v2903 = vld [vmem:[%s951 + $0x78] sm:$0xf]
      %v2904 = vld [vmem:[%s951 + $0x7c] sm:$0xf]
      %v2905 = vld [vmem:[%s951 + $0x80] sm:$0x1]
      %v2906 = vld [vmem:[%s951 + $0x84] sm:$0xf]
      %v2907 = vld [vmem:[%s951 + $0x88] sm:$0xf]
      %v2908 = vld [vmem:[%s951 + $0x8c] sm:$0x1]
      %v2909 = vld [vmem:[%s951 + $0x90] sm:$0xf]
      %v2910 = vld [vmem:[%s951 + $0x94] sm:$0xf]
      %v2911 = vld [vmem:[%s951 + $0x98] sm:$0x1]
      %v2912 = vld [vmem:[%s951 + $0x9c] sm:$0xf]
      %v2913 = vld [vmem:[%s951 + $0xa0] sm:$0xf]
      %v2914 = vld [vmem:[%s951 + $0xa4] sm:$0x1]
      %v2915 = vld [vmem:[%s951 + $0xa8] sm:$0xf]
      %v2916 = vld [vmem:[%s951 + $0xac] sm:$0xf]
      %v2917 = vld [vmem:[%s951 + $0xb0] sm:$0x1]
      %v2918 = vld [vmem:[%s951 + $0xb4] sm:$0xf]
      %v2919 = vld [vmem:[%s951 + $0xb8] sm:$0xf]
      %v2920 = vld [vmem:[%s951 + $0xbc] sm:$0x1]
      %v2922 = vshrl.u32 %v2873, 16
      %v2924 = vrot.slane %v2922, 4
      %v2925 = vshll.u32 %v2873, 16
      %v2927 = vrot.slane %v2925, 5
      %v2928 = vor.u32 %v2924, %v2927
      %v2929 = vrot.slane %v2928, 4
      %v2931 = vshll.u32 %v2874, 16
      %v2933 = vrot.slane %v2931, 5
      %v2934 = vsel %vm1117, %v2929, %v2933
      %v2935 = vshrl.u32 %v2874, 16
      %v2937 = vrot.slane %v2935, 4
      %v2938 = vor.u32 %v2937, %v2933
      %v2939 = vrot.slane %v2938, 4
      %v2941 = vshll.u32 %v2875, 16
      %v2943 = vrot.slane %v2941, 5
      %v2944 = vsel %vm1117, %v2939, %v2943
      %v2946 = vshrl.u32 %v2876, 16
      %v2948 = vrot.slane %v2946, 4
      %v2949 = vshll.u32 %v2876, 16
      %v2951 = vrot.slane %v2949, 5
      %v2952 = vor.u32 %v2948, %v2951
      %v2953 = vrot.slane %v2952, 4
      %v2955 = vshll.u32 %v2877, 16
      %v2957 = vrot.slane %v2955, 5
      %v2958 = vsel %vm1117, %v2953, %v2957
      %v2959 = vshrl.u32 %v2877, 16
      %v2961 = vrot.slane %v2959, 4
      %v2962 = vor.u32 %v2961, %v2957
      %v2963 = vrot.slane %v2962, 4
      %v2965 = vshll.u32 %v2878, 16
      %v2967 = vrot.slane %v2965, 5
      %v2968 = vsel %vm1117, %v2963, %v2967
      %v2970 = vshrl.u32 %v2879, 16
      %v2972 = vrot.slane %v2970, 4
      %v2973 = vshll.u32 %v2879, 16
      %v2975 = vrot.slane %v2973, 5
      %v2976 = vor.u32 %v2972, %v2975
      %v2977 = vrot.slane %v2976, 4
      %v2979 = vshll.u32 %v2880, 16
      %v2981 = vrot.slane %v2979, 5
      %v2982 = vsel %vm1117, %v2977, %v2981
      %v2983 = vshrl.u32 %v2880, 16
      %v2985 = vrot.slane %v2983, 4
      %v2986 = vor.u32 %v2985, %v2981
      %v2987 = vrot.slane %v2986, 4
      %v2989 = vshll.u32 %v2881, 16
      %v2991 = vrot.slane %v2989, 5
      %v2992 = vsel %vm1117, %v2987, %v2991
      %v2994 = vshrl.u32 %v2882, 16
      %v2996 = vrot.slane %v2994, 4
      %v2997 = vshll.u32 %v2882, 16
      %v2999 = vrot.slane %v2997, 5
      %v3000 = vor.u32 %v2996, %v2999
      %v3001 = vrot.slane %v3000, 4
      %v3003 = vshll.u32 %v2883, 16
      %v3005 = vrot.slane %v3003, 5
      %v3006 = vsel %vm1117, %v3001, %v3005
      %v3007 = vshrl.u32 %v2883, 16
      %v3009 = vrot.slane %v3007, 4
      %v3010 = vor.u32 %v3009, %v3005
      %v3011 = vrot.slane %v3010, 4
      %v3013 = vshll.u32 %v2884, 16
      %v3015 = vrot.slane %v3013, 5
      %v3016 = vsel %vm1117, %v3011, %v3015
      %v3018 = vshrl.u32 %v2885, 16
      %v3020 = vrot.slane %v3018, 4
      %v3021 = vshll.u32 %v2885, 16
      %v3023 = vrot.slane %v3021, 5
      %v3024 = vor.u32 %v3020, %v3023
      %v3025 = vrot.slane %v3024, 4
      %v3027 = vshll.u32 %v2886, 16
      %v3029 = vrot.slane %v3027, 5
      %v3030 = vsel %vm1117, %v3025, %v3029
      %v3031 = vshrl.u32 %v2886, 16
      %v3033 = vrot.slane %v3031, 4
      %v3034 = vor.u32 %v3033, %v3029
      %v3035 = vrot.slane %v3034, 4
      %v3037 = vshll.u32 %v2887, 16
      %v3039 = vrot.slane %v3037, 5
      %v3040 = vsel %vm1117, %v3035, %v3039
      %v3042 = vshrl.u32 %v2888, 16
      %v3044 = vrot.slane %v3042, 4
      %v3045 = vshll.u32 %v2888, 16
      %v3047 = vrot.slane %v3045, 5
      %v3048 = vor.u32 %v3044, %v3047
      %v3049 = vrot.slane %v3048, 4
      %v3051 = vshll.u32 %v2889, 16
      %v3053 = vrot.slane %v3051, 5
      %v3054 = vsel %vm1117, %v3049, %v3053
      %v3055 = vshrl.u32 %v2889, 16
      %v3057 = vrot.slane %v3055, 4
      %v3058 = vor.u32 %v3057, %v3053
      %v3059 = vrot.slane %v3058, 4
      %v3061 = vshll.u32 %v2890, 16
      %v3063 = vrot.slane %v3061, 5
      %v3064 = vsel %vm1117, %v3059, %v3063
      %v3066 = vshrl.u32 %v2891, 16
      %v3068 = vrot.slane %v3066, 4
      %v3069 = vshll.u32 %v2891, 16
      %v3071 = vrot.slane %v3069, 5
      %v3072 = vor.u32 %v3068, %v3071
      %v3073 = vrot.slane %v3072, 4
      %v3075 = vshll.u32 %v2892, 16
      %v3077 = vrot.slane %v3075, 5
      %v3078 = vsel %vm1117, %v3073, %v3077
      %v3079 = vshrl.u32 %v2892, 16
      %v3081 = vrot.slane %v3079, 4
      %v3082 = vor.u32 %v3081, %v3077
      %v3083 = vrot.slane %v3082, 4
      %v3085 = vshll.u32 %v2893, 16
      %v3087 = vrot.slane %v3085, 5
      %v3088 = vsel %vm1117, %v3083, %v3087
      %v3090 = vshrl.u32 %v2894, 16
      %v3092 = vrot.slane %v3090, 4
      %v3093 = vshll.u32 %v2894, 16
      %v3095 = vrot.slane %v3093, 5
      %v3096 = vor.u32 %v3092, %v3095
      %v3097 = vrot.slane %v3096, 4
      %v3099 = vshll.u32 %v2895, 16
      %v3101 = vrot.slane %v3099, 5
      %v3102 = vsel %vm1117, %v3097, %v3101
      %v3103 = vshrl.u32 %v2895, 16
      %v3105 = vrot.slane %v3103, 4
      %v3106 = vor.u32 %v3105, %v3101
      %v3107 = vrot.slane %v3106, 4
      %v3109 = vshll.u32 %v2896, 16
      %v3111 = vrot.slane %v3109, 5
      %v3112 = vsel %vm1117, %v3107, %v3111
      %v3114 = vshrl.u32 %v2897, 16
      %v3116 = vrot.slane %v3114, 4
      %v3117 = vshll.u32 %v2897, 16
      %v3119 = vrot.slane %v3117, 5
      %v3120 = vor.u32 %v3116, %v3119
      %v3121 = vrot.slane %v3120, 4
      %v3123 = vshll.u32 %v2898, 16
      %v3125 = vrot.slane %v3123, 5
      %v3126 = vsel %vm1117, %v3121, %v3125
      %v3127 = vshrl.u32 %v2898, 16
      %v3129 = vrot.slane %v3127, 4
      %v3130 = vor.u32 %v3129, %v3125
      %v3131 = vrot.slane %v3130, 4
      %v3133 = vshll.u32 %v2899, 16
      %v3135 = vrot.slane %v3133, 5
      %v3136 = vsel %vm1117, %v3131, %v3135
      %v3138 = vshrl.u32 %v2900, 16
      %v3140 = vrot.slane %v3138, 4
      %v3141 = vshll.u32 %v2900, 16
      %v3143 = vrot.slane %v3141, 5
      %v3144 = vor.u32 %v3140, %v3143
      %v3145 = vrot.slane %v3144, 4
      %v3147 = vshll.u32 %v2901, 16
      %v3149 = vrot.slane %v3147, 5
      %v3150 = vsel %vm1117, %v3145, %v3149
      %v3151 = vshrl.u32 %v2901, 16
      %v3153 = vrot.slane %v3151, 4
      %v3154 = vor.u32 %v3153, %v3149
      %v3155 = vrot.slane %v3154, 4
      %v3157 = vshll.u32 %v2902, 16
      %v3159 = vrot.slane %v3157, 5
      %v3160 = vsel %vm1117, %v3155, %v3159
      %v3162 = vshrl.u32 %v2903, 16
      %v3164 = vrot.slane %v3162, 4
      %v3165 = vshll.u32 %v2903, 16
      %v3167 = vrot.slane %v3165, 5
      %v3168 = vor.u32 %v3164, %v3167
      %v3169 = vrot.slane %v3168, 4
      %v3171 = vshll.u32 %v2904, 16
      %v3173 = vrot.slane %v3171, 5
      %v3174 = vsel %vm1117, %v3169, %v3173
      %v3175 = vshrl.u32 %v2904, 16
      %v3177 = vrot.slane %v3175, 4
      %v3178 = vor.u32 %v3177, %v3173
      %v3179 = vrot.slane %v3178, 4
      %v3181 = vshll.u32 %v2905, 16
      %v3183 = vrot.slane %v3181, 5
      %v3184 = vsel %vm1117, %v3179, %v3183
      %v3186 = vshrl.u32 %v2906, 16
      %v3188 = vrot.slane %v3186, 4
      %v3189 = vshll.u32 %v2906, 16
      %v3191 = vrot.slane %v3189, 5
      %v3192 = vor.u32 %v3188, %v3191
      %v3193 = vrot.slane %v3192, 4
      %v3195 = vshll.u32 %v2907, 16
      %v3197 = vrot.slane %v3195, 5
      %v3198 = vsel %vm1117, %v3193, %v3197
      %v3199 = vshrl.u32 %v2907, 16
      %v3201 = vrot.slane %v3199, 4
      %v3202 = vor.u32 %v3201, %v3197
      %v3203 = vrot.slane %v3202, 4
      %v3205 = vshll.u32 %v2908, 16
      %v3207 = vrot.slane %v3205, 5
      %v3208 = vsel %vm1117, %v3203, %v3207
      %v3210 = vshrl.u32 %v2909, 16
      %v3212 = vrot.slane %v3210, 4
      %v3213 = vshll.u32 %v2909, 16
      %v3215 = vrot.slane %v3213, 5
      %v3216 = vor.u32 %v3212, %v3215
      %v3217 = vrot.slane %v3216, 4
      %v3219 = vshll.u32 %v2910, 16
      %v3221 = vrot.slane %v3219, 5
      %v3222 = vsel %vm1117, %v3217, %v3221
      %v3223 = vshrl.u32 %v2910, 16
      %v3225 = vrot.slane %v3223, 4
      %v3226 = vor.u32 %v3225, %v3221
      %v3227 = vrot.slane %v3226, 4
      %v3229 = vshll.u32 %v2911, 16
      %v3231 = vrot.slane %v3229, 5
      %v3232 = vsel %vm1117, %v3227, %v3231
      %v3234 = vshrl.u32 %v2912, 16
      %v3236 = vrot.slane %v3234, 4
      %v3237 = vshll.u32 %v2912, 16
      %v3239 = vrot.slane %v3237, 5
      %v3240 = vor.u32 %v3236, %v3239
      %v3241 = vrot.slane %v3240, 4
      %v3243 = vshll.u32 %v2913, 16
      %v3245 = vrot.slane %v3243, 5
      %v3246 = vsel %vm1117, %v3241, %v3245
      %v3247 = vshrl.u32 %v2913, 16
      %v3249 = vrot.slane %v3247, 4
      %v3250 = vor.u32 %v3249, %v3245
      %v3251 = vrot.slane %v3250, 4
      %v3253 = vshll.u32 %v2914, 16
      %v3255 = vrot.slane %v3253, 5
      %v3256 = vsel %vm1117, %v3251, %v3255
      %v3258 = vshrl.u32 %v2915, 16
      %v3260 = vrot.slane %v3258, 4
      %v3261 = vshll.u32 %v2915, 16
      %v3263 = vrot.slane %v3261, 5
      %v3264 = vor.u32 %v3260, %v3263
      %v3265 = vrot.slane %v3264, 4
      %v3267 = vshll.u32 %v2916, 16
      %v3269 = vrot.slane %v3267, 5
      %v3270 = vsel %vm1117, %v3265, %v3269
      %v3271 = vshrl.u32 %v2916, 16
      %v3273 = vrot.slane %v3271, 4
      %v3274 = vor.u32 %v3273, %v3269
      %v3275 = vrot.slane %v3274, 4
      %v3277 = vshll.u32 %v2917, 16
      %v3279 = vrot.slane %v3277, 5
      %v3280 = vsel %vm1117, %v3275, %v3279
      %v3282 = vshrl.u32 %v2918, 16
      %v3284 = vrot.slane %v3282, 4
      %v3285 = vshll.u32 %v2918, 16
      %v3287 = vrot.slane %v3285, 5
      %v3288 = vor.u32 %v3284, %v3287
      %v3289 = vrot.slane %v3288, 4
      %v3291 = vshll.u32 %v2919, 16
      %v3293 = vrot.slane %v3291, 5
      %v3294 = vsel %vm1117, %v3289, %v3293
      %v3295 = vshrl.u32 %v2919, 16
      %v3297 = vrot.slane %v3295, 4
      %v3298 = vor.u32 %v3297, %v3293
      %v3299 = vrot.slane %v3298, 4
      %v3301 = vshll.u32 %v2920, 16
      %v3303 = vrot.slane %v3301, 5
      %v3304 = vsel %vm1117, %v3299, %v3303
      %s3305 = scalar_lea.vmem %s1, 8
      %v3306 = vld [vmem:[%s3305] sm:$0x3]
      %v3307 = vunpack.c.l.b16 %v2934
      %v3308 = vunpack.c.l.b16 %v2944
      %v3309 = vunpack.c.l.b16 %v2958
      %v3310 = vunpack.c.l.b16 %v2968
      %v3311 = vunpack.c.l.b16 %v2982
      %v3312 = vunpack.c.l.b16 %v2992
      %v3313 = vunpack.c.l.b16 %v3006
      %v3314 = vunpack.c.l.b16 %v3016
      %v3315 = vunpack.c.l.b16 %v3030
      %v3316 = vunpack.c.l.b16 %v3040
      %v3317 = vunpack.c.l.b16 %v3054
      %v3318 = vunpack.c.l.b16 %v3064
      %v3319 = vunpack.c.l.b16 %v3078
      %v3320 = vunpack.c.l.b16 %v3088
      %v3321 = vunpack.c.l.b16 %v3102
      %v3322 = vunpack.c.l.b16 %v3112
      %v3323 = vunpack.c.l.b16 %v3126
      %v3324 = vunpack.c.l.b16 %v3136
      %v3325 = vunpack.c.l.b16 %v3150
      %v3326 = vunpack.c.l.b16 %v3160
      %v3327 = vunpack.c.l.b16 %v3174
      %v3328 = vunpack.c.l.b16 %v3184
      %v3329 = vunpack.c.l.b16 %v3198
      %v3330 = vunpack.c.l.b16 %v3208
      %v3331 = vunpack.c.l.b16 %v3222
      %v3332 = vunpack.c.l.b16 %v3232
      %v3333 = vunpack.c.l.b16 %v3246
      %v3334 = vunpack.c.l.b16 %v3256
      %v3335 = vunpack.c.l.b16 %v3270
      %v3336 = vunpack.c.l.b16 %v3280
      %v3337 = vunpack.c.l.b16 %v3294
      %v3338 = vunpack.c.l.b16 %v3304
      %v3339 = vpack.c.b16 %v3308, %v3307
      %v3340 = vpack.c.b16 %v3310, %v3309
      %v3341 = vpack.c.b16 %v3312, %v3311
      %v3342 = vpack.c.b16 %v3314, %v3313
      %v3343 = vpack.c.b16 %v3316, %v3315
      %v3344 = vpack.c.b16 %v3318, %v3317
      %v3345 = vpack.c.b16 %v3320, %v3319
      %v3346 = vpack.c.b16 %v3322, %v3321
      %v3347 = vpack.c.b16 %v3324, %v3323
      %v3348 = vpack.c.b16 %v3326, %v3325
      %v3349 = vpack.c.b16 %v3328, %v3327
      %v3350 = vpack.c.b16 %v3330, %v3329
      %v3351 = vpack.c.b16 %v3332, %v3331
      %v3352 = vpack.c.b16 %v3334, %v3333
      %v3353 = vpack.c.b16 %v3336, %v3335
      %v3354 = vpack.c.b16 %v3338, %v3337
      %v3356 = vsel %vm1552, %v3339, 0
      %v3359 = vsel %vm1552, %v3340, 0
      %v3362 = vsel %vm1552, %v3341, 0
      %v3365 = vsel %vm1552, %v3342, 0
      %v3368 = vsel %vm1552, %v3343, 0
      %v3371 = vsel %vm1552, %v3344, 0
      %v3374 = vsel %vm1552, %v3345, 0
      %v3377 = vsel %vm1552, %v3346, 0
      %v3380 = vsel %vm1552, %v3347, 0
      %v3383 = vsel %vm1552, %v3348, 0
      %v3386 = vsel %vm1552, %v3349, 0
      %v3389 = vsel %vm1552, %v3350, 0
      %v3392 = vsel %vm1552, %v3351, 0
      %v3395 = vsel %vm1552, %v3352, 0
      %v3398 = vsel %vm1552, %v3353, 0
      %v3401 = vsel %vm1552, %v3354, 0
      %v3404 = vsel %vm1601, %v3306, 0
      %3406 = vmatprep.subr.bf16.mxu0 0
      %3407 = vmatpush1.bf16.msra.mxu0 %v3404
      %3408 = vmatprep.subr.bf16.mxu0 0
      %3409 = vmatpush1.bf16.msra.mxu0 0
      %3410 = vmatprep.subr.bf16.mxu0 0
      %3411 = vmatpush1.bf16.msra.mxu0 0
      %3412 = vmatprep.subr.bf16.mxu0 0
      %3413 = vmatpush1.bf16.msra.mxu0 0
      %3414 = vmatprep.subr.bf16.mxu0 0
      %3415 = vmatpush1.bf16.msra.mxu0 0
      %3416 = vmatprep.subr.bf16.mxu0 0
      %3417 = vmatpush1.bf16.msra.mxu0 0
      %3418 = vmatprep.subr.bf16.mxu0 0
      %3419 = vmatpush1.bf16.msra.mxu0 0
      %3420 = vmatprep.subr.bf16.mxu0 0
      %3421 = vmatpush1.bf16.msra.mxu0 0
      %3422 = vmatprep.subr.bf16.mxu0 0
      %3423 = vmatpush1.bf16.msra.mxu0 0
      %3424 = vmatprep.subr.bf16.mxu0 0
      %3425 = vmatpush1.bf16.msra.mxu0 0
      %3426 = vmatprep.subr.bf16.mxu0 0
      %3427 = vmatpush1.bf16.msra.mxu0 0
      %3428 = vmatprep.subr.bf16.mxu0 0
      %3429 = vmatpush1.bf16.msra.mxu0 0
      %3430 = vmatprep.subr.bf16.mxu0 0
      %3431 = vmatpush1.bf16.msra.mxu0 0
      %3432 = vmatprep.subr.bf16.mxu0 0
      %3433 = vmatpush1.bf16.msra.mxu0 0
      %3434 = vmatprep.subr.bf16.mxu0 0
      %3435 = vmatpush1.bf16.msra.mxu0 0
      %3436 = vmatprep.subr.bf16.mxu0 0
      %3437 = vmatpush1.bf16.msra.mxu0 0
      %3438 = vmatprep.mubr.bf16.mxu0 0
      %3439 = vmatmul.mubr.bf16.gmra.mrb[0].mxu0 %v3356
      %v3440 = vpop.f32.mrb[0].mxu0
      %v3441 = vadd.f32 0.0, %v3440
      %v3442 = vpop.f32.mrb[0].mxu0
      %v3443 = vpop.f32.mrb[0].mxu0
      %v3444 = vadd.f32 0.0, %v3443
      %v3445 = vpop.f32.mrb[0].mxu0
      %3446 = vmatprep.mubr.bf16.mxu0 0
      %3447 = vmatmul.mubr.bf16.gmra.mrb[0].mxu0 %v3359
      %v3448 = vpop.f32.mrb[0].mxu0
      %v3449 = vadd.f32 0.0, %v3448
      %v3450 = vpop.f32.mrb[0].mxu0
      %v3451 = vpop.f32.mrb[0].mxu0
      %v3452 = vadd.f32 0.0, %v3451
      %v3453 = vpop.f32.mrb[0].mxu0
      %3454 = vmatprep.mubr.bf16.mxu0 0
      %3455 = vmatmul.mubr.bf16.gmra.mrb[0].mxu0 %v3362
      %v3456 = vpop.f32.mrb[0].mxu0
      %v3457 = vadd.f32 0.0, %v3456
      %v3458 = vpop.f32.mrb[0].mxu0
      %v3459 = vpop.f32.mrb[0].mxu0
      %v3460 = vadd.f32 0.0, %v3459
      %v3461 = vpop.f32.mrb[0].mxu0
      %3462 = vmatprep.mubr.bf16.mxu0 0
      %3463 = vmatmul.mubr.bf16.gmra.mrb[0].mxu0 %v3365
      %v3464 = vpop.f32.mrb[0].mxu0
      %v3465 = vadd.f32 0.0, %v3464
      %v3466 = vpop.f32.mrb[0].mxu0
      %v3467 = vpop.f32.mrb[0].mxu0
      %v3468 = vadd.f32 0.0, %v3467
      %v3469 = vpop.f32.mrb[0].mxu0
      %3470 = vmatprep.mubr.bf16.mxu0 0
      %3471 = vmatmul.mubr.bf16.gmra.mrb[0].mxu0 %v3368
      %v3472 = vpop.f32.mrb[0].mxu0
      %v3473 = vadd.f32 0.0, %v3472
      %v3474 = vpop.f32.mrb[0].mxu0
      %v3475 = vpop.f32.mrb[0].mxu0
      %v3476 = vadd.f32 0.0, %v3475
      %v3477 = vpop.f32.mrb[0].mxu0
      %3478 = vmatprep.mubr.bf16.mxu0 0
      %3479 = vmatmul.mubr.bf16.gmra.mrb[0].mxu0 %v3371
      %v3480 = vpop.f32.mrb[0].mxu0
      %v3481 = vadd.f32 0.0, %v3480
      %v3482 = vpop.f32.mrb[0].mxu0
      %v3483 = vpop.f32.mrb[0].mxu0
      %v3484 = vadd.f32 0.0, %v3483
      %v3485 = vpop.f32.mrb[0].mxu0
      %3486 = vmatprep.mubr.bf16.mxu0 0
      %3487 = vmatmul.mubr.bf16.gmra.mrb[0].mxu0 %v3374
      %v3488 = vpop.f32.mrb[0].mxu0
      %v3489 = vadd.f32 0.0, %v3488
      %v3490 = vpop.f32.mrb[0].mxu0
      %v3491 = vpop.f32.mrb[0].mxu0
      %v3492 = vadd.f32 0.0, %v3491
      %v3493 = vpop.f32.mrb[0].mxu0
      %3494 = vmatprep.mubr.bf16.mxu0 0
      %3495 = vmatmul.mubr.bf16.gmra.mrb[0].mxu0 %v3377
      %v3496 = vpop.f32.mrb[0].mxu0
      %v3497 = vadd.f32 0.0, %v3496
      %v3498 = vpop.f32.mrb[0].mxu0
      %v3499 = vpop.f32.mrb[0].mxu0
      %v3500 = vadd.f32 0.0, %v3499
      %v3501 = vpop.f32.mrb[0].mxu0
      %3502 = vmatprep.mubr.bf16.mxu0 0
      %3503 = vmatmul.mubr.bf16.gmra.mrb[0].mxu0 %v3380
      %v3504 = vpop.f32.mrb[0].mxu0
      %v3505 = vadd.f32 0.0, %v3504
      %v3506 = vpop.f32.mrb[0].mxu0
      %v3507 = vpop.f32.mrb[0].mxu0
      %v3508 = vadd.f32 0.0, %v3507
      %v3509 = vpop.f32.mrb[0].mxu0
      %3510 = vmatprep.mubr.bf16.mxu0 0
      %3511 = vmatmul.mubr.bf16.gmra.mrb[0].mxu0 %v3383
      %v3512 = vpop.f32.mrb[0].mxu0
      %v3513 = vadd.f32 0.0, %v3512
      %v3514 = vpop.f32.mrb[0].mxu0
      %v3515 = vpop.f32.mrb[0].mxu0
      %v3516 = vadd.f32 0.0, %v3515
      %v3517 = vpop.f32.mrb[0].mxu0
      %3518 = vmatprep.mubr.bf16.mxu0 0
      %3519 = vmatmul.mubr.bf16.gmra.mrb[0].mxu0 %v3386
      %v3520 = vpop.f32.mrb[0].mxu0
      %v3521 = vadd.f32 0.0, %v3520
      %v3522 = vpop.f32.mrb[0].mxu0
      %v3523 = vpop.f32.mrb[0].mxu0
      %v3524 = vadd.f32 0.0, %v3523
      %v3525 = vpop.f32.mrb[0].mxu0
      %3526 = vmatprep.mubr.bf16.mxu0 0
      %3527 = vmatmul.mubr.bf16.gmra.mrb[0].mxu0 %v3389
      %v3528 = vpop.f32.mrb[0].mxu0
      %v3529 = vadd.f32 0.0, %v3528
      %v3530 = vpop.f32.mrb[0].mxu0
      %v3531 = vpop.f32.mrb[0].mxu0
      %v3532 = vadd.f32 0.0, %v3531
      %v3533 = vpop.f32.mrb[0].mxu0
      %3534 = vmatprep.mubr.bf16.mxu0 0
      %3535 = vmatmul.mubr.bf16.gmra.mrb[0].mxu0 %v3392
      %v3536 = vpop.f32.mrb[0].mxu0
      %v3537 = vadd.f32 0.0, %v3536
      %v3538 = vpop.f32.mrb[0].mxu0
      %v3539 = vpop.f32.mrb[0].mxu0
      %v3540 = vadd.f32 0.0, %v3539
      %v3541 = vpop.f32.mrb[0].mxu0
      %3542 = vmatprep.mubr.bf16.mxu0 0
      %3543 = vmatmul.mubr.bf16.gmra.mrb[0].mxu0 %v3395
      %v3544 = vpop.f32.mrb[0].mxu0
      %v3545 = vadd.f32 0.0, %v3544
      %v3546 = vpop.f32.mrb[0].mxu0
      %v3547 = vpop.f32.mrb[0].mxu0
      %v3548 = vadd.f32 0.0, %v3547
      %v3549 = vpop.f32.mrb[0].mxu0
      %3550 = vmatprep.mubr.bf16.mxu0 0
      %3551 = vmatmul.mubr.bf16.gmra.mrb[0].mxu0 %v3398
      %v3552 = vpop.f32.mrb[0].mxu0
      %v3553 = vadd.f32 0.0, %v3552
      %v3554 = vpop.f32.mrb[0].mxu0
      %v3555 = vpop.f32.mrb[0].mxu0
      %v3556 = vadd.f32 0.0, %v3555
      %v3557 = vpop.f32.mrb[0].mxu0
      %3558 = vmatprep.mubr.bf16.mxu0 0
      %3559 = vmatmul.mubr.bf16.gmra.mrb[0].mxu0 %v3401
      %v3560 = vpop.f32.mrb[0].mxu0
      %v3561 = vadd.f32 0.0, %v3560
      %v3562 = vpop.f32.mrb[0].mxu0
      %v3563 = vpop.f32.mrb[0].mxu0
      %v3564 = vadd.f32 0.0, %v3563
      %v3565 = vpop.f32.mrb[0].mxu0
      %3566 = vdwg.mxu0
      %v3567 = vadd.f32 %v2841, %v3441
      %v3568 = vadd.f32 %v2842, %v3444
      %v3569 = vadd.f32 %v2843, %v3449
      %v3570 = vadd.f32 %v2844, %v3452
      %v3571 = vadd.f32 %v2845, %v3457
      %v3572 = vadd.f32 %v2846, %v3460
      %v3573 = vadd.f32 %v2847, %v3465
      %v3574 = vadd.f32 %v2848, %v3468
      %v3575 = vadd.f32 %v2849, %v3473
      %v3576 = vadd.f32 %v2850, %v3476
      %v3577 = vadd.f32 %v2851, %v3481
      %v3578 = vadd.f32 %v2852, %v3484
      %v3579 = vadd.f32 %v2853, %v3489
      %v3580 = vadd.f32 %v2854, %v3492
      %v3581 = vadd.f32 %v2855, %v3497
      %v3582 = vadd.f32 %v2856, %v3500
      %v3583 = vadd.f32 %v2857, %v3505
      %v3584 = vadd.f32 %v2858, %v3508
      %v3585 = vadd.f32 %v2859, %v3513
      %v3586 = vadd.f32 %v2860, %v3516
      %v3587 = vadd.f32 %v2861, %v3521
      %v3588 = vadd.f32 %v2862, %v3524
      %v3589 = vadd.f32 %v2863, %v3529
      %v3590 = vadd.f32 %v2864, %v3532
      %v3591 = vadd.f32 %v2865, %v3537
      %v3592 = vadd.f32 %v2866, %v3540
      %v3593 = vadd.f32 %v2867, %v3545
      %v3594 = vadd.f32 %v2868, %v3548
      %v3595 = vadd.f32 %v2869, %v3553
      %v3596 = vadd.f32 %v2870, %v3556
      %v3597 = vadd.f32 %v2871, %v3561
      %v3598 = vadd.f32 %v2872, %v3564
      %v3599 = vld [vmem:[%s951] sm:$0xe]
      %v3600 = vld [vmem:[%s951 + $0xc] sm:$0xe]
      %v3601 = vld [vmem:[%s951 + $0x18] sm:$0xe]
      %v3602 = vld [vmem:[%s951 + $0x24] sm:$0xe]
      %v3603 = vld [vmem:[%s951 + $0x30] sm:$0xe]
      %v3604 = vld [vmem:[%s951 + $0x3c] sm:$0xe]
      %v3605 = vld [vmem:[%s951 + $0x48] sm:$0xe]
      %v3606 = vld [vmem:[%s951 + $0x54] sm:$0xe]
      %v3607 = vld [vmem:[%s951 + $0x60] sm:$0xe]
      %v3608 = vld [vmem:[%s951 + $0x6c] sm:$0xe]
      %v3609 = vld [vmem:[%s951 + $0x78] sm:$0xe]
      %v3610 = vld [vmem:[%s951 + $0x84] sm:$0xe]
      %v3611 = vld [vmem:[%s951 + $0x90] sm:$0xe]
      %v3612 = vld [vmem:[%s951 + $0x9c] sm:$0xe]
      %v3613 = vld [vmem:[%s951 + $0xa8] sm:$0xe]
      %v3614 = vld [vmem:[%s951 + $0xb4] sm:$0xe]
      %v3663 = vrot.slane %v3599, 5
      %v3664 = vrot.slane %v3663, 4
      %v3665 = vrot.slane %v2874, 5
      %v3666 = vsel %vm2108, %v3664, %v3665
      %v3667 = vrot.slane %v3665, 4
      %v3668 = vrot.slane %v2875, 5
      %v3669 = vsel %vm2108, %v3667, %v3668
      %v3670 = vrot.slane %v3600, 5
      %v3671 = vrot.slane %v3670, 4
      %v3672 = vrot.slane %v2877, 5
      %v3673 = vsel %vm2108, %v3671, %v3672
      %v3674 = vrot.slane %v3672, 4
      %v3675 = vrot.slane %v2878, 5
      %v3676 = vsel %vm2108, %v3674, %v3675
      %v3677 = vrot.slane %v3601, 5
      %v3678 = vrot.slane %v3677, 4
      %v3679 = vrot.slane %v2880, 5
      %v3680 = vsel %vm2108, %v3678, %v3679
      %v3681 = vrot.slane %v3679, 4
      %v3682 = vrot.slane %v2881, 5
      %v3683 = vsel %vm2108, %v3681, %v3682
      %v3684 = vrot.slane %v3602, 5
      %v3685 = vrot.slane %v3684, 4
      %v3686 = vrot.slane %v2883, 5
      %v3687 = vsel %vm2108, %v3685, %v3686
      %v3688 = vrot.slane %v3686, 4
      %v3689 = vrot.slane %v2884, 5
      %v3690 = vsel %vm2108, %v3688, %v3689
      %v3691 = vrot.slane %v3603, 5
      %v3692 = vrot.slane %v3691, 4
      %v3693 = vrot.slane %v2886, 5
      %v3694 = vsel %vm2108, %v3692, %v3693
      %v3695 = vrot.slane %v3693, 4
      %v3696 = vrot.slane %v2887, 5
      %v3697 = vsel %vm2108, %v3695, %v3696
      %v3698 = vrot.slane %v3604, 5
      %v3699 = vrot.slane %v3698, 4
      %v3700 = vrot.slane %v2889, 5
      %v3701 = vsel %vm2108, %v3699, %v3700
      %v3702 = vrot.slane %v3700, 4
      %v3703 = vrot.slane %v2890, 5
      %v3704 = vsel %vm2108, %v3702, %v3703
      %v3705 = vrot.slane %v3605, 5
      %v3706 = vrot.slane %v3705, 4
      %v3707 = vrot.slane %v2892, 5
      %v3708 = vsel %vm2108, %v3706, %v3707
      %v3709 = vrot.slane %v3707, 4
      %v3710 = vrot.slane %v2893, 5
      %v3711 = vsel %vm2108, %v3709, %v3710
      %v3712 = vrot.slane %v3606, 5
      %v3713 = vrot.slane %v3712, 4
      %v3714 = vrot.slane %v2895, 5
      %v3715 = vsel %vm2108, %v3713, %v3714
      %v3716 = vrot.slane %v3714, 4
      %v3717 = vrot.slane %v2896, 5
      %v3718 = vsel %vm2108, %v3716, %v3717
      %v3719 = vrot.slane %v3607, 5
      %v3720 = vrot.slane %v3719, 4
      %v3721 = vrot.slane %v2898, 5
      %v3722 = vsel %vm2108, %v3720, %v3721
      %v3723 = vrot.slane %v3721, 4
      %v3724 = vrot.slane %v2899, 5
      %v3725 = vsel %vm2108, %v3723, %v3724
      %v3726 = vrot.slane %v3608, 5
      %v3727 = vrot.slane %v3726, 4
      %v3728 = vrot.slane %v2901, 5
      %v3729 = vsel %vm2108, %v3727, %v3728
      %v3730 = vrot.slane %v3728, 4
      %v3731 = vrot.slane %v2902, 5
      %v3732 = vsel %vm2108, %v3730, %v3731
      %v3733 = vrot.slane %v3609, 5
      %v3734 = vrot.slane %v3733, 4
      %v3735 = vrot.slane %v2904, 5
      %v3736 = vsel %vm2108, %v3734, %v3735
      %v3737 = vrot.slane %v3735, 4
      %v3738 = vrot.slane %v2905, 5
      %v3739 = vsel %vm2108, %v3737, %v3738
      %v3740 = vrot.slane %v3610, 5
      %v3741 = vrot.slane %v3740, 4
      %v3742 = vrot.slane %v2907, 5
      %v3743 = vsel %vm2108, %v3741, %v3742
      %v3744 = vrot.slane %v3742, 4
      %v3745 = vrot.slane %v2908, 5
      %v3746 = vsel %vm2108, %v3744, %v3745
      %v3747 = vrot.slane %v3611, 5
      %v3748 = vrot.slane %v3747, 4
      %v3749 = vrot.slane %v2910, 5
      %v3750 = vsel %vm2108, %v3748, %v3749
      %v3751 = vrot.slane %v3749, 4
      %v3752 = vrot.slane %v2911, 5
      %v3753 = vsel %vm2108, %v3751, %v3752
      %v3754 = vrot.slane %v3612, 5
      %v3755 = vrot.slane %v3754, 4
      %v3756 = vrot.slane %v2913, 5
      %v3757 = vsel %vm2108, %v3755, %v3756
      %v3758 = vrot.slane %v3756, 4
      %v3759 = vrot.slane %v2914, 5
      %v3760 = vsel %vm2108, %v3758, %v3759
      %v3761 = vrot.slane %v3613, 5
      %v3762 = vrot.slane %v3761, 4
      %v3763 = vrot.slane %v2916, 5
      %v3764 = vsel %vm2108, %v3762, %v3763
      %v3765 = vrot.slane %v3763, 4
      %v3766 = vrot.slane %v2917, 5
      %v3767 = vsel %vm2108, %v3765, %v3766
      %v3768 = vrot.slane %v3614, 5
      %v3769 = vrot.slane %v3768, 4
      %v3770 = vrot.slane %v2919, 5
      %v3771 = vsel %vm2108, %v3769, %v3770
      %v3772 = vrot.slane %v3770, 4
      %v3773 = vrot.slane %v2920, 5
      %v3774 = vsel %vm2108, %v3772, %v3773
      %s3775 = scalar_lea.vmem %s1, 10
      %v3776 = vld [vmem:[%s3775] sm:$0x3]
      %v3777 = vunpack.c.l.b16 %v3666
      %v3778 = vunpack.c.l.b16 %v3669
      %v3779 = vunpack.c.l.b16 %v3673
      %v3780 = vunpack.c.l.b16 %v3676
      %v3781 = vunpack.c.l.b16 %v3680
      %v3782 = vunpack.c.l.b16 %v3683
      %v3783 = vunpack.c.l.b16 %v3687
      %v3784 = vunpack.c.l.b16 %v3690
      %v3785 = vunpack.c.l.b16 %v3694
      %v3786 = vunpack.c.l.b16 %v3697
      %v3787 = vunpack.c.l.b16 %v3701
      %v3788 = vunpack.c.l.b16 %v3704
      %v3789 = vunpack.c.l.b16 %v3708
      %v3790 = vunpack.c.l.b16 %v3711
      %v3791 = vunpack.c.l.b16 %v3715
      %v3792 = vunpack.c.l.b16 %v3718
      %v3793 = vunpack.c.l.b16 %v3722
      %v3794 = vunpack.c.l.b16 %v3725
      %v3795 = vunpack.c.l.b16 %v3729
      %v3796 = vunpack.c.l.b16 %v3732
      %v3797 = vunpack.c.l.b16 %v3736
      %v3798 = vunpack.c.l.b16 %v3739
      %v3799 = vunpack.c.l.b16 %v3743
      %v3800 = vunpack.c.l.b16 %v3746
      %v3801 = vunpack.c.l.b16 %v3750
      %v3802 = vunpack.c.l.b16 %v3753
      %v3803 = vunpack.c.l.b16 %v3757
      %v3804 = vunpack.c.l.b16 %v3760
      %v3805 = vunpack.c.l.b16 %v3764
      %v3806 = vunpack.c.l.b16 %v3767
      %v3807 = vunpack.c.l.b16 %v3771
      %v3808 = vunpack.c.l.b16 %v3774
      %v3809 = vpack.c.b16 %v3778, %v3777
      %v3810 = vpack.c.b16 %v3780, %v3779
      %v3811 = vpack.c.b16 %v3782, %v3781
      %v3812 = vpack.c.b16 %v3784, %v3783
      %v3813 = vpack.c.b16 %v3786, %v3785
      %v3814 = vpack.c.b16 %v3788, %v3787
      %v3815 = vpack.c.b16 %v3790, %v3789
      %v3816 = vpack.c.b16 %v3792, %v3791
      %v3817 = vpack.c.b16 %v3794, %v3793
      %v3818 = vpack.c.b16 %v3796, %v3795
      %v3819 = vpack.c.b16 %v3798, %v3797
      %v3820 = vpack.c.b16 %v3800, %v3799
      %v3821 = vpack.c.b16 %v3802, %v3801
      %v3822 = vpack.c.b16 %v3804, %v3803
      %v3823 = vpack.c.b16 %v3806, %v3805
      %v3824 = vpack.c.b16 %v3808, %v3807
      %v3826 = vsel %vm1552, %v3809, 0
      %v3829 = vsel %vm1552, %v3810, 0
      %v3832 = vsel %vm1552, %v3811, 0
      %v3835 = vsel %vm1552, %v3812, 0
      %v3838 = vsel %vm1552, %v3813, 0
      %v3841 = vsel %vm1552, %v3814, 0
      %v3844 = vsel %vm1552, %v3815, 0
      %v3847 = vsel %vm1552, %v3816, 0
      %v3850 = vsel %vm1552, %v3817, 0
      %v3853 = vsel %vm1552, %v3818, 0
      %v3856 = vsel %vm1552, %v3819, 0
      %v3859 = vsel %vm1552, %v3820, 0
      %v3862 = vsel %vm1552, %v3821, 0
      %v3865 = vsel %vm1552, %v3822, 0
      %v3868 = vsel %vm1552, %v3823, 0
      %v3871 = vsel %vm1552, %v3824, 0
      %v3874 = vsel %vm1601, %v3776, 0
      %3876 = vmatprep.subr.bf16.mxu0 0
      %3877 = vmatpush1.bf16.msra.mxu0 %v3874
      %3878 = vmatprep.subr.bf16.mxu0 0
      %3879 = vmatpush1.bf16.msra.mxu0 0
      %3880 = vmatprep.subr.bf16.mxu0 0
      %3881 = vmatpush1.bf16.msra.mxu0 0
      %3882 = vmatprep.subr.bf16.mxu0 0
      %3883 = vmatpush1.bf16.msra.mxu0 0
      %3884 = vmatprep.subr.bf16.mxu0 0
      %3885 = vmatpush1.bf16.msra.mxu0 0
      %3886 = vmatprep.subr.bf16.mxu0 0
      %3887 = vmatpush1.bf16.msra.mxu0 0
      %3888 = vmatprep.subr.bf16.mxu0 0
      %3889 = vmatpush1.bf16.msra.mxu0 0
      %3890 = vmatprep.subr.bf16.mxu0 0
      %3891 = vmatpush1.bf16.msra.mxu0 0
      %3892 = vmatprep.subr.bf16.mxu0 0
      %3893 = vmatpush1.bf16.msra.mxu0 0
      %3894 = vmatprep.subr.bf16.mxu0 0
      %3895 = vmatpush1.bf16.msra.mxu0 0
      %3896 = vmatprep.subr.bf16.mxu0 0
      %3897 = vmatpush1.bf16.msra.mxu0 0
      %3898 = vmatprep.subr.bf16.mxu0 0
      %3899 = vmatpush1.bf16.msra.mxu0 0
      %3900 = vmatprep.subr.bf16.mxu0 0
      %3901 = vmatpush1.bf16.msra.mxu0 0
      %3902 = vmatprep.subr.bf16.mxu0 0
      %3903 = vmatpush1.bf16.msra.mxu0 0
      %3904 = vmatprep.subr.bf16.mxu0 0
      %3905 = vmatpush1.bf16.msra.mxu0 0
      %3906 = vmatprep.subr.bf16.mxu0 0
      %3907 = vmatpush1.bf16.msra.mxu0 0
      %3908 = vmatprep.mubr.bf16.mxu0 0
      %3909 = vmatmul.mubr.bf16.gmra.mrb[0].mxu0 %v3826
      %v3910 = vpop.f32.mrb[0].mxu0
      %v3911 = vadd.f32 0.0, %v3910
      %v3912 = vpop.f32.mrb[0].mxu0
      %v3913 = vpop.f32.mrb[0].mxu0
      %v3914 = vadd.f32 0.0, %v3913
      %v3915 = vpop.f32.mrb[0].mxu0
      %3916 = vmatprep.mubr.bf16.mxu0 0
      %3917 = vmatmul.mubr.bf16.gmra.mrb[0].mxu0 %v3829
      %v3918 = vpop.f32.mrb[0].mxu0
      %v3919 = vadd.f32 0.0, %v3918
      %v3920 = vpop.f32.mrb[0].mxu0
      %v3921 = vpop.f32.mrb[0].mxu0
      %v3922 = vadd.f32 0.0, %v3921
      %v3923 = vpop.f32.mrb[0].mxu0
      %3924 = vmatprep.mubr.bf16.mxu0 0
      %3925 = vmatmul.mubr.bf16.gmra.mrb[0].mxu0 %v3832
      %v3926 = vpop.f32.mrb[0].mxu0
      %v3927 = vadd.f32 0.0, %v3926
      %v3928 = vpop.f32.mrb[0].mxu0
      %v3929 = vpop.f32.mrb[0].mxu0
      %v3930 = vadd.f32 0.0, %v3929
      %v3931 = vpop.f32.mrb[0].mxu0
      %3932 = vmatprep.mubr.bf16.mxu0 0
      %3933 = vmatmul.mubr.bf16.gmra.mrb[0].mxu0 %v3835
      %v3934 = vpop.f32.mrb[0].mxu0
      %v3935 = vadd.f32 0.0, %v3934
      %v3936 = vpop.f32.mrb[0].mxu0
      %v3937 = vpop.f32.mrb[0].mxu0
      %v3938 = vadd.f32 0.0, %v3937
      %v3939 = vpop.f32.mrb[0].mxu0
      %3940 = vmatprep.mubr.bf16.mxu0 0
      %3941 = vmatmul.mubr.bf16.gmra.mrb[0].mxu0 %v3838
      %v3942 = vpop.f32.mrb[0].mxu0
      %v3943 = vadd.f32 0.0, %v3942
      %v3944 = vpop.f32.mrb[0].mxu0
      %v3945 = vpop.f32.mrb[0].mxu0
      %v3946 = vadd.f32 0.0, %v3945
      %v3947 = vpop.f32.mrb[0].mxu0
      %3948 = vmatprep.mubr.bf16.mxu0 0
      %3949 = vmatmul.mubr.bf16.gmra.mrb[0].mxu0 %v3841
      %v3950 = vpop.f32.mrb[0].mxu0
      %v3951 = vadd.f32 0.0, %v3950
      %v3952 = vpop.f32.mrb[0].mxu0
      %v3953 = vpop.f32.mrb[0].mxu0
      %v3954 = vadd.f32 0.0, %v3953
      %v3955 = vpop.f32.mrb[0].mxu0
      %3956 = vmatprep.mubr.bf16.mxu0 0
      %3957 = vmatmul.mubr.bf16.gmra.mrb[0].mxu0 %v3844
      %v3958 = vpop.f32.mrb[0].mxu0
      %v3959 = vadd.f32 0.0, %v3958
      %v3960 = vpop.f32.mrb[0].mxu0
      %v3961 = vpop.f32.mrb[0].mxu0
      %v3962 = vadd.f32 0.0, %v3961
      %v3963 = vpop.f32.mrb[0].mxu0
      %3964 = vmatprep.mubr.bf16.mxu0 0
      %3965 = vmatmul.mubr.bf16.gmra.mrb[0].mxu0 %v3847
      %v3966 = vpop.f32.mrb[0].mxu0
      %v3967 = vadd.f32 0.0, %v3966
      %v3968 = vpop.f32.mrb[0].mxu0
      %v3969 = vpop.f32.mrb[0].mxu0
      %v3970 = vadd.f32 0.0, %v3969
      %v3971 = vpop.f32.mrb[0].mxu0
      %3972 = vmatprep.mubr.bf16.mxu0 0
      %3973 = vmatmul.mubr.bf16.gmra.mrb[0].mxu0 %v3850
      %v3974 = vpop.f32.mrb[0].mxu0
      %v3975 = vadd.f32 0.0, %v3974
      %v3976 = vpop.f32.mrb[0].mxu0
      %v3977 = vpop.f32.mrb[0].mxu0
      %v3978 = vadd.f32 0.0, %v3977
      %v3979 = vpop.f32.mrb[0].mxu0
      %3980 = vmatprep.mubr.bf16.mxu0 0
      %3981 = vmatmul.mubr.bf16.gmra.mrb[0].mxu0 %v3853
      %v3982 = vpop.f32.mrb[0].mxu0
      %v3983 = vadd.f32 0.0, %v3982
      %v3984 = vpop.f32.mrb[0].mxu0
      %v3985 = vpop.f32.mrb[0].mxu0
      %v3986 = vadd.f32 0.0, %v3985
      %v3987 = vpop.f32.mrb[0].mxu0
      %3988 = vmatprep.mubr.bf16.mxu0 0
      %3989 = vmatmul.mubr.bf16.gmra.mrb[0].mxu0 %v3856
      %v3990 = vpop.f32.mrb[0].mxu0
      %v3991 = vadd.f32 0.0, %v3990
      %v3992 = vpop.f32.mrb[0].mxu0
      %v3993 = vpop.f32.mrb[0].mxu0
      %v3994 = vadd.f32 0.0, %v3993
      %v3995 = vpop.f32.mrb[0].mxu0
      %3996 = vmatprep.mubr.bf16.mxu0 0
      %3997 = vmatmul.mubr.bf16.gmra.mrb[0].mxu0 %v3859
      %v3998 = vpop.f32.mrb[0].mxu0
      %v3999 = vadd.f32 0.0, %v3998
      %v4000 = vpop.f32.mrb[0].mxu0
      %v4001 = vpop.f32.mrb[0].mxu0
      %v4002 = vadd.f32 0.0, %v4001
      %v4003 = vpop.f32.mrb[0].mxu0
      %4004 = vmatprep.mubr.bf16.mxu0 0
      %4005 = vmatmul.mubr.bf16.gmra.mrb[0].mxu0 %v3862
      %v4006 = vpop.f32.mrb[0].mxu0
      %v4007 = vadd.f32 0.0, %v4006
      %v4008 = vpop.f32.mrb[0].mxu0
      %v4009 = vpop.f32.mrb[0].mxu0
      %v4010 = vadd.f32 0.0, %v4009
      %v4011 = vpop.f32.mrb[0].mxu0
      %4012 = vmatprep.mubr.bf16.mxu0 0
      %4013 = vmatmul.mubr.bf16.gmra.mrb[0].mxu0 %v3865
      %v4014 = vpop.f32.mrb[0].mxu0
      %v4015 = vadd.f32 0.0, %v4014
      %v4016 = vpop.f32.mrb[0].mxu0
      %v4017 = vpop.f32.mrb[0].mxu0
      %v4018 = vadd.f32 0.0, %v4017
      %v4019 = vpop.f32.mrb[0].mxu0
      %4020 = vmatprep.mubr.bf16.mxu0 0
      %4021 = vmatmul.mubr.bf16.gmra.mrb[0].mxu0 %v3868
      %v4022 = vpop.f32.mrb[0].mxu0
      %v4023 = vadd.f32 0.0, %v4022
      %v4024 = vpop.f32.mrb[0].mxu0
      %v4025 = vpop.f32.mrb[0].mxu0
      %v4026 = vadd.f32 0.0, %v4025
      %v4027 = vpop.f32.mrb[0].mxu0
      %4028 = vmatprep.mubr.bf16.mxu0 0
      %4029 = vmatmul.mubr.bf16.gmra.mrb[0].mxu0 %v3871
      %v4030 = vpop.f32.mrb[0].mxu0
      %v4031 = vadd.f32 0.0, %v4030
      %v4032 = vpop.f32.mrb[0].mxu0
      %v4033 = vpop.f32.mrb[0].mxu0
      %v4034 = vadd.f32 0.0, %v4033
      %v4035 = vpop.f32.mrb[0].mxu0
      %4036 = vdwg.mxu0
      %v4037 = vadd.f32 %v3567, %v3911
      %v4038 = vadd.f32 %v3568, %v3914
      %v4039 = vadd.f32 %v3569, %v3919
      %v4040 = vadd.f32 %v3570, %v3922
      %v4041 = vadd.f32 %v3571, %v3927
      %v4042 = vadd.f32 %v3572, %v3930
      %v4043 = vadd.f32 %v3573, %v3935
      %v4044 = vadd.f32 %v3574, %v3938
      %v4045 = vadd.f32 %v3575, %v3943
      %v4046 = vadd.f32 %v3576, %v3946
      %v4047 = vadd.f32 %v3577, %v3951
      %v4048 = vadd.f32 %v3578, %v3954
      %v4049 = vadd.f32 %v3579, %v3959
      %v4050 = vadd.f32 %v3580, %v3962
      %v4051 = vadd.f32 %v3581, %v3967
      %v4052 = vadd.f32 %v3582, %v3970
      %v4053 = vadd.f32 %v3583, %v3975
      %v4054 = vadd.f32 %v3584, %v3978
      %v4055 = vadd.f32 %v3585, %v3983
      %v4056 = vadd.f32 %v3586, %v3986
      %v4057 = vadd.f32 %v3587, %v3991
      %v4058 = vadd.f32 %v3588, %v3994
      %v4059 = vadd.f32 %v3589, %v3999
      %v4060 = vadd.f32 %v3590, %v4002
      %v4061 = vadd.f32 %v3591, %v4007
      %v4062 = vadd.f32 %v3592, %v4010
      %v4063 = vadd.f32 %v3593, %v4015
      %v4064 = vadd.f32 %v3594, %v4018
      %v4065 = vadd.f32 %v3595, %v4023
      %v4066 = vadd.f32 %v3596, %v4026
      %v4067 = vadd.f32 %v3597, %v4031
      %v4068 = vadd.f32 %v3598, %v4034
      %s4069 = scalar_lea.vmem [#allocation2], 24
      %v4070 = vld [vmem:[%s4069] sm:$0xf]
      %v4071 = vld [vmem:[%s4069 + $0x4] sm:$0xf]
      %v4072 = vld [vmem:[%s4069 + $0xc] sm:$0xf]
      %v4073 = vld [vmem:[%s4069 + $0x10] sm:$0xf]
      %v4074 = vld [vmem:[%s4069 + $0x18] sm:$0xf]
      %v4075 = vld [vmem:[%s4069 + $0x1c] sm:$0xf]
      %v4076 = vld [vmem:[%s4069 + $0x24] sm:$0xf]
      %v4077 = vld [vmem:[%s4069 + $0x28] sm:$0xf]
      %v4078 = vld [vmem:[%s4069 + $0x30] sm:$0xf]
      %v4079 = vld [vmem:[%s4069 + $0x34] sm:$0xf]
      %v4080 = vld [vmem:[%s4069 + $0x3c] sm:$0xf]
      %v4081 = vld [vmem:[%s4069 + $0x40] sm:$0xf]
      %v4082 = vld [vmem:[%s4069 + $0x48] sm:$0xf]
      %v4083 = vld [vmem:[%s4069 + $0x4c] sm:$0xf]
      %v4084 = vld [vmem:[%s4069 + $0x54] sm:$0xf]
      %v4085 = vld [vmem:[%s4069 + $0x58] sm:$0xf]
      %v4086 = vld [vmem:[%s4069 + $0x60] sm:$0xf]
      %v4087 = vld [vmem:[%s4069 + $0x64] sm:$0xf]
      %v4088 = vld [vmem:[%s4069 + $0x6c] sm:$0xf]
      %v4089 = vld [vmem:[%s4069 + $0x70] sm:$0xf]
      %v4090 = vld [vmem:[%s4069 + $0x78] sm:$0xf]
      %v4091 = vld [vmem:[%s4069 + $0x7c] sm:$0xf]
      %v4092 = vld [vmem:[%s4069 + $0x84] sm:$0xf]
      %v4093 = vld [vmem:[%s4069 + $0x88] sm:$0xf]
      %v4094 = vld [vmem:[%s4069 + $0x90] sm:$0xf]
      %v4095 = vld [vmem:[%s4069 + $0x94] sm:$0xf]
      %v4096 = vld [vmem:[%s4069 + $0x9c] sm:$0xf]
      %v4097 = vld [vmem:[%s4069 + $0xa0] sm:$0xf]
      %v4098 = vld [vmem:[%s4069 + $0xa8] sm:$0xf]
      %v4099 = vld [vmem:[%s4069 + $0xac] sm:$0xf]
      %v4100 = vld [vmem:[%s4069 + $0xb4] sm:$0xf]
      %v4101 = vld [vmem:[%s4069 + $0xb8] sm:$0xf]
      %s4102 = scalar_lea.vmem %s1, 12
      %v4103 = vld [vmem:[%s4102] sm:$0x3]
      %v4136 = vunpack.c.l.b16 %v4070
      %v4137 = vunpack.c.l.b16 %v4071
      %v4138 = vunpack.c.l.b16 %v4072
      %v4139 = vunpack.c.l.b16 %v4073
      %v4140 = vunpack.c.l.b16 %v4074
      %v4141 = vunpack.c.l.b16 %v4075
      %v4142 = vunpack.c.l.b16 %v4076
      %v4143 = vunpack.c.l.b16 %v4077
      %v4144 = vunpack.c.l.b16 %v4078
      %v4145 = vunpack.c.l.b16 %v4079
      %v4146 = vunpack.c.l.b16 %v4080
      %v4147 = vunpack.c.l.b16 %v4081
      %v4148 = vunpack.c.l.b16 %v4082
      %v4149 = vunpack.c.l.b16 %v4083
      %v4150 = vunpack.c.l.b16 %v4084
      %v4151 = vunpack.c.l.b16 %v4085
      %v4152 = vunpack.c.l.b16 %v4086
      %v4153 = vunpack.c.l.b16 %v4087
      %v4154 = vunpack.c.l.b16 %v4088
      %v4155 = vunpack.c.l.b16 %v4089
      %v4156 = vunpack.c.l.b16 %v4090
      %v4157 = vunpack.c.l.b16 %v4091
      %v4158 = vunpack.c.l.b16 %v4092
      %v4159 = vunpack.c.l.b16 %v4093
      %v4160 = vunpack.c.l.b16 %v4094
      %v4161 = vunpack.c.l.b16 %v4095
      %v4162 = vunpack.c.l.b16 %v4096
      %v4163 = vunpack.c.l.b16 %v4097
      %v4164 = vunpack.c.l.b16 %v4098
      %v4165 = vunpack.c.l.b16 %v4099
      %v4166 = vunpack.c.l.b16 %v4100
      %v4167 = vunpack.c.l.b16 %v4101
      %v4168 = vpack.c.b16 %v4137, %v4136
      %v4169 = vpack.c.b16 %v4139, %v4138
      %v4170 = vpack.c.b16 %v4141, %v4140
      %v4171 = vpack.c.b16 %v4143, %v4142
      %v4172 = vpack.c.b16 %v4145, %v4144
      %v4173 = vpack.c.b16 %v4147, %v4146
      %v4174 = vpack.c.b16 %v4149, %v4148
      %v4175 = vpack.c.b16 %v4151, %v4150
      %v4176 = vpack.c.b16 %v4153, %v4152
      %v4177 = vpack.c.b16 %v4155, %v4154
      %v4178 = vpack.c.b16 %v4157, %v4156
      %v4179 = vpack.c.b16 %v4159, %v4158
      %v4180 = vpack.c.b16 %v4161, %v4160
      %v4181 = vpack.c.b16 %v4163, %v4162
      %v4182 = vpack.c.b16 %v4165, %v4164
      %v4183 = vpack.c.b16 %v4167, %v4166
      %v4185 = vsel %vm1552, %v4168, 0
      %v4188 = vsel %vm1552, %v4169, 0
      %v4191 = vsel %vm1552, %v4170, 0
      %v4194 = vsel %vm1552, %v4171, 0
      %v4197 = vsel %vm1552, %v4172, 0
      %v4200 = vsel %vm1552, %v4173, 0
      %v4203 = vsel %vm1552, %v4174, 0
      %v4206 = vsel %vm1552, %v4175, 0
      %v4209 = vsel %vm1552, %v4176, 0
      %v4212 = vsel %vm1552, %v4177, 0
      %v4215 = vsel %vm1552, %v4178, 0
      %v4218 = vsel %vm1552, %v4179, 0
      %v4221 = vsel %vm1552, %v4180, 0
      %v4224 = vsel %vm1552, %v4181, 0
      %v4227 = vsel %vm1552, %v4182, 0
      %v4230 = vsel %vm1552, %v4183, 0
      %v4233 = vsel %vm1601, %v4103, 0
      %4235 = vmatprep.subr.bf16.mxu0 0
      %4236 = vmatpush1.bf16.msra.mxu0 %v4233
      %4237 = vmatprep.subr.bf16.mxu0 0
      %4238 = vmatpush1.bf16.msra.mxu0 0
      %4239 = vmatprep.subr.bf16.mxu0 0
      %4240 = vmatpush1.bf16.msra.mxu0 0
      %4241 = vmatprep.subr.bf16.mxu0 0
      %4242 = vmatpush1.bf16.msra.mxu0 0
      %4243 = vmatprep.subr.bf16.mxu0 0
      %4244 = vmatpush1.bf16.msra.mxu0 0
      %4245 = vmatprep.subr.bf16.mxu0 0
      %4246 = vmatpush1.bf16.msra.mxu0 0
      %4247 = vmatprep.subr.bf16.mxu0 0
      %4248 = vmatpush1.bf16.msra.mxu0 0
      %4249 = vmatprep.subr.bf16.mxu0 0
      %4250 = vmatpush1.bf16.msra.mxu0 0
      %4251 = vmatprep.subr.bf16.mxu0 0
      %4252 = vmatpush1.bf16.msra.mxu0 0
      %4253 = vmatprep.subr.bf16.mxu0 0
      %4254 = vmatpush1.bf16.msra.mxu0 0
      %4255 = vmatprep.subr.bf16.mxu0 0
      %4256 = vmatpush1.bf16.msra.mxu0 0
      %4257 = vmatprep.subr.bf16.mxu0 0
      %4258 = vmatpush1.bf16.msra.mxu0 0
      %4259 = vmatprep.subr.bf16.mxu0 0
      %4260 = vmatpush1.bf16.msra.mxu0 0
      %4261 = vmatprep.subr.bf16.mxu0 0
      %4262 = vmatpush1.bf16.msra.mxu0 0
      %4263 = vmatprep.subr.bf16.mxu0 0
      %4264 = vmatpush1.bf16.msra.mxu0 0
      %4265 = vmatprep.subr.bf16.mxu0 0
      %4266 = vmatpush1.bf16.msra.mxu0 0
      %4267 = vmatprep.mubr.bf16.mxu0 0
      %4268 = vmatmul.mubr.bf16.gmra.mrb[0].mxu0 %v4185
      %v4269 = vpop.f32.mrb[0].mxu0
      %v4270 = vadd.f32 0.0, %v4269
      %v4271 = vpop.f32.mrb[0].mxu0
      %v4272 = vpop.f32.mrb[0].mxu0
      %v4273 = vadd.f32 0.0, %v4272
      %v4274 = vpop.f32.mrb[0].mxu0
      %4275 = vmatprep.mubr.bf16.mxu0 0
      %4276 = vmatmul.mubr.bf16.gmra.mrb[0].mxu0 %v4188
      %v4277 = vpop.f32.mrb[0].mxu0
      %v4278 = vadd.f32 0.0, %v4277
      %v4279 = vpop.f32.mrb[0].mxu0
      %v4280 = vpop.f32.mrb[0].mxu0
      %v4281 = vadd.f32 0.0, %v4280
      %v4282 = vpop.f32.mrb[0].mxu0
      %4283 = vmatprep.mubr.bf16.mxu0 0
      %4284 = vmatmul.mubr.bf16.gmra.mrb[0].mxu0 %v4191
      %v4285 = vpop.f32.mrb[0].mxu0
      %v4286 = vadd.f32 0.0, %v4285
      %v4287 = vpop.f32.mrb[0].mxu0
      %v4288 = vpop.f32.mrb[0].mxu0
      %v4289 = vadd.f32 0.0, %v4288
      %v4290 = vpop.f32.mrb[0].mxu0
      %4291 = vmatprep.mubr.bf16.mxu0 0
      %4292 = vmatmul.mubr.bf16.gmra.mrb[0].mxu0 %v4194
      %v4293 = vpop.f32.mrb[0].mxu0
      %v4294 = vadd.f32 0.0, %v4293
      %v4295 = vpop.f32.mrb[0].mxu0
      %v4296 = vpop.f32.mrb[0].mxu0
      %v4297 = vadd.f32 0.0, %v4296
      %v4298 = vpop.f32.mrb[0].mxu0
      %4299 = vmatprep.mubr.bf16.mxu0 0
      %4300 = vmatmul.mubr.bf16.gmra.mrb[0].mxu0 %v4197
      %v4301 = vpop.f32.mrb[0].mxu0
      %v4302 = vadd.f32 0.0, %v4301
      %v4303 = vpop.f32.mrb[0].mxu0
      %v4304 = vpop.f32.mrb[0].mxu0
      %v4305 = vadd.f32 0.0, %v4304
      %v4306 = vpop.f32.mrb[0].mxu0
      %4307 = vmatprep.mubr.bf16.mxu0 0
      %4308 = vmatmul.mubr.bf16.gmra.mrb[0].mxu0 %v4200
      %v4309 = vpop.f32.mrb[0].mxu0
      %v4310 = vadd.f32 0.0, %v4309
      %v4311 = vpop.f32.mrb[0].mxu0
      %v4312 = vpop.f32.mrb[0].mxu0
      %v4313 = vadd.f32 0.0, %v4312
      %v4314 = vpop.f32.mrb[0].mxu0
      %4315 = vmatprep.mubr.bf16.mxu0 0
      %4316 = vmatmul.mubr.bf16.gmra.mrb[0].mxu0 %v4203
      %v4317 = vpop.f32.mrb[0].mxu0
      %v4318 = vadd.f32 0.0, %v4317
      %v4319 = vpop.f32.mrb[0].mxu0
      %v4320 = vpop.f32.mrb[0].mxu0
      %v4321 = vadd.f32 0.0, %v4320
      %v4322 = vpop.f32.mrb[0].mxu0
      %4323 = vmatprep.mubr.bf16.mxu0 0
      %4324 = vmatmul.mubr.bf16.gmra.mrb[0].mxu0 %v4206
      %v4325 = vpop.f32.mrb[0].mxu0
      %v4326 = vadd.f32 0.0, %v4325
      %v4327 = vpop.f32.mrb[0].mxu0
      %v4328 = vpop.f32.mrb[0].mxu0
      %v4329 = vadd.f32 0.0, %v4328
      %v4330 = vpop.f32.mrb[0].mxu0
      %4331 = vmatprep.mubr.bf16.mxu0 0
      %4332 = vmatmul.mubr.bf16.gmra.mrb[0].mxu0 %v4209
      %v4333 = vpop.f32.mrb[0].mxu0
      %v4334 = vadd.f32 0.0, %v4333
      %v4335 = vpop.f32.mrb[0].mxu0
      %v4336 = vpop.f32.mrb[0].mxu0
      %v4337 = vadd.f32 0.0, %v4336
      %v4338 = vpop.f32.mrb[0].mxu0
      %4339 = vmatprep.mubr.bf16.mxu0 0
      %4340 = vmatmul.mubr.bf16.gmra.mrb[0].mxu0 %v4212
      %v4341 = vpop.f32.mrb[0].mxu0
      %v4342 = vadd.f32 0.0, %v4341
      %v4343 = vpop.f32.mrb[0].mxu0
      %v4344 = vpop.f32.mrb[0].mxu0
      %v4345 = vadd.f32 0.0, %v4344
      %v4346 = vpop.f32.mrb[0].mxu0
      %4347 = vmatprep.mubr.bf16.mxu0 0
      %4348 = vmatmul.mubr.bf16.gmra.mrb[0].mxu0 %v4215
      %v4349 = vpop.f32.mrb[0].mxu0
      %v4350 = vadd.f32 0.0, %v4349
      %v4351 = vpop.f32.mrb[0].mxu0
      %v4352 = vpop.f32.mrb[0].mxu0
      %v4353 = vadd.f32 0.0, %v4352
      %v4354 = vpop.f32.mrb[0].mxu0
      %4355 = vmatprep.mubr.bf16.mxu0 0
      %4356 = vmatmul.mubr.bf16.gmra.mrb[0].mxu0 %v4218
      %v4357 = vpop.f32.mrb[0].mxu0
      %v4358 = vadd.f32 0.0, %v4357
      %v4359 = vpop.f32.mrb[0].mxu0
      %v4360 = vpop.f32.mrb[0].mxu0
      %v4361 = vadd.f32 0.0, %v4360
      %v4362 = vpop.f32.mrb[0].mxu0
      %4363 = vmatprep.mubr.bf16.mxu0 0
      %4364 = vmatmul.mubr.bf16.gmra.mrb[0].mxu0 %v4221
      %v4365 = vpop.f32.mrb[0].mxu0
      %v4366 = vadd.f32 0.0, %v4365
      %v4367 = vpop.f32.mrb[0].mxu0
      %v4368 = vpop.f32.mrb[0].mxu0
      %v4369 = vadd.f32 0.0, %v4368
      %v4370 = vpop.f32.mrb[0].mxu0
      %4371 = vmatprep.mubr.bf16.mxu0 0
      %4372 = vmatmul.mubr.bf16.gmra.mrb[0].mxu0 %v4224
      %v4373 = vpop.f32.mrb[0].mxu0
      %v4374 = vadd.f32 0.0, %v4373
      %v4375 = vpop.f32.mrb[0].mxu0
      %v4376 = vpop.f32.mrb[0].mxu0
      %v4377 = vadd.f32 0.0, %v4376
      %v4378 = vpop.f32.mrb[0].mxu0
      %4379 = vmatprep.mubr.bf16.mxu0 0
      %4380 = vmatmul.mubr.bf16.gmra.mrb[0].mxu0 %v4227
      %v4381 = vpop.f32.mrb[0].mxu0
      %v4382 = vadd.f32 0.0, %v4381
      %v4383 = vpop.f32.mrb[0].mxu0
      %v4384 = vpop.f32.mrb[0].mxu0
      %v4385 = vadd.f32 0.0, %v4384
      %v4386 = vpop.f32.mrb[0].mxu0
      %4387 = vmatprep.mubr.bf16.mxu0 0
      %4388 = vmatmul.mubr.bf16.gmra.mrb[0].mxu0 %v4230
      %v4389 = vpop.f32.mrb[0].mxu0
      %v4390 = vadd.f32 0.0, %v4389
      %v4391 = vpop.f32.mrb[0].mxu0
      %v4392 = vpop.f32.mrb[0].mxu0
      %v4393 = vadd.f32 0.0, %v4392
      %v4394 = vpop.f32.mrb[0].mxu0
      %4395 = vdwg.mxu0
      %v4396 = vadd.f32 %v4037, %v4270
      %v4397 = vadd.f32 %v4038, %v4273
      %v4398 = vadd.f32 %v4039, %v4278
      %v4399 = vadd.f32 %v4040, %v4281
      %v4400 = vadd.f32 %v4041, %v4286
      %v4401 = vadd.f32 %v4042, %v4289
      %v4402 = vadd.f32 %v4043, %v4294
      %v4403 = vadd.f32 %v4044, %v4297
      %v4404 = vadd.f32 %v4045, %v4302
      %v4405 = vadd.f32 %v4046, %v4305
      %v4406 = vadd.f32 %v4047, %v4310
      %v4407 = vadd.f32 %v4048, %v4313
      %v4408 = vadd.f32 %v4049, %v4318
      %v4409 = vadd.f32 %v4050, %v4321
      %v4410 = vadd.f32 %v4051, %v4326
      %v4411 = vadd.f32 %v4052, %v4329
      %v4412 = vadd.f32 %v4053, %v4334
      %v4413 = vadd.f32 %v4054, %v4337
      %v4414 = vadd.f32 %v4055, %v4342
      %v4415 = vadd.f32 %v4056, %v4345
      %v4416 = vadd.f32 %v4057, %v4350
      %v4417 = vadd.f32 %v4058, %v4353
      %v4418 = vadd.f32 %v4059, %v4358
      %v4419 = vadd.f32 %v4060, %v4361
      %v4420 = vadd.f32 %v4061, %v4366
      %v4421 = vadd.f32 %v4062, %v4369
      %v4422 = vadd.f32 %v4063, %v4374
      %v4423 = vadd.f32 %v4064, %v4377
      %v4424 = vadd.f32 %v4065, %v4382
      %v4425 = vadd.f32 %v4066, %v4385
      %v4426 = vadd.f32 %v4067, %v4390
      %v4427 = vadd.f32 %v4068, %v4393
      %v4428 = vld [vmem:[%s4069] sm:$0xf]
      %v4429 = vld [vmem:[%s4069 + $0x4] sm:$0xf]
      %v4430 = vld [vmem:[%s4069 + $0x8] sm:$0x1]
      %v4431 = vld [vmem:[%s4069 + $0xc] sm:$0xf]
      %v4432 = vld [vmem:[%s4069 + $0x10] sm:$0xf]
      %v4433 = vld [vmem:[%s4069 + $0x14] sm:$0x1]
      %v4434 = vld [vmem:[%s4069 + $0x18] sm:$0xf]
      %v4435 = vld [vmem:[%s4069 + $0x1c] sm:$0xf]
      %v4436 = vld [vmem:[%s4069 + $0x20] sm:$0x1]
      %v4437 = vld [vmem:[%s4069 + $0x24] sm:$0xf]
      %v4438 = vld [vmem:[%s4069 + $0x28] sm:$0xf]
      %v4439 = vld [vmem:[%s4069 + $0x2c] sm:$0x1]
      %v4440 = vld [vmem:[%s4069 + $0x30] sm:$0xf]
      %v4441 = vld [vmem:[%s4069 + $0x34] sm:$0xf]
      %v4442 = vld [vmem:[%s4069 + $0x38] sm:$0x1]
      %v4443 = vld [vmem:[%s4069 + $0x3c] sm:$0xf]
      %v4444 = vld [vmem:[%s4069 + $0x40] sm:$0xf]
      %v4445 = vld [vmem:[%s4069 + $0x44] sm:$0x1]
      %v4446 = vld [vmem:[%s4069 + $0x48] sm:$0xf]
      %v4447 = vld [vmem:[%s4069 + $0x4c] sm:$0xf]
      %v4448 = vld [vmem:[%s4069 + $0x50] sm:$0x1]
      %v4449 = vld [vmem:[%s4069 + $0x54] sm:$0xf]
      %v4450 = vld [vmem:[%s4069 + $0x58] sm:$0xf]
      %v4451 = vld [vmem:[%s4069 + $0x5c] sm:$0x1]
      %v4452 = vld [vmem:[%s4069 + $0x60] sm:$0xf]
      %v4453 = vld [vmem:[%s4069 + $0x64] sm:$0xf]
      %v4454 = vld [vmem:[%s4069 + $0x68] sm:$0x1]
      %v4455 = vld [vmem:[%s4069 + $0x6c] sm:$0xf]
      %v4456 = vld [vmem:[%s4069 + $0x70] sm:$0xf]
      %v4457 = vld [vmem:[%s4069 + $0x74] sm:$0x1]
      %v4458 = vld [vmem:[%s4069 + $0x78] sm:$0xf]
      %v4459 = vld [vmem:[%s4069 + $0x7c] sm:$0xf]
      %v4460 = vld [vmem:[%s4069 + $0x80] sm:$0x1]
      %v4461 = vld [vmem:[%s4069 + $0x84] sm:$0xf]
      %v4462 = vld [vmem:[%s4069 + $0x88] sm:$0xf]
      %v4463 = vld [vmem:[%s4069 + $0x8c] sm:$0x1]
      %v4464 = vld [vmem:[%s4069 + $0x90] sm:$0xf]
      %v4465 = vld [vmem:[%s4069 + $0x94] sm:$0xf]
      %v4466 = vld [vmem:[%s4069 + $0x98] sm:$0x1]
      %v4467 = vld [vmem:[%s4069 + $0x9c] sm:$0xf]
      %v4468 = vld [vmem:[%s4069 + $0xa0] sm:$0xf]
      %v4469 = vld [vmem:[%s4069 + $0xa4] sm:$0x1]
      %v4470 = vld [vmem:[%s4069 + $0xa8] sm:$0xf]
      %v4471 = vld [vmem:[%s4069 + $0xac] sm:$0xf]
      %v4472 = vld [vmem:[%s4069 + $0xb0] sm:$0x1]
      %v4473 = vld [vmem:[%s4069 + $0xb4] sm:$0xf]
      %v4474 = vld [vmem:[%s4069 + $0xb8] sm:$0xf]
      %v4475 = vld [vmem:[%s4069 + $0xbc] sm:$0x1]
      %v4477 = vshrl.u32 %v4428, 16
      %v4479 = vrot.slane %v4477, 4
      %v4480 = vshll.u32 %v4428, 16
      %v4482 = vrot.slane %v4480, 5
      %v4483 = vor.u32 %v4479, %v4482
      %v4484 = vrot.slane %v4483, 4
      %v4486 = vshll.u32 %v4429, 16
      %v4488 = vrot.slane %v4486, 5
      %v4489 = vsel %vm1117, %v4484, %v4488
      %v4490 = vshrl.u32 %v4429, 16
      %v4492 = vrot.slane %v4490, 4
      %v4493 = vor.u32 %v4492, %v4488
      %v4494 = vrot.slane %v4493, 4
      %v4496 = vshll.u32 %v4430, 16
      %v4498 = vrot.slane %v4496, 5
      %v4499 = vsel %vm1117, %v4494, %v4498
      %v4501 = vshrl.u32 %v4431, 16
      %v4503 = vrot.slane %v4501, 4
      %v4504 = vshll.u32 %v4431, 16
      %v4506 = vrot.slane %v4504, 5
      %v4507 = vor.u32 %v4503, %v4506
      %v4508 = vrot.slane %v4507, 4
      %v4510 = vshll.u32 %v4432, 16
      %v4512 = vrot.slane %v4510, 5
      %v4513 = vsel %vm1117, %v4508, %v4512
      %v4514 = vshrl.u32 %v4432, 16
      %v4516 = vrot.slane %v4514, 4
      %v4517 = vor.u32 %v4516, %v4512
      %v4518 = vrot.slane %v4517, 4
      %v4520 = vshll.u32 %v4433, 16
      %v4522 = vrot.slane %v4520, 5
      %v4523 = vsel %vm1117, %v4518, %v4522
      %v4525 = vshrl.u32 %v4434, 16
      %v4527 = vrot.slane %v4525, 4
      %v4528 = vshll.u32 %v4434, 16
      %v4530 = vrot.slane %v4528, 5
      %v4531 = vor.u32 %v4527, %v4530
      %v4532 = vrot.slane %v4531, 4
      %v4534 = vshll.u32 %v4435, 16
      %v4536 = vrot.slane %v4534, 5
      %v4537 = vsel %vm1117, %v4532, %v4536
      %v4538 = vshrl.u32 %v4435, 16
      %v4540 = vrot.slane %v4538, 4
      %v4541 = vor.u32 %v4540, %v4536
      %v4542 = vrot.slane %v4541, 4
      %v4544 = vshll.u32 %v4436, 16
      %v4546 = vrot.slane %v4544, 5
      %v4547 = vsel %vm1117, %v4542, %v4546
      %v4549 = vshrl.u32 %v4437, 16
      %v4551 = vrot.slane %v4549, 4
      %v4552 = vshll.u32 %v4437, 16
      %v4554 = vrot.slane %v4552, 5
      %v4555 = vor.u32 %v4551, %v4554
      %v4556 = vrot.slane %v4555, 4
      %v4558 = vshll.u32 %v4438, 16
      %v4560 = vrot.slane %v4558, 5
      %v4561 = vsel %vm1117, %v4556, %v4560
      %v4562 = vshrl.u32 %v4438, 16
      %v4564 = vrot.slane %v4562, 4
      %v4565 = vor.u32 %v4564, %v4560
      %v4566 = vrot.slane %v4565, 4
      %v4568 = vshll.u32 %v4439, 16
      %v4570 = vrot.slane %v4568, 5
      %v4571 = vsel %vm1117, %v4566, %v4570
      %v4573 = vshrl.u32 %v4440, 16
      %v4575 = vrot.slane %v4573, 4
      %v4576 = vshll.u32 %v4440, 16
      %v4578 = vrot.slane %v4576, 5
      %v4579 = vor.u32 %v4575, %v4578
      %v4580 = vrot.slane %v4579, 4
      %v4582 = vshll.u32 %v4441, 16
      %v4584 = vrot.slane %v4582, 5
      %v4585 = vsel %vm1117, %v4580, %v4584
      %v4586 = vshrl.u32 %v4441, 16
      %v4588 = vrot.slane %v4586, 4
      %v4589 = vor.u32 %v4588, %v4584
      %v4590 = vrot.slane %v4589, 4
      %v4592 = vshll.u32 %v4442, 16
      %v4594 = vrot.slane %v4592, 5
      %v4595 = vsel %vm1117, %v4590, %v4594
      %v4597 = vshrl.u32 %v4443, 16
      %v4599 = vrot.slane %v4597, 4
      %v4600 = vshll.u32 %v4443, 16
      %v4602 = vrot.slane %v4600, 5
      %v4603 = vor.u32 %v4599, %v4602
      %v4604 = vrot.slane %v4603, 4
      %v4606 = vshll.u32 %v4444, 16
      %v4608 = vrot.slane %v4606, 5
      %v4609 = vsel %vm1117, %v4604, %v4608
      %v4610 = vshrl.u32 %v4444, 16
      %v4612 = vrot.slane %v4610, 4
      %v4613 = vor.u32 %v4612, %v4608
      %v4614 = vrot.slane %v4613, 4
      %v4616 = vshll.u32 %v4445, 16
      %v4618 = vrot.slane %v4616, 5
      %v4619 = vsel %vm1117, %v4614, %v4618
      %v4621 = vshrl.u32 %v4446, 16
      %v4623 = vrot.slane %v4621, 4
      %v4624 = vshll.u32 %v4446, 16
      %v4626 = vrot.slane %v4624, 5
      %v4627 = vor.u32 %v4623, %v4626
      %v4628 = vrot.slane %v4627, 4
      %v4630 = vshll.u32 %v4447, 16
      %v4632 = vrot.slane %v4630, 5
      %v4633 = vsel %vm1117, %v4628, %v4632
      %v4634 = vshrl.u32 %v4447, 16
      %v4636 = vrot.slane %v4634, 4
      %v4637 = vor.u32 %v4636, %v4632
      %v4638 = vrot.slane %v4637, 4
      %v4640 = vshll.u32 %v4448, 16
      %v4642 = vrot.slane %v4640, 5
      %v4643 = vsel %vm1117, %v4638, %v4642
      %v4645 = vshrl.u32 %v4449, 16
      %v4647 = vrot.slane %v4645, 4
      %v4648 = vshll.u32 %v4449, 16
      %v4650 = vrot.slane %v4648, 5
      %v4651 = vor.u32 %v4647, %v4650
      %v4652 = vrot.slane %v4651, 4
      %v4654 = vshll.u32 %v4450, 16
      %v4656 = vrot.slane %v4654, 5
      %v4657 = vsel %vm1117, %v4652, %v4656
      %v4658 = vshrl.u32 %v4450, 16
      %v4660 = vrot.slane %v4658, 4
      %v4661 = vor.u32 %v4660, %v4656
      %v4662 = vrot.slane %v4661, 4
      %v4664 = vshll.u32 %v4451, 16
      %v4666 = vrot.slane %v4664, 5
      %v4667 = vsel %vm1117, %v4662, %v4666
      %v4669 = vshrl.u32 %v4452, 16
      %v4671 = vrot.slane %v4669, 4
      %v4672 = vshll.u32 %v4452, 16
      %v4674 = vrot.slane %v4672, 5
      %v4675 = vor.u32 %v4671, %v4674
      %v4676 = vrot.slane %v4675, 4
      %v4678 = vshll.u32 %v4453, 16
      %v4680 = vrot.slane %v4678, 5
      %v4681 = vsel %vm1117, %v4676, %v4680
      %v4682 = vshrl.u32 %v4453, 16
      %v4684 = vrot.slane %v4682, 4
      %v4685 = vor.u32 %v4684, %v4680
      %v4686 = vrot.slane %v4685, 4
      %v4688 = vshll.u32 %v4454, 16
      %v4690 = vrot.slane %v4688, 5
      %v4691 = vsel %vm1117, %v4686, %v4690
      %v4693 = vshrl.u32 %v4455, 16
      %v4695 = vrot.slane %v4693, 4
      %v4696 = vshll.u32 %v4455, 16
      %v4698 = vrot.slane %v4696, 5
      %v4699 = vor.u32 %v4695, %v4698
      %v4700 = vrot.slane %v4699, 4
      %v4702 = vshll.u32 %v4456, 16
      %v4704 = vrot.slane %v4702, 5
      %v4705 = vsel %vm1117, %v4700, %v4704
      %v4706 = vshrl.u32 %v4456, 16
      %v4708 = vrot.slane %v4706, 4
      %v4709 = vor.u32 %v4708, %v4704
      %v4710 = vrot.slane %v4709, 4
      %v4712 = vshll.u32 %v4457, 16
      %v4714 = vrot.slane %v4712, 5
      %v4715 = vsel %vm1117, %v4710, %v4714
      %v4717 = vshrl.u32 %v4458, 16
      %v4719 = vrot.slane %v4717, 4
      %v4720 = vshll.u32 %v4458, 16
      %v4722 = vrot.slane %v4720, 5
      %v4723 = vor.u32 %v4719, %v4722
      %v4724 = vrot.slane %v4723, 4
      %v4726 = vshll.u32 %v4459, 16
      %v4728 = vrot.slane %v4726, 5
      %v4729 = vsel %vm1117, %v4724, %v4728
      %v4730 = vshrl.u32 %v4459, 16
      %v4732 = vrot.slane %v4730, 4
      %v4733 = vor.u32 %v4732, %v4728
      %v4734 = vrot.slane %v4733, 4
      %v4736 = vshll.u32 %v4460, 16
      %v4738 = vrot.slane %v4736, 5
      %v4739 = vsel %vm1117, %v4734, %v4738
      %v4741 = vshrl.u32 %v4461, 16
      %v4743 = vrot.slane %v4741, 4
      %v4744 = vshll.u32 %v4461, 16
      %v4746 = vrot.slane %v4744, 5
      %v4747 = vor.u32 %v4743, %v4746
      %v4748 = vrot.slane %v4747, 4
      %v4750 = vshll.u32 %v4462, 16
      %v4752 = vrot.slane %v4750, 5
      %v4753 = vsel %vm1117, %v4748, %v4752
      %v4754 = vshrl.u32 %v4462, 16
      %v4756 = vrot.slane %v4754, 4
      %v4757 = vor.u32 %v4756, %v4752
      %v4758 = vrot.slane %v4757, 4
      %v4760 = vshll.u32 %v4463, 16
      %v4762 = vrot.slane %v4760, 5
      %v4763 = vsel %vm1117, %v4758, %v4762
      %v4765 = vshrl.u32 %v4464, 16
      %v4767 = vrot.slane %v4765, 4
      %v4768 = vshll.u32 %v4464, 16
      %v4770 = vrot.slane %v4768, 5
      %v4771 = vor.u32 %v4767, %v4770
      %v4772 = vrot.slane %v4771, 4
      %v4774 = vshll.u32 %v4465, 16
      %v4776 = vrot.slane %v4774, 5
      %v4777 = vsel %vm1117, %v4772, %v4776
      %v4778 = vshrl.u32 %v4465, 16
      %v4780 = vrot.slane %v4778, 4
      %v4781 = vor.u32 %v4780, %v4776
      %v4782 = vrot.slane %v4781, 4
      %v4784 = vshll.u32 %v4466, 16
      %v4786 = vrot.slane %v4784, 5
      %v4787 = vsel %vm1117, %v4782, %v4786
      %v4789 = vshrl.u32 %v4467, 16
      %v4791 = vrot.slane %v4789, 4
      %v4792 = vshll.u32 %v4467, 16
      %v4794 = vrot.slane %v4792, 5
      %v4795 = vor.u32 %v4791, %v4794
      %v4796 = vrot.slane %v4795, 4
      %v4798 = vshll.u32 %v4468, 16
      %v4800 = vrot.slane %v4798, 5
      %v4801 = vsel %vm1117, %v4796, %v4800
      %v4802 = vshrl.u32 %v4468, 16
      %v4804 = vrot.slane %v4802, 4
      %v4805 = vor.u32 %v4804, %v4800
      %v4806 = vrot.slane %v4805, 4
      %v4808 = vshll.u32 %v4469, 16
      %v4810 = vrot.slane %v4808, 5
      %v4811 = vsel %vm1117, %v4806, %v4810
      %v4813 = vshrl.u32 %v4470, 16
      %v4815 = vrot.slane %v4813, 4
      %v4816 = vshll.u32 %v4470, 16
      %v4818 = vrot.slane %v4816, 5
      %v4819 = vor.u32 %v4815, %v4818
      %v4820 = vrot.slane %v4819, 4
      %v4822 = vshll.u32 %v4471, 16
      %v4824 = vrot.slane %v4822, 5
      %v4825 = vsel %vm1117, %v4820, %v4824
      %v4826 = vshrl.u32 %v4471, 16
      %v4828 = vrot.slane %v4826, 4
      %v4829 = vor.u32 %v4828, %v4824
      %v4830 = vrot.slane %v4829, 4
      %v4832 = vshll.u32 %v4472, 16
      %v4834 = vrot.slane %v4832, 5
      %v4835 = vsel %vm1117, %v4830, %v4834
      %v4837 = vshrl.u32 %v4473, 16
      %v4839 = vrot.slane %v4837, 4
      %v4840 = vshll.u32 %v4473, 16
      %v4842 = vrot.slane %v4840, 5
      %v4843 = vor.u32 %v4839, %v4842
      %v4844 = vrot.slane %v4843, 4
      %v4846 = vshll.u32 %v4474, 16
      %v4848 = vrot.slane %v4846, 5
      %v4849 = vsel %vm1117, %v4844, %v4848
      %v4850 = vshrl.u32 %v4474, 16
      %v4852 = vrot.slane %v4850, 4
      %v4853 = vor.u32 %v4852, %v4848
      %v4854 = vrot.slane %v4853, 4
      %v4856 = vshll.u32 %v4475, 16
      %v4858 = vrot.slane %v4856, 5
      %v4859 = vsel %vm1117, %v4854, %v4858
      %s4860 = scalar_lea.vmem %s1, 14
      %v4861 = vld [vmem:[%s4860] sm:$0x3]
      %v4862 = vunpack.c.l.b16 %v4489
      %v4863 = vunpack.c.l.b16 %v4499
      %v4864 = vunpack.c.l.b16 %v4513
      %v4865 = vunpack.c.l.b16 %v4523
      %v4866 = vunpack.c.l.b16 %v4537
      %v4867 = vunpack.c.l.b16 %v4547
      %v4868 = vunpack.c.l.b16 %v4561
      %v4869 = vunpack.c.l.b16 %v4571
      %v4870 = vunpack.c.l.b16 %v4585
      %v4871 = vunpack.c.l.b16 %v4595
      %v4872 = vunpack.c.l.b16 %v4609
      %v4873 = vunpack.c.l.b16 %v4619
      %v4874 = vunpack.c.l.b16 %v4633
      %v4875 = vunpack.c.l.b16 %v4643
      %v4876 = vunpack.c.l.b16 %v4657
      %v4877 = vunpack.c.l.b16 %v4667
      %v4878 = vunpack.c.l.b16 %v4681
      %v4879 = vunpack.c.l.b16 %v4691
      %v4880 = vunpack.c.l.b16 %v4705
      %v4881 = vunpack.c.l.b16 %v4715
      %v4882 = vunpack.c.l.b16 %v4729
      %v4883 = vunpack.c.l.b16 %v4739
      %v4884 = vunpack.c.l.b16 %v4753
      %v4885 = vunpack.c.l.b16 %v4763
      %v4886 = vunpack.c.l.b16 %v4777
      %v4887 = vunpack.c.l.b16 %v4787
      %v4888 = vunpack.c.l.b16 %v4801
      %v4889 = vunpack.c.l.b16 %v4811
      %v4890 = vunpack.c.l.b16 %v4825
      %v4891 = vunpack.c.l.b16 %v4835
      %v4892 = vunpack.c.l.b16 %v4849
      %v4893 = vunpack.c.l.b16 %v4859
      %v4894 = vpack.c.b16 %v4863, %v4862
      %v4895 = vpack.c.b16 %v4865, %v4864
      %v4896 = vpack.c.b16 %v4867, %v4866
      %v4897 = vpack.c.b16 %v4869, %v4868
      %v4898 = vpack.c.b16 %v4871, %v4870
      %v4899 = vpack.c.b16 %v4873, %v4872
      %v4900 = vpack.c.b16 %v4875, %v4874
      %v4901 = vpack.c.b16 %v4877, %v4876
      %v4902 = vpack.c.b16 %v4879, %v4878
      %v4903 = vpack.c.b16 %v4881, %v4880
      %v4904 = vpack.c.b16 %v4883, %v4882
      %v4905 = vpack.c.b16 %v4885, %v4884
      %v4906 = vpack.c.b16 %v4887, %v4886
      %v4907 = vpack.c.b16 %v4889, %v4888
      %v4908 = vpack.c.b16 %v4891, %v4890
      %v4909 = vpack.c.b16 %v4893, %v4892
      %v4911 = vsel %vm1552, %v4894, 0
      %v4914 = vsel %vm1552, %v4895, 0
      %v4917 = vsel %vm1552, %v4896, 0
      %v4920 = vsel %vm1552, %v4897, 0
      %v4923 = vsel %vm1552, %v4898, 0
      %v4926 = vsel %vm1552, %v4899, 0
      %v4929 = vsel %vm1552, %v4900, 0
      %v4932 = vsel %vm1552, %v4901, 0
      %v4935 = vsel %vm1552, %v4902, 0
      %v4938 = vsel %vm1552, %v4903, 0
      %v4941 = vsel %vm1552, %v4904, 0
      %v4944 = vsel %vm1552, %v4905, 0
      %v4947 = vsel %vm1552, %v4906, 0
      %v4950 = vsel %vm1552, %v4907, 0
      %v4953 = vsel %vm1552, %v4908, 0
      %v4956 = vsel %vm1552, %v4909, 0
      %v4959 = vsel %vm1601, %v4861, 0
      %4961 = vmatprep.subr.bf16.mxu0 0
      %4962 = vmatpush1.bf16.msra.mxu0 %v4959
      %4963 = vmatprep.subr.bf16.mxu0 0
      %4964 = vmatpush1.bf16.msra.mxu0 0
      %4965 = vmatprep.subr.bf16.mxu0 0
      %4966 = vmatpush1.bf16.msra.mxu0 0
      %4967 = vmatprep.subr.bf16.mxu0 0
      %4968 = vmatpush1.bf16.msra.mxu0 0
      %4969 = vmatprep.subr.bf16.mxu0 0
      %4970 = vmatpush1.bf16.msra.mxu0 0
      %4971 = vmatprep.subr.bf16.mxu0 0
      %4972 = vmatpush1.bf16.msra.mxu0 0
      %4973 = vmatprep.subr.bf16.mxu0 0
      %4974 = vmatpush1.bf16.msra.mxu0 0
      %4975 = vmatprep.subr.bf16.mxu0 0
      %4976 = vmatpush1.bf16.msra.mxu0 0
      %4977 = vmatprep.subr.bf16.mxu0 0
      %4978 = vmatpush1.bf16.msra.mxu0 0
      %4979 = vmatprep.subr.bf16.mxu0 0
      %4980 = vmatpush1.bf16.msra.mxu0 0
      %4981 = vmatprep.subr.bf16.mxu0 0
      %4982 = vmatpush1.bf16.msra.mxu0 0
      %4983 = vmatprep.subr.bf16.mxu0 0
      %4984 = vmatpush1.bf16.msra.mxu0 0
      %4985 = vmatprep.subr.bf16.mxu0 0
      %4986 = vmatpush1.bf16.msra.mxu0 0
      %4987 = vmatprep.subr.bf16.mxu0 0
      %4988 = vmatpush1.bf16.msra.mxu0 0
      %4989 = vmatprep.subr.bf16.mxu0 0
      %4990 = vmatpush1.bf16.msra.mxu0 0
      %4991 = vmatprep.subr.bf16.mxu0 0
      %4992 = vmatpush1.bf16.msra.mxu0 0
      %4993 = vmatprep.mubr.bf16.mxu0 0
      %4994 = vmatmul.mubr.bf16.gmra.mrb[0].mxu0 %v4911
      %v4995 = vpop.f32.mrb[0].mxu0
      %v4996 = vadd.f32 0.0, %v4995
      %v4997 = vpop.f32.mrb[0].mxu0
      %v4998 = vpop.f32.mrb[0].mxu0
      %v4999 = vadd.f32 0.0, %v4998
      %v5000 = vpop.f32.mrb[0].mxu0
      %5001 = vmatprep.mubr.bf16.mxu0 0
      %5002 = vmatmul.mubr.bf16.gmra.mrb[0].mxu0 %v4914
      %v5003 = vpop.f32.mrb[0].mxu0
      %v5004 = vadd.f32 0.0, %v5003
      %v5005 = vpop.f32.mrb[0].mxu0
      %v5006 = vpop.f32.mrb[0].mxu0
      %v5007 = vadd.f32 0.0, %v5006
      %v5008 = vpop.f32.mrb[0].mxu0
      %5009 = vmatprep.mubr.bf16.mxu0 0
      %5010 = vmatmul.mubr.bf16.gmra.mrb[0].mxu0 %v4917
      %v5011 = vpop.f32.mrb[0].mxu0
      %v5012 = vadd.f32 0.0, %v5011
      %v5013 = vpop.f32.mrb[0].mxu0
      %v5014 = vpop.f32.mrb[0].mxu0
      %v5015 = vadd.f32 0.0, %v5014
      %v5016 = vpop.f32.mrb[0].mxu0
      %5017 = vmatprep.mubr.bf16.mxu0 0
      %5018 = vmatmul.mubr.bf16.gmra.mrb[0].mxu0 %v4920
      %v5019 = vpop.f32.mrb[0].mxu0
      %v5020 = vadd.f32 0.0, %v5019
      %v5021 = vpop.f32.mrb[0].mxu0
      %v5022 = vpop.f32.mrb[0].mxu0
      %v5023 = vadd.f32 0.0, %v5022
      %v5024 = vpop.f32.mrb[0].mxu0
      %5025 = vmatprep.mubr.bf16.mxu0 0
      %5026 = vmatmul.mubr.bf16.gmra.mrb[0].mxu0 %v4923
      %v5027 = vpop.f32.mrb[0].mxu0
      %v5028 = vadd.f32 0.0, %v5027
      %v5029 = vpop.f32.mrb[0].mxu0
      %v5030 = vpop.f32.mrb[0].mxu0
      %v5031 = vadd.f32 0.0, %v5030
      %v5032 = vpop.f32.mrb[0].mxu0
      %5033 = vmatprep.mubr.bf16.mxu0 0
      %5034 = vmatmul.mubr.bf16.gmra.mrb[0].mxu0 %v4926
      %v5035 = vpop.f32.mrb[0].mxu0
      %v5036 = vadd.f32 0.0, %v5035
      %v5037 = vpop.f32.mrb[0].mxu0
      %v5038 = vpop.f32.mrb[0].mxu0
      %v5039 = vadd.f32 0.0, %v5038
      %v5040 = vpop.f32.mrb[0].mxu0
      %5041 = vmatprep.mubr.bf16.mxu0 0
      %5042 = vmatmul.mubr.bf16.gmra.mrb[0].mxu0 %v4929
      %v5043 = vpop.f32.mrb[0].mxu0
      %v5044 = vadd.f32 0.0, %v5043
      %v5045 = vpop.f32.mrb[0].mxu0
      %v5046 = vpop.f32.mrb[0].mxu0
      %v5047 = vadd.f32 0.0, %v5046
      %v5048 = vpop.f32.mrb[0].mxu0
      %5049 = vmatprep.mubr.bf16.mxu0 0
      %5050 = vmatmul.mubr.bf16.gmra.mrb[0].mxu0 %v4932
      %v5051 = vpop.f32.mrb[0].mxu0
      %v5052 = vadd.f32 0.0, %v5051
      %v5053 = vpop.f32.mrb[0].mxu0
      %v5054 = vpop.f32.mrb[0].mxu0
      %v5055 = vadd.f32 0.0, %v5054
      %v5056 = vpop.f32.mrb[0].mxu0
      %5057 = vmatprep.mubr.bf16.mxu0 0
      %5058 = vmatmul.mubr.bf16.gmra.mrb[0].mxu0 %v4935
      %v5059 = vpop.f32.mrb[0].mxu0
      %v5060 = vadd.f32 0.0, %v5059
      %v5061 = vpop.f32.mrb[0].mxu0
      %v5062 = vpop.f32.mrb[0].mxu0
      %v5063 = vadd.f32 0.0, %v5062
      %v5064 = vpop.f32.mrb[0].mxu0
      %5065 = vmatprep.mubr.bf16.mxu0 0
      %5066 = vmatmul.mubr.bf16.gmra.mrb[0].mxu0 %v4938
      %v5067 = vpop.f32.mrb[0].mxu0
      %v5068 = vadd.f32 0.0, %v5067
      %v5069 = vpop.f32.mrb[0].mxu0
      %v5070 = vpop.f32.mrb[0].mxu0
      %v5071 = vadd.f32 0.0, %v5070
      %v5072 = vpop.f32.mrb[0].mxu0
      %5073 = vmatprep.mubr.bf16.mxu0 0
      %5074 = vmatmul.mubr.bf16.gmra.mrb[0].mxu0 %v4941
      %v5075 = vpop.f32.mrb[0].mxu0
      %v5076 = vadd.f32 0.0, %v5075
      %v5077 = vpop.f32.mrb[0].mxu0
      %v5078 = vpop.f32.mrb[0].mxu0
      %v5079 = vadd.f32 0.0, %v5078
      %v5080 = vpop.f32.mrb[0].mxu0
      %5081 = vmatprep.mubr.bf16.mxu0 0
      %5082 = vmatmul.mubr.bf16.gmra.mrb[0].mxu0 %v4944
      %v5083 = vpop.f32.mrb[0].mxu0
      %v5084 = vadd.f32 0.0, %v5083
      %v5085 = vpop.f32.mrb[0].mxu0
      %v5086 = vpop.f32.mrb[0].mxu0
      %v5087 = vadd.f32 0.0, %v5086
      %v5088 = vpop.f32.mrb[0].mxu0
      %5089 = vmatprep.mubr.bf16.mxu0 0
      %5090 = vmatmul.mubr.bf16.gmra.mrb[0].mxu0 %v4947
      %v5091 = vpop.f32.mrb[0].mxu0
      %v5092 = vadd.f32 0.0, %v5091
      %v5093 = vpop.f32.mrb[0].mxu0
      %v5094 = vpop.f32.mrb[0].mxu0
      %v5095 = vadd.f32 0.0, %v5094
      %v5096 = vpop.f32.mrb[0].mxu0
      %5097 = vmatprep.mubr.bf16.mxu0 0
      %5098 = vmatmul.mubr.bf16.gmra.mrb[0].mxu0 %v4950
      %v5099 = vpop.f32.mrb[0].mxu0
      %v5100 = vadd.f32 0.0, %v5099
      %v5101 = vpop.f32.mrb[0].mxu0
      %v5102 = vpop.f32.mrb[0].mxu0
      %v5103 = vadd.f32 0.0, %v5102
      %v5104 = vpop.f32.mrb[0].mxu0
      %5105 = vmatprep.mubr.bf16.mxu0 0
      %5106 = vmatmul.mubr.bf16.gmra.mrb[0].mxu0 %v4953
      %v5107 = vpop.f32.mrb[0].mxu0
      %v5108 = vadd.f32 0.0, %v5107
      %v5109 = vpop.f32.mrb[0].mxu0
      %v5110 = vpop.f32.mrb[0].mxu0
      %v5111 = vadd.f32 0.0, %v5110
      %v5112 = vpop.f32.mrb[0].mxu0
      %5113 = vmatprep.mubr.bf16.mxu0 0
      %5114 = vmatmul.mubr.bf16.gmra.mrb[0].mxu0 %v4956
      %v5115 = vpop.f32.mrb[0].mxu0
      %v5116 = vadd.f32 0.0, %v5115
      %v5117 = vpop.f32.mrb[0].mxu0
      %v5118 = vpop.f32.mrb[0].mxu0
      %v5119 = vadd.f32 0.0, %v5118
      %v5120 = vpop.f32.mrb[0].mxu0
      %5121 = vdwg.mxu0
      %v5122 = vadd.f32 %v4396, %v4996
      %v5123 = vadd.f32 %v4397, %v4999
      %v5124 = vadd.f32 %v4398, %v5004
      %v5125 = vadd.f32 %v4399, %v5007
      %v5126 = vadd.f32 %v4400, %v5012
      %v5127 = vadd.f32 %v4401, %v5015
      %v5128 = vadd.f32 %v4402, %v5020
      %v5129 = vadd.f32 %v4403, %v5023
      %v5130 = vadd.f32 %v4404, %v5028
      %v5131 = vadd.f32 %v4405, %v5031
      %v5132 = vadd.f32 %v4406, %v5036
      %v5133 = vadd.f32 %v4407, %v5039
      %v5134 = vadd.f32 %v4408, %v5044
      %v5135 = vadd.f32 %v4409, %v5047
      %v5136 = vadd.f32 %v4410, %v5052
      %v5137 = vadd.f32 %v4411, %v5055
      %v5138 = vadd.f32 %v4412, %v5060
      %v5139 = vadd.f32 %v4413, %v5063
      %v5140 = vadd.f32 %v4414, %v5068
      %v5141 = vadd.f32 %v4415, %v5071
      %v5142 = vadd.f32 %v4416, %v5076
      %v5143 = vadd.f32 %v4417, %v5079
      %v5144 = vadd.f32 %v4418, %v5084
      %v5145 = vadd.f32 %v4419, %v5087
      %v5146 = vadd.f32 %v4420, %v5092
      %v5147 = vadd.f32 %v4421, %v5095
      %v5148 = vadd.f32 %v4422, %v5100
      %v5149 = vadd.f32 %v4423, %v5103
      %v5150 = vadd.f32 %v4424, %v5108
      %v5151 = vadd.f32 %v4425, %v5111
      %v5152 = vadd.f32 %v4426, %v5116
      %v5153 = vadd.f32 %v4427, %v5119
      %v5154 = vld [vmem:[%s4069] sm:$0xe]
      %v5155 = vld [vmem:[%s4069 + $0xc] sm:$0xe]
      %v5156 = vld [vmem:[%s4069 + $0x18] sm:$0xe]
      %v5157 = vld [vmem:[%s4069 + $0x24] sm:$0xe]
      %v5158 = vld [vmem:[%s4069 + $0x30] sm:$0xe]
      %v5159 = vld [vmem:[%s4069 + $0x3c] sm:$0xe]
      %v5160 = vld [vmem:[%s4069 + $0x48] sm:$0xe]
      %v5161 = vld [vmem:[%s4069 + $0x54] sm:$0xe]
      %v5162 = vld [vmem:[%s4069 + $0x60] sm:$0xe]
      %v5163 = vld [vmem:[%s4069 + $0x6c] sm:$0xe]
      %v5164 = vld [vmem:[%s4069 + $0x78] sm:$0xe]
      %v5165 = vld [vmem:[%s4069 + $0x84] sm:$0xe]
      %v5166 = vld [vmem:[%s4069 + $0x90] sm:$0xe]
      %v5167 = vld [vmem:[%s4069 + $0x9c] sm:$0xe]
      %v5168 = vld [vmem:[%s4069 + $0xa8] sm:$0xe]
      %v5169 = vld [vmem:[%s4069 + $0xb4] sm:$0xe]
      %v5218 = vrot.slane %v5154, 5
      %v5219 = vrot.slane %v5218, 4
      %v5220 = vrot.slane %v4429, 5
      %v5221 = vsel %vm2108, %v5219, %v5220
      %v5222 = vrot.slane %v5220, 4
      %v5223 = vrot.slane %v4430, 5
      %v5224 = vsel %vm2108, %v5222, %v5223
      %v5225 = vrot.slane %v5155, 5
      %v5226 = vrot.slane %v5225, 4
      %v5227 = vrot.slane %v4432, 5
      %v5228 = vsel %vm2108, %v5226, %v5227
      %v5229 = vrot.slane %v5227, 4
      %v5230 = vrot.slane %v4433, 5
      %v5231 = vsel %vm2108, %v5229, %v5230
      %v5232 = vrot.slane %v5156, 5
      %v5233 = vrot.slane %v5232, 4
      %v5234 = vrot.slane %v4435, 5
      %v5235 = vsel %vm2108, %v5233, %v5234
      %v5236 = vrot.slane %v5234, 4
      %v5237 = vrot.slane %v4436, 5
      %v5238 = vsel %vm2108, %v5236, %v5237
      %v5239 = vrot.slane %v5157, 5
      %v5240 = vrot.slane %v5239, 4
      %v5241 = vrot.slane %v4438, 5
      %v5242 = vsel %vm2108, %v5240, %v5241
      %v5243 = vrot.slane %v5241, 4
      %v5244 = vrot.slane %v4439, 5
      %v5245 = vsel %vm2108, %v5243, %v5244
      %v5246 = vrot.slane %v5158, 5
      %v5247 = vrot.slane %v5246, 4
      %v5248 = vrot.slane %v4441, 5
      %v5249 = vsel %vm2108, %v5247, %v5248
      %v5250 = vrot.slane %v5248, 4
      %v5251 = vrot.slane %v4442, 5
      %v5252 = vsel %vm2108, %v5250, %v5251
      %v5253 = vrot.slane %v5159, 5
      %v5254 = vrot.slane %v5253, 4
      %v5255 = vrot.slane %v4444, 5
      %v5256 = vsel %vm2108, %v5254, %v5255
      %v5257 = vrot.slane %v5255, 4
      %v5258 = vrot.slane %v4445, 5
      %v5259 = vsel %vm2108, %v5257, %v5258
      %v5260 = vrot.slane %v5160, 5
      %v5261 = vrot.slane %v5260, 4
      %v5262 = vrot.slane %v4447, 5
      %v5263 = vsel %vm2108, %v5261, %v5262
      %v5264 = vrot.slane %v5262, 4
      %v5265 = vrot.slane %v4448, 5
      %v5266 = vsel %vm2108, %v5264, %v5265
      %v5267 = vrot.slane %v5161, 5
      %v5268 = vrot.slane %v5267, 4
      %v5269 = vrot.slane %v4450, 5
      %v5270 = vsel %vm2108, %v5268, %v5269
      %v5271 = vrot.slane %v5269, 4
      %v5272 = vrot.slane %v4451, 5
      %v5273 = vsel %vm2108, %v5271, %v5272
      %v5274 = vrot.slane %v5162, 5
      %v5275 = vrot.slane %v5274, 4
      %v5276 = vrot.slane %v4453, 5
      %v5277 = vsel %vm2108, %v5275, %v5276
      %v5278 = vrot.slane %v5276, 4
      %v5279 = vrot.slane %v4454, 5
      %v5280 = vsel %vm2108, %v5278, %v5279
      %v5281 = vrot.slane %v5163, 5
      %v5282 = vrot.slane %v5281, 4
      %v5283 = vrot.slane %v4456, 5
      %v5284 = vsel %vm2108, %v5282, %v5283
      %v5285 = vrot.slane %v5283, 4
      %v5286 = vrot.slane %v4457, 5
      %v5287 = vsel %vm2108, %v5285, %v5286
      %v5288 = vrot.slane %v5164, 5
      %v5289 = vrot.slane %v5288, 4
      %v5290 = vrot.slane %v4459, 5
      %v5291 = vsel %vm2108, %v5289, %v5290
      %v5292 = vrot.slane %v5290, 4
      %v5293 = vrot.slane %v4460, 5
      %v5294 = vsel %vm2108, %v5292, %v5293
      %v5295 = vrot.slane %v5165, 5
      %v5296 = vrot.slane %v5295, 4
      %v5297 = vrot.slane %v4462, 5
      %v5298 = vsel %vm2108, %v5296, %v5297
      %v5299 = vrot.slane %v5297, 4
      %v5300 = vrot.slane %v4463, 5
      %v5301 = vsel %vm2108, %v5299, %v5300
      %v5302 = vrot.slane %v5166, 5
      %v5303 = vrot.slane %v5302, 4
      %v5304 = vrot.slane %v4465, 5
      %v5305 = vsel %vm2108, %v5303, %v5304
      %v5306 = vrot.slane %v5304, 4
      %v5307 = vrot.slane %v4466, 5
      %v5308 = vsel %vm2108, %v5306, %v5307
      %v5309 = vrot.slane %v5167, 5
      %v5310 = vrot.slane %v5309, 4
      %v5311 = vrot.slane %v4468, 5
      %v5312 = vsel %vm2108, %v5310, %v5311
      %v5313 = vrot.slane %v5311, 4
      %v5314 = vrot.slane %v4469, 5
      %v5315 = vsel %vm2108, %v5313, %v5314
      %v5316 = vrot.slane %v5168, 5
      %v5317 = vrot.slane %v5316, 4
      %v5318 = vrot.slane %v4471, 5
      %v5319 = vsel %vm2108, %v5317, %v5318
      %v5320 = vrot.slane %v5318, 4
      %v5321 = vrot.slane %v4472, 5
      %v5322 = vsel %vm2108, %v5320, %v5321
      %v5323 = vrot.slane %v5169, 5
      %v5324 = vrot.slane %v5323, 4
      %v5325 = vrot.slane %v4474, 5
      %v5326 = vsel %vm2108, %v5324, %v5325
      %v5327 = vrot.slane %v5325, 4
      %v5328 = vrot.slane %v4475, 5
      %v5329 = vsel %vm2108, %v5327, %v5328
      %s5330 = scalar_lea.vmem %s1, 16
      %v5331 = vld [vmem:[%s5330] sm:$0x3]
      %v5332 = vunpack.c.l.b16 %v5221
      %v5333 = vunpack.c.l.b16 %v5224
      %v5334 = vunpack.c.l.b16 %v5228
      %v5335 = vunpack.c.l.b16 %v5231
      %v5336 = vunpack.c.l.b16 %v5235
      %v5337 = vunpack.c.l.b16 %v5238
      %v5338 = vunpack.c.l.b16 %v5242
      %v5339 = vunpack.c.l.b16 %v5245
      %v5340 = vunpack.c.l.b16 %v5249
      %v5341 = vunpack.c.l.b16 %v5252
      %v5342 = vunpack.c.l.b16 %v5256
      %v5343 = vunpack.c.l.b16 %v5259
      %v5344 = vunpack.c.l.b16 %v5263
      %v5345 = vunpack.c.l.b16 %v5266
      %v5346 = vunpack.c.l.b16 %v5270
      %v5347 = vunpack.c.l.b16 %v5273
      %v5348 = vunpack.c.l.b16 %v5277
      %v5349 = vunpack.c.l.b16 %v5280
      %v5350 = vunpack.c.l.b16 %v5284
      %v5351 = vunpack.c.l.b16 %v5287
      %v5352 = vunpack.c.l.b16 %v5291
      %v5353 = vunpack.c.l.b16 %v5294
      %v5354 = vunpack.c.l.b16 %v5298
      %v5355 = vunpack.c.l.b16 %v5301
      %v5356 = vunpack.c.l.b16 %v5305
      %v5357 = vunpack.c.l.b16 %v5308
      %v5358 = vunpack.c.l.b16 %v5312
      %v5359 = vunpack.c.l.b16 %v5315
      %v5360 = vunpack.c.l.b16 %v5319
      %v5361 = vunpack.c.l.b16 %v5322
      %v5362 = vunpack.c.l.b16 %v5326
      %v5363 = vunpack.c.l.b16 %v5329
      %v5364 = vpack.c.b16 %v5333, %v5332
      %v5365 = vpack.c.b16 %v5335, %v5334
      %v5366 = vpack.c.b16 %v5337, %v5336
      %v5367 = vpack.c.b16 %v5339, %v5338
      %v5368 = vpack.c.b16 %v5341, %v5340
      %v5369 = vpack.c.b16 %v5343, %v5342
      %v5370 = vpack.c.b16 %v5345, %v5344
      %v5371 = vpack.c.b16 %v5347, %v5346
      %v5372 = vpack.c.b16 %v5349, %v5348
      %v5373 = vpack.c.b16 %v5351, %v5350
      %v5374 = vpack.c.b16 %v5353, %v5352
      %v5375 = vpack.c.b16 %v5355, %v5354
      %v5376 = vpack.c.b16 %v5357, %v5356
      %v5377 = vpack.c.b16 %v5359, %v5358
      %v5378 = vpack.c.b16 %v5361, %v5360
      %v5379 = vpack.c.b16 %v5363, %v5362
      %v5381 = vsel %vm1552, %v5364, 0
      %v5384 = vsel %vm1552, %v5365, 0
      %v5387 = vsel %vm1552, %v5366, 0
      %v5390 = vsel %vm1552, %v5367, 0
      %v5393 = vsel %vm1552, %v5368, 0
      %v5396 = vsel %vm1552, %v5369, 0
      %v5399 = vsel %vm1552, %v5370, 0
      %v5402 = vsel %vm1552, %v5371, 0
      %v5405 = vsel %vm1552, %v5372, 0
      %v5408 = vsel %vm1552, %v5373, 0
      %v5411 = vsel %vm1552, %v5374, 0
      %v5414 = vsel %vm1552, %v5375, 0
      %v5417 = vsel %vm1552, %v5376, 0
      %v5420 = vsel %vm1552, %v5377, 0
      %v5423 = vsel %vm1552, %v5378, 0
      %v5426 = vsel %vm1552, %v5379, 0
      %v5429 = vsel %vm1601, %v5331, 0
      %5431 = vmatprep.subr.bf16.mxu0 0
      %5432 = vmatpush1.bf16.msra.mxu0 %v5429
      %5433 = vmatprep.subr.bf16.mxu0 0
      %5434 = vmatpush1.bf16.msra.mxu0 0
      %5435 = vmatprep.subr.bf16.mxu0 0
      %5436 = vmatpush1.bf16.msra.mxu0 0
      %5437 = vmatprep.subr.bf16.mxu0 0
      %5438 = vmatpush1.bf16.msra.mxu0 0
      %5439 = vmatprep.subr.bf16.mxu0 0
      %5440 = vmatpush1.bf16.msra.mxu0 0
      %5441 = vmatprep.subr.bf16.mxu0 0
      %5442 = vmatpush1.bf16.msra.mxu0 0
      %5443 = vmatprep.subr.bf16.mxu0 0
      %5444 = vmatpush1.bf16.msra.mxu0 0
      %5445 = vmatprep.subr.bf16.mxu0 0
      %5446 = vmatpush1.bf16.msra.mxu0 0
      %5447 = vmatprep.subr.bf16.mxu0 0
      %5448 = vmatpush1.bf16.msra.mxu0 0
      %5449 = vmatprep.subr.bf16.mxu0 0
      %5450 = vmatpush1.bf16.msra.mxu0 0
      %5451 = vmatprep.subr.bf16.mxu0 0
      %5452 = vmatpush1.bf16.msra.mxu0 0
      %5453 = vmatprep.subr.bf16.mxu0 0
      %5454 = vmatpush1.bf16.msra.mxu0 0
      %5455 = vmatprep.subr.bf16.mxu0 0
      %5456 = vmatpush1.bf16.msra.mxu0 0
      %5457 = vmatprep.subr.bf16.mxu0 0
      %5458 = vmatpush1.bf16.msra.mxu0 0
      %5459 = vmatprep.subr.bf16.mxu0 0
      %5460 = vmatpush1.bf16.msra.mxu0 0
      %5461 = vmatprep.subr.bf16.mxu0 0
      %5462 = vmatpush1.bf16.msra.mxu0 0
      %5463 = vmatprep.mubr.bf16.mxu0 0
      %5464 = vmatmul.mubr.bf16.gmra.mrb[0].mxu0 %v5381
      %v5465 = vpop.f32.mrb[0].mxu0
      %v5466 = vadd.f32 0.0, %v5465
      %v5467 = vpop.f32.mrb[0].mxu0
      %v5468 = vpop.f32.mrb[0].mxu0
      %v5469 = vadd.f32 0.0, %v5468
      %v5470 = vpop.f32.mrb[0].mxu0
      %5471 = vmatprep.mubr.bf16.mxu0 0
      %5472 = vmatmul.mubr.bf16.gmra.mrb[0].mxu0 %v5384
      %v5473 = vpop.f32.mrb[0].mxu0
      %v5474 = vadd.f32 0.0, %v5473
      %v5475 = vpop.f32.mrb[0].mxu0
      %v5476 = vpop.f32.mrb[0].mxu0
      %v5477 = vadd.f32 0.0, %v5476
      %v5478 = vpop.f32.mrb[0].mxu0
      %5479 = vmatprep.mubr.bf16.mxu0 0
      %5480 = vmatmul.mubr.bf16.gmra.mrb[0].mxu0 %v5387
      %v5481 = vpop.f32.mrb[0].mxu0
      %v5482 = vadd.f32 0.0, %v5481
      %v5483 = vpop.f32.mrb[0].mxu0
      %v5484 = vpop.f32.mrb[0].mxu0
      %v5485 = vadd.f32 0.0, %v5484
      %v5486 = vpop.f32.mrb[0].mxu0
      %5487 = vmatprep.mubr.bf16.mxu0 0
      %5488 = vmatmul.mubr.bf16.gmra.mrb[0].mxu0 %v5390
      %v5489 = vpop.f32.mrb[0].mxu0
      %v5490 = vadd.f32 0.0, %v5489
      %v5491 = vpop.f32.mrb[0].mxu0
      %v5492 = vpop.f32.mrb[0].mxu0
      %v5493 = vadd.f32 0.0, %v5492
      %v5494 = vpop.f32.mrb[0].mxu0
      %5495 = vmatprep.mubr.bf16.mxu0 0
      %5496 = vmatmul.mubr.bf16.gmra.mrb[0].mxu0 %v5393
      %v5497 = vpop.f32.mrb[0].mxu0
      %v5498 = vadd.f32 0.0, %v5497
      %v5499 = vpop.f32.mrb[0].mxu0
      %v5500 = vpop.f32.mrb[0].mxu0
      %v5501 = vadd.f32 0.0, %v5500
      %v5502 = vpop.f32.mrb[0].mxu0
      %5503 = vmatprep.mubr.bf16.mxu0 0
      %5504 = vmatmul.mubr.bf16.gmra.mrb[0].mxu0 %v5396
      %v5505 = vpop.f32.mrb[0].mxu0
      %v5506 = vadd.f32 0.0, %v5505
      %v5507 = vpop.f32.mrb[0].mxu0
      %v5508 = vpop.f32.mrb[0].mxu0
      %v5509 = vadd.f32 0.0, %v5508
      %v5510 = vpop.f32.mrb[0].mxu0
      %5511 = vmatprep.mubr.bf16.mxu0 0
      %5512 = vmatmul.mubr.bf16.gmra.mrb[0].mxu0 %v5399
      %v5513 = vpop.f32.mrb[0].mxu0
      %v5514 = vadd.f32 0.0, %v5513
      %v5515 = vpop.f32.mrb[0].mxu0
      %v5516 = vpop.f32.mrb[0].mxu0
      %v5517 = vadd.f32 0.0, %v5516
      %v5518 = vpop.f32.mrb[0].mxu0
      %5519 = vmatprep.mubr.bf16.mxu0 0
      %5520 = vmatmul.mubr.bf16.gmra.mrb[0].mxu0 %v5402
      %v5521 = vpop.f32.mrb[0].mxu0
      %v5522 = vadd.f32 0.0, %v5521
      %v5523 = vpop.f32.mrb[0].mxu0
      %v5524 = vpop.f32.mrb[0].mxu0
      %v5525 = vadd.f32 0.0, %v5524
      %v5526 = vpop.f32.mrb[0].mxu0
      %5527 = vmatprep.mubr.bf16.mxu0 0
      %5528 = vmatmul.mubr.bf16.gmra.mrb[0].mxu0 %v5405
      %v5529 = vpop.f32.mrb[0].mxu0
      %v5530 = vadd.f32 0.0, %v5529
      %v5531 = vpop.f32.mrb[0].mxu0
      %v5532 = vpop.f32.mrb[0].mxu0
      %v5533 = vadd.f32 0.0, %v5532
      %v5534 = vpop.f32.mrb[0].mxu0
      %5535 = vmatprep.mubr.bf16.mxu0 0
      %5536 = vmatmul.mubr.bf16.gmra.mrb[0].mxu0 %v5408
      %v5537 = vpop.f32.mrb[0].mxu0
      %v5538 = vadd.f32 0.0, %v5537
      %v5539 = vpop.f32.mrb[0].mxu0
      %v5540 = vpop.f32.mrb[0].mxu0
      %v5541 = vadd.f32 0.0, %v5540
      %v5542 = vpop.f32.mrb[0].mxu0
      %5543 = vmatprep.mubr.bf16.mxu0 0
      %5544 = vmatmul.mubr.bf16.gmra.mrb[0].mxu0 %v5411
      %v5545 = vpop.f32.mrb[0].mxu0
      %v5546 = vadd.f32 0.0, %v5545
      %v5547 = vpop.f32.mrb[0].mxu0
      %v5548 = vpop.f32.mrb[0].mxu0
      %v5549 = vadd.f32 0.0, %v5548
      %v5550 = vpop.f32.mrb[0].mxu0
      %5551 = vmatprep.mubr.bf16.mxu0 0
      %5552 = vmatmul.mubr.bf16.gmra.mrb[0].mxu0 %v5414
      %v5553 = vpop.f32.mrb[0].mxu0
      %v5554 = vadd.f32 0.0, %v5553
      %v5555 = vpop.f32.mrb[0].mxu0
      %v5556 = vpop.f32.mrb[0].mxu0
      %v5557 = vadd.f32 0.0, %v5556
      %v5558 = vpop.f32.mrb[0].mxu0
      %5559 = vmatprep.mubr.bf16.mxu0 0
      %5560 = vmatmul.mubr.bf16.gmra.mrb[0].mxu0 %v5417
      %v5561 = vpop.f32.mrb[0].mxu0
      %v5562 = vadd.f32 0.0, %v5561
      %v5563 = vpop.f32.mrb[0].mxu0
      %v5564 = vpop.f32.mrb[0].mxu0
      %v5565 = vadd.f32 0.0, %v5564
      %v5566 = vpop.f32.mrb[0].mxu0
      %5567 = vmatprep.mubr.bf16.mxu0 0
      %5568 = vmatmul.mubr.bf16.gmra.mrb[0].mxu0 %v5420
      %v5569 = vpop.f32.mrb[0].mxu0
      %v5570 = vadd.f32 0.0, %v5569
      %v5571 = vpop.f32.mrb[0].mxu0
      %v5572 = vpop.f32.mrb[0].mxu0
      %v5573 = vadd.f32 0.0, %v5572
      %v5574 = vpop.f32.mrb[0].mxu0
      %5575 = vmatprep.mubr.bf16.mxu0 0
      %5576 = vmatmul.mubr.bf16.gmra.mrb[0].mxu0 %v5423
      %v5577 = vpop.f32.mrb[0].mxu0
      %v5578 = vadd.f32 0.0, %v5577
      %v5579 = vpop.f32.mrb[0].mxu0
      %v5580 = vpop.f32.mrb[0].mxu0
      %v5581 = vadd.f32 0.0, %v5580
      %v5582 = vpop.f32.mrb[0].mxu0
      %5583 = vmatprep.mubr.bf16.mxu0 0
      %5584 = vmatmul.mubr.bf16.gmra.mrb[0].mxu0 %v5426
      %v5585 = vpop.f32.mrb[0].mxu0
      %v5586 = vadd.f32 0.0, %v5585
      %v5587 = vpop.f32.mrb[0].mxu0
      %v5588 = vpop.f32.mrb[0].mxu0
      %v5589 = vadd.f32 0.0, %v5588
      %v5590 = vpop.f32.mrb[0].mxu0
      %5591 = vdwg.mxu0
      %v5592 = vadd.f32 %v5122, %v5466
      %v5593 = vadd.f32 %v5123, %v5469
      %v5594 = vadd.f32 %v5124, %v5474
      %v5595 = vadd.f32 %v5125, %v5477
      %v5596 = vadd.f32 %v5126, %v5482
      %v5597 = vadd.f32 %v5127, %v5485
      %v5598 = vadd.f32 %v5128, %v5490
      %v5599 = vadd.f32 %v5129, %v5493
      %v5600 = vadd.f32 %v5130, %v5498
      %v5601 = vadd.f32 %v5131, %v5501
      %v5602 = vadd.f32 %v5132, %v5506
      %v5603 = vadd.f32 %v5133, %v5509
      %v5604 = vadd.f32 %v5134, %v5514
      %v5605 = vadd.f32 %v5135, %v5517
      %v5606 = vadd.f32 %v5136, %v5522
      %v5607 = vadd.f32 %v5137, %v5525
      %v5608 = vadd.f32 %v5138, %v5530
      %v5609 = vadd.f32 %v5139, %v5533
      %v5610 = vadd.f32 %v5140, %v5538
      %v5611 = vadd.f32 %v5141, %v5541
      %v5612 = vadd.f32 %v5142, %v5546
      %v5613 = vadd.f32 %v5143, %v5549
      %v5614 = vadd.f32 %v5144, %v5554
      %v5615 = vadd.f32 %v5145, %v5557
      %v5616 = vadd.f32 %v5146, %v5562
      %v5617 = vadd.f32 %v5147, %v5565
      %v5618 = vadd.f32 %v5148, %v5570
      %v5619 = vadd.f32 %v5149, %v5573
      %v5620 = vadd.f32 %v5150, %v5578
      %v5621 = vadd.f32 %v5151, %v5581
      %v5622 = vadd.f32 %v5152, %v5586
      %v5623 = vadd.f32 %v5153, %v5589
      %v5624 = vpack.c.bf16 %v5593, %v5592
      %v5625 = vpack.c.bf16 %v5595, %v5594
      %v5626 = vpack.c.bf16 %v5597, %v5596
      %v5627 = vpack.c.bf16 %v5599, %v5598
      %v5628 = vpack.c.bf16 %v5601, %v5600
      %v5629 = vpack.c.bf16 %v5603, %v5602
      %v5630 = vpack.c.bf16 %v5605, %v5604
      %v5631 = vpack.c.bf16 %v5607, %v5606
      %v5632 = vpack.c.bf16 %v5609, %v5608
      %v5633 = vpack.c.bf16 %v5611, %v5610
      %v5634 = vpack.c.bf16 %v5613, %v5612
      %v5635 = vpack.c.bf16 %v5615, %v5614
      %v5636 = vpack.c.bf16 %v5617, %v5616
      %v5637 = vpack.c.bf16 %v5619, %v5618
      %v5638 = vpack.c.bf16 %v5621, %v5620
      %v5639 = vpack.c.bf16 %v5623, %v5622
      %v5656 = vunpack.c.l.b16 %v5624
      %v5657 = vunpack.c.h.b16 %v5624
      %v5658 = vunpack.c.l.b16 %v5625
      %v5659 = vunpack.c.h.b16 %v5625
      %v5660 = vunpack.c.l.b16 %v5626
      %v5661 = vunpack.c.h.b16 %v5626
      %v5662 = vunpack.c.l.b16 %v5627
      %v5663 = vunpack.c.h.b16 %v5627
      %v5664 = vunpack.c.l.b16 %v5628
      %v5665 = vunpack.c.h.b16 %v5628
      %v5666 = vunpack.c.l.b16 %v5629
      %v5667 = vunpack.c.h.b16 %v5629
      %v5668 = vunpack.c.l.b16 %v5630
      %v5669 = vunpack.c.h.b16 %v5630
      %v5670 = vunpack.c.l.b16 %v5631
      %v5671 = vunpack.c.h.b16 %v5631
      %v5672 = vunpack.c.l.b16 %v5632
      %v5673 = vunpack.c.h.b16 %v5632
      %v5674 = vunpack.c.l.b16 %v5633
      %v5675 = vunpack.c.h.b16 %v5633
      %v5676 = vunpack.c.l.b16 %v5634
      %v5677 = vunpack.c.h.b16 %v5634
      %v5678 = vunpack.c.l.b16 %v5635
      %v5679 = vunpack.c.h.b16 %v5635
      %v5680 = vunpack.c.l.b16 %v5636
      %v5681 = vunpack.c.h.b16 %v5636
      %v5682 = vunpack.c.l.b16 %v5637
      %v5683 = vunpack.c.h.b16 %v5637
      %v5684 = vunpack.c.l.b16 %v5638
      %v5685 = vunpack.c.h.b16 %v5638
      %v5686 = vunpack.c.l.b16 %v5639
      %v5687 = vunpack.c.h.b16 %v5639
      %v5688 = vpack.c.b16 %v5656, %v5656
      %v5689 = vpack.c.b16 %v5657, %v5657
      %v5690 = vpack.c.b16 %v5658, %v5658
      %v5691 = vpack.c.b16 %v5659, %v5659
      %v5692 = vpack.c.b16 %v5660, %v5660
      %v5693 = vpack.c.b16 %v5661, %v5661
      %v5694 = vpack.c.b16 %v5662, %v5662
      %v5695 = vpack.c.b16 %v5663, %v5663
      %v5696 = vpack.c.b16 %v5664, %v5664
      %v5697 = vpack.c.b16 %v5665, %v5665
      %v5698 = vpack.c.b16 %v5666, %v5666
      %v5699 = vpack.c.b16 %v5667, %v5667
      %v5700 = vpack.c.b16 %v5668, %v5668
      %v5701 = vpack.c.b16 %v5669, %v5669
      %v5702 = vpack.c.b16 %v5670, %v5670
      %v5703 = vpack.c.b16 %v5671, %v5671
      %v5704 = vpack.c.b16 %v5672, %v5672
      %v5705 = vpack.c.b16 %v5673, %v5673
      %v5706 = vpack.c.b16 %v5674, %v5674
      %v5707 = vpack.c.b16 %v5675, %v5675
      %v5708 = vpack.c.b16 %v5676, %v5676
      %v5709 = vpack.c.b16 %v5677, %v5677
      %v5710 = vpack.c.b16 %v5678, %v5678
      %v5711 = vpack.c.b16 %v5679, %v5679
      %v5712 = vpack.c.b16 %v5680, %v5680
      %v5713 = vpack.c.b16 %v5681, %v5681
      %v5714 = vpack.c.b16 %v5682, %v5682
      %v5715 = vpack.c.b16 %v5683, %v5683
      %v5716 = vpack.c.b16 %v5684, %v5684
      %v5717 = vpack.c.b16 %v5685, %v5685
      %v5718 = vpack.c.b16 %v5686, %v5686
      %v5719 = vpack.c.b16 %v5687, %v5687
      %5752 = vst.msk [vmem:[%s231] sm:$0xf] %vm237, %v5688
      %5753 = vst.msk [vmem:[%s231 + $0x4] sm:$0xf] %vm237, %v5689
      %5754 = vst.msk [vmem:[%s231 + $0x8] sm:$0xf] %vm237, %v5690
      %5755 = vst.msk [vmem:[%s231 + $0xc] sm:$0xf] %vm237, %v5691
      %5756 = vst.msk [vmem:[%s231 + $0x10] sm:$0xf] %vm237, %v5692
      %5757 = vst.msk [vmem:[%s231 + $0x14] sm:$0xf] %vm237, %v5693
      %5758 = vst.msk [vmem:[%s231 + $0x18] sm:$0xf] %vm237, %v5694
      %5759 = vst.msk [vmem:[%s231 + $0x1c] sm:$0xf] %vm237, %v5695
      %5760 = vst.msk [vmem:[%s231 + $0x20] sm:$0xf] %vm237, %v5696
      %5761 = vst.msk [vmem:[%s231 + $0x24] sm:$0xf] %vm237, %v5697
      %5762 = vst.msk [vmem:[%s231 + $0x28] sm:$0xf] %vm237, %v5698
      %5763 = vst.msk [vmem:[%s231 + $0x2c] sm:$0xf] %vm237, %v5699
      %5764 = vst.msk [vmem:[%s231 + $0x30] sm:$0xf] %vm237, %v5700
      %5765 = vst.msk [vmem:[%s231 + $0x34] sm:$0xf] %vm237, %v5701
      %5766 = vst.msk [vmem:[%s231 + $0x38] sm:$0xf] %vm237, %v5702
      %5767 = vst.msk [vmem:[%s231 + $0x3c] sm:$0xf] %vm237, %v5703
      %5768 = vst.msk [vmem:[%s231 + $0x40] sm:$0xf] %vm237, %v5704
      %5769 = vst.msk [vmem:[%s231 + $0x44] sm:$0xf] %vm237, %v5705
      %5770 = vst.msk [vmem:[%s231 + $0x48] sm:$0xf] %vm237, %v5706
      %5771 = vst.msk [vmem:[%s231 + $0x4c] sm:$0xf] %vm237, %v5707
      %5772 = vst.msk [vmem:[%s231 + $0x50] sm:$0xf] %vm237, %v5708
      %5773 = vst.msk [vmem:[%s231 + $0x54] sm:$0xf] %vm237, %v5709
      %5774 = vst.msk [vmem:[%s231 + $0x58] sm:$0xf] %vm237, %v5710
      %5775 = vst.msk [vmem:[%s231 + $0x5c] sm:$0xf] %vm237, %v5711
      %5776 = vst.msk [vmem:[%s231 + $0x60] sm:$0xf] %vm237, %v5712
      %5777 = vst.msk [vmem:[%s231 + $0x64] sm:$0xf] %vm237, %v5713
      %5778 = vst.msk [vmem:[%s231 + $0x68] sm:$0xf] %vm237, %v5714
      %5779 = vst.msk [vmem:[%s231 + $0x6c] sm:$0xf] %vm237, %v5715
      %5780 = vst.msk [vmem:[%s231 + $0x70] sm:$0xf] %vm237, %v5716
      %5781 = vst.msk [vmem:[%s231 + $0x74] sm:$0xf] %vm237, %v5717
      %5782 = vst.msk [vmem:[%s231 + $0x78] sm:$0xf] %vm237, %v5718
      %5783 = vst.msk [vmem:[%s231 + $0x7c] sm:$0xf] %vm237, %v5719
      %v5784 = vsel %vm1552, %v5592, 0.0
      %v5785 = vsel %vm1552, %v5593, 0.0
      %v5786 = vadd.f32 %v5784, %v5785
      %v5787 = vsel %vm1552, %v5594, 0.0
      %v5788 = vadd.f32 %v5786, %v5787
      %v5789 = vsel %vm1552, %v5595, 0.0
      %v5790 = vadd.f32 %v5788, %v5789
      %v5791 = vsel %vm1552, %v5596, 0.0
      %v5792 = vadd.f32 %v5790, %v5791
      %v5793 = vsel %vm1552, %v5597, 0.0
      %v5794 = vadd.f32 %v5792, %v5793
      %v5795 = vsel %vm1552, %v5598, 0.0
      %v5796 = vadd.f32 %v5794, %v5795
      %v5797 = vsel %vm1552, %v5599, 0.0
      %v5798 = vadd.f32 %v5796, %v5797
      %v5799 = vsel %vm1552, %v5600, 0.0
      %v5800 = vadd.f32 %v5798, %v5799
      %v5801 = vsel %vm1552, %v5601, 0.0
      %v5802 = vadd.f32 %v5800, %v5801
      %v5803 = vsel %vm1552, %v5602, 0.0
      %v5804 = vadd.f32 %v5802, %v5803
      %v5805 = vsel %vm1552, %v5603, 0.0
      %v5806 = vadd.f32 %v5804, %v5805
      %v5807 = vsel %vm1552, %v5604, 0.0
      %v5808 = vadd.f32 %v5806, %v5807
      %v5809 = vsel %vm1552, %v5605, 0.0
      %v5810 = vadd.f32 %v5808, %v5809
      %v5811 = vsel %vm1552, %v5606, 0.0
      %v5812 = vadd.f32 %v5810, %v5811
      %v5813 = vsel %vm1552, %v5607, 0.0
      %v5814 = vadd.f32 %v5812, %v5813
      %v5815 = vsel %vm1552, %v5608, 0.0
      %v5816 = vadd.f32 %v5814, %v5815
      %v5817 = vsel %vm1552, %v5609, 0.0
      %v5818 = vadd.f32 %v5816, %v5817
      %v5819 = vsel %vm1552, %v5610, 0.0
      %v5820 = vadd.f32 %v5818, %v5819
      %v5821 = vsel %vm1552, %v5611, 0.0
      %v5822 = vadd.f32 %v5820, %v5821
      %v5823 = vsel %vm1552, %v5612, 0.0
      %v5824 = vadd.f32 %v5822, %v5823
      %v5825 = vsel %vm1552, %v5613, 0.0
      %v5826 = vadd.f32 %v5824, %v5825
      %v5827 = vsel %vm1552, %v5614, 0.0
      %v5828 = vadd.f32 %v5826, %v5827
      %v5829 = vsel %vm1552, %v5615, 0.0
      %v5830 = vadd.f32 %v5828, %v5829
      %v5831 = vsel %vm1552, %v5616, 0.0
      %v5832 = vadd.f32 %v5830, %v5831
      %v5833 = vsel %vm1552, %v5617, 0.0
      %v5834 = vadd.f32 %v5832, %v5833
      %v5835 = vsel %vm1552, %v5618, 0.0
      %v5836 = vadd.f32 %v5834, %v5835
      %v5837 = vsel %vm1552, %v5619, 0.0
      %v5838 = vadd.f32 %v5836, %v5837
      %v5839 = vsel %vm1552, %v5620, 0.0
      %v5840 = vadd.f32 %v5838, %v5839
      %v5841 = vsel %vm1552, %v5621, 0.0
      %v5842 = vadd.f32 %v5840, %v5841
      %v5843 = vsel %vm1552, %v5622, 0.0
      %v5844 = vadd.f32 %v5842, %v5843
      %v5845 = vsel %vm1552, %v5623, 0.0
      %v5846 = vadd.f32 %v5844, %v5845
      %v5847 = vrot.slane %v5846, 4
      %v5848 = vadd.f32 %v5846, %v5847
      %v5849 = vrot.slane %v5848, 2
      %v5850 = vadd.f32 %v5848, %v5849
      %v5851 = vrot.slane %v5850, 1
      %v5852 = vadd.f32 %v5850, %v5851
      %5853 = vst.msk [vmem:[%s235] sm:$0x1] %vm240, %v5852
      %v5854 = vmul.f32 %v5592, %v5592
      %v5855 = vmul.f32 %v5593, %v5593
      %v5856 = vmul.f32 %v5594, %v5594
      %v5857 = vmul.f32 %v5595, %v5595
      %v5858 = vmul.f32 %v5596, %v5596
      %v5859 = vmul.f32 %v5597, %v5597
      %v5860 = vmul.f32 %v5598, %v5598
      %v5861 = vmul.f32 %v5599, %v5599
      %v5862 = vmul.f32 %v5600, %v5600
      %v5863 = vmul.f32 %v5601, %v5601
      %v5864 = vmul.f32 %v5602, %v5602
      %v5865 = vmul.f32 %v5603, %v5603
      %v5866 = vmul.f32 %v5604, %v5604
      %v5867 = vmul.f32 %v5605, %v5605
      %v5868 = vmul.f32 %v5606, %v5606
      %v5869 = vmul.f32 %v5607, %v5607
      %v5870 = vmul.f32 %v5608, %v5608
      %v5871 = vmul.f32 %v5609, %v5609
      %v5872 = vmul.f32 %v5610, %v5610
      %v5873 = vmul.f32 %v5611, %v5611
      %v5874 = vmul.f32 %v5612, %v5612
      %v5875 = vmul.f32 %v5613, %v5613
      %v5876 = vmul.f32 %v5614, %v5614
      %v5877 = vmul.f32 %v5615, %v5615
      %v5878 = vmul.f32 %v5616, %v5616
      %v5879 = vmul.f32 %v5617, %v5617
      %v5880 = vmul.f32 %v5618, %v5618
      %v5881 = vmul.f32 %v5619, %v5619
      %v5882 = vmul.f32 %v5620, %v5620
      %v5883 = vmul.f32 %v5621, %v5621
      %v5884 = vmul.f32 %v5622, %v5622
      %v5885 = vmul.f32 %v5623, %v5623
      %v5886 = vsel %vm1552, %v5854, 0.0
      %v5887 = vsel %vm1552, %v5855, 0.0
      %v5888 = vadd.f32 %v5886, %v5887
      %v5889 = vsel %vm1552, %v5856, 0.0
      %v5890 = vadd.f32 %v5888, %v5889
      %v5891 = vsel %vm1552, %v5857, 0.0
      %v5892 = vadd.f32 %v5890, %v5891
      %v5893 = vsel %vm1552, %v5858, 0.0
      %v5894 = vadd.f32 %v5892, %v5893
      %v5895 = vsel %vm1552, %v5859, 0.0
      %v5896 = vadd.f32 %v5894, %v5895
      %v5897 = vsel %vm1552, %v5860, 0.0
      %v5898 = vadd.f32 %v5896, %v5897
      %v5899 = vsel %vm1552, %v5861, 0.0
      %v5900 = vadd.f32 %v5898, %v5899
      %v5901 = vsel %vm1552, %v5862, 0.0
      %v5902 = vadd.f32 %v5900, %v5901
      %v5903 = vsel %vm1552, %v5863, 0.0
      %v5904 = vadd.f32 %v5902, %v5903
      %v5905 = vsel %vm1552, %v5864, 0.0
      %v5906 = vadd.f32 %v5904, %v5905
      %v5907 = vsel %vm1552, %v5865, 0.0
      %v5908 = vadd.f32 %v5906, %v5907
      %v5909 = vsel %vm1552, %v5866, 0.0
      %v5910 = vadd.f32 %v5908, %v5909
      %v5911 = vsel %vm1552, %v5867, 0.0
      %v5912 = vadd.f32 %v5910, %v5911
      %v5913 = vsel %vm1552, %v5868, 0.0
      %v5914 = vadd.f32 %v5912, %v5913
      %v5915 = vsel %vm1552, %v5869, 0.0
      %v5916 = vadd.f32 %v5914, %v5915
      %v5917 = vsel %vm1552, %v5870, 0.0
      %v5918 = vadd.f32 %v5916, %v5917
      %v5919 = vsel %vm1552, %v5871, 0.0
      %v5920 = vadd.f32 %v5918, %v5919
      %v5921 = vsel %vm1552, %v5872, 0.0
      %v5922 = vadd.f32 %v5920, %v5921
      %v5923 = vsel %vm1552, %v5873, 0.0
      %v5924 = vadd.f32 %v5922, %v5923
      %v5925 = vsel %vm1552, %v5874, 0.0
      %v5926 = vadd.f32 %v5924, %v5925
      %v5927 = vsel %vm1552, %v5875, 0.0
      %v5928 = vadd.f32 %v5926, %v5927
      %v5929 = vsel %vm1552, %v5876, 0.0
      %v5930 = vadd.f32 %v5928, %v5929
      %v5931 = vsel %vm1552, %v5877, 0.0
      %v5932 = vadd.f32 %v5930, %v5931
      %v5933 = vsel %vm1552, %v5878, 0.0
      %v5934 = vadd.f32 %v5932, %v5933
      %v5935 = vsel %vm1552, %v5879, 0.0
      %v5936 = vadd.f32 %v5934, %v5935
      %v5937 = vsel %vm1552, %v5880, 0.0
      %v5938 = vadd.f32 %v5936, %v5937
      %v5939 = vsel %vm1552, %v5881, 0.0
      %v5940 = vadd.f32 %v5938, %v5939
      %v5941 = vsel %vm1552, %v5882, 0.0
      %v5942 = vadd.f32 %v5940, %v5941
      %v5943 = vsel %vm1552, %v5883, 0.0
      %v5944 = vadd.f32 %v5942, %v5943
      %v5945 = vsel %vm1552, %v5884, 0.0
      %v5946 = vadd.f32 %v5944, %v5945
      %v5947 = vsel %vm1552, %v5885, 0.0
      %v5948 = vadd.f32 %v5946, %v5947
      %v5949 = vrot.slane %v5948, 4
      %v5950 = vadd.f32 %v5948, %v5949
      %v5951 = vrot.slane %v5950, 2
      %v5952 = vadd.f32 %v5950, %v5951
      %v5953 = vrot.slane %v5952, 1
      %v5954 = vadd.f32 %v5952, %v5953
      %5955 = vst.msk [vmem:[%s235 + $0x1] sm:$0x1] %vm240, %v5954
      %p5956 = scmp.lt.s32.totalorder %s17, 1
      %s5957 = scalar_select %p5956, %s17, 1
      %s5958 = smul.addr %s5957, 32
      %s5959 = smul.addr %s5958, 4
      %s5960 = scalar_lea.vmem %s4, %s5959
      %p5961 = scmp.lt.s32.totalorder %s17, 1
      %s5962 = scalar_select %p5961, %s17, 1
      %s5963 = smul.addr %s5962, 2
      %s5964 = scalar_lea.vmem %s5, %s5963
      // Predicated region
      $region37: #{basic_res_block_2d.4} parent=35 // pred_check
        %p5965 = pneg %p124
      $region38: #{basic_res_block_2d.4} parent=35 // pred_check_branch
        %5967 = sbr.rel (%p5965) target = $region40
      $region39: #{basic_res_block_2d.4} parent=35 // pred_region
        _
      $region40: #{basic_res_block_2d.4} parent=35 // pred_fallthru
        _
      // Predicated region
      $region41: #{basic_res_block_2d.4} parent=35 // pred_check
        %p5968 = pneg %p150
      $region42: #{basic_res_block_2d.4} parent=35 // pred_check_branch
        %5970 = sbr.rel (%p5968) target = $region44
      $region43: #{basic_res_block_2d.4} parent=35 // pred_region
        _
      $region44: #{basic_res_block_2d.4} parent=35 // pred_fallthru
        _
    $region36: #{basic_res_block_2d.4} parent=5 // pred_fallthru
      _
    %p5971 = scmp.le.s32.totalorder 2, %s12
    // Predicated region
    $region45: #{basic_res_block_2d.4} parent=5 // pred_check
      %p5972 = pneg %p5971
    $region46: #{basic_res_block_2d.4} parent=5 // pred_check_branch
      %5974 = sbr.rel (%p5972) target = $region48
    $region47: #{basic_res_block_2d.4} parent=5 // pred_region
      %s5975 = ssub.s32 %s12, 2
      // Predicated region
      $region49: #{basic_res_block_2d.4} parent=47 // pred_check
        %p5976 = pneg %p130
      $region50: #{basic_res_block_2d.4} parent=47 // pred_check_branch
        %5978 = sbr.rel (%p5976) target = $region52
      $region51: #{basic_res_block_2d.4} parent=47 // pred_region
        %p5979 = scmp.lt.s32.totalorder %s18, 1
        %s5980 = scalar_select %p5979, %s18, 1
        %s5981 = smul.addr %s5980, 32
        %s5982 = smul.addr %s5981, 4
        %s5983 = scalar_lea.vmem %s4, %s5982
      $region52: #{basic_res_block_2d.4} parent=47 // pred_fallthru
        _
      // Predicated region
      $region53: #{basic_res_block_2d.4} parent=47 // pred_check
        %p5984 = pneg %p156
      $region54: #{basic_res_block_2d.4} parent=47 // pred_check_branch
        %5986 = sbr.rel (%p5984) target = $region56
      $region55: #{basic_res_block_2d.4} parent=47 // pred_region
        %p5987 = scmp.lt.s32.totalorder %s18, 1
        %s5988 = scalar_select %p5987, %s18, 1
        %s5989 = smul.addr %s5988, 2
        %s5990 = scalar_lea.vmem %s5, %s5989
      $region56: #{basic_res_block_2d.4} parent=47 // pred_fallthru
        _
    $region48: #{basic_res_block_2d.4} parent=5 // pred_fallthru
      _
  $region6: #{basic_res_block_2d.4} parent=0 // loop_footer
    %s16 = sadd.s32 1, %s12
  $region7: #{basic_res_block_2d.4} parent=0 // loop_footer_branch
    %11 = sbr.rel target = $region3
  $region8: #{basic_res_block_2d.4} parent=0 // loop_exit
    _

</llo_original>
